<compile_context>
chip_gen: v7x
topology: tpu7x:2x2x1
jax: 0.10.0
libtpu: 0.0.40
codegen_flags: <defaults>
</compile_context>

<pallas_src>
import functools
import math

import jax
import jax.numpy as jnp
from jax.experimental import pallas as pl
from jax.experimental.pallas import tpu as pltpu


def _layernorm(x, gamma, beta, eps=1e-5):
    # x: (T, D) f32, gamma/beta: (1, D) f32; PyTorch LayerNorm (biased variance).
    mu = jnp.mean(x, axis=-1, keepdims=True)
    xc = x - mu
    var = jnp.mean(xc * xc, axis=-1, keepdims=True)
    return xc * jax.lax.rsqrt(var + eps) * gamma + beta


def encoder_layer_kernel(n_heads, block_k, n_k,
                         x_ref, k_ref, v_ref,
                         wq_ref, bq_ref, wo_ref, bo_ref,
                         g1_ref, be1_ref,
                         w1_ref, b1_ref, w2_ref, b2_ref,
                         g2_ref, be2_ref,
                         o_ref):
    Tq, D = x_ref.shape
    d_k = D // n_heads

    x_q = x_ref[...]                                   # (Tq, D) f32 residual
    xq_b = x_q.astype(jnp.bfloat16)

    # Q projection; 1/sqrt(d_k) already folded into wq/bq on the host.
    q = jnp.dot(xq_b, wq_ref[...], preferred_element_type=jnp.float32) + bq_ref[...]
    q3 = q.reshape(Tq, n_heads, d_k).astype(jnp.bfloat16)   # (Tq, H, d_k)

    # ---- key-tiled online softmax (f32 stats, bf16 MXU operands) ----
    m0 = jnp.full((n_heads, Tq, 1), -jnp.inf, jnp.float32)
    l0 = jnp.zeros((n_heads, Tq, 1), jnp.float32)
    a0 = jnp.zeros((n_heads, Tq, d_k), jnp.float32)

    def kv_step(kt, carry):
        m, l, acc = carry
        start = kt * block_k
        if not isinstance(start, int):
            start = pl.multiple_of(start, block_k)
        kb = k_ref[pl.ds(start, block_k), :].reshape(block_k, n_heads, d_k)
        vb = v_ref[pl.ds(start, block_k), :].reshape(block_k, n_heads, d_k)
        s = jnp.einsum('qhd,khd->hqk', q3, kb,
                       preferred_element_type=jnp.float32)          # (H, Tq, bk)
        m_new = jnp.maximum(m, jnp.max(s, axis=-1, keepdims=True))
        alpha = jnp.exp(m - m_new)                                   # (H, Tq, 1)
        p = jnp.exp(s - m_new)                                       # f32 exp (EUP)
        l_new = alpha * l + jnp.sum(p, axis=-1, keepdims=True)
        pv = jnp.einsum('hqk,khd->hqd', p.astype(jnp.bfloat16), vb,
                        preferred_element_type=jnp.float32)          # (H, Tq, d_k)
        acc_new = alpha * acc + pv
        return m_new, l_new, acc_new

    if n_k == 1:
        _, l, acc = kv_step(0, (m0, l0, a0))
    else:
        _, l, acc = jax.lax.fori_loop(0, n_k, kv_step, (m0, l0, a0))

    # Exact reciprocal: (H, Tq, 1) is tiny, addresses the approx-recip accuracy concern.
    ctx = acc * pl.reciprocal(l, approx=False)
    # Single head-merge relayout per query tile (kept out of the key loop).
    ctx = jnp.swapaxes(ctx, 0, 1).reshape(Tq, D)

    attn = jnp.dot(ctx.astype(jnp.bfloat16), wo_ref[...],
                   preferred_element_type=jnp.float32) + bo_ref[...]

    # dropout1 -> identity (eval);  residual + LayerNorm in f32.
    h = _layernorm(x_q + attn, g1_ref[...], be1_ref[...])

    # Position-wise FFN (bf16 operands, f32 accumulation).
    f = jnp.dot(h.astype(jnp.bfloat16), w1_ref[...],
                preferred_element_type=jnp.float32) + b1_ref[...]
    f = jnp.maximum(f, 0.0)
    y = jnp.dot(f.astype(jnp.bfloat16), w2_ref[...],
                preferred_element_type=jnp.float32) + b2_ref[...]

    # dropout2 -> identity (eval);  residual + LayerNorm in f32.
    out = _layernorm(h + y, g2_ref[...], be2_ref[...])
    o_ref[...] = out.astype(o_ref.dtype)


def encoder_layer(x, params, n_heads, *, block_t=None, block_k=None):
    B, T, D = x.shape
    d_ff = params["w1"].shape[1]
    assert D % n_heads == 0, "d_model must be divisible by n_heads"
    d_k = D // n_heads

    # For real shapes prefer: D, d_ff multiples of 128 (lane-dense stores),
    # block_t in 256-512, block_k a multiple of 16 (bf16 sublane packing).
    if block_t is None:
        block_t = min(T, 256)
    if block_k is None:
        block_k = min(T, 512)
    assert T % block_t == 0 and T % block_k == 0
    n_t = T // block_t
    n_k = T // block_k

    # Fold 1/sqrt(d_k) into the Q projection parameters (free at prep time).
    scale = 1.0 / math.sqrt(d_k)
    wq_s = (params["wq"].astype(jnp.float32) * scale).astype(params["wq"].dtype)
    bq_s = (params["bq"] * scale).astype(params["bq"].dtype)

    # Hoisted K/V projections: plain XLA bf16 GEMMs, full sequence per batch.
    xb = x.astype(jnp.bfloat16)

    def _proj(w, b):
        return (jnp.einsum('btd,df->btf', xb, w,
                           preferred_element_type=jnp.float32) + b).astype(jnp.bfloat16)

    k = _proj(params["wk"], params["bk"])
    v = _proj(params["wv"], params["bv"])

    # Advisory cost estimate for the pallas_call (q/o proj + attention + FFN).
    cost = pl.CostEstimate(
        flops=int(B * T * 4 * (D * D + T * D + D * d_ff)),
        transcendentals=int(B * n_heads * T * T),
        bytes_accessed=int(8 * B * T * D + 4 * B * T * D
                           + 2 * (2 * D * D + 2 * D * d_ff)),
    )

    def _run(single_buffer_weights):
        def wspec(r, c):
            # Whole-array block, constant index over the grid.
            if single_buffer_weights:
                return pl.BlockSpec((r, c), lambda b, t: (0, 0),
                                    pipeline_mode=pl.Buffered(1))
            return pl.BlockSpec((r, c), lambda b, t: (0, 0))

        in_specs = [
            # x: query tile (Q projection + residual)
            pl.BlockSpec((pl.Squeezed(), block_t, D), lambda b, t: (b, t, 0)),
            # K, V: full sequence of batch b (bf16)
            pl.BlockSpec((pl.Squeezed(), T, D), lambda b, t: (b, 0, 0)),
            pl.BlockSpec((pl.Squeezed(), T, D), lambda b, t: (b, 0, 0)),
            wspec(D, D), wspec(1, D),        # Wq (scaled), bq (scaled)
            wspec(D, D), wspec(1, D),        # Wo, bo
            wspec(1, D), wspec(1, D),        # norm1 gamma, beta
            wspec(D, d_ff), wspec(1, d_ff),  # FFN W1, b1
            wspec(d_ff, D), wspec(1, D),     # FFN W2, b2
            wspec(1, D), wspec(1, D),        # norm2 gamma, beta
        ]

        kernel = functools.partial(encoder_layer_kernel, n_heads, block_k, n_k)
        return pl.pallas_call(
            kernel,
            out_shape=jax.ShapeDtypeStruct((B, T, D), x.dtype),
            grid_spec=pltpu.PrefetchScalarGridSpec(
                num_scalar_prefetch=0,
                grid=(B, n_t),
                in_specs=in_specs,
                out_specs=pl.BlockSpec((pl.Squeezed(), block_t, D),
                                       lambda b, t: (b, t, 0)),
            ),
            compiler_params=pltpu.CompilerParams(
                # No cross-iteration scratch carry -> both axes parallel (v7x megacore).
                dimension_semantics=("parallel", "parallel"),
                # Explicit budget, safe on v5e/v6e/v7x; re-derive for real shapes.
                vmem_limit_bytes=48 * 1024 * 1024),
            cost_estimate=cost,
        )(x, k, v, wq_s, bq_s, params["wo"], params["bo"],
          params["g1"], params["be1"],
          params["w1"], params["b1"], params["w2"], params["b2"],
          params["g2"], params["be2"])

    try:
        # Single-buffer the constant-index weights (halves weight VMEM).
        return _run(True)
    except Exception:
        # Fallback for JAX versions without BlockSpec pipeline_mode support.
        return _run(False)


def make_params(key, d_model, d_ff):
    ks = jax.random.split(key, 12)
    s_m = 1.0 / math.sqrt(d_model)
    s_f = 1.0 / math.sqrt(d_ff)

    def lin(k, fan_in, fan_out, scale):
        # weights stored transposed: (in, out); bf16 MXU operands
        w = jax.random.uniform(k, (fan_in, fan_out), jnp.float32,
                               minval=-scale, maxval=scale)
        return w.astype(jnp.bfloat16)

    def bias(k, n, scale):
        # biases / LN params stay f32 (added after f32 accumulation)
        return jax.random.uniform(k, (1, n), jnp.float32, minval=-scale, maxval=scale)

    return dict(
        wq=lin(ks[0], d_model, d_model, s_m), bq=bias(ks[1], d_model, s_m),
        wk=lin(ks[2], d_model, d_model, s_m), bk=bias(ks[3], d_model, s_m),
        wv=lin(ks[4], d_model, d_model, s_m), bv=bias(ks[5], d_model, s_m),
        wo=lin(ks[6], d_model, d_model, s_m), bo=bias(ks[7], d_model, s_m),
        g1=jnp.ones((1, d_model), jnp.float32),
        be1=jnp.zeros((1, d_model), jnp.float32),
        w1=lin(ks[8], d_model, d_ff, s_m), b1=bias(ks[9], d_ff, s_m),
        w2=lin(ks[10], d_ff, d_model, s_f), b2=bias(ks[11], d_model, s_f),
        g2=jnp.ones((1, d_model), jnp.float32),
        be2=jnp.zeros((1, d_model), jnp.float32),
    )


def encoder_layer_reference(x, params, n_heads):
    """Pure-JAX (XLA) reference mirroring the kernel's mixed precision."""
    B, T, D = x.shape
    d_k = D // n_heads
    xb = x.astype(jnp.bfloat16)

    def mm(a, w, b):
        return jnp.einsum('btd,df->btf', a, w,
                          preferred_element_type=jnp.float32) + b

    q = mm(xb, params["wq"], params["bq"]) * (1.0 / math.sqrt(d_k))
    k = mm(xb, params["wk"], params["bk"])
    v = mm(xb, params["wv"], params["bv"])
    qh = q.reshape(B, T, n_heads, d_k).astype(jnp.bfloat16)
    kh = k.reshape(B, T, n_heads, d_k).astype(jnp.bfloat16)
    vh = v.reshape(B, T, n_heads, d_k).astype(jnp.bfloat16)

    s = jnp.einsum('bqhd,bkhd->bhqk', qh, kh, preferred_element_type=jnp.float32)
    m = s.max(-1, keepdims=True)
    e = jnp.exp(s - m)
    l = e.sum(-1, keepdims=True)
    ctx = jnp.einsum('bhqk,bkhd->bqhd', e.astype(jnp.bfloat16), vh,
                     preferred_element_type=jnp.float32)
    ctx = (ctx / jnp.swapaxes(l, 1, 2)).reshape(B, T, D)
    attn = mm(ctx.astype(jnp.bfloat16), params["wo"], params["bo"])

    def ln(u, g, b):
        mu = u.mean(-1, keepdims=True)
        var = ((u - mu) ** 2).mean(-1, keepdims=True)
        return (u - mu) * jax.lax.rsqrt(var + 1e-5) * g + b

    h = ln(x + attn, params["g1"], params["be1"])
    f = jnp.maximum(mm(h.astype(jnp.bfloat16), params["w1"], params["b1"]), 0.0)
    y = mm(f.astype(jnp.bfloat16), params["w2"], params["b2"])
    return ln(h + y, params["g2"], params["be2"])


if __name__ == "__main__":
    # Small demo shapes (h=4, d_model=32, d_ff=64); block_k=16 exercises the
    # online-softmax key loop, block_t=16 exercises query tiling.
    B, T, D, H, DFF = 2, 32, 32, 4, 64
    key = jax.random.PRNGKey(0)
    kx, kp = jax.random.split(key)
    x = jax.random.normal(kx, (B, T, D), jnp.float32)
    params = make_params(kp, D, DFF)

    y = encoder_layer(x, params, n_heads=H, block_t=16, block_k=16)
    jax.block_until_ready(y)
    assert y.shape == (B, T, D)

    y_ref = encoder_layer_reference(x, params, n_heads=H)
    err = float(jnp.max(jnp.abs(y - y_ref)))
    assert err < 5e-2, f"max abs error vs reference too large: {err}"
    print("KERNEL_OK")
</pallas_src>

<mosaic_0001>
module attributes {stable_mosaic.version = 11 : i64} {
  func.func @encoder_layer_kernel(%arg0: i32, %arg1: i32, %arg2: memref<1x16x32xf32, #tpu.memory_space<vmem>>, %arg3: memref<1x32x32xbf16, #tpu.memory_space<vmem>>, %arg4: memref<1x32x32xbf16, #tpu.memory_space<vmem>>, %arg5: memref<32x32xbf16, #tpu.memory_space<vmem>>, %arg6: memref<1x32xf32, #tpu.memory_space<vmem>>, %arg7: memref<32x32xbf16, #tpu.memory_space<vmem>>, %arg8: memref<1x32xf32, #tpu.memory_space<vmem>>, %arg9: memref<1x32xf32, #tpu.memory_space<vmem>>, %arg10: memref<1x32xf32, #tpu.memory_space<vmem>>, %arg11: memref<32x64xbf16, #tpu.memory_space<vmem>>, %arg12: memref<1x64xf32, #tpu.memory_space<vmem>>, %arg13: memref<64x32xbf16, #tpu.memory_space<vmem>>, %arg14: memref<1x32xf32, #tpu.memory_space<vmem>>, %arg15: memref<1x32xf32, #tpu.memory_space<vmem>>, %arg16: memref<1x32xf32, #tpu.memory_space<vmem>>, %arg17: memref<1x16x32xf32, #tpu.memory_space<vmem>>) attributes {dimension_semantics = [#tpu.dimension_semantics<parallel>, #tpu.dimension_semantics<parallel>], iteration_bounds = array<i64: 2, 2>, scalar_prefetch = 0 : i64, scratch_operands = 0 : i64, tpu.core_type = #tpu.core_type<tc>, window_params = [{transform_indices = @transform_0, window_bounds = array<i64: 1, 16, 32>}, {transform_indices = @transform_1, window_bounds = array<i64: 1, 32, 32>}, {transform_indices = @transform_2, window_bounds = array<i64: 1, 32, 32>}, {pipeline_mode = #tpu.pipeline_mode<synchronous>, transform_indices = @transform_3, window_bounds = array<i64: 32, 32>}, {pipeline_mode = #tpu.pipeline_mode<synchronous>, transform_indices = @transform_4, window_bounds = array<i64: 1, 32>}, {pipeline_mode = #tpu.pipeline_mode<synchronous>, transform_indices = @transform_5, window_bounds = array<i64: 32, 32>}, {pipeline_mode = #tpu.pipeline_mode<synchronous>, transform_indices = @transform_6, window_bounds = array<i64: 1, 32>}, {pipeline_mode = #tpu.pipeline_mode<synchronous>, transform_indices = @transform_7, window_bounds = array<i64: 1, 32>}, {pipeline_mode = #tpu.pipeline_mode<synchronous>, transform_indices = @transform_8, window_bounds = array<i64: 1, 32>}, {pipeline_mode = #tpu.pipeline_mode<synchronous>, transform_indices = @transform_9, window_bounds = array<i64: 32, 64>}, {pipeline_mode = #tpu.pipeline_mode<synchronous>, transform_indices = @transform_10, window_bounds = array<i64: 1, 64>}, {pipeline_mode = #tpu.pipeline_mode<synchronous>, transform_indices = @transform_11, window_bounds = array<i64: 64, 32>}, {pipeline_mode = #tpu.pipeline_mode<synchronous>, transform_indices = @transform_12, window_bounds = array<i64: 1, 32>}, {pipeline_mode = #tpu.pipeline_mode<synchronous>, transform_indices = @transform_13, window_bounds = array<i64: 1, 32>}, {pipeline_mode = #tpu.pipeline_mode<synchronous>, transform_indices = @transform_14, window_bounds = array<i64: 1, 32>}, {transform_indices = @transform_15, window_bounds = array<i64: 1, 16, 32>}]} {
    %c0 = arith.constant 0 : index
    %c0_0 = arith.constant 0 : index
    %c0_1 = arith.constant 0 : index
    %0 = vector.load %arg2[%c0, %c0_0, %c0_1] : memref<1x16x32xf32, #tpu.memory_space<vmem>>, vector<1x16x32xf32>
    %1 = vector.shape_cast %0 : vector<1x16x32xf32> to vector<16x32xf32>
    %2 = arith.truncf %1 : vector<16x32xf32> to vector<16x32xbf16>
    %c0_2 = arith.constant 0 : index
    %c0_3 = arith.constant 0 : index
    %3 = vector.load %arg5[%c0_2, %c0_3] : memref<32x32xbf16, #tpu.memory_space<vmem>>, vector<32x32xbf16>
    %cst = arith.constant dense<0.000000e+00> : vector<16x32xf32>
    %4 = tpu.matmul %2, %3, %cst {dimension_numbers = #tpu.dot_dimension_numbers<[1], [0], [0], [1], [0, 0, 1, 1], [], []>} : vector<16x32xbf16>, vector<32x32xbf16>, vector<16x32xf32> -> vector<16x32xf32>
    %c0_4 = arith.constant 0 : index
    %c0_5 = arith.constant 0 : index
    %5 = vector.load %arg6[%c0_4, %c0_5] : memref<1x32xf32, #tpu.memory_space<vmem>>, vector<1x32xf32>
    %6 = vector.broadcast %5 : vector<1x32xf32> to vector<16x32xf32>
    %7 = arith.addf %4, %6 : vector<16x32xf32>
    %8 = vector.shape_cast %7 : vector<16x32xf32> to vector<16x4x8xf32>
    %9 = arith.truncf %8 : vector<16x4x8xf32> to vector<16x4x8xbf16>
    %cst_6 = arith.constant 0xFF800000 : f32
    %10 = vector.broadcast %cst_6 : f32 to vector<4x16x1xf32>
    %cst_7 = arith.constant 0.000000e+00 : f32
    %11 = vector.broadcast %cst_7 : f32 to vector<4x16x1xf32>
    %cst_8 = arith.constant 0.000000e+00 : f32
    %12 = vector.broadcast %cst_8 : f32 to vector<4x16x8xf32>
    %c0_i32 = arith.constant 0 : i32
    %c2_i32 = arith.constant 2 : i32
    %13 = arith.addi %c0_i32, %c2_i32 : i32
    %c1_i32 = arith.constant 1 : i32
    %14:3 = scf.for %arg18 = %c0_i32 to %13 step %c1_i32 iter_args(%arg19 = %10, %arg20 = %11, %arg21 = %12) -> (vector<4x16x1xf32>, vector<4x16x1xf32>, vector<4x16x8xf32>)  : i32 {
      %c16_i32 = arith.constant 16 : i32
      %89 = arith.muli %arg18, %c16_i32 : i32
      %90 = tpu.assume_multiple %89, 16 : i32
      %c0_47 = arith.constant 0 : index
      %91 = arith.index_cast %90 : i32 to index
      %c0_48 = arith.constant 0 : index
      %92 = vector.load %arg3[%c0_47, %91, %c0_48] : memref<1x32x32xbf16, #tpu.memory_space<vmem>>, vector<1x16x32xbf16>
      %93 = vector.shape_cast %92 : vector<1x16x32xbf16> to vector<16x32xbf16>
      %94 = vector.shape_cast %93 : vector<16x32xbf16> to vector<16x4x8xbf16>
      %c0_49 = arith.constant 0 : index
      %95 = arith.index_cast %90 : i32 to index
      %c0_50 = arith.constant 0 : index
      %96 = vector.load %arg4[%c0_49, %95, %c0_50] : memref<1x32x32xbf16, #tpu.memory_space<vmem>>, vector<1x16x32xbf16>
      %97 = vector.shape_cast %96 : vector<1x16x32xbf16> to vector<16x32xbf16>
      %98 = vector.shape_cast %97 : vector<16x32xbf16> to vector<16x4x8xbf16>
      "tpu.trace_start"() <{level = 10 : i32, message = "qhd,khd->hqk"}> : () -> ()
      %cst_51 = arith.constant dense<0.000000e+00> : vector<4x16x16xf32>
      %99 = tpu.matmul %9, %94, %cst_51 {dimension_numbers = #tpu.dot_dimension_numbers<[2], [2], [0], [0], [0, 1, 0, 0, 1, 0], [1], [1]>} : vector<16x4x8xbf16>, vector<16x4x8xbf16>, vector<4x16x16xf32> -> vector<4x16x16xf32>
      "tpu.trace_stop"() : () -> ()
      %cst_52 = arith.constant dense<0xFF800000> : vector<4x16xf32>
      %100 = vector.multi_reduction <maximumf>, %99, %cst_52 [2] : vector<4x16x16xf32> to vector<4x16xf32>
      %101 = vector.shape_cast %100 : vector<4x16xf32> to vector<4x16x1xf32>
      %102 = arith.maximumf %arg19, %101 : vector<4x16x1xf32>
      %103 = arith.subf %arg19, %102 : vector<4x16x1xf32>
      %104 = math.exp %103 : vector<4x16x1xf32>
      %105 = vector.broadcast %102 : vector<4x16x1xf32> to vector<4x16x16xf32>
      %106 = arith.subf %99, %105 : vector<4x16x16xf32>
      %107 = math.exp %106 : vector<4x16x16xf32>
      %108 = arith.mulf %104, %arg20 : vector<4x16x1xf32>
      %cst_53 = arith.constant dense<0.000000e+00> : vector<4x16xf32>
      %109 = vector.multi_reduction <add>, %107, %cst_53 [2] : vector<4x16x16xf32> to vector<4x16xf32>
      %110 = vector.shape_cast %109 : vector<4x16xf32> to vector<4x16x1xf32>
      %111 = arith.addf %108, %110 : vector<4x16x1xf32>
      %112 = arith.truncf %107 : vector<4x16x16xf32> to vector<4x16x16xbf16>
      "tpu.trace_start"() <{level = 10 : i32, message = "hqk,khd->hqd"}> : () -> ()
      %cst_54 = arith.constant dense<0.000000e+00> : vector<4x16x8xf32>
      %113 = tpu.matmul %112, %98, %cst_54 {dimension_numbers = #tpu.dot_dimension_numbers<[2], [0], [1], [2], [0, 0, 0, 1, 1, 2], [0], [1]>} : vector<4x16x16xbf16>, vector<16x4x8xbf16>, vector<4x16x8xf32> -> vector<4x16x8xf32>
      "tpu.trace_stop"() : () -> ()
      %114 = vector.broadcast %104 : vector<4x16x1xf32> to vector<4x16x8xf32>
      %115 = arith.mulf %114, %arg21 : vector<4x16x8xf32>
      %116 = arith.addf %115, %113 : vector<4x16x8xf32>
      scf.yield %102, %111, %116 : vector<4x16x1xf32>, vector<4x16x1xf32>, vector<4x16x8xf32>
    }
    %c2_i32_9 = arith.constant 2 : i32
    %15 = tpu.reciprocal %14#1 : vector<4x16x1xf32> -> vector<4x16x1xf32>
    %16 = vector.broadcast %15 : vector<4x16x1xf32> to vector<4x16x8xf32>
    %17 = arith.mulf %14#2, %16 : vector<4x16x8xf32>
    %18 = tpu.transpose %17, [1, 0, 2] : vector<4x16x8xf32> -> vector<16x4x8xf32>
    %19 = vector.shape_cast %18 : vector<16x4x8xf32> to vector<16x32xf32>
    %20 = arith.truncf %19 : vector<16x32xf32> to vector<16x32xbf16>
    %c0_10 = arith.constant 0 : index
    %c0_11 = arith.constant 0 : index
    %21 = vector.load %arg7[%c0_10, %c0_11] : memref<32x32xbf16, #tpu.memory_space<vmem>>, vector<32x32xbf16>
    %cst_12 = arith.constant dense<0.000000e+00> : vector<16x32xf32>
    %22 = tpu.matmul %20, %21, %cst_12 {dimension_numbers = #tpu.dot_dimension_numbers<[1], [0], [0], [1], [0, 0, 1, 1], [], []>} : vector<16x32xbf16>, vector<32x32xbf16>, vector<16x32xf32> -> vector<16x32xf32>
    %c0_13 = arith.constant 0 : index
    %c0_14 = arith.constant 0 : index
    %23 = vector.load %arg8[%c0_13, %c0_14] : memref<1x32xf32, #tpu.memory_space<vmem>>, vector<1x32xf32>
    %24 = vector.broadcast %23 : vector<1x32xf32> to vector<16x32xf32>
    %25 = arith.addf %22, %24 : vector<16x32xf32>
    %26 = arith.addf %1, %25 : vector<16x32xf32>
    %c0_15 = arith.constant 0 : index
    %c0_16 = arith.constant 0 : index
    %27 = vector.load %arg9[%c0_15, %c0_16] : memref<1x32xf32, #tpu.memory_space<vmem>>, vector<1x32xf32>
    %c0_17 = arith.constant 0 : index
    %c0_18 = arith.constant 0 : index
    %28 = vector.load %arg10[%c0_17, %c0_18] : memref<1x32xf32, #tpu.memory_space<vmem>>, vector<1x32xf32>
    %cst_19 = arith.constant dense<0.000000e+00> : vector<16xf32>
    %29 = vector.multi_reduction <add>, %26, %cst_19 [1] : vector<16x32xf32> to vector<16xf32>
    %30 = vector.shape_cast %29 : vector<16xf32> to vector<16x1xf32>
    %cst_20 = arith.constant 3.200000e+01 : f32
    %31 = vector.broadcast %cst_20 : f32 to vector<16x1xf32>
    %32 = arith.divf %30, %31 : vector<16x1xf32>
    %33 = vector.broadcast %32 : vector<16x1xf32> to vector<16x32xf32>
    %34 = arith.subf %26, %33 : vector<16x32xf32>
    %35 = arith.mulf %34, %34 : vector<16x32xf32>
    %cst_21 = arith.constant dense<0.000000e+00> : vector<16xf32>
    %36 = vector.multi_reduction <add>, %35, %cst_21 [1] : vector<16x32xf32> to vector<16xf32>
    %37 = vector.shape_cast %36 : vector<16xf32> to vector<16x1xf32>
    %cst_22 = arith.constant 3.200000e+01 : f32
    %38 = vector.broadcast %cst_22 : f32 to vector<16x1xf32>
    %39 = arith.divf %37, %38 : vector<16x1xf32>
    %cst_23 = arith.constant 9.99999974E-6 : f32
    %40 = vector.broadcast %cst_23 : f32 to vector<16x1xf32>
    %41 = arith.addf %39, %40 : vector<16x1xf32>
    %42 = math.rsqrt %41 : vector<16x1xf32>
    %43 = vector.broadcast %42 : vector<16x1xf32> to vector<16x32xf32>
    %44 = arith.mulf %34, %43 : vector<16x32xf32>
    %45 = vector.broadcast %27 : vector<1x32xf32> to vector<16x32xf32>
    %46 = arith.mulf %44, %45 : vector<16x32xf32>
    %47 = vector.broadcast %28 : vector<1x32xf32> to vector<16x32xf32>
    %48 = arith.addf %46, %47 : vector<16x32xf32>
    %49 = arith.truncf %48 : vector<16x32xf32> to vector<16x32xbf16>
    %c0_24 = arith.constant 0 : index
    %c0_25 = arith.constant 0 : index
    %50 = vector.load %arg11[%c0_24, %c0_25] : memref<32x64xbf16, #tpu.memory_space<vmem>>, vector<32x64xbf16>
    %cst_26 = arith.constant dense<0.000000e+00> : vector<16x64xf32>
    %51 = tpu.matmul %49, %50, %cst_26 {dimension_numbers = #tpu.dot_dimension_numbers<[1], [0], [0], [1], [0, 0, 1, 1], [], []>} : vector<16x32xbf16>, vector<32x64xbf16>, vector<16x64xf32> -> vector<16x64xf32>
    %c0_27 = arith.constant 0 : index
    %c0_28 = arith.constant 0 : index
    %52 = vector.load %arg12[%c0_27, %c0_28] : memref<1x64xf32, #tpu.memory_space<vmem>>, vector<1x64xf32>
    %53 = vector.broadcast %52 : vector<1x64xf32> to vector<16x64xf32>
    %54 = arith.addf %51, %53 : vector<16x64xf32>
    %cst_29 = arith.constant 0.000000e+00 : f32
    %55 = vector.broadcast %cst_29 : f32 to vector<16x64xf32>
    %56 = arith.maximumf %54, %55 : vector<16x64xf32>
    %57 = arith.truncf %56 : vector<16x64xf32> to vector<16x64xbf16>
    %c0_30 = arith.constant 0 : index
    %c0_31 = arith.constant 0 : index
    %58 = vector.load %arg13[%c0_30, %c0_31] : memref<64x32xbf16, #tpu.memory_space<vmem>>, vector<64x32xbf16>
    %cst_32 = arith.constant dense<0.000000e+00> : vector<16x32xf32>
    %59 = tpu.matmul %57, %58, %cst_32 {dimension_numbers = #tpu.dot_dimension_numbers<[1], [0], [0], [1], [0, 0, 1, 1], [], []>} : vector<16x64xbf16>, vector<64x32xbf16>, vector<16x32xf32> -> vector<16x32xf32>
    %c0_33 = arith.constant 0 : index
    %c0_34 = arith.constant 0 : index
    %60 = vector.load %arg14[%c0_33, %c0_34] : memref<1x32xf32, #tpu.memory_space<vmem>>, vector<1x32xf32>
    %61 = vector.broadcast %60 : vector<1x32xf32> to vector<16x32xf32>
    %62 = arith.addf %59, %61 : vector<16x32xf32>
    %63 = arith.addf %48, %62 : vector<16x32xf32>
    %c0_35 = arith.constant 0 : index
    %c0_36 = arith.constant 0 : index
    %64 = vector.load %arg15[%c0_35, %c0_36] : memref<1x32xf32, #tpu.memory_space<vmem>>, vector<1x32xf32>
    %c0_37 = arith.constant 0 : index
    %c0_38 = arith.constant 0 : index
    %65 = vector.load %arg16[%c0_37, %c0_38] : memref<1x32xf32, #tpu.memory_space<vmem>>, vector<1x32xf32>
    %cst_39 = arith.constant dense<0.000000e+00> : vector<16xf32>
    %66 = vector.multi_reduction <add>, %63, %cst_39 [1] : vector<16x32xf32> to vector<16xf32>
    %67 = vector.shape_cast %66 : vector<16xf32> to vector<16x1xf32>
    %cst_40 = arith.constant 3.200000e+01 : f32
    %68 = vector.broadcast %cst_40 : f32 to vector<16x1xf32>
    %69 = arith.divf %67, %68 : vector<16x1xf32>
    %70 = vector.broadcast %69 : vector<16x1xf32> to vector<16x32xf32>
    %71 = arith.subf %63, %70 : vector<16x32xf32>
    %72 = arith.mulf %71, %71 : vector<16x32xf32>
    %cst_41 = arith.constant dense<0.000000e+00> : vector<16xf32>
    %73 = vector.multi_reduction <add>, %72, %cst_41 [1] : vector<16x32xf32> to vector<16xf32>
    %74 = vector.shape_cast %73 : vector<16xf32> to vector<16x1xf32>
    %cst_42 = arith.constant 3.200000e+01 : f32
    %75 = vector.broadcast %cst_42 : f32 to vector<16x1xf32>
    %76 = arith.divf %74, %75 : vector<16x1xf32>
    %cst_43 = arith.constant 9.99999974E-6 : f32
    %77 = vector.broadcast %cst_43 : f32 to vector<16x1xf32>
    %78 = arith.addf %76, %77 : vector<16x1xf32>
    %79 = math.rsqrt %78 : vector<16x1xf32>
    %80 = vector.broadcast %79 : vector<16x1xf32> to vector<16x32xf32>
    %81 = arith.mulf %71, %80 : vector<16x32xf32>
    %82 = vector.broadcast %64 : vector<1x32xf32> to vector<16x32xf32>
    %83 = arith.mulf %81, %82 : vector<16x32xf32>
    %84 = vector.broadcast %65 : vector<1x32xf32> to vector<16x32xf32>
    %85 = arith.addf %83, %84 : vector<16x32xf32>
    %c0_44 = arith.constant 0 : index
    %c0_45 = arith.constant 0 : index
    %c0_46 = arith.constant 0 : index
    %86 = vector.load %arg17[%c0_44, %c0_45, %c0_46] : memref<1x16x32xf32, #tpu.memory_space<vmem>>, vector<1x16x32xf32>
    %87 = vector.shape_cast %86 : vector<1x16x32xf32> to vector<16x32xf32>
    %88 = vector.shape_cast %85 : vector<16x32xf32> to vector<1x16x32xf32>
    tpu.vector_store %arg17[%c0_44, %c0_45, %c0_46], %88 {strides = array<i32>} : memref<1x16x32xf32, #tpu.memory_space<vmem>>, vector<1x16x32xf32>,
    return
  }
  func.func @transform_0(%arg0: i32, %arg1: i32) -> (i32, i32, i32) {
    %c0_i32 = arith.constant 0 : i32
    %c0_i32_0 = arith.constant 0 : i32
    return %arg0, %arg1, %c0_i32 : i32, i32, i32
  }
  func.func @transform_1(%arg0: i32, %arg1: i32) -> (i32, i32, i32) {
    %c0_i32 = arith.constant 0 : i32
    %c0_i32_0 = arith.constant 0 : i32
    %c0_i32_1 = arith.constant 0 : i32
    return %arg0, %c0_i32, %c0_i32_0 : i32, i32, i32
  }
  func.func @transform_2(%arg0: i32, %arg1: i32) -> (i32, i32, i32) {
    %c0_i32 = arith.constant 0 : i32
    %c0_i32_0 = arith.constant 0 : i32
    %c0_i32_1 = arith.constant 0 : i32
    return %arg0, %c0_i32, %c0_i32_0 : i32, i32, i32
  }
  func.func @transform_3(%arg0: i32, %arg1: i32) -> (i32, i32) {
    %c0_i32 = arith.constant 0 : i32
    %c0_i32_0 = arith.constant 0 : i32
    %c0_i32_1 = arith.constant 0 : i32
    return %c0_i32, %c0_i32_0 : i32, i32
  }
  func.func @transform_4(%arg0: i32, %arg1: i32) -> (i32, i32) {
    %c0_i32 = arith.constant 0 : i32
    %c0_i32_0 = arith.constant 0 : i32
    %c0_i32_1 = arith.constant 0 : i32
    return %c0_i32, %c0_i32_0 : i32, i32
  }
  func.func @transform_5(%arg0: i32, %arg1: i32) -> (i32, i32) {
    %c0_i32 = arith.constant 0 : i32
    %c0_i32_0 = arith.constant 0 : i32
    %c0_i32_1 = arith.constant 0 : i32
    return %c0_i32, %c0_i32_0 : i32, i32
  }
  func.func @transform_6(%arg0: i32, %arg1: i32) -> (i32, i32) {
    %c0_i32 = arith.constant 0 : i32
    %c0_i32_0 = arith.constant 0 : i32
    %c0_i32_1 = arith.constant 0 : i32
    return %c0_i32, %c0_i32_0 : i32, i32
  }
  func.func @transform_7(%arg0: i32, %arg1: i32) -> (i32, i32) {
    %c0_i32 = arith.constant 0 : i32
    %c0_i32_0 = arith.constant 0 : i32
    %c0_i32_1 = arith.constant 0 : i32
    return %c0_i32, %c0_i32_0 : i32, i32
  }
  func.func @transform_8(%arg0: i32, %arg1: i32) -> (i32, i32) {
    %c0_i32 = arith.constant 0 : i32
    %c0_i32_0 = arith.constant 0 : i32
    %c0_i32_1 = arith.constant 0 : i32
    return %c0_i32, %c0_i32_0 : i32, i32
  }
  func.func @transform_9(%arg0: i32, %arg1: i32) -> (i32, i32) {
    %c0_i32 = arith.constant 0 : i32
    %c0_i32_0 = arith.constant 0 : i32
    %c0_i32_1 = arith.constant 0 : i32
    return %c0_i32, %c0_i32_0 : i32, i32
  }
  func.func @transform_10(%arg0: i32, %arg1: i32) -> (i32, i32) {
    %c0_i32 = arith.constant 0 : i32
    %c0_i32_0 = arith.constant 0 : i32
    %c0_i32_1 = arith.constant 0 : i32
    return %c0_i32, %c0_i32_0 : i32, i32
  }
  func.func @transform_11(%arg0: i32, %arg1: i32) -> (i32, i32) {
    %c0_i32 = arith.constant 0 : i32
    %c0_i32_0 = arith.constant 0 : i32
    %c0_i32_1 = arith.constant 0 : i32
    return %c0_i32, %c0_i32_0 : i32, i32
  }
  func.func @transform_12(%arg0: i32, %arg1: i32) -> (i32, i32) {
    %c0_i32 = arith.constant 0 : i32
    %c0_i32_0 = arith.constant 0 : i32
    %c0_i32_1 = arith.constant 0 : i32
    return %c0_i32, %c0_i32_0 : i32, i32
  }
  func.func @transform_13(%arg0: i32, %arg1: i32) -> (i32, i32) {
    %c0_i32 = arith.constant 0 : i32
    %c0_i32_0 = arith.constant 0 : i32
    %c0_i32_1 = arith.constant 0 : i32
    return %c0_i32, %c0_i32_0 : i32, i32
  }
  func.func @transform_14(%arg0: i32, %arg1: i32) -> (i32, i32) {
    %c0_i32 = arith.constant 0 : i32
    %c0_i32_0 = arith.constant 0 : i32
    %c0_i32_1 = arith.constant 0 : i32
    return %c0_i32, %c0_i32_0 : i32, i32
  }
  func.func @transform_15(%arg0: i32, %arg1: i32) -> (i32, i32, i32) {
    %c0_i32 = arith.constant 0 : i32
    %c0_i32_0 = arith.constant 0 : i32
    return %arg0, %arg1, %c0_i32 : i32, i32, i32
  }
}

module attributes {stable_mosaic.version = 11 : i64} {
  func.func @encoder_layer_kernel(%arg0: i32, %arg1: i32, %arg2: memref<1x16x32xf32, #tpu.memory_space<vmem>>, %arg3: memref<1x32x32xbf16, #tpu.memory_space<vmem>>, %arg4: memref<1x32x32xbf16, #tpu.memory_space<vmem>>, %arg5: memref<32x32xbf16, #tpu.memory_space<vmem>>, %arg6: memref<1x32xf32, #tpu.memory_space<vmem>>, %arg7: memref<32x32xbf16, #tpu.memory_space<vmem>>, %arg8: memref<1x32xf32, #tpu.memory_space<vmem>>, %arg9: memref<1x32xf32, #tpu.memory_space<vmem>>, %arg10: memref<1x32xf32, #tpu.memory_space<vmem>>, %arg11: memref<32x64xbf16, #tpu.memory_space<vmem>>, %arg12: memref<1x64xf32, #tpu.memory_space<vmem>>, %arg13: memref<64x32xbf16, #tpu.memory_space<vmem>>, %arg14: memref<1x32xf32, #tpu.memory_space<vmem>>, %arg15: memref<1x32xf32, #tpu.memory_space<vmem>>, %arg16: memref<1x32xf32, #tpu.memory_space<vmem>>, %arg17: memref<1x16x32xf32, #tpu.memory_space<vmem>>) attributes {dimension_semantics = [#tpu.dimension_semantics<parallel>, #tpu.dimension_semantics<parallel>], iteration_bounds = array<i64: 2, 2>, scalar_prefetch = 0 : i64, scratch_operands = 0 : i64, tpu.core_type = #tpu.core_type<tc>, window_params = [{transform_indices = @transform_0, window_bounds = array<i64: 1, 16, 32>}, {transform_indices = @transform_1, window_bounds = array<i64: 1, 32, 32>}, {transform_indices = @transform_2, window_bounds = array<i64: 1, 32, 32>}, {pipeline_mode = #tpu.pipeline_mode<synchronous>, transform_indices = @transform_3, window_bounds = array<i64: 32, 32>}, {pipeline_mode = #tpu.pipeline_mode<synchronous>, transform_indices = @transform_4, window_bounds = array<i64: 1, 32>}, {pipeline_mode = #tpu.pipeline_mode<synchronous>, transform_indices = @transform_5, window_bounds = array<i64: 32, 32>}, {pipeline_mode = #tpu.pipeline_mode<synchronous>, transform_indices = @transform_6, window_bounds = array<i64: 1, 32>}, {pipeline_mode = #tpu.pipeline_mode<synchronous>, transform_indices = @transform_7, window_bounds = array<i64: 1, 32>}, {pipeline_mode = #tpu.pipeline_mode<synchronous>, transform_indices = @transform_8, window_bounds = array<i64: 1, 32>}, {pipeline_mode = #tpu.pipeline_mode<synchronous>, transform_indices = @transform_9, window_bounds = array<i64: 32, 64>}, {pipeline_mode = #tpu.pipeline_mode<synchronous>, transform_indices = @transform_10, window_bounds = array<i64: 1, 64>}, {pipeline_mode = #tpu.pipeline_mode<synchronous>, transform_indices = @transform_11, window_bounds = array<i64: 64, 32>}, {pipeline_mode = #tpu.pipeline_mode<synchronous>, transform_indices = @transform_12, window_bounds = array<i64: 1, 32>}, {pipeline_mode = #tpu.pipeline_mode<synchronous>, transform_indices = @transform_13, window_bounds = array<i64: 1, 32>}, {pipeline_mode = #tpu.pipeline_mode<synchronous>, transform_indices = @transform_14, window_bounds = array<i64: 1, 32>}, {transform_indices = @transform_15, window_bounds = array<i64: 1, 16, 32>}]} {
    %c0 = arith.constant 0 : index
    %c0_0 = arith.constant 0 : index
    %c0_1 = arith.constant 0 : index
    %0 = vector.load %arg2[%c0, %c0_0, %c0_1] : memref<1x16x32xf32, #tpu.memory_space<vmem>>, vector<1x16x32xf32>
    %1 = vector.shape_cast %0 : vector<1x16x32xf32> to vector<16x32xf32>
    %2 = arith.truncf %1 : vector<16x32xf32> to vector<16x32xbf16>
    %c0_2 = arith.constant 0 : index
    %c0_3 = arith.constant 0 : index
    %3 = vector.load %arg5[%c0_2, %c0_3] : memref<32x32xbf16, #tpu.memory_space<vmem>>, vector<32x32xbf16>
    %cst = arith.constant dense<0.000000e+00> : vector<16x32xf32>
    %4 = tpu.matmul %2, %3, %cst {dimension_numbers = #tpu.dot_dimension_numbers<[1], [0], [0], [1], [0, 0, 1, 1], [], []>} : vector<16x32xbf16>, vector<32x32xbf16>, vector<16x32xf32> -> vector<16x32xf32>
    %c0_4 = arith.constant 0 : index
    %c0_5 = arith.constant 0 : index
    %5 = vector.load %arg6[%c0_4, %c0_5] : memref<1x32xf32, #tpu.memory_space<vmem>>, vector<1x32xf32>
    %6 = vector.broadcast %5 : vector<1x32xf32> to vector<16x32xf32>
    %7 = arith.addf %4, %6 : vector<16x32xf32>
    %8 = vector.shape_cast %7 : vector<16x32xf32> to vector<16x4x8xf32>
    %9 = arith.truncf %8 : vector<16x4x8xf32> to vector<16x4x8xbf16>
    %cst_6 = arith.constant 0xFF800000 : f32
    %10 = vector.broadcast %cst_6 : f32 to vector<4x16x1xf32>
    %cst_7 = arith.constant 0.000000e+00 : f32
    %11 = vector.broadcast %cst_7 : f32 to vector<4x16x1xf32>
    %cst_8 = arith.constant 0.000000e+00 : f32
    %12 = vector.broadcast %cst_8 : f32 to vector<4x16x8xf32>
    %c0_i32 = arith.constant 0 : i32
    %c2_i32 = arith.constant 2 : i32
    %13 = arith.addi %c0_i32, %c2_i32 : i32
    %c1_i32 = arith.constant 1 : i32
    %14:3 = scf.for %arg18 = %c0_i32 to %13 step %c1_i32 iter_args(%arg19 = %10, %arg20 = %11, %arg21 = %12) -> (vector<4x16x1xf32>, vector<4x16x1xf32>, vector<4x16x8xf32>)  : i32 {
      %c16_i32 = arith.constant 16 : i32
      %89 = arith.muli %arg18, %c16_i32 : i32
      %90 = tpu.assume_multiple %89, 16 : i32
      %c0_47 = arith.constant 0 : index
      %91 = arith.index_cast %90 : i32 to index
      %c0_48 = arith.constant 0 : index
      %92 = vector.load %arg3[%c0_47, %91, %c0_48] : memref<1x32x32xbf16, #tpu.memory_space<vmem>>, vector<1x16x32xbf16>
      %93 = vector.shape_cast %92 : vector<1x16x32xbf16> to vector<16x32xbf16>
      %94 = vector.shape_cast %93 : vector<16x32xbf16> to vector<16x4x8xbf16>
      %c0_49 = arith.constant 0 : index
      %95 = arith.index_cast %90 : i32 to index
      %c0_50 = arith.constant 0 : index
      %96 = vector.load %arg4[%c0_49, %95, %c0_50] : memref<1x32x32xbf16, #tpu.memory_space<vmem>>, vector<1x16x32xbf16>
      %97 = vector.shape_cast %96 : vector<1x16x32xbf16> to vector<16x32xbf16>
      %98 = vector.shape_cast %97 : vector<16x32xbf16> to vector<16x4x8xbf16>
      "tpu.trace_start"() <{level = 10 : i32, message = "qhd,khd->hqk"}> : () -> ()
      %cst_51 = arith.constant dense<0.000000e+00> : vector<4x16x16xf32>
      %99 = tpu.matmul %9, %94, %cst_51 {dimension_numbers = #tpu.dot_dimension_numbers<[2], [2], [0], [0], [0, 1, 0, 0, 1, 0], [1], [1]>} : vector<16x4x8xbf16>, vector<16x4x8xbf16>, vector<4x16x16xf32> -> vector<4x16x16xf32>
      "tpu.trace_stop"() : () -> ()
      %cst_52 = arith.constant dense<0xFF800000> : vector<4x16xf32>
      %100 = vector.multi_reduction <maximumf>, %99, %cst_52 [2] : vector<4x16x16xf32> to vector<4x16xf32>
      %101 = vector.shape_cast %100 : vector<4x16xf32> to vector<4x16x1xf32>
      %102 = arith.maximumf %arg19, %101 : vector<4x16x1xf32>
      %103 = arith.subf %arg19, %102 : vector<4x16x1xf32>
      %104 = math.exp %103 : vector<4x16x1xf32>
      %105 = vector.broadcast %102 : vector<4x16x1xf32> to vector<4x16x16xf32>
      %106 = arith.subf %99, %105 : vector<4x16x16xf32>
      %107 = math.exp %106 : vector<4x16x16xf32>
      %108 = arith.mulf %104, %arg20 : vector<4x16x1xf32>
      %cst_53 = arith.constant dense<0.000000e+00> : vector<4x16xf32>
      %109 = vector.multi_reduction <add>, %107, %cst_53 [2] : vector<4x16x16xf32> to vector<4x16xf32>
      %110 = vector.shape_cast %109 : vector<4x16xf32> to vector<4x16x1xf32>
      %111 = arith.addf %108, %110 : vector<4x16x1xf32>
      %112 = arith.truncf %107 : vector<4x16x16xf32> to vector<4x16x16xbf16>
      "tpu.trace_start"() <{level = 10 : i32, message = "hqk,khd->hqd"}> : () -> ()
      %cst_54 = arith.constant dense<0.000000e+00> : vector<4x16x8xf32>
      %113 = tpu.matmul %112, %98, %cst_54 {dimension_numbers = #tpu.dot_dimension_numbers<[2], [0], [1], [2], [0, 0, 0, 1, 1, 2], [0], [1]>} : vector<4x16x16xbf16>, vector<16x4x8xbf16>, vector<4x16x8xf32> -> vector<4x16x8xf32>
      "tpu.trace_stop"() : () -> ()
      %114 = vector.broadcast %104 : vector<4x16x1xf32> to vector<4x16x8xf32>
      %115 = arith.mulf %114, %arg21 : vector<4x16x8xf32>
      %116 = arith.addf %115, %113 : vector<4x16x8xf32>
      scf.yield %102, %111, %116 : vector<4x16x1xf32>, vector<4x16x1xf32>, vector<4x16x8xf32>
    }
    %c2_i32_9 = arith.constant 2 : i32
    %15 = tpu.reciprocal %14#1 : vector<4x16x1xf32> -> vector<4x16x1xf32>
    %16 = vector.broadcast %15 : vector<4x16x1xf32> to vector<4x16x8xf32>
    %17 = arith.mulf %14#2, %16 : vector<4x16x8xf32>
    %18 = tpu.transpose %17, [1, 0, 2] : vector<4x16x8xf32> -> vector<16x4x8xf32>
    %19 = vector.shape_cast %18 : vector<16x4x8xf32> to vector<16x32xf32>
    %20 = arith.truncf %19 : vector<16x32xf32> to vector<16x32xbf16>
    %c0_10 = arith.constant 0 : index
    %c0_11 = arith.constant 0 : index
    %21 = vector.load %arg7[%c0_10, %c0_11] : memref<32x32xbf16, #tpu.memory_space<vmem>>, vector<32x32xbf16>
    %cst_12 = arith.constant dense<0.000000e+00> : vector<16x32xf32>
    %22 = tpu.matmul %20, %21, %cst_12 {dimension_numbers = #tpu.dot_dimension_numbers<[1], [0], [0], [1], [0, 0, 1, 1], [], []>} : vector<16x32xbf16>, vector<32x32xbf16>, vector<16x32xf32> -> vector<16x32xf32>
    %c0_13 = arith.constant 0 : index
    %c0_14 = arith.constant 0 : index
    %23 = vector.load %arg8[%c0_13, %c0_14] : memref<1x32xf32, #tpu.memory_space<vmem>>, vector<1x32xf32>
    %24 = vector.broadcast %23 : vector<1x32xf32> to vector<16x32xf32>
    %25 = arith.addf %22, %24 : vector<16x32xf32>
    %26 = arith.addf %1, %25 : vector<16x32xf32>
    %c0_15 = arith.constant 0 : index
    %c0_16 = arith.constant 0 : index
    %27 = vector.load %arg9[%c0_15, %c0_16] : memref<1x32xf32, #tpu.memory_space<vmem>>, vector<1x32xf32>
    %c0_17 = arith.constant 0 : index
    %c0_18 = arith.constant 0 : index
    %28 = vector.load %arg10[%c0_17, %c0_18] : memref<1x32xf32, #tpu.memory_space<vmem>>, vector<1x32xf32>
    %cst_19 = arith.constant dense<0.000000e+00> : vector<16xf32>
    %29 = vector.multi_reduction <add>, %26, %cst_19 [1] : vector<16x32xf32> to vector<16xf32>
    %30 = vector.shape_cast %29 : vector<16xf32> to vector<16x1xf32>
    %cst_20 = arith.constant 3.200000e+01 : f32
    %31 = vector.broadcast %cst_20 : f32 to vector<16x1xf32>
    %32 = arith.divf %30, %31 : vector<16x1xf32>
    %33 = vector.broadcast %32 : vector<16x1xf32> to vector<16x32xf32>
    %34 = arith.subf %26, %33 : vector<16x32xf32>
    %35 = arith.mulf %34, %34 : vector<16x32xf32>
    %cst_21 = arith.constant dense<0.000000e+00> : vector<16xf32>
    %36 = vector.multi_reduction <add>, %35, %cst_21 [1] : vector<16x32xf32> to vector<16xf32>
    %37 = vector.shape_cast %36 : vector<16xf32> to vector<16x1xf32>
    %cst_22 = arith.constant 3.200000e+01 : f32
    %38 = vector.broadcast %cst_22 : f32 to vector<16x1xf32>
    %39 = arith.divf %37, %38 : vector<16x1xf32>
    %cst_23 = arith.constant 9.99999974E-6 : f32
    %40 = vector.broadcast %cst_23 : f32 to vector<16x1xf32>
    %41 = arith.addf %39, %40 : vector<16x1xf32>
    %42 = math.rsqrt %41 : vector<16x1xf32>
    %43 = vector.broadcast %42 : vector<16x1xf32> to vector<16x32xf32>
    %44 = arith.mulf %34, %43 : vector<16x32xf32>
    %45 = vector.broadcast %27 : vector<1x32xf32> to vector<16x32xf32>
    %46 = arith.mulf %44, %45 : vector<16x32xf32>
    %47 = vector.broadcast %28 : vector<1x32xf32> to vector<16x32xf32>
    %48 = arith.addf %46, %47 : vector<16x32xf32>
    %49 = arith.truncf %48 : vector<16x32xf32> to vector<16x32xbf16>
    %c0_24 = arith.constant 0 : index
    %c0_25 = arith.constant 0 : index
    %50 = vector.load %arg11[%c0_24, %c0_25] : memref<32x64xbf16, #tpu.memory_space<vmem>>, vector<32x64xbf16>
    %cst_26 = arith.constant dense<0.000000e+00> : vector<16x64xf32>
    %51 = tpu.matmul %49, %50, %cst_26 {dimension_numbers = #tpu.dot_dimension_numbers<[1], [0], [0], [1], [0, 0, 1, 1], [], []>} : vector<16x32xbf16>, vector<32x64xbf16>, vector<16x64xf32> -> vector<16x64xf32>
    %c0_27 = arith.constant 0 : index
    %c0_28 = arith.constant 0 : index
    %52 = vector.load %arg12[%c0_27, %c0_28] : memref<1x64xf32, #tpu.memory_space<vmem>>, vector<1x64xf32>
    %53 = vector.broadcast %52 : vector<1x64xf32> to vector<16x64xf32>
    %54 = arith.addf %51, %53 : vector<16x64xf32>
    %cst_29 = arith.constant 0.000000e+00 : f32
    %55 = vector.broadcast %cst_29 : f32 to vector<16x64xf32>
    %56 = arith.maximumf %54, %55 : vector<16x64xf32>
    %57 = arith.truncf %56 : vector<16x64xf32> to vector<16x64xbf16>
    %c0_30 = arith.constant 0 : index
    %c0_31 = arith.constant 0 : index
    %58 = vector.load %arg13[%c0_30, %c0_31] : memref<64x32xbf16, #tpu.memory_space<vmem>>, vector<64x32xbf16>
    %cst_32 = arith.constant dense<0.000000e+00> : vector<16x32xf32>
    %59 = tpu.matmul %57, %58, %cst_32 {dimension_numbers = #tpu.dot_dimension_numbers<[1], [0], [0], [1], [0, 0, 1, 1], [], []>} : vector<16x64xbf16>, vector<64x32xbf16>, vector<16x32xf32> -> vector<16x32xf32>
    %c0_33 = arith.constant 0 : index
    %c0_34 = arith.constant 0 : index
    %60 = vector.load %arg14[%c0_33, %c0_34] : memref<1x32xf32, #tpu.memory_space<vmem>>, vector<1x32xf32>
    %61 = vector.broadcast %60 : vector<1x32xf32> to vector<16x32xf32>
    %62 = arith.addf %59, %61 : vector<16x32xf32>
    %63 = arith.addf %48, %62 : vector<16x32xf32>
    %c0_35 = arith.constant 0 : index
    %c0_36 = arith.constant 0 : index
    %64 = vector.load %arg15[%c0_35, %c0_36] : memref<1x32xf32, #tpu.memory_space<vmem>>, vector<1x32xf32>
    %c0_37 = arith.constant 0 : index
    %c0_38 = arith.constant 0 : index
    %65 = vector.load %arg16[%c0_37, %c0_38] : memref<1x32xf32, #tpu.memory_space<vmem>>, vector<1x32xf32>
    %cst_39 = arith.constant dense<0.000000e+00> : vector<16xf32>
    %66 = vector.multi_reduction <add>, %63, %cst_39 [1] : vector<16x32xf32> to vector<16xf32>
    %67 = vector.shape_cast %66 : vector<16xf32> to vector<16x1xf32>
    %cst_40 = arith.constant 3.200000e+01 : f32
    %68 = vector.broadcast %cst_40 : f32 to vector<16x1xf32>
    %69 = arith.divf %67, %68 : vector<16x1xf32>
    %70 = vector.broadcast %69 : vector<16x1xf32> to vector<16x32xf32>
    %71 = arith.subf %63, %70 : vector<16x32xf32>
    %72 = arith.mulf %71, %71 : vector<16x32xf32>
    %cst_41 = arith.constant dense<0.000000e+00> : vector<16xf32>
    %73 = vector.multi_reduction <add>, %72, %cst_41 [1] : vector<16x32xf32> to vector<16xf32>
    %74 = vector.shape_cast %73 : vector<16xf32> to vector<16x1xf32>
    %cst_42 = arith.constant 3.200000e+01 : f32
    %75 = vector.broadcast %cst_42 : f32 to vector<16x1xf32>
    %76 = arith.divf %74, %75 : vector<16x1xf32>
    %cst_43 = arith.constant 9.99999974E-6 : f32
    %77 = vector.broadcast %cst_43 : f32 to vector<16x1xf32>
    %78 = arith.addf %76, %77 : vector<16x1xf32>
    %79 = math.rsqrt %78 : vector<16x1xf32>
    %80 = vector.broadcast %79 : vector<16x1xf32> to vector<16x32xf32>
    %81 = arith.mulf %71, %80 : vector<16x32xf32>
    %82 = vector.broadcast %64 : vector<1x32xf32> to vector<16x32xf32>
    %83 = arith.mulf %81, %82 : vector<16x32xf32>
    %84 = vector.broadcast %65 : vector<1x32xf32> to vector<16x32xf32>
    %85 = arith.addf %83, %84 : vector<16x32xf32>
    %c0_44 = arith.constant 0 : index
    %c0_45 = arith.constant 0 : index
    %c0_46 = arith.constant 0 : index
    %86 = vector.load %arg17[%c0_44, %c0_45, %c0_46] : memref<1x16x32xf32, #tpu.memory_space<vmem>>, vector<1x16x32xf32>
    %87 = vector.shape_cast %86 : vector<1x16x32xf32> to vector<16x32xf32>
    %88 = vector.shape_cast %85 : vector<16x32xf32> to vector<1x16x32xf32>
    tpu.vector_store %arg17[%c0_44, %c0_45, %c0_46], %88 {strides = array<i32>} : memref<1x16x32xf32, #tpu.memory_space<vmem>>, vector<1x16x32xf32>,
    return
  }
  func.func @transform_0(%arg0: i32, %arg1: i32) -> (i32, i32, i32) {
    %c0_i32 = arith.constant 0 : i32
    %c0_i32_0 = arith.constant 0 : i32
    return %arg0, %arg1, %c0_i32 : i32, i32, i32
  }
  func.func @transform_1(%arg0: i32, %arg1: i32) -> (i32, i32, i32) {
    %c0_i32 = arith.constant 0 : i32
    %c0_i32_0 = arith.constant 0 : i32
    %c0_i32_1 = arith.constant 0 : i32
    return %arg0, %c0_i32, %c0_i32_0 : i32, i32, i32
  }
  func.func @transform_2(%arg0: i32, %arg1: i32) -> (i32, i32, i32) {
    %c0_i32 = arith.constant 0 : i32
    %c0_i32_0 = arith.constant 0 : i32
    %c0_i32_1 = arith.constant 0 : i32
    return %arg0, %c0_i32, %c0_i32_0 : i32, i32, i32
  }
  func.func @transform_3(%arg0: i32, %arg1: i32) -> (i32, i32) {
    %c0_i32 = arith.constant 0 : i32
    %c0_i32_0 = arith.constant 0 : i32
    %c0_i32_1 = arith.constant 0 : i32
    return %c0_i32, %c0_i32_0 : i32, i32
  }
  func.func @transform_4(%arg0: i32, %arg1: i32) -> (i32, i32) {
    %c0_i32 = arith.constant 0 : i32
    %c0_i32_0 = arith.constant 0 : i32
    %c0_i32_1 = arith.constant 0 : i32
    return %c0_i32, %c0_i32_0 : i32, i32
  }
  func.func @transform_5(%arg0: i32, %arg1: i32) -> (i32, i32) {
    %c0_i32 = arith.constant 0 : i32
    %c0_i32_0 = arith.constant 0 : i32
    %c0_i32_1 = arith.constant 0 : i32
    return %c0_i32, %c0_i32_0 : i32, i32
  }
  func.func @transform_6(%arg0: i32, %arg1: i32) -> (i32, i32) {
    %c0_i32 = arith.constant 0 : i32
    %c0_i32_0 = arith.constant 0 : i32
    %c0_i32_1 = arith.constant 0 : i32
    return %c0_i32, %c0_i32_0 : i32, i32
  }
  func.func @transform_7(%arg0: i32, %arg1: i32) -> (i32, i32) {
    %c0_i32 = arith.constant 0 : i32
    %c0_i32_0 = arith.constant 0 : i32
    %c0_i32_1 = arith.constant 0 : i32
    return %c0_i32, %c0_i32_0 : i32, i32
  }
  func.func @transform_8(%arg0: i32, %arg1: i32) -> (i32, i32) {
    %c0_i32 = arith.constant 0 : i32
    %c0_i32_0 = arith.constant 0 : i32
    %c0_i32_1 = arith.constant 0 : i32
    return %c0_i32, %c0_i32_0 : i32, i32
  }
  func.func @transform_9(%arg0: i32, %arg1: i32) -> (i32, i32) {
    %c0_i32 = arith.constant 0 : i32
    %c0_i32_0 = arith.constant 0 : i32
    %c0_i32_1 = arith.constant 0 : i32
    return %c0_i32, %c0_i32_0 : i32, i32
  }
  func.func @transform_10(%arg0: i32, %arg1: i32) -> (i32, i32) {
    %c0_i32 = arith.constant 0 : i32
    %c0_i32_0 = arith.constant 0 : i32
    %c0_i32_1 = arith.constant 0 : i32
    return %c0_i32, %c0_i32_0 : i32, i32
  }
  func.func @transform_11(%arg0: i32, %arg1: i32) -> (i32, i32) {
    %c0_i32 = arith.constant 0 : i32
    %c0_i32_0 = arith.constant 0 : i32
    %c0_i32_1 = arith.constant 0 : i32
    return %c0_i32, %c0_i32_0 : i32, i32
  }
  func.func @transform_12(%arg0: i32, %arg1: i32) -> (i32, i32) {
    %c0_i32 = arith.constant 0 : i32
    %c0_i32_0 = arith.constant 0 : i32
    %c0_i32_1 = arith.constant 0 : i32
    return %c0_i32, %c0_i32_0 : i32, i32
  }
  func.func @transform_13(%arg0: i32, %arg1: i32) -> (i32, i32) {
    %c0_i32 = arith.constant 0 : i32
    %c0_i32_0 = arith.constant 0 : i32
    %c0_i32_1 = arith.constant 0 : i32
    return %c0_i32, %c0_i32_0 : i32, i32
  }
  func.func @transform_14(%arg0: i32, %arg1: i32) -> (i32, i32) {
    %c0_i32 = arith.constant 0 : i32
    %c0_i32_0 = arith.constant 0 : i32
    %c0_i32_1 = arith.constant 0 : i32
    return %c0_i32, %c0_i32_0 : i32, i32
  }
  func.func @transform_15(%arg0: i32, %arg1: i32) -> (i32, i32, i32) {
    %c0_i32 = arith.constant 0 : i32
    %c0_i32_0 = arith.constant 0 : i32
    return %arg0, %arg1, %c0_i32 : i32, i32, i32
  }
}

</mosaic_0001>

<llo_original>
// kernel: tpu_custom_call.1
$region0: #{tpu_custom_call.1}
  #allocation0 [shape = 'u32[]', space=smem, size = 0x4, offset = 0x4, fixed_abs, tag = 'smem constant byte address 0x4 - core index']
  #allocation1 [shape = 'u32[144,128]{1,0:T(1,128)}', space=vmem, size = 0x12000, scoped, tag = 'internal scratch']
  %s0 = inlined_call_operand.hbm [shape: f32[2,32,32], index: 0, kind: input, shape index: {}]
  %s1 = inlined_call_operand.vmem [shape: bf16[2,32,32], index: 1, kind: input, shape index: {}]
  %s2 = inlined_call_operand.hbm [shape: bf16[2,32,32], index: 2, kind: input, shape index: {}]
  %s3 = inlined_call_operand.vmem [shape: bf16[32,32], index: 3, kind: input, shape index: {}]
  %s4 = inlined_call_operand.vmem [shape: f32[1,32], index: 4, kind: input, shape index: {}]
  %s5 = inlined_call_operand.hbm [shape: bf16[32,32], index: 5, kind: input, shape index: {}]
  %s6 = inlined_call_operand.vmem [shape: f32[1,32], index: 6, kind: input, shape index: {}]
  %s7 = inlined_call_operand.hbm [shape: f32[1,32], index: 7, kind: input, shape index: {}]
  %s8 = inlined_call_operand.hbm [shape: f32[1,32], index: 8, kind: input, shape index: {}]
  %s9 = inlined_call_operand.vmem [shape: bf16[32,64], index: 9, kind: input, shape index: {}]
  %s10 = inlined_call_operand.vmem [shape: f32[1,64], index: 10, kind: input, shape index: {}]
  %s11 = inlined_call_operand.vmem [shape: bf16[64,32], index: 11, kind: input, shape index: {}]
  %s12 = inlined_call_operand.vmem [shape: f32[1,32], index: 12, kind: input, shape index: {}]
  %s13 = inlined_call_operand.vmem [shape: f32[1,32], index: 13, kind: input, shape index: {}]
  %s14 = inlined_call_operand.vmem [shape: f32[1,32], index: 14, kind: input, shape index: {}]
  %s15 = inlined_call_operand.hbm [shape: f32[2,32,32], index: 15, kind: output, shape index: {}]
  %s16 = sld [smem:[#allocation0]]
  $region120: #{tpu_custom_call.1} parent=0
    _
  %s18 = ssub.s32 1, %s16
  %s19 = scalar_select 0, %s18, %s16
  $region1: #{tpu_custom_call.1} parent=0
    #allocation2 [shape = 'u8[16384]{0}', space=vmem, size = 0x4000, scoped, tag = 'input window, operand 0']
    #allocation3 [shape = 's32[2]{0}', space=sflag, size = 0x8, scoped, tag = 'scoped memory for tpu_custom_call.1']
    #allocation4 [shape = 's32[2]{0}', space=sflag, size = 0x8, scoped, tag = 'scoped memory for tpu_custom_call.1']
    #allocation5 [shape = 'u8[16384]{0}', space=vmem, size = 0x4000, scoped, tag = 'input window, operand 2']
    #allocation6 [shape = 's32[2]{0}', space=sflag, size = 0x8, scoped, tag = 'scoped memory for tpu_custom_call.1']
    #allocation7 [shape = 'u8[8192]{0}', space=vmem, size = 0x2000, scoped, tag = 'input window, operand 5, single buffered']
    #allocation8 [shape = 'u8[512]{0}', space=vmem, size = 0x400, scoped, tag = 'input window, operand 7, single buffered']
    #allocation9 [shape = 's32[1]{0}', space=sflag, size = 0x4, scoped, tag = 'scoped memory for tpu_custom_call.1']
    #allocation10 [shape = 'u8[512]{0}', space=vmem, size = 0x400, scoped, tag = 'input window, operand 8, single buffered']
    #allocation11 [shape = 'u8[16384]{0}', space=vmem, size = 0x4000, scoped, tag = 'output window, operand 0']
    %20 = vsyncpa [#allocation3], 0
    %s21 = scalar_lea.sflag [#allocation3], 1
    %22 = vsyncpa %s21, 0
    %23 = vsyncpa [#allocation6], 0
    %s24 = scalar_lea.sflag [#allocation6], 1
    %25 = vsyncpa %s24, 0
    %26 = vsyncpa [#allocation9], 0
    %27 = vsyncpa [#allocation4], 0
    %s28 = scalar_lea.sflag [#allocation4], 1
    %29 = vsyncpa %s28, 0
    loop: start=0, step=1, limit=6
    $region2: #{tpu_custom_call.1} parent=1 // loop_pre_header
      _
    $region3: #{tpu_custom_call.1} parent=1 // loop_header
      %s31 = sphi 0, %s35
      %p32 = scmp.ge.s32.totalorder %s31, 6
      %s38 = sphi 0, %s50
      %s39 = sphi 0, %s46
      %s40 = sphi 0, %s38
      %s41 = sphi 0, %s39
      %s42 = sphi 0, %s40
      %s43 = sphi 0, %s41
      %s55 = sphi 0, %s57
      %s58 = sphi 0, %s55
      %s59 = sphi 0, %s58
      %s75 = sphi 0, %s59
      %s81 = sphi 0, %s83
      %s84 = sphi 0, %s81
      %s85 = sphi 0, %s84
      %s101 = sphi 0, %s85
      %s107 = sphi 0, %s109
      %s110 = sphi 0, %s107
      %s111 = sphi 0, %s110
      %s127 = sphi 0, %s111
      %s131 = sphi 0, %s131
      %s133 = sphi 0, %s131
      %s134 = sphi 0, %s133
      %s148 = sphi 0, %s134
      %s152 = sphi 0, %s152
      %s154 = sphi 0, %s152
      %s155 = sphi 0, %s154
      %s169 = sphi 0, %s155
      %s173 = sphi 0, %s173
      %s175 = sphi 0, %s173
      %s176 = sphi 0, %s175
      %s190 = sphi 0, %s176
      %s194 = sphi 0, %s194
      %s196 = sphi 0, %s194
      %s197 = sphi 0, %s196
      %s211 = sphi 0, %s197
      %s215 = sphi 0, %s215
      %s217 = sphi 0, %s215
      %s218 = sphi 0, %s217
      %s232 = sphi 0, %s218
      %s236 = sphi 0, %s236
      %s238 = sphi 0, %s236
      %s239 = sphi 0, %s238
      %s253 = sphi 0, %s239
      %s257 = sphi 0, %s257
      %s259 = sphi 0, %s257
      %s260 = sphi 0, %s259
      %s274 = sphi 0, %s260
      %s278 = sphi 0, %s278
      %s280 = sphi 0, %s278
      %s281 = sphi 0, %s280
      %s295 = sphi 0, %s281
      %s299 = sphi 0, %s299
      %s301 = sphi 0, %s299
      %s302 = sphi 0, %s301
      %s316 = sphi 0, %s302
      %s320 = sphi 0, %s320
      %s322 = sphi 0, %s320
      %s323 = sphi 0, %s322
      %s337 = sphi 0, %s323
      %s341 = sphi 0, %s341
      %s343 = sphi 0, %s341
      %s344 = sphi 0, %s343
      %s358 = sphi 0, %s344
      %s362 = sphi 0, %s362
      %s364 = sphi 0, %s362
      %s365 = sphi 0, %s364
      %s379 = sphi 0, %s365
      %s387 = sphi 0, %s389
      %s390 = sphi 0, %s387
      %s391 = sphi 0, %s390
      %s407 = sphi 0, %s391
    $region4: #{tpu_custom_call.1} parent=1 // loop_header_branch
      %34 = sbr.rel (%p32) target = $region8
    $region5: #{tpu_custom_call.1} parent=1 // loop_body
      %s36 = ssub.s32 %s31, 1
      %s37 = ssub.s32 %s31, 2
      %s44 = sadd.s32 1, %s39
      %p45 = scmp.ge.s32.totalorder %s44, 2
      %s46 = scalar_select %p45, 0, %s44
      %s47 = sadd.s32 1, %s38
      %s48 = scalar_select %p45, %s47, %s38
      %p49 = scmp.ge.s32.totalorder %s48, 2
      %s50 = scalar_select %p49, 0, %s48
      %s51 = ssub.s32 %s38, %s50
      %s52 = ssub.s32 %s39, %s46
      %s53 = sor.u32 %s51, %s52
      %p54 = scmp.eq.s32.totalorder %s53, 0
      %s56 = sadd.s32 %s55, 1
      %s57 = scalar_select %p54, %s55, %s56
      %p60 = pneg %p54
      %p61 = scmp.eq.s32.totalorder %s31, 3
      %p62 = por %p60, %p61
      %p63 = scmp.ne.s32.totalorder %s55, %s58
      %p64 = scmp.eq.s32.totalorder %s31, 0
      %p65 = por %p63, %p64
      %p66 = scmp.ne.s32.totalorder %s55, %s58
      %p67 = scmp.eq.s32.totalorder %s36, 3
      %p68 = por %p66, %p67
      %p69 = scmp.ne.s32.totalorder %s58, %s59
      %p70 = scmp.eq.s32.totalorder %s36, 0
      %p71 = por %p69, %p70
      %p72 = scmp.ne.s32.totalorder %s58, %s59
      %p73 = scmp.eq.s32.totalorder %s37, 3
      %p74 = por %p72, %p73
      %p76 = scmp.ne.s32.totalorder %s59, %s75
      %p77 = scmp.eq.s32.totalorder %s37, 0
      %p78 = por %p76, %p77
      %s79 = ssub.s32 %s38, %s50
      %p80 = scmp.eq.s32.totalorder %s79, 0
      %s82 = sadd.s32 %s81, 1
      %s83 = scalar_select %p80, %s81, %s82
      %p86 = pneg %p80
      %p87 = scmp.eq.s32.totalorder %s31, 3
      %p88 = por %p86, %p87
      %p89 = scmp.ne.s32.totalorder %s81, %s84
      %p90 = scmp.eq.s32.totalorder %s31, 0
      %p91 = por %p89, %p90
      %p92 = scmp.ne.s32.totalorder %s81, %s84
      %p93 = scmp.eq.s32.totalorder %s36, 3
      %p94 = por %p92, %p93
      %p95 = scmp.ne.s32.totalorder %s84, %s85
      %p96 = scmp.eq.s32.totalorder %s36, 0
      %p97 = por %p95, %p96
      %p98 = scmp.ne.s32.totalorder %s84, %s85
      %p99 = scmp.eq.s32.totalorder %s37, 3
      %p100 = por %p98, %p99
      %p102 = scmp.ne.s32.totalorder %s85, %s101
      %p103 = scmp.eq.s32.totalorder %s37, 0
      %p104 = por %p102, %p103
      %s105 = ssub.s32 %s38, %s50
      %p106 = scmp.eq.s32.totalorder %s105, 0
      %s108 = sadd.s32 %s107, 1
      %s109 = scalar_select %p106, %s107, %s108
      %p112 = pneg %p106
      %p113 = scmp.eq.s32.totalorder %s31, 3
      %p114 = por %p112, %p113
      %p115 = scmp.ne.s32.totalorder %s107, %s110
      %p116 = scmp.eq.s32.totalorder %s31, 0
      %p117 = por %p115, %p116
      %p118 = scmp.ne.s32.totalorder %s107, %s110
      %p119 = scmp.eq.s32.totalorder %s36, 3
      %p120 = por %p118, %p119
      %p121 = scmp.ne.s32.totalorder %s110, %s111
      %p122 = scmp.eq.s32.totalorder %s36, 0
      %p123 = por %p121, %p122
      %p124 = scmp.ne.s32.totalorder %s110, %s111
      %p125 = scmp.eq.s32.totalorder %s37, 3
      %p126 = por %p124, %p125
      %p128 = scmp.ne.s32.totalorder %s111, %s127
      %p129 = scmp.eq.s32.totalorder %s37, 0
      %p130 = por %p128, %p129
      %s132 = sadd.s32 %s131, 1
      %p135 = scmp.eq.s32.totalorder %s31, 3
      %p136 = scmp.ne.s32.totalorder %s131, %s133
      %p137 = scmp.eq.s32.totalorder %s31, 0
      %p138 = por %p136, %p137
      %p139 = scmp.ne.s32.totalorder %s131, %s133
      %p140 = scmp.eq.s32.totalorder %s36, 3
      %p141 = por %p139, %p140
      %p142 = scmp.ne.s32.totalorder %s133, %s134
      %p143 = scmp.eq.s32.totalorder %s36, 0
      %p144 = por %p142, %p143
      %p145 = scmp.ne.s32.totalorder %s133, %s134
      %p146 = scmp.eq.s32.totalorder %s37, 3
      %p147 = por %p145, %p146
      %p149 = scmp.ne.s32.totalorder %s134, %s148
      %p150 = scmp.eq.s32.totalorder %s37, 0
      %p151 = por %p149, %p150
      %s153 = sadd.s32 %s152, 1
      %p156 = scmp.eq.s32.totalorder %s31, 3
      %p157 = scmp.ne.s32.totalorder %s152, %s154
      %p158 = scmp.eq.s32.totalorder %s31, 0
      %p159 = por %p157, %p158
      %p160 = scmp.ne.s32.totalorder %s152, %s154
      %p161 = scmp.eq.s32.totalorder %s36, 3
      %p162 = por %p160, %p161
      %p163 = scmp.ne.s32.totalorder %s154, %s155
      %p164 = scmp.eq.s32.totalorder %s36, 0
      %p165 = por %p163, %p164
      %p166 = scmp.ne.s32.totalorder %s154, %s155
      %p167 = scmp.eq.s32.totalorder %s37, 3
      %p168 = por %p166, %p167
      %p170 = scmp.ne.s32.totalorder %s155, %s169
      %p171 = scmp.eq.s32.totalorder %s37, 0
      %p172 = por %p170, %p171
      %s174 = sadd.s32 %s173, 1
      %p177 = scmp.eq.s32.totalorder %s31, 3
      %p178 = scmp.ne.s32.totalorder %s173, %s175
      %p179 = scmp.eq.s32.totalorder %s31, 0
      %p180 = por %p178, %p179
      %p181 = scmp.ne.s32.totalorder %s173, %s175
      %p182 = scmp.eq.s32.totalorder %s36, 3
      %p183 = por %p181, %p182
      %p184 = scmp.ne.s32.totalorder %s175, %s176
      %p185 = scmp.eq.s32.totalorder %s36, 0
      %p186 = por %p184, %p185
      %p187 = scmp.ne.s32.totalorder %s175, %s176
      %p188 = scmp.eq.s32.totalorder %s37, 3
      %p189 = por %p187, %p188
      %p191 = scmp.ne.s32.totalorder %s176, %s190
      %p192 = scmp.eq.s32.totalorder %s37, 0
      %p193 = por %p191, %p192
      %s195 = sadd.s32 %s194, 1
      %p198 = scmp.eq.s32.totalorder %s31, 3
      %p199 = scmp.ne.s32.totalorder %s194, %s196
      %p200 = scmp.eq.s32.totalorder %s31, 0
      %p201 = por %p199, %p200
      %p202 = scmp.ne.s32.totalorder %s194, %s196
      %p203 = scmp.eq.s32.totalorder %s36, 3
      %p204 = por %p202, %p203
      %p205 = scmp.ne.s32.totalorder %s196, %s197
      %p206 = scmp.eq.s32.totalorder %s36, 0
      %p207 = por %p205, %p206
      %p208 = scmp.ne.s32.totalorder %s196, %s197
      %p209 = scmp.eq.s32.totalorder %s37, 3
      %p210 = por %p208, %p209
      %p212 = scmp.ne.s32.totalorder %s197, %s211
      %p213 = scmp.eq.s32.totalorder %s37, 0
      %p214 = por %p212, %p213
      %s216 = sadd.s32 %s215, 1
      %p219 = scmp.eq.s32.totalorder %s31, 3
      %p220 = scmp.ne.s32.totalorder %s215, %s217
      %p221 = scmp.eq.s32.totalorder %s31, 0
      %p222 = por %p220, %p221
      %p223 = scmp.ne.s32.totalorder %s215, %s217
      %p224 = scmp.eq.s32.totalorder %s36, 3
      %p225 = por %p223, %p224
      %p226 = scmp.ne.s32.totalorder %s217, %s218
      %p227 = scmp.eq.s32.totalorder %s36, 0
      %p228 = por %p226, %p227
      %p229 = scmp.ne.s32.totalorder %s217, %s218
      %p230 = scmp.eq.s32.totalorder %s37, 3
      %p231 = por %p229, %p230
      %p233 = scmp.ne.s32.totalorder %s218, %s232
      %p234 = scmp.eq.s32.totalorder %s37, 0
      %p235 = por %p233, %p234
      %s237 = sadd.s32 %s236, 1
      %p240 = scmp.eq.s32.totalorder %s31, 3
      %p241 = scmp.ne.s32.totalorder %s236, %s238
      %p242 = scmp.eq.s32.totalorder %s31, 0
      %p243 = por %p241, %p242
      %p244 = scmp.ne.s32.totalorder %s236, %s238
      %p245 = scmp.eq.s32.totalorder %s36, 3
      %p246 = por %p244, %p245
      %p247 = scmp.ne.s32.totalorder %s238, %s239
      %p248 = scmp.eq.s32.totalorder %s36, 0
      %p249 = por %p247, %p248
      %p250 = scmp.ne.s32.totalorder %s238, %s239
      %p251 = scmp.eq.s32.totalorder %s37, 3
      %p252 = por %p250, %p251
      %p254 = scmp.ne.s32.totalorder %s239, %s253
      %p255 = scmp.eq.s32.totalorder %s37, 0
      %p256 = por %p254, %p255
      %s258 = sadd.s32 %s257, 1
      %p261 = scmp.eq.s32.totalorder %s31, 3
      %p262 = scmp.ne.s32.totalorder %s257, %s259
      %p263 = scmp.eq.s32.totalorder %s31, 0
      %p264 = por %p262, %p263
      %p265 = scmp.ne.s32.totalorder %s257, %s259
      %p266 = scmp.eq.s32.totalorder %s36, 3
      %p267 = por %p265, %p266
      %p268 = scmp.ne.s32.totalorder %s259, %s260
      %p269 = scmp.eq.s32.totalorder %s36, 0
      %p270 = por %p268, %p269
      %p271 = scmp.ne.s32.totalorder %s259, %s260
      %p272 = scmp.eq.s32.totalorder %s37, 3
      %p273 = por %p271, %p272
      %p275 = scmp.ne.s32.totalorder %s260, %s274
      %p276 = scmp.eq.s32.totalorder %s37, 0
      %p277 = por %p275, %p276
      %s279 = sadd.s32 %s278, 1
      %p282 = scmp.eq.s32.totalorder %s31, 3
      %p283 = scmp.ne.s32.totalorder %s278, %s280
      %p284 = scmp.eq.s32.totalorder %s31, 0
      %p285 = por %p283, %p284
      %p286 = scmp.ne.s32.totalorder %s278, %s280
      %p287 = scmp.eq.s32.totalorder %s36, 3
      %p288 = por %p286, %p287
      %p289 = scmp.ne.s32.totalorder %s280, %s281
      %p290 = scmp.eq.s32.totalorder %s36, 0
      %p291 = por %p289, %p290
      %p292 = scmp.ne.s32.totalorder %s280, %s281
      %p293 = scmp.eq.s32.totalorder %s37, 3
      %p294 = por %p292, %p293
      %p296 = scmp.ne.s32.totalorder %s281, %s295
      %p297 = scmp.eq.s32.totalorder %s37, 0
      %p298 = por %p296, %p297
      %s300 = sadd.s32 %s299, 1
      %p303 = scmp.eq.s32.totalorder %s31, 3
      %p304 = scmp.ne.s32.totalorder %s299, %s301
      %p305 = scmp.eq.s32.totalorder %s31, 0
      %p306 = por %p304, %p305
      %p307 = scmp.ne.s32.totalorder %s299, %s301
      %p308 = scmp.eq.s32.totalorder %s36, 3
      %p309 = por %p307, %p308
      %p310 = scmp.ne.s32.totalorder %s301, %s302
      %p311 = scmp.eq.s32.totalorder %s36, 0
      %p312 = por %p310, %p311
      %p313 = scmp.ne.s32.totalorder %s301, %s302
      %p314 = scmp.eq.s32.totalorder %s37, 3
      %p315 = por %p313, %p314
      %p317 = scmp.ne.s32.totalorder %s302, %s316
      %p318 = scmp.eq.s32.totalorder %s37, 0
      %p319 = por %p317, %p318
      %s321 = sadd.s32 %s320, 1
      %p324 = scmp.eq.s32.totalorder %s31, 3
      %p325 = scmp.ne.s32.totalorder %s320, %s322
      %p326 = scmp.eq.s32.totalorder %s31, 0
      %p327 = por %p325, %p326
      %p328 = scmp.ne.s32.totalorder %s320, %s322
      %p329 = scmp.eq.s32.totalorder %s36, 3
      %p330 = por %p328, %p329
      %p331 = scmp.ne.s32.totalorder %s322, %s323
      %p332 = scmp.eq.s32.totalorder %s36, 0
      %p333 = por %p331, %p332
      %p334 = scmp.ne.s32.totalorder %s322, %s323
      %p335 = scmp.eq.s32.totalorder %s37, 3
      %p336 = por %p334, %p335
      %p338 = scmp.ne.s32.totalorder %s323, %s337
      %p339 = scmp.eq.s32.totalorder %s37, 0
      %p340 = por %p338, %p339
      %s342 = sadd.s32 %s341, 1
      %p345 = scmp.eq.s32.totalorder %s31, 3
      %p346 = scmp.ne.s32.totalorder %s341, %s343
      %p347 = scmp.eq.s32.totalorder %s31, 0
      %p348 = por %p346, %p347
      %p349 = scmp.ne.s32.totalorder %s341, %s343
      %p350 = scmp.eq.s32.totalorder %s36, 3
      %p351 = por %p349, %p350
      %p352 = scmp.ne.s32.totalorder %s343, %s344
      %p353 = scmp.eq.s32.totalorder %s36, 0
      %p354 = por %p352, %p353
      %p355 = scmp.ne.s32.totalorder %s343, %s344
      %p356 = scmp.eq.s32.totalorder %s37, 3
      %p357 = por %p355, %p356
      %p359 = scmp.ne.s32.totalorder %s344, %s358
      %p360 = scmp.eq.s32.totalorder %s37, 0
      %p361 = por %p359, %p360
      %s363 = sadd.s32 %s362, 1
      %p366 = scmp.eq.s32.totalorder %s31, 3
      %p367 = scmp.ne.s32.totalorder %s362, %s364
      %p368 = scmp.eq.s32.totalorder %s31, 0
      %p369 = por %p367, %p368
      %p370 = scmp.ne.s32.totalorder %s362, %s364
      %p371 = scmp.eq.s32.totalorder %s36, 3
      %p372 = por %p370, %p371
      %p373 = scmp.ne.s32.totalorder %s364, %s365
      %p374 = scmp.eq.s32.totalorder %s36, 0
      %p375 = por %p373, %p374
      %p376 = scmp.ne.s32.totalorder %s364, %s365
      %p377 = scmp.eq.s32.totalorder %s37, 3
      %p378 = por %p376, %p377
      %p380 = scmp.ne.s32.totalorder %s365, %s379
      %p381 = scmp.eq.s32.totalorder %s37, 0
      %p382 = por %p380, %p381
      %s383 = ssub.s32 %s38, %s50
      %s384 = ssub.s32 %s39, %s46
      %s385 = sor.u32 %s383, %s384
      %p386 = scmp.eq.s32.totalorder %s385, 0
      %s388 = sadd.s32 %s387, 1
      %s389 = scalar_select %p386, %s387, %s388
      %p392 = pneg %p386
      %p393 = scmp.eq.s32.totalorder %s31, 3
      %p394 = por %p392, %p393
      %p395 = scmp.ne.s32.totalorder %s387, %s390
      %p396 = scmp.eq.s32.totalorder %s31, 0
      %p397 = por %p395, %p396
      %p398 = scmp.ne.s32.totalorder %s387, %s390
      %p399 = scmp.eq.s32.totalorder %s36, 3
      %p400 = por %p398, %p399
      %p401 = scmp.ne.s32.totalorder %s390, %s391
      %p402 = scmp.eq.s32.totalorder %s36, 0
      %p403 = por %p401, %p402
      %p404 = scmp.ne.s32.totalorder %s390, %s391
      %p405 = scmp.eq.s32.totalorder %s37, 3
      %p406 = por %p404, %p405
      %p408 = scmp.ne.s32.totalorder %s391, %s407
      %p409 = scmp.eq.s32.totalorder %s37, 0
      %p410 = por %p408, %p409
      %p411 = scmp.le.s32.totalorder 1, %s31
      %p412 = scmp.lt.s32.totalorder %s31, 5
      %p413 = pnand %p411, %p412
      %p414 = pneg %p413
      // Predicated region
      $region9: #{tpu_custom_call.1} parent=5 // pred_check
        _
      $region10: #{tpu_custom_call.1} parent=5 // pred_check_branch
        %416 = sbr.rel (%p413) target = $region12
      $region11: #{tpu_custom_call.1} parent=5 // pred_region
        %s417 = ssub.s32 %s31, 1
        // Predicated region
        $region13: #{tpu_custom_call.1} parent=11 // pred_check
          %p418 = pneg %p144
        $region14: #{tpu_custom_call.1} parent=11 // pred_check_branch
          %420 = sbr.rel (%p418) target = $region16
        $region15: #{tpu_custom_call.1} parent=11 // pred_region
          _
        $region16: #{tpu_custom_call.1} parent=11 // pred_fallthru
          _
        // Predicated region
        $region17: #{tpu_custom_call.1} parent=11 // pred_check
          %p421 = pneg %p165
        $region18: #{tpu_custom_call.1} parent=11 // pred_check_branch
          %423 = sbr.rel (%p421) target = $region20
        $region19: #{tpu_custom_call.1} parent=11 // pred_region
          _
        $region20: #{tpu_custom_call.1} parent=11 // pred_fallthru
          _
        // Predicated region
        $region21: #{tpu_custom_call.1} parent=11 // pred_check
          %p424 = pneg %p186
        $region22: #{tpu_custom_call.1} parent=11 // pred_check_branch
          %426 = sbr.rel (%p424) target = $region24
        $region23: #{tpu_custom_call.1} parent=11 // pred_region
          %s428 = ssub.s32 256, 256
          %429 = vsyncadd [#allocation6], %s428
          %s430 = sshll.u32 [#allocation7], 4
          %s431 = int_to_ptr.vmem [resolvable:$true] %s430
          %436 = dma.hbm_to_vmem [thread:$0]  %s5, 256, %s431, [#allocation6], 64, 64, 4
        $region24: #{tpu_custom_call.1} parent=11 // pred_fallthru
          _
        // Predicated region
        $region25: #{tpu_custom_call.1} parent=11 // pred_check
          %p437 = pneg %p207
        $region26: #{tpu_custom_call.1} parent=11 // pred_check_branch
          %439 = sbr.rel (%p437) target = $region28
        $region27: #{tpu_custom_call.1} parent=11 // pred_region
          _
        $region28: #{tpu_custom_call.1} parent=11 // pred_fallthru
          _
        // Predicated region
        $region29: #{tpu_custom_call.1} parent=11 // pred_check
          %p440 = pneg %p228
        $region30: #{tpu_custom_call.1} parent=11 // pred_check_branch
          %442 = sbr.rel (%p440) target = $region32
        $region31: #{tpu_custom_call.1} parent=11 // pred_region
          %s444 = ssub.s32 16, 16
          %445 = vsyncadd [#allocation9], %s444
          %s447 = sshll.u32 [#allocation8], 4
          %s448 = int_to_ptr.vmem [resolvable:$true] %s447
          %450 = dma.hbm_to_vmem [thread:$0]  %s7, 16, %s448, [#allocation9]
        $region32: #{tpu_custom_call.1} parent=11 // pred_fallthru
          _
        // Predicated region
        $region33: #{tpu_custom_call.1} parent=11 // pred_check
          %p451 = pneg %p249
        $region34: #{tpu_custom_call.1} parent=11 // pred_check_branch
          %453 = sbr.rel (%p451) target = $region36
        $region35: #{tpu_custom_call.1} parent=11 // pred_region
          %s455 = ssub.s32 16, 16
          %456 = vsyncadd [#allocation9], %s455
          %s458 = sshll.u32 [#allocation10], 4
          %s459 = int_to_ptr.vmem [resolvable:$true] %s458
          %461 = dma.hbm_to_vmem [thread:$0]  %s8, 16, %s459, [#allocation9]
        $region36: #{tpu_custom_call.1} parent=11 // pred_fallthru
          _
        // Predicated region
        $region37: #{tpu_custom_call.1} parent=11 // pred_check
          %p462 = pneg %p270
        $region38: #{tpu_custom_call.1} parent=11 // pred_check_branch
          %464 = sbr.rel (%p462) target = $region40
        $region39: #{tpu_custom_call.1} parent=11 // pred_region
          _
        $region40: #{tpu_custom_call.1} parent=11 // pred_fallthru
          _
        // Predicated region
        $region41: #{tpu_custom_call.1} parent=11 // pred_check
          %p465 = pneg %p291
        $region42: #{tpu_custom_call.1} parent=11 // pred_check_branch
          %467 = sbr.rel (%p465) target = $region44
        $region43: #{tpu_custom_call.1} parent=11 // pred_region
          _
        $region44: #{tpu_custom_call.1} parent=11 // pred_fallthru
          _
        // Predicated region
        $region45: #{tpu_custom_call.1} parent=11 // pred_check
          %p468 = pneg %p312
        $region46: #{tpu_custom_call.1} parent=11 // pred_check_branch
          %470 = sbr.rel (%p468) target = $region48
        $region47: #{tpu_custom_call.1} parent=11 // pred_region
          _
        $region48: #{tpu_custom_call.1} parent=11 // pred_fallthru
          _
        // Predicated region
        $region49: #{tpu_custom_call.1} parent=11 // pred_check
          %p471 = pneg %p333
        $region50: #{tpu_custom_call.1} parent=11 // pred_check_branch
          %473 = sbr.rel (%p471) target = $region52
        $region51: #{tpu_custom_call.1} parent=11 // pred_region
          _
        $region52: #{tpu_custom_call.1} parent=11 // pred_fallthru
          _
        // Predicated region
        $region53: #{tpu_custom_call.1} parent=11 // pred_check
          %p474 = pneg %p354
        $region54: #{tpu_custom_call.1} parent=11 // pred_check_branch
          %476 = sbr.rel (%p474) target = $region56
        $region55: #{tpu_custom_call.1} parent=11 // pred_region
          _
        $region56: #{tpu_custom_call.1} parent=11 // pred_fallthru
          _
        // Predicated region
        $region57: #{tpu_custom_call.1} parent=11 // pred_check
          %p477 = pneg %p375
        $region58: #{tpu_custom_call.1} parent=11 // pred_check_branch
          %479 = sbr.rel (%p477) target = $region60
        $region59: #{tpu_custom_call.1} parent=11 // pred_region
          _
        $region60: #{tpu_custom_call.1} parent=11 // pred_fallthru
          _
      $region12: #{tpu_custom_call.1} parent=5 // pred_fallthru
        _
      %p480 = scmp.lt.s32.totalorder %s31, 4
      // Predicated region
      $region61: #{tpu_custom_call.1} parent=5 // pred_check
        %p481 = pneg %p480
      $region62: #{tpu_custom_call.1} parent=5 // pred_check_branch
        %483 = sbr.rel (%p481) target = $region64
      $region63: #{tpu_custom_call.1} parent=5 // pred_region
        // Predicated region
        $region65: #{tpu_custom_call.1} parent=63 // pred_check
          %p484 = pneg %p65
        $region66: #{tpu_custom_call.1} parent=63 // pred_check_branch
          %486 = sbr.rel (%p484) target = $region68
        $region67: #{tpu_custom_call.1} parent=63 // pred_region
          %s487 = sand.u32 %s55, 1
          %s488 = scalar_lea.sflag [#allocation3], %s487
          %s489 = sand.u32 %s55, 1
          %s490 = smul.addr %s489, 16
          %s491 = scalar_lea.vmem [#allocation2], %s490
          %s492 = smul.u32 2, %s39
          %s494 = ssub.s32 256, 256
          %495 = vsyncadd %s488, %s494
          %s496 = smul.addr %s38, 4
          %s497 = sadd.s32 %s492, %s496
          %s498 = smul.addr %s497, 128
          %s499 = scalar_lea.hbm %s0, %s498
          %s500 = sshll.u32 %s491, 4
          %s501 = int_to_ptr.vmem [resolvable:$true] %s500
          %506 = dma.hbm_to_vmem [thread:$0]  %s499, 256, %s501, %s488, 128, 128, 8
        $region68: #{tpu_custom_call.1} parent=63 // pred_fallthru
          _
        // Predicated region
        $region69: #{tpu_custom_call.1} parent=63 // pred_check
          %p507 = pneg %p91
        $region70: #{tpu_custom_call.1} parent=63 // pred_check_branch
          %509 = sbr.rel (%p507) target = $region72
        $region71: #{tpu_custom_call.1} parent=63 // pred_region
          %p510 = scmp.lt.s32.totalorder %s38, 1
          %s511 = scalar_select %p510, %s38, 1
          %s512 = smul.addr %s511, 4
          %s513 = smul.addr %s512, 4
          %s514 = scalar_lea.vmem %s1, %s513
        $region72: #{tpu_custom_call.1} parent=63 // pred_fallthru
          _
        // Predicated region
        $region73: #{tpu_custom_call.1} parent=63 // pred_check
          %p515 = pneg %p117
        $region74: #{tpu_custom_call.1} parent=63 // pred_check_branch
          %517 = sbr.rel (%p515) target = $region76
        $region75: #{tpu_custom_call.1} parent=63 // pred_region
          %s518 = sand.u32 %s31, 1
          %s519 = scalar_lea.sflag [#allocation6], %s518
          %s520 = sand.u32 %s107, 1
          %s521 = smul.addr %s520, 16
          %s522 = scalar_lea.vmem [#allocation5], %s521
          %s524 = ssub.s32 256, 256
          %525 = vsyncadd %s519, %s524
          %s526 = smul.addr %s38, 4
          %s527 = smul.addr %s526, 64
          %s528 = scalar_lea.hbm %s2, %s527
          %s529 = sshll.u32 %s522, 4
          %s530 = int_to_ptr.vmem [resolvable:$true] %s529
          %535 = dma.hbm_to_vmem [thread:$0]  %s528, 256, %s530, %s519, 64, 64, 4
        $region76: #{tpu_custom_call.1} parent=63 // pred_fallthru
          _
      $region64: #{tpu_custom_call.1} parent=5 // pred_fallthru
        _
      %p536 = scmp.le.s32.totalorder 1, %s31
      %p537 = scmp.lt.s32.totalorder %s31, 5
      %p538 = pnand %p536, %p537
      %p539 = pneg %p538
      // Predicated region
      $region77: #{tpu_custom_call.1} parent=5 // pred_check
        _
      $region78: #{tpu_custom_call.1} parent=5 // pred_check_branch
        %541 = sbr.rel (%p538) target = $region80
      $region79: #{tpu_custom_call.1} parent=5 // pred_region
        %s542 = ssub.s32 %s31, 1
        %s543 = sand.u32 %s58, 1
        %s544 = scalar_lea.sflag [#allocation3], %s543
        %s545 = sand.u32 %s58, 1
        %s546 = smul.addr %s545, 16
        %s547 = scalar_lea.vmem [#allocation2], %s546
        // Predicated region
        $region81: #{tpu_custom_call.1} parent=79 // pred_check
          %p548 = pneg %p71
        $region82: #{tpu_custom_call.1} parent=79 // pred_check_branch
          %550 = sbr.rel (%p548) target = $region84
        $region83: #{tpu_custom_call.1} parent=79 // pred_region
          %551 = dma.done %s544, 256
        $region84: #{tpu_custom_call.1} parent=79 // pred_fallthru
          _
        %s552 = sand.u32 %s36, 1
        %s553 = scalar_lea.sflag [#allocation6], %s552
        %s554 = sand.u32 %s110, 1
        %s555 = smul.addr %s554, 16
        %s556 = scalar_lea.vmem [#allocation5], %s555
        // Predicated region
        $region85: #{tpu_custom_call.1} parent=79 // pred_check
          %p557 = pneg %p123
        $region86: #{tpu_custom_call.1} parent=79 // pred_check_branch
          %559 = sbr.rel (%p557) target = $region88
        $region87: #{tpu_custom_call.1} parent=79 // pred_region
          %560 = dma.done %s553, 256
        $region88: #{tpu_custom_call.1} parent=79 // pred_fallthru
          _
        // Predicated region
        $region89: #{tpu_custom_call.1} parent=79 // pred_check
          %p561 = pneg %p186
        $region90: #{tpu_custom_call.1} parent=79 // pred_check_branch
          %563 = sbr.rel (%p561) target = $region92
        $region91: #{tpu_custom_call.1} parent=79 // pred_region
          %564 = dma.done [#allocation6], 256
        $region92: #{tpu_custom_call.1} parent=79 // pred_fallthru
          _
        // Predicated region
        $region93: #{tpu_custom_call.1} parent=79 // pred_check
          %p565 = pneg %p228
        $region94: #{tpu_custom_call.1} parent=79 // pred_check_branch
          %567 = sbr.rel (%p565) target = $region96
        $region95: #{tpu_custom_call.1} parent=79 // pred_region
          %568 = dma.done [#allocation9], 16
        $region96: #{tpu_custom_call.1} parent=79 // pred_fallthru
          _
        // Predicated region
        $region97: #{tpu_custom_call.1} parent=79 // pred_check
          %p569 = pneg %p249
        $region98: #{tpu_custom_call.1} parent=79 // pred_check_branch
          %571 = sbr.rel (%p569) target = $region100
        $region99: #{tpu_custom_call.1} parent=79 // pred_region
          %572 = dma.done [#allocation9], 16
        $region100: #{tpu_custom_call.1} parent=79 // pred_fallthru
          _
        %s573 = sand.u32 %s58, 1
        %s574 = scalar_lea.sflag [#allocation3], %s573
        %s575 = sand.u32 %s58, 1
        %s576 = smul.addr %s575, 16
        %s577 = scalar_lea.vmem [#allocation2], %s576
        %p578 = pneg %p71
        %p579 = pneg %p68
        %p580 = scmp.lt.s32.totalorder %s40, 1
        %s581 = scalar_select %p580, %s40, 1
        %s582 = smul.addr %s581, 4
        %s583 = smul.addr %s582, 4
        %s584 = scalar_lea.vmem %s1, %s583
        %p585 = pneg %p97
        %p586 = pneg %p94
        %s587 = sand.u32 %s36, 1
        %s588 = scalar_lea.sflag [#allocation6], %s587
        %s589 = sand.u32 %s110, 1
        %s590 = smul.addr %s589, 16
        %s591 = scalar_lea.vmem [#allocation5], %s590
        %p592 = pneg %p123
        %p593 = pneg %p120
        %p594 = pneg %p144
        %p595 = pneg %p141
        %p596 = pneg %p165
        %p597 = pneg %p162
        %p598 = pneg %p186
        %p599 = pneg %p183
        %p600 = pneg %p207
        %p601 = pneg %p204
        %p602 = pneg %p228
        %p603 = pneg %p225
        %p604 = pneg %p249
        %p605 = pneg %p246
        %p606 = pneg %p270
        %p607 = pneg %p267
        %p608 = pneg %p291
        %p609 = pneg %p288
        %p610 = pneg %p312
        %p611 = pneg %p309
        %p612 = pneg %p333
        %p613 = pneg %p330
        %p614 = pneg %p354
        %p615 = pneg %p351
        %p616 = pneg %p375
        %p617 = pneg %p372
        %p618 = pneg %p403
        %p619 = pneg %p400
        %s620 = sand.u32 %s390, 1
        %s621 = scalar_lea.sflag [#allocation4], %s620
        %s622 = sand.u32 %s390, 1
        %s623 = smul.addr %s622, 16
        %s624 = scalar_lea.vmem [#allocation11], %s623
        %s625 = smul.u32 2, %s41
        %p626 = scmp.lt.s32.totalorder %s40, 1
        %s627 = scalar_select %p626, %s40, 1
        %s628 = smul.addr %s627, 4
        %s629 = smul.addr %s628, 4
        %s630 = scalar_lea.vmem %s1, %s629
        %s631 = smul.u32 2, %s41
        %v633 = vld [vmem:[%s547] sm:$0xff]
        %v634 = vld [vmem:[%s547 + $0x8] sm:$0xff]
        %v635 = vpack.c.bf16 %v634, %v633
        %v636 = vld [vmem:[%s3] sm:$0xf]
        %v637 = vld [vmem:[%s3 + $0x4] sm:$0xf]
        %v638 = vld [vmem:[%s3 + $0x8] sm:$0xf]
        %v639 = vld [vmem:[%s3 + $0xc] sm:$0xf]
        %v640 = vld [vmem:[%s4] sm:$0x1]
        %v642 = vlaneseq
        %v643 = vshrl.u32 %v642, 7
        %v644 = vsub.s32 0, %v643
        %v645 = vrot.slane %v640, %v644
        %v651 = vunpack.c.l.b16 %v636
        %v652 = vunpack.c.l.b16 %v637
        %v653 = vunpack.c.l.b16 %v638
        %v654 = vunpack.c.l.b16 %v639
        %v655 = vpack.c.b16 %v652, %v651
        %v656 = vpack.c.b16 %v654, %v653
        %vm659 = vcmask 261120
        %v661 = vsel %vm659, %v635, 0
        %663 = vmatprep.subr.bf16.mxu0 0
        %664 = vmatpush1.bf16.msra.mxu0 %v655
        %665 = vmatprep.subr.bf16.mxu0 0
        %666 = vmatpush1.bf16.msra.mxu0 %v656
        %667 = vmatprep.subr.bf16.mxu0 0
        %668 = vmatpush1.bf16.msra.mxu0 0
        %669 = vmatprep.subr.bf16.mxu0 0
        %670 = vmatpush1.bf16.msra.mxu0 0
        %671 = vmatprep.subr.bf16.mxu0 0
        %672 = vmatpush1.bf16.msra.mxu0 0
        %673 = vmatprep.subr.bf16.mxu0 0
        %674 = vmatpush1.bf16.msra.mxu0 0
        %675 = vmatprep.subr.bf16.mxu0 0
        %676 = vmatpush1.bf16.msra.mxu0 0
        %677 = vmatprep.subr.bf16.mxu0 0
        %678 = vmatpush1.bf16.msra.mxu0 0
        %679 = vmatprep.subr.bf16.mxu0 0
        %680 = vmatpush1.bf16.msra.mxu0 0
        %681 = vmatprep.subr.bf16.mxu0 0
        %682 = vmatpush1.bf16.msra.mxu0 0
        %683 = vmatprep.subr.bf16.mxu0 0
        %684 = vmatpush1.bf16.msra.mxu0 0
        %685 = vmatprep.subr.bf16.mxu0 0
        %686 = vmatpush1.bf16.msra.mxu0 0
        %687 = vmatprep.subr.bf16.mxu0 0
        %688 = vmatpush1.bf16.msra.mxu0 0
        %689 = vmatprep.subr.bf16.mxu0 0
        %690 = vmatpush1.bf16.msra.mxu0 0
        %691 = vmatprep.subr.bf16.mxu0 0
        %692 = vmatpush1.bf16.msra.mxu0 0
        %693 = vmatprep.subr.bf16.mxu0 0
        %694 = vmatpush1.bf16.msra.mxu0 0
        %695 = vmatprep.mubr.bf16.mxu0 0
        %696 = vmatmul.mubr.bf16.gmra.mrb[0].mxu0 %v661
        %v697 = vpop.f32.mrb[0].mxu0
        %v698 = vadd.f32 %v645, %v697
        %v699 = vpop.f32.mrb[0].mxu0
        %v700 = vpop.f32.mrb[0].mxu0
        %v701 = vadd.f32 %v645, %v700
        %v702 = vpop.f32.mrb[0].mxu0
        %703 = vdwg.mxu0
        %706 = vrot.lane.b32.xlu0 %v698, 120
        %v707 = vpop.permute.xlu0 %706
        %708 = vrot.lane.b32.xlu0 %v701, 120
        %v709 = vpop.permute.xlu0 %708
        %712 = vrot.lane.b32.xlu0 %v698, 112
        %v713 = vpop.permute.xlu0 %712
        %714 = vrot.lane.b32.xlu0 %v701, 112
        %v715 = vpop.permute.xlu0 %714
        %718 = vrot.lane.b32.xlu0 %v698, 104
        %v719 = vpop.permute.xlu0 %718
        %720 = vrot.lane.b32.xlu0 %v701, 104
        %v721 = vpop.permute.xlu0 %720
        %v724 = vcombine.low %v698, %v713
        %v725 = vcombine.high %v698, %v713
        %v727 = vunpack.c.l.s4 1983009808
        %v728 = vunpack.c.0.s8 %v727
        %v729 = vlaneseq
        %v730 = vshrl.u32 %v729, 7
        %v731 = vsub.s32 %v728, %v730
        %v732 = vrot.slane %v724, %v731
        %v734 = vunpack.c.l.s4 1983009808
        %v735 = vunpack.c.0.s8 %v734
        %v736 = vlaneseq
        %v737 = vshrl.u32 %v736, 7
        %v738 = vsub.s32 %v735, %v737
        %v739 = vrot.slane %v725, %v738
        %v740 = vcombine.low %v707, %v719
        %v741 = vcombine.high %v707, %v719
        %v743 = vunpack.c.l.s4 1983009808
        %v744 = vunpack.c.0.s8 %v743
        %v745 = vlaneseq
        %v746 = vshrl.u32 %v745, 7
        %v747 = vsub.s32 %v744, %v746
        %v748 = vrot.slane %v740, %v747
        %v750 = vunpack.c.l.s4 1983009808
        %v751 = vunpack.c.0.s8 %v750
        %v752 = vlaneseq
        %v753 = vshrl.u32 %v752, 7
        %v754 = vsub.s32 %v751, %v753
        %v755 = vrot.slane %v741, %v754
        %v756 = vcombine.low %v732, %v748
        %v757 = vcombine.high %v732, %v748
        %v759 = vunpack.c.l.s4 1934713408
        %v760 = vunpack.c.0.s8 %v759
        %v761 = vlaneseq
        %v762 = vshrl.u32 %v761, 7
        %v763 = vsub.s32 %v760, %v762
        %v764 = vrot.slane %v756, %v763
        %v766 = vunpack.c.l.s4 1934713408
        %v767 = vunpack.c.0.s8 %v766
        %v768 = vlaneseq
        %v769 = vshrl.u32 %v768, 7
        %v770 = vsub.s32 %v767, %v769
        %v771 = vrot.slane %v757, %v770
        %v772 = vcombine.low %v739, %v755
        %v773 = vcombine.high %v739, %v755
        %v775 = vunpack.c.l.s4 1934713408
        %v776 = vunpack.c.0.s8 %v775
        %v777 = vlaneseq
        %v778 = vshrl.u32 %v777, 7
        %v779 = vsub.s32 %v776, %v778
        %v780 = vrot.slane %v772, %v779
        %v782 = vunpack.c.l.s4 1934713408
        %v783 = vunpack.c.0.s8 %v782
        %v784 = vlaneseq
        %v785 = vshrl.u32 %v784, 7
        %v786 = vsub.s32 %v783, %v785
        %v787 = vrot.slane %v773, %v786
        %v788 = vcombine.high %v764, 0.0
        %v789 = vcombine.high %v771, 0.0
        %v790 = vcombine.high %v780, 0.0
        %v791 = vcombine.high %v787, 0.0
        %v792 = vcombine.low %v701, %v715
        %v793 = vcombine.high %v701, %v715
        %v795 = vunpack.c.l.s4 1983009808
        %v796 = vunpack.c.0.s8 %v795
        %v797 = vlaneseq
        %v798 = vshrl.u32 %v797, 7
        %v799 = vsub.s32 %v796, %v798
        %v800 = vrot.slane %v792, %v799
        %v802 = vunpack.c.l.s4 1983009808
        %v803 = vunpack.c.0.s8 %v802
        %v804 = vlaneseq
        %v805 = vshrl.u32 %v804, 7
        %v806 = vsub.s32 %v803, %v805
        %v807 = vrot.slane %v793, %v806
        %v808 = vcombine.low %v709, %v721
        %v809 = vcombine.high %v709, %v721
        %v811 = vunpack.c.l.s4 1983009808
        %v812 = vunpack.c.0.s8 %v811
        %v813 = vlaneseq
        %v814 = vshrl.u32 %v813, 7
        %v815 = vsub.s32 %v812, %v814
        %v816 = vrot.slane %v808, %v815
        %v818 = vunpack.c.l.s4 1983009808
        %v819 = vunpack.c.0.s8 %v818
        %v820 = vlaneseq
        %v821 = vshrl.u32 %v820, 7
        %v822 = vsub.s32 %v819, %v821
        %v823 = vrot.slane %v809, %v822
        %v824 = vcombine.low %v800, %v816
        %v825 = vcombine.high %v800, %v816
        %v827 = vunpack.c.l.s4 1934713408
        %v828 = vunpack.c.0.s8 %v827
        %v829 = vlaneseq
        %v830 = vshrl.u32 %v829, 7
        %v831 = vsub.s32 %v828, %v830
        %v832 = vrot.slane %v824, %v831
        %v834 = vunpack.c.l.s4 1934713408
        %v835 = vunpack.c.0.s8 %v834
        %v836 = vlaneseq
        %v837 = vshrl.u32 %v836, 7
        %v838 = vsub.s32 %v835, %v837
        %v839 = vrot.slane %v825, %v838
        %v840 = vcombine.low %v807, %v823
        %v841 = vcombine.high %v807, %v823
        %v843 = vunpack.c.l.s4 1934713408
        %v844 = vunpack.c.0.s8 %v843
        %v845 = vlaneseq
        %v846 = vshrl.u32 %v845, 7
        %v847 = vsub.s32 %v844, %v846
        %v848 = vrot.slane %v840, %v847
        %v850 = vunpack.c.l.s4 1934713408
        %v851 = vunpack.c.0.s8 %v850
        %v852 = vlaneseq
        %v853 = vshrl.u32 %v852, 7
        %v854 = vsub.s32 %v851, %v853
        %v855 = vrot.slane %v841, %v854
        %v856 = vcombine.high %v832, 0.0
        %v857 = vcombine.high %v839, 0.0
        %v858 = vcombine.high %v848, 0.0
        %v859 = vcombine.high %v855, 0.0
        %v860 = vpack.c.bf16 %v764, %v764
        %v861 = vpack.c.bf16 %v788, %v788
        %v862 = vpack.c.bf16 %v771, %v771
        %v863 = vpack.c.bf16 %v789, %v789
        %v864 = vpack.c.bf16 %v780, %v780
        %v865 = vpack.c.bf16 %v790, %v790
        %v866 = vpack.c.bf16 %v787, %v787
        %v867 = vpack.c.bf16 %v791, %v791
        %v868 = vpack.c.bf16 %v832, %v832
        %v869 = vpack.c.bf16 %v856, %v856
        %v870 = vpack.c.bf16 %v839, %v839
        %v871 = vpack.c.bf16 %v857, %v857
        %v872 = vpack.c.bf16 %v848, %v848
        %v873 = vpack.c.bf16 %v858, %v858
        %v874 = vpack.c.bf16 %v855, %v855
        %v875 = vpack.c.bf16 %v859, %v859
        loop: start=0, step=1, limit=2
        $region101: #{tpu_custom_call.1} parent=79 // loop_pre_header
          _
        $region102: #{tpu_custom_call.1} parent=79 // loop_header
          %s877 = sphi 0, %s881
          %p878 = scmp.ge.s32.totalorder %s877, 2
          %v882 = vphi -inf, %v2206
          %v883 = vphi -inf, %v2207
          %v884 = vphi -inf, %v2208
          %v885 = vphi -inf, %v2209
          %v886 = vphi -inf, %v2210
          %v887 = vphi -inf, %v2211
          %v888 = vphi -inf, %v2212
          %v889 = vphi -inf, %v2213
          %v890 = vphi 0.0, %v2294
          %v891 = vphi 0.0, %v2295
          %v892 = vphi 0.0, %v2296
          %v893 = vphi 0.0, %v2297
          %v894 = vphi 0.0, %v2298
          %v895 = vphi 0.0, %v2299
          %v896 = vphi 0.0, %v2300
          %v897 = vphi 0.0, %v2301
          %v898 = vphi 0.0, %v2630
          %v899 = vphi 0.0, %v2631
          %v900 = vphi 0.0, %v2632
          %v901 = vphi 0.0, %v2633
          %v902 = vphi 0.0, %v2634
          %v903 = vphi 0.0, %v2635
          %v904 = vphi 0.0, %v2636
          %v905 = vphi 0.0, %v2637
        $region103: #{tpu_custom_call.1} parent=79 // loop_header_branch
          %880 = sbr.rel (%p878) target = $region107
        $region104: #{tpu_custom_call.1} parent=79 // loop_body
          %s906 = smul.u32 %s877, 16
          %s907 = sshra.s32 %s906, 3
          %s908 = sand.u32 %s906, 7
          %s909 = smul.addr %s907, 4
          %s910 = scalar_lea.vmem %s630, %s909
          %v911 = vld [vmem:[%s910] sm:$0xf]
          %v912 = vld [vmem:[%s910 + $0x4] sm:$0xf]
          %915 = vrot.lane.b32.xlu0 %v911, 120
          %v916 = vpop.permute.xlu0 %915
          %917 = vrot.lane.b32.xlu0 %v912, 120
          %v918 = vpop.permute.xlu0 %917
          %919 = vrot.lane.b32.xlu0 %v911, 112
          %v920 = vpop.permute.xlu0 %919
          %921 = vrot.lane.b32.xlu0 %v912, 112
          %v922 = vpop.permute.xlu0 %921
          %923 = vrot.lane.b32.xlu0 %v911, 104
          %v924 = vpop.permute.xlu0 %923
          %925 = vrot.lane.b32.xlu0 %v912, 104
          %v926 = vpop.permute.xlu0 %925
          %v929 = vpack.i.b16 %v916, %v911
          %v930 = vshrl.u32 %v911, 16
          %v931 = vshrl.u32 %v916, 16
          %v932 = vpack.i.b16 %v931, %v930
          %v935 = vpack.i.b16 %v924, %v920
          %v936 = vshrl.u32 %v920, 16
          %v937 = vshrl.u32 %v924, 16
          %v938 = vpack.i.b16 %v937, %v936
          %v941 = vpack.i.b16 %v918, %v912
          %v942 = vshrl.u32 %v912, 16
          %v943 = vshrl.u32 %v918, 16
          %v944 = vpack.i.b16 %v943, %v942
          %v947 = vpack.i.b16 %v926, %v922
          %v948 = vshrl.u32 %v922, 16
          %v949 = vshrl.u32 %v926, 16
          %v950 = vpack.i.b16 %v949, %v948
          %v953 = vunpack.c.l.s4 1983009808
          %v954 = vunpack.c.0.s8 %v953
          %v955 = vlaneseq
          %v956 = vshrl.u32 %v955, 7
          %v957 = vsub.s32 %v954, %v956
          %v958 = vrot.slane %v929, %v957
          %v961 = vunpack.c.l.s4 1983009808
          %v962 = vunpack.c.0.s8 %v961
          %v963 = vlaneseq
          %v964 = vshrl.u32 %v963, 7
          %v965 = vsub.s32 %v962, %v964
          %v966 = vrot.slane %v935, %v965
          %v967 = vcombine.low %v958, %v966
          %v968 = vcombine.high %v958, %v966
          %v970 = vunpack.c.l.s4 1934713408
          %v971 = vunpack.c.0.s8 %v970
          %v972 = vlaneseq
          %v973 = vshrl.u32 %v972, 7
          %v974 = vsub.s32 %v971, %v973
          %v975 = vrot.slane %v967, %v974
          %v977 = vunpack.c.l.s4 1934713408
          %v978 = vunpack.c.0.s8 %v977
          %v979 = vlaneseq
          %v980 = vshrl.u32 %v979, 7
          %v981 = vsub.s32 %v978, %v980
          %v982 = vrot.slane %v968, %v981
          %v983 = vcombine.high %v975, 0
          %v984 = vcombine.high %v982, 0
          %v987 = vunpack.c.l.s4 1983009808
          %v988 = vunpack.c.0.s8 %v987
          %v989 = vlaneseq
          %v990 = vshrl.u32 %v989, 7
          %v991 = vsub.s32 %v988, %v990
          %v992 = vrot.slane %v932, %v991
          %v995 = vunpack.c.l.s4 1983009808
          %v996 = vunpack.c.0.s8 %v995
          %v997 = vlaneseq
          %v998 = vshrl.u32 %v997, 7
          %v999 = vsub.s32 %v996, %v998
          %v1000 = vrot.slane %v938, %v999
          %v1001 = vcombine.low %v992, %v1000
          %v1002 = vcombine.high %v992, %v1000
          %v1004 = vunpack.c.l.s4 1934713408
          %v1005 = vunpack.c.0.s8 %v1004
          %v1006 = vlaneseq
          %v1007 = vshrl.u32 %v1006, 7
          %v1008 = vsub.s32 %v1005, %v1007
          %v1009 = vrot.slane %v1001, %v1008
          %v1011 = vunpack.c.l.s4 1934713408
          %v1012 = vunpack.c.0.s8 %v1011
          %v1013 = vlaneseq
          %v1014 = vshrl.u32 %v1013, 7
          %v1015 = vsub.s32 %v1012, %v1014
          %v1016 = vrot.slane %v1002, %v1015
          %v1017 = vcombine.high %v1009, 0
          %v1018 = vcombine.high %v1016, 0
          %v1021 = vunpack.c.l.s4 1983009808
          %v1022 = vunpack.c.0.s8 %v1021
          %v1023 = vlaneseq
          %v1024 = vshrl.u32 %v1023, 7
          %v1025 = vsub.s32 %v1022, %v1024
          %v1026 = vrot.slane %v941, %v1025
          %v1029 = vunpack.c.l.s4 1983009808
          %v1030 = vunpack.c.0.s8 %v1029
          %v1031 = vlaneseq
          %v1032 = vshrl.u32 %v1031, 7
          %v1033 = vsub.s32 %v1030, %v1032
          %v1034 = vrot.slane %v947, %v1033
          %v1035 = vcombine.low %v1026, %v1034
          %v1036 = vcombine.high %v1026, %v1034
          %v1038 = vunpack.c.l.s4 1934713408
          %v1039 = vunpack.c.0.s8 %v1038
          %v1040 = vlaneseq
          %v1041 = vshrl.u32 %v1040, 7
          %v1042 = vsub.s32 %v1039, %v1041
          %v1043 = vrot.slane %v1035, %v1042
          %v1045 = vunpack.c.l.s4 1934713408
          %v1046 = vunpack.c.0.s8 %v1045
          %v1047 = vlaneseq
          %v1048 = vshrl.u32 %v1047, 7
          %v1049 = vsub.s32 %v1046, %v1048
          %v1050 = vrot.slane %v1036, %v1049
          %v1051 = vcombine.high %v1043, 0
          %v1052 = vcombine.high %v1050, 0
          %v1055 = vunpack.c.l.s4 1983009808
          %v1056 = vunpack.c.0.s8 %v1055
          %v1057 = vlaneseq
          %v1058 = vshrl.u32 %v1057, 7
          %v1059 = vsub.s32 %v1056, %v1058
          %v1060 = vrot.slane %v944, %v1059
          %v1063 = vunpack.c.l.s4 1983009808
          %v1064 = vunpack.c.0.s8 %v1063
          %v1065 = vlaneseq
          %v1066 = vshrl.u32 %v1065, 7
          %v1067 = vsub.s32 %v1064, %v1066
          %v1068 = vrot.slane %v950, %v1067
          %v1069 = vcombine.low %v1060, %v1068
          %v1070 = vcombine.high %v1060, %v1068
          %v1072 = vunpack.c.l.s4 1934713408
          %v1073 = vunpack.c.0.s8 %v1072
          %v1074 = vlaneseq
          %v1075 = vshrl.u32 %v1074, 7
          %v1076 = vsub.s32 %v1073, %v1075
          %v1077 = vrot.slane %v1069, %v1076
          %v1079 = vunpack.c.l.s4 1934713408
          %v1080 = vunpack.c.0.s8 %v1079
          %v1081 = vlaneseq
          %v1082 = vshrl.u32 %v1081, 7
          %v1083 = vsub.s32 %v1080, %v1082
          %v1084 = vrot.slane %v1070, %v1083
          %v1085 = vcombine.high %v1077, 0
          %v1086 = vcombine.high %v1084, 0
          %s1087 = smul.addr %s907, 4
          %s1088 = scalar_lea.vmem %s556, %s1087 [#allocation5]
          %v1089 = vld [vmem:[%s1088] sm:$0xf]
          %v1090 = vld [vmem:[%s1088 + $0x4] sm:$0xf]
          %1093 = vrot.lane.b32.xlu0 %v1089, 120
          %v1094 = vpop.permute.xlu0 %1093
          %1095 = vrot.lane.b32.xlu0 %v1090, 120
          %v1096 = vpop.permute.xlu0 %1095
          %1097 = vrot.lane.b32.xlu0 %v1089, 112
          %v1098 = vpop.permute.xlu0 %1097
          %1099 = vrot.lane.b32.xlu0 %v1090, 112
          %v1100 = vpop.permute.xlu0 %1099
          %1101 = vrot.lane.b32.xlu0 %v1089, 104
          %v1102 = vpop.permute.xlu0 %1101
          %1103 = vrot.lane.b32.xlu0 %v1090, 104
          %v1104 = vpop.permute.xlu0 %1103
          %v1107 = vpack.i.b16 %v1094, %v1089
          %v1108 = vshrl.u32 %v1089, 16
          %v1109 = vshrl.u32 %v1094, 16
          %v1110 = vpack.i.b16 %v1109, %v1108
          %v1113 = vpack.i.b16 %v1102, %v1098
          %v1114 = vshrl.u32 %v1098, 16
          %v1115 = vshrl.u32 %v1102, 16
          %v1116 = vpack.i.b16 %v1115, %v1114
          %v1119 = vpack.i.b16 %v1096, %v1090
          %v1120 = vshrl.u32 %v1090, 16
          %v1121 = vshrl.u32 %v1096, 16
          %v1122 = vpack.i.b16 %v1121, %v1120
          %v1125 = vpack.i.b16 %v1104, %v1100
          %v1126 = vshrl.u32 %v1100, 16
          %v1127 = vshrl.u32 %v1104, 16
          %v1128 = vpack.i.b16 %v1127, %v1126
          %v1131 = vunpack.c.l.s4 1983009808
          %v1132 = vunpack.c.0.s8 %v1131
          %v1133 = vlaneseq
          %v1134 = vshrl.u32 %v1133, 7
          %v1135 = vsub.s32 %v1132, %v1134
          %v1136 = vrot.slane %v1107, %v1135
          %v1139 = vunpack.c.l.s4 1983009808
          %v1140 = vunpack.c.0.s8 %v1139
          %v1141 = vlaneseq
          %v1142 = vshrl.u32 %v1141, 7
          %v1143 = vsub.s32 %v1140, %v1142
          %v1144 = vrot.slane %v1113, %v1143
          %v1145 = vcombine.low %v1136, %v1144
          %v1146 = vcombine.high %v1136, %v1144
          %v1148 = vunpack.c.l.s4 1934713408
          %v1149 = vunpack.c.0.s8 %v1148
          %v1150 = vlaneseq
          %v1151 = vshrl.u32 %v1150, 7
          %v1152 = vsub.s32 %v1149, %v1151
          %v1153 = vrot.slane %v1145, %v1152
          %v1155 = vunpack.c.l.s4 1934713408
          %v1156 = vunpack.c.0.s8 %v1155
          %v1157 = vlaneseq
          %v1158 = vshrl.u32 %v1157, 7
          %v1159 = vsub.s32 %v1156, %v1158
          %v1160 = vrot.slane %v1146, %v1159
          %v1161 = vcombine.high %v1153, 0
          %v1162 = vcombine.high %v1160, 0
          %v1165 = vunpack.c.l.s4 1983009808
          %v1166 = vunpack.c.0.s8 %v1165
          %v1167 = vlaneseq
          %v1168 = vshrl.u32 %v1167, 7
          %v1169 = vsub.s32 %v1166, %v1168
          %v1170 = vrot.slane %v1110, %v1169
          %v1173 = vunpack.c.l.s4 1983009808
          %v1174 = vunpack.c.0.s8 %v1173
          %v1175 = vlaneseq
          %v1176 = vshrl.u32 %v1175, 7
          %v1177 = vsub.s32 %v1174, %v1176
          %v1178 = vrot.slane %v1116, %v1177
          %v1179 = vcombine.low %v1170, %v1178
          %v1180 = vcombine.high %v1170, %v1178
          %v1182 = vunpack.c.l.s4 1934713408
          %v1183 = vunpack.c.0.s8 %v1182
          %v1184 = vlaneseq
          %v1185 = vshrl.u32 %v1184, 7
          %v1186 = vsub.s32 %v1183, %v1185
          %v1187 = vrot.slane %v1179, %v1186
          %v1189 = vunpack.c.l.s4 1934713408
          %v1190 = vunpack.c.0.s8 %v1189
          %v1191 = vlaneseq
          %v1192 = vshrl.u32 %v1191, 7
          %v1193 = vsub.s32 %v1190, %v1192
          %v1194 = vrot.slane %v1180, %v1193
          %v1195 = vcombine.high %v1187, 0
          %v1196 = vcombine.high %v1194, 0
          %v1199 = vunpack.c.l.s4 1983009808
          %v1200 = vunpack.c.0.s8 %v1199
          %v1201 = vlaneseq
          %v1202 = vshrl.u32 %v1201, 7
          %v1203 = vsub.s32 %v1200, %v1202
          %v1204 = vrot.slane %v1119, %v1203
          %v1207 = vunpack.c.l.s4 1983009808
          %v1208 = vunpack.c.0.s8 %v1207
          %v1209 = vlaneseq
          %v1210 = vshrl.u32 %v1209, 7
          %v1211 = vsub.s32 %v1208, %v1210
          %v1212 = vrot.slane %v1125, %v1211
          %v1213 = vcombine.low %v1204, %v1212
          %v1214 = vcombine.high %v1204, %v1212
          %v1216 = vunpack.c.l.s4 1934713408
          %v1217 = vunpack.c.0.s8 %v1216
          %v1218 = vlaneseq
          %v1219 = vshrl.u32 %v1218, 7
          %v1220 = vsub.s32 %v1217, %v1219
          %v1221 = vrot.slane %v1213, %v1220
          %v1223 = vunpack.c.l.s4 1934713408
          %v1224 = vunpack.c.0.s8 %v1223
          %v1225 = vlaneseq
          %v1226 = vshrl.u32 %v1225, 7
          %v1227 = vsub.s32 %v1224, %v1226
          %v1228 = vrot.slane %v1214, %v1227
          %v1229 = vcombine.high %v1221, 0
          %v1230 = vcombine.high %v1228, 0
          %v1233 = vunpack.c.l.s4 1983009808
          %v1234 = vunpack.c.0.s8 %v1233
          %v1235 = vlaneseq
          %v1236 = vshrl.u32 %v1235, 7
          %v1237 = vsub.s32 %v1234, %v1236
          %v1238 = vrot.slane %v1122, %v1237
          %v1241 = vunpack.c.l.s4 1983009808
          %v1242 = vunpack.c.0.s8 %v1241
          %v1243 = vlaneseq
          %v1244 = vshrl.u32 %v1243, 7
          %v1245 = vsub.s32 %v1242, %v1244
          %v1246 = vrot.slane %v1128, %v1245
          %v1247 = vcombine.low %v1238, %v1246
          %v1248 = vcombine.high %v1238, %v1246
          %v1250 = vunpack.c.l.s4 1934713408
          %v1251 = vunpack.c.0.s8 %v1250
          %v1252 = vlaneseq
          %v1253 = vshrl.u32 %v1252, 7
          %v1254 = vsub.s32 %v1251, %v1253
          %v1255 = vrot.slane %v1247, %v1254
          %v1257 = vunpack.c.l.s4 1934713408
          %v1258 = vunpack.c.0.s8 %v1257
          %v1259 = vlaneseq
          %v1260 = vshrl.u32 %v1259, 7
          %v1261 = vsub.s32 %v1258, %v1260
          %v1262 = vrot.slane %v1248, %v1261
          %v1263 = vcombine.high %v1255, 0
          %v1264 = vcombine.high %v1262, 0
          %v1265 = vcombine.low %v860, %v864
          %v1267 = vunpack.c.l.s4 1983009808
          %v1268 = vunpack.c.0.s8 %v1267
          %v1269 = vlaneseq
          %v1270 = vshrl.u32 %v1269, 7
          %v1271 = vsub.s32 %v1268, %v1270
          %v1272 = vrot.slane %v1265, %v1271
          %v1273 = vcombine.low %v862, %v866
          %v1275 = vunpack.c.l.s4 1983009808
          %v1276 = vunpack.c.0.s8 %v1275
          %v1277 = vlaneseq
          %v1278 = vshrl.u32 %v1277, 7
          %v1279 = vsub.s32 %v1276, %v1278
          %v1280 = vrot.slane %v1273, %v1279
          %v1281 = vcombine.low %v868, %v872
          %v1283 = vunpack.c.l.s4 1983009808
          %v1284 = vunpack.c.0.s8 %v1283
          %v1285 = vlaneseq
          %v1286 = vshrl.u32 %v1285, 7
          %v1287 = vsub.s32 %v1284, %v1286
          %v1288 = vrot.slane %v1281, %v1287
          %v1289 = vcombine.low %v870, %v874
          %v1291 = vunpack.c.l.s4 1983009808
          %v1292 = vunpack.c.0.s8 %v1291
          %v1293 = vlaneseq
          %v1294 = vshrl.u32 %v1293, 7
          %v1295 = vsub.s32 %v1292, %v1294
          %v1296 = vrot.slane %v1289, %v1295
          %v1297 = vcombine.low %v1272, %v1280
          %v1299 = vunpack.c.l.s4 1934713408
          %v1300 = vunpack.c.0.s8 %v1299
          %v1301 = vlaneseq
          %v1302 = vshrl.u32 %v1301, 7
          %v1303 = vsub.s32 %v1300, %v1302
          %v1304 = vrot.slane %v1297, %v1303
          %v1305 = vcombine.low %v1288, %v1296
          %v1307 = vunpack.c.l.s4 1934713408
          %v1308 = vunpack.c.0.s8 %v1307
          %v1309 = vlaneseq
          %v1310 = vshrl.u32 %v1309, 7
          %v1311 = vsub.s32 %v1308, %v1310
          %v1312 = vrot.slane %v1305, %v1311
          %v1313 = vcombine.low %v1304, %v1312
          %v1314 = vcombine.high %v1304, %v1312
          %v1315 = vcombine.low %v861, %v865
          %v1317 = vunpack.c.l.s4 1983009808
          %v1318 = vunpack.c.0.s8 %v1317
          %v1319 = vlaneseq
          %v1320 = vshrl.u32 %v1319, 7
          %v1321 = vsub.s32 %v1318, %v1320
          %v1322 = vrot.slane %v1315, %v1321
          %v1323 = vcombine.low %v863, %v867
          %v1325 = vunpack.c.l.s4 1983009808
          %v1326 = vunpack.c.0.s8 %v1325
          %v1327 = vlaneseq
          %v1328 = vshrl.u32 %v1327, 7
          %v1329 = vsub.s32 %v1326, %v1328
          %v1330 = vrot.slane %v1323, %v1329
          %v1331 = vcombine.low %v869, %v873
          %v1333 = vunpack.c.l.s4 1983009808
          %v1334 = vunpack.c.0.s8 %v1333
          %v1335 = vlaneseq
          %v1336 = vshrl.u32 %v1335, 7
          %v1337 = vsub.s32 %v1334, %v1336
          %v1338 = vrot.slane %v1331, %v1337
          %v1339 = vcombine.low %v871, %v875
          %v1341 = vunpack.c.l.s4 1983009808
          %v1342 = vunpack.c.0.s8 %v1341
          %v1343 = vlaneseq
          %v1344 = vshrl.u32 %v1343, 7
          %v1345 = vsub.s32 %v1342, %v1344
          %v1346 = vrot.slane %v1339, %v1345
          %v1347 = vcombine.low %v1322, %v1330
          %v1349 = vunpack.c.l.s4 1934713408
          %v1350 = vunpack.c.0.s8 %v1349
          %v1351 = vlaneseq
          %v1352 = vshrl.u32 %v1351, 7
          %v1353 = vsub.s32 %v1350, %v1352
          %v1354 = vrot.slane %v1347, %v1353
          %v1355 = vcombine.low %v1338, %v1346
          %v1357 = vunpack.c.l.s4 1934713408
          %v1358 = vunpack.c.0.s8 %v1357
          %v1359 = vlaneseq
          %v1360 = vshrl.u32 %v1359, 7
          %v1361 = vsub.s32 %v1358, %v1360
          %v1362 = vrot.slane %v1355, %v1361
          %v1363 = vcombine.low %v1354, %v1362
          %v1364 = vcombine.high %v1354, %v1362
          %v1367 = vpack.i.b16 %v1363, %v1313
          %v1368 = vshrl.u32 %v1313, 16
          %v1369 = vshrl.u32 %v1363, 16
          %v1370 = vpack.i.b16 %v1369, %v1368
          %v1373 = vpack.i.b16 %v1364, %v1314
          %v1374 = vshrl.u32 %v1314, 16
          %v1375 = vshrl.u32 %v1364, 16
          %v1376 = vpack.i.b16 %v1375, %v1374
          %1377 = vxpose.xlu0.c.b16.start [1/8] %v975, 128
          %1378 = vxpose.xlu0.c.b16.cont [2/8] 0, 128
          %1379 = vxpose.xlu0.c.b16.cont [3/8] 0, 128
          %1380 = vxpose.xlu0.c.b16.cont [4/8] 0, 128
          %1381 = vxpose.xlu0.c.b16.cont [5/8] 0, 128
          %1382 = vxpose.xlu0.c.b16.cont [6/8] 0, 128
          %1383 = vxpose.xlu0.c.b16.cont [7/8] 0, 128
          %1384 = vxpose.xlu0.c.b16.end [8/8] 0, 128
          %v1385 = vpop.trf.xlu0
          %v1386 = vpop.trf.xlu0
          %v1387 = vpop.trf.xlu0
          %v1388 = vpop.trf.xlu0
          %v1389 = vpop.trf.xlu0
          %v1390 = vpop.trf.xlu0
          %v1391 = vpop.trf.xlu0
          %v1392 = vpop.trf.xlu0
          %1393 = vxpose.xlu0.c.b16.start [1/8] %v1009, 128
          %1394 = vxpose.xlu0.c.b16.cont [2/8] 0, 128
          %1395 = vxpose.xlu0.c.b16.cont [3/8] 0, 128
          %1396 = vxpose.xlu0.c.b16.cont [4/8] 0, 128
          %1397 = vxpose.xlu0.c.b16.cont [5/8] 0, 128
          %1398 = vxpose.xlu0.c.b16.cont [6/8] 0, 128
          %1399 = vxpose.xlu0.c.b16.cont [7/8] 0, 128
          %1400 = vxpose.xlu0.c.b16.end [8/8] 0, 128
          %v1401 = vpop.trf.xlu0
          %v1402 = vpop.trf.xlu0
          %v1403 = vpop.trf.xlu0
          %v1404 = vpop.trf.xlu0
          %v1405 = vpop.trf.xlu0
          %v1406 = vpop.trf.xlu0
          %v1407 = vpop.trf.xlu0
          %v1408 = vpop.trf.xlu0
          %1409 = vxpose.xlu0.c.b16.start [1/8] %v983, 128
          %1410 = vxpose.xlu0.c.b16.cont [2/8] 0, 128
          %1411 = vxpose.xlu0.c.b16.cont [3/8] 0, 128
          %1412 = vxpose.xlu0.c.b16.cont [4/8] 0, 128
          %1413 = vxpose.xlu0.c.b16.cont [5/8] 0, 128
          %1414 = vxpose.xlu0.c.b16.cont [6/8] 0, 128
          %1415 = vxpose.xlu0.c.b16.cont [7/8] 0, 128
          %1416 = vxpose.xlu0.c.b16.end [8/8] 0, 128
          %v1417 = vpop.trf.xlu0
          %v1418 = vpop.trf.xlu0
          %v1419 = vpop.trf.xlu0
          %v1420 = vpop.trf.xlu0
          %v1421 = vpop.trf.xlu0
          %v1422 = vpop.trf.xlu0
          %v1423 = vpop.trf.xlu0
          %v1424 = vpop.trf.xlu0
          %1425 = vxpose.xlu0.c.b16.start [1/8] %v1017, 128
          %1426 = vxpose.xlu0.c.b16.cont [2/8] 0, 128
          %1427 = vxpose.xlu0.c.b16.cont [3/8] 0, 128
          %1428 = vxpose.xlu0.c.b16.cont [4/8] 0, 128
          %1429 = vxpose.xlu0.c.b16.cont [5/8] 0, 128
          %1430 = vxpose.xlu0.c.b16.cont [6/8] 0, 128
          %1431 = vxpose.xlu0.c.b16.cont [7/8] 0, 128
          %1432 = vxpose.xlu0.c.b16.end [8/8] 0, 128
          %v1433 = vpop.trf.xlu0
          %v1434 = vpop.trf.xlu0
          %v1435 = vpop.trf.xlu0
          %v1436 = vpop.trf.xlu0
          %v1437 = vpop.trf.xlu0
          %v1438 = vpop.trf.xlu0
          %v1439 = vpop.trf.xlu0
          %v1440 = vpop.trf.xlu0
          %1441 = vxpose.xlu0.c.b16.start [1/8] %v982, 128
          %1442 = vxpose.xlu0.c.b16.cont [2/8] 0, 128
          %1443 = vxpose.xlu0.c.b16.cont [3/8] 0, 128
          %1444 = vxpose.xlu0.c.b16.cont [4/8] 0, 128
          %1445 = vxpose.xlu0.c.b16.cont [5/8] 0, 128
          %1446 = vxpose.xlu0.c.b16.cont [6/8] 0, 128
          %1447 = vxpose.xlu0.c.b16.cont [7/8] 0, 128
          %1448 = vxpose.xlu0.c.b16.end [8/8] 0, 128
          %v1449 = vpop.trf.xlu0
          %v1450 = vpop.trf.xlu0
          %v1451 = vpop.trf.xlu0
          %v1452 = vpop.trf.xlu0
          %v1453 = vpop.trf.xlu0
          %v1454 = vpop.trf.xlu0
          %v1455 = vpop.trf.xlu0
          %v1456 = vpop.trf.xlu0
          %1457 = vxpose.xlu0.c.b16.start [1/8] %v1016, 128
          %1458 = vxpose.xlu0.c.b16.cont [2/8] 0, 128
          %1459 = vxpose.xlu0.c.b16.cont [3/8] 0, 128
          %1460 = vxpose.xlu0.c.b16.cont [4/8] 0, 128
          %1461 = vxpose.xlu0.c.b16.cont [5/8] 0, 128
          %1462 = vxpose.xlu0.c.b16.cont [6/8] 0, 128
          %1463 = vxpose.xlu0.c.b16.cont [7/8] 0, 128
          %1464 = vxpose.xlu0.c.b16.end [8/8] 0, 128
          %v1465 = vpop.trf.xlu0
          %v1466 = vpop.trf.xlu0
          %v1467 = vpop.trf.xlu0
          %v1468 = vpop.trf.xlu0
          %v1469 = vpop.trf.xlu0
          %v1470 = vpop.trf.xlu0
          %v1471 = vpop.trf.xlu0
          %v1472 = vpop.trf.xlu0
          %1473 = vxpose.xlu0.c.b16.start [1/8] %v984, 128
          %1474 = vxpose.xlu0.c.b16.cont [2/8] 0, 128
          %1475 = vxpose.xlu0.c.b16.cont [3/8] 0, 128
          %1476 = vxpose.xlu0.c.b16.cont [4/8] 0, 128
          %1477 = vxpose.xlu0.c.b16.cont [5/8] 0, 128
          %1478 = vxpose.xlu0.c.b16.cont [6/8] 0, 128
          %1479 = vxpose.xlu0.c.b16.cont [7/8] 0, 128
          %1480 = vxpose.xlu0.c.b16.end [8/8] 0, 128
          %v1481 = vpop.trf.xlu0
          %v1482 = vpop.trf.xlu0
          %v1483 = vpop.trf.xlu0
          %v1484 = vpop.trf.xlu0
          %v1485 = vpop.trf.xlu0
          %v1486 = vpop.trf.xlu0
          %v1487 = vpop.trf.xlu0
          %v1488 = vpop.trf.xlu0
          %1489 = vxpose.xlu0.c.b16.start [1/8] %v1018, 128
          %1490 = vxpose.xlu0.c.b16.cont [2/8] 0, 128
          %1491 = vxpose.xlu0.c.b16.cont [3/8] 0, 128
          %1492 = vxpose.xlu0.c.b16.cont [4/8] 0, 128
          %1493 = vxpose.xlu0.c.b16.cont [5/8] 0, 128
          %1494 = vxpose.xlu0.c.b16.cont [6/8] 0, 128
          %1495 = vxpose.xlu0.c.b16.cont [7/8] 0, 128
          %1496 = vxpose.xlu0.c.b16.end [8/8] 0, 128
          %v1497 = vpop.trf.xlu0
          %v1498 = vpop.trf.xlu0
          %v1499 = vpop.trf.xlu0
          %v1500 = vpop.trf.xlu0
          %v1501 = vpop.trf.xlu0
          %v1502 = vpop.trf.xlu0
          %v1503 = vpop.trf.xlu0
          %v1504 = vpop.trf.xlu0
          %1505 = vxpose.xlu0.c.b16.start [1/8] %v1043, 128
          %1506 = vxpose.xlu0.c.b16.cont [2/8] 0, 128
          %1507 = vxpose.xlu0.c.b16.cont [3/8] 0, 128
          %1508 = vxpose.xlu0.c.b16.cont [4/8] 0, 128
          %1509 = vxpose.xlu0.c.b16.cont [5/8] 0, 128
          %1510 = vxpose.xlu0.c.b16.cont [6/8] 0, 128
          %1511 = vxpose.xlu0.c.b16.cont [7/8] 0, 128
          %1512 = vxpose.xlu0.c.b16.end [8/8] 0, 128
          %v1513 = vpop.trf.xlu0
          %v1514 = vpop.trf.xlu0
          %v1515 = vpop.trf.xlu0
          %v1516 = vpop.trf.xlu0
          %v1517 = vpop.trf.xlu0
          %v1518 = vpop.trf.xlu0
          %v1519 = vpop.trf.xlu0
          %v1520 = vpop.trf.xlu0
          %1521 = vxpose.xlu0.c.b16.start [1/8] %v1077, 128
          %1522 = vxpose.xlu0.c.b16.cont [2/8] 0, 128
          %1523 = vxpose.xlu0.c.b16.cont [3/8] 0, 128
          %1524 = vxpose.xlu0.c.b16.cont [4/8] 0, 128
          %1525 = vxpose.xlu0.c.b16.cont [5/8] 0, 128
          %1526 = vxpose.xlu0.c.b16.cont [6/8] 0, 128
          %1527 = vxpose.xlu0.c.b16.cont [7/8] 0, 128
          %1528 = vxpose.xlu0.c.b16.end [8/8] 0, 128
          %v1529 = vpop.trf.xlu0
          %v1530 = vpop.trf.xlu0
          %v1531 = vpop.trf.xlu0
          %v1532 = vpop.trf.xlu0
          %v1533 = vpop.trf.xlu0
          %v1534 = vpop.trf.xlu0
          %v1535 = vpop.trf.xlu0
          %v1536 = vpop.trf.xlu0
          %1537 = vxpose.xlu0.c.b16.start [1/8] %v1051, 128
          %1538 = vxpose.xlu0.c.b16.cont [2/8] 0, 128
          %1539 = vxpose.xlu0.c.b16.cont [3/8] 0, 128
          %1540 = vxpose.xlu0.c.b16.cont [4/8] 0, 128
          %1541 = vxpose.xlu0.c.b16.cont [5/8] 0, 128
          %1542 = vxpose.xlu0.c.b16.cont [6/8] 0, 128
          %1543 = vxpose.xlu0.c.b16.cont [7/8] 0, 128
          %1544 = vxpose.xlu0.c.b16.end [8/8] 0, 128
          %v1545 = vpop.trf.xlu0
          %v1546 = vpop.trf.xlu0
          %v1547 = vpop.trf.xlu0
          %v1548 = vpop.trf.xlu0
          %v1549 = vpop.trf.xlu0
          %v1550 = vpop.trf.xlu0
          %v1551 = vpop.trf.xlu0
          %v1552 = vpop.trf.xlu0
          %1553 = vxpose.xlu0.c.b16.start [1/8] %v1085, 128
          %1554 = vxpose.xlu0.c.b16.cont [2/8] 0, 128
          %1555 = vxpose.xlu0.c.b16.cont [3/8] 0, 128
          %1556 = vxpose.xlu0.c.b16.cont [4/8] 0, 128
          %1557 = vxpose.xlu0.c.b16.cont [5/8] 0, 128
          %1558 = vxpose.xlu0.c.b16.cont [6/8] 0, 128
          %1559 = vxpose.xlu0.c.b16.cont [7/8] 0, 128
          %1560 = vxpose.xlu0.c.b16.end [8/8] 0, 128
          %v1561 = vpop.trf.xlu0
          %v1562 = vpop.trf.xlu0
          %v1563 = vpop.trf.xlu0
          %v1564 = vpop.trf.xlu0
          %v1565 = vpop.trf.xlu0
          %v1566 = vpop.trf.xlu0
          %v1567 = vpop.trf.xlu0
          %v1568 = vpop.trf.xlu0
          %1569 = vxpose.xlu0.c.b16.start [1/8] %v1050, 128
          %1570 = vxpose.xlu0.c.b16.cont [2/8] 0, 128
          %1571 = vxpose.xlu0.c.b16.cont [3/8] 0, 128
          %1572 = vxpose.xlu0.c.b16.cont [4/8] 0, 128
          %1573 = vxpose.xlu0.c.b16.cont [5/8] 0, 128
          %1574 = vxpose.xlu0.c.b16.cont [6/8] 0, 128
          %1575 = vxpose.xlu0.c.b16.cont [7/8] 0, 128
          %1576 = vxpose.xlu0.c.b16.end [8/8] 0, 128
          %v1577 = vpop.trf.xlu0
          %v1578 = vpop.trf.xlu0
          %v1579 = vpop.trf.xlu0
          %v1580 = vpop.trf.xlu0
          %v1581 = vpop.trf.xlu0
          %v1582 = vpop.trf.xlu0
          %v1583 = vpop.trf.xlu0
          %v1584 = vpop.trf.xlu0
          %1585 = vxpose.xlu0.c.b16.start [1/8] %v1084, 128
          %1586 = vxpose.xlu0.c.b16.cont [2/8] 0, 128
          %1587 = vxpose.xlu0.c.b16.cont [3/8] 0, 128
          %1588 = vxpose.xlu0.c.b16.cont [4/8] 0, 128
          %1589 = vxpose.xlu0.c.b16.cont [5/8] 0, 128
          %1590 = vxpose.xlu0.c.b16.cont [6/8] 0, 128
          %1591 = vxpose.xlu0.c.b16.cont [7/8] 0, 128
          %1592 = vxpose.xlu0.c.b16.end [8/8] 0, 128
          %v1593 = vpop.trf.xlu0
          %v1594 = vpop.trf.xlu0
          %v1595 = vpop.trf.xlu0
          %v1596 = vpop.trf.xlu0
          %v1597 = vpop.trf.xlu0
          %v1598 = vpop.trf.xlu0
          %v1599 = vpop.trf.xlu0
          %v1600 = vpop.trf.xlu0
          %1601 = vxpose.xlu0.c.b16.start [1/8] %v1052, 128
          %1602 = vxpose.xlu0.c.b16.cont [2/8] 0, 128
          %1603 = vxpose.xlu0.c.b16.cont [3/8] 0, 128
          %1604 = vxpose.xlu0.c.b16.cont [4/8] 0, 128
          %1605 = vxpose.xlu0.c.b16.cont [5/8] 0, 128
          %1606 = vxpose.xlu0.c.b16.cont [6/8] 0, 128
          %1607 = vxpose.xlu0.c.b16.cont [7/8] 0, 128
          %1608 = vxpose.xlu0.c.b16.end [8/8] 0, 128
          %v1609 = vpop.trf.xlu0
          %v1610 = vpop.trf.xlu0
          %v1611 = vpop.trf.xlu0
          %v1612 = vpop.trf.xlu0
          %v1613 = vpop.trf.xlu0
          %v1614 = vpop.trf.xlu0
          %v1615 = vpop.trf.xlu0
          %v1616 = vpop.trf.xlu0
          %1617 = vxpose.xlu0.c.b16.start [1/8] %v1086, 128
          %1618 = vxpose.xlu0.c.b16.cont [2/8] 0, 128
          %1619 = vxpose.xlu0.c.b16.cont [3/8] 0, 128
          %1620 = vxpose.xlu0.c.b16.cont [4/8] 0, 128
          %1621 = vxpose.xlu0.c.b16.cont [5/8] 0, 128
          %1622 = vxpose.xlu0.c.b16.cont [6/8] 0, 128
          %1623 = vxpose.xlu0.c.b16.cont [7/8] 0, 128
          %1624 = vxpose.xlu0.c.b16.end [8/8] 0, 128
          %v1625 = vpop.trf.xlu0
          %v1626 = vpop.trf.xlu0
          %v1627 = vpop.trf.xlu0
          %v1628 = vpop.trf.xlu0
          %v1629 = vpop.trf.xlu0
          %v1630 = vpop.trf.xlu0
          %v1631 = vpop.trf.xlu0
          %v1632 = vpop.trf.xlu0
          %v1633 = vcombine.low %v1385, %v1449
          %v1635 = vunpack.c.l.s4 1983009808
          %v1636 = vunpack.c.0.s8 %v1635
          %v1637 = vlaneseq
          %v1638 = vshrl.u32 %v1637, 7
          %v1639 = vsub.s32 %v1636, %v1638
          %v1640 = vrot.slane %v1633, %v1639
          %v1641 = vcombine.low %v1417, %v1481
          %v1643 = vunpack.c.l.s4 1983009808
          %v1644 = vunpack.c.0.s8 %v1643
          %v1645 = vlaneseq
          %v1646 = vshrl.u32 %v1645, 7
          %v1647 = vsub.s32 %v1644, %v1646
          %v1648 = vrot.slane %v1641, %v1647
          %v1649 = vcombine.low %v1513, %v1577
          %v1651 = vunpack.c.l.s4 1983009808
          %v1652 = vunpack.c.0.s8 %v1651
          %v1653 = vlaneseq
          %v1654 = vshrl.u32 %v1653, 7
          %v1655 = vsub.s32 %v1652, %v1654
          %v1656 = vrot.slane %v1649, %v1655
          %v1657 = vcombine.low %v1545, %v1609
          %v1659 = vunpack.c.l.s4 1983009808
          %v1660 = vunpack.c.0.s8 %v1659
          %v1661 = vlaneseq
          %v1662 = vshrl.u32 %v1661, 7
          %v1663 = vsub.s32 %v1660, %v1662
          %v1664 = vrot.slane %v1657, %v1663
          %v1665 = vcombine.low %v1640, %v1648
          %v1666 = vcombine.high %v1640, %v1648
          %v1668 = vunpack.c.l.s4 1934713408
          %v1669 = vunpack.c.0.s8 %v1668
          %v1670 = vlaneseq
          %v1671 = vshrl.u32 %v1670, 7
          %v1672 = vsub.s32 %v1669, %v1671
          %v1673 = vrot.slane %v1665, %v1672
          %v1675 = vunpack.c.l.s4 1934713408
          %v1676 = vunpack.c.0.s8 %v1675
          %v1677 = vlaneseq
          %v1678 = vshrl.u32 %v1677, 7
          %v1679 = vsub.s32 %v1676, %v1678
          %v1680 = vrot.slane %v1666, %v1679
          %v1681 = vcombine.low %v1656, %v1664
          %v1682 = vcombine.high %v1656, %v1664
          %v1684 = vunpack.c.l.s4 1934713408
          %v1685 = vunpack.c.0.s8 %v1684
          %v1686 = vlaneseq
          %v1687 = vshrl.u32 %v1686, 7
          %v1688 = vsub.s32 %v1685, %v1687
          %v1689 = vrot.slane %v1681, %v1688
          %v1691 = vunpack.c.l.s4 1934713408
          %v1692 = vunpack.c.0.s8 %v1691
          %v1693 = vlaneseq
          %v1694 = vshrl.u32 %v1693, 7
          %v1695 = vsub.s32 %v1692, %v1694
          %v1696 = vrot.slane %v1682, %v1695
          %v1697 = vcombine.low %v1673, %v1689
          %v1698 = vcombine.high %v1673, %v1689
          %v1699 = vcombine.low %v1680, %v1696
          %v1700 = vcombine.high %v1680, %v1696
          %v1701 = vcombine.low %v1401, %v1465
          %v1703 = vunpack.c.l.s4 1983009808
          %v1704 = vunpack.c.0.s8 %v1703
          %v1705 = vlaneseq
          %v1706 = vshrl.u32 %v1705, 7
          %v1707 = vsub.s32 %v1704, %v1706
          %v1708 = vrot.slane %v1701, %v1707
          %v1709 = vcombine.low %v1433, %v1497
          %v1711 = vunpack.c.l.s4 1983009808
          %v1712 = vunpack.c.0.s8 %v1711
          %v1713 = vlaneseq
          %v1714 = vshrl.u32 %v1713, 7
          %v1715 = vsub.s32 %v1712, %v1714
          %v1716 = vrot.slane %v1709, %v1715
          %v1717 = vcombine.low %v1529, %v1593
          %v1719 = vunpack.c.l.s4 1983009808
          %v1720 = vunpack.c.0.s8 %v1719
          %v1721 = vlaneseq
          %v1722 = vshrl.u32 %v1721, 7
          %v1723 = vsub.s32 %v1720, %v1722
          %v1724 = vrot.slane %v1717, %v1723
          %v1725 = vcombine.low %v1561, %v1625
          %v1727 = vunpack.c.l.s4 1983009808
          %v1728 = vunpack.c.0.s8 %v1727
          %v1729 = vlaneseq
          %v1730 = vshrl.u32 %v1729, 7
          %v1731 = vsub.s32 %v1728, %v1730
          %v1732 = vrot.slane %v1725, %v1731
          %v1733 = vcombine.low %v1708, %v1716
          %v1734 = vcombine.high %v1708, %v1716
          %v1736 = vunpack.c.l.s4 1934713408
          %v1737 = vunpack.c.0.s8 %v1736
          %v1738 = vlaneseq
          %v1739 = vshrl.u32 %v1738, 7
          %v1740 = vsub.s32 %v1737, %v1739
          %v1741 = vrot.slane %v1733, %v1740
          %v1743 = vunpack.c.l.s4 1934713408
          %v1744 = vunpack.c.0.s8 %v1743
          %v1745 = vlaneseq
          %v1746 = vshrl.u32 %v1745, 7
          %v1747 = vsub.s32 %v1744, %v1746
          %v1748 = vrot.slane %v1734, %v1747
          %v1749 = vcombine.low %v1724, %v1732
          %v1750 = vcombine.high %v1724, %v1732
          %v1752 = vunpack.c.l.s4 1934713408
          %v1753 = vunpack.c.0.s8 %v1752
          %v1754 = vlaneseq
          %v1755 = vshrl.u32 %v1754, 7
          %v1756 = vsub.s32 %v1753, %v1755
          %v1757 = vrot.slane %v1749, %v1756
          %v1759 = vunpack.c.l.s4 1934713408
          %v1760 = vunpack.c.0.s8 %v1759
          %v1761 = vlaneseq
          %v1762 = vshrl.u32 %v1761, 7
          %v1763 = vsub.s32 %v1760, %v1762
          %v1764 = vrot.slane %v1750, %v1763
          %v1765 = vcombine.low %v1741, %v1757
          %v1766 = vcombine.high %v1741, %v1757
          %v1767 = vcombine.low %v1748, %v1764
          %v1768 = vcombine.high %v1748, %v1764
          %v1771 = vpack.i.b16 %v1765, %v1697
          %v1773 = vshrl.u32 %v1697, 16
          %v1774 = vshrl.u32 %v1765, 16
          %v1775 = vpack.i.b16 %v1774, %v1773
          %v1779 = vpack.i.b16 %v1766, %v1698
          %v1781 = vshrl.u32 %v1698, 16
          %v1782 = vshrl.u32 %v1766, 16
          %v1783 = vpack.i.b16 %v1782, %v1781
          %v1787 = vpack.i.b16 %v1767, %v1699
          %v1789 = vshrl.u32 %v1699, 16
          %v1790 = vshrl.u32 %v1767, 16
          %v1791 = vpack.i.b16 %v1790, %v1789
          %v1795 = vpack.i.b16 %v1768, %v1700
          %v1797 = vshrl.u32 %v1700, 16
          %v1798 = vshrl.u32 %v1768, 16
          %v1799 = vpack.i.b16 %v1798, %v1797
          %1801 = vxpose.xlu0.c.b16.start [1/8] %v1771, 128
          %1802 = vxpose.xlu0.c.b16.cont [2/8] 0, 128
          %1803 = vxpose.xlu0.c.b16.cont [3/8] 0, 128
          %1804 = vxpose.xlu0.c.b16.cont [4/8] 0, 128
          %1805 = vxpose.xlu0.c.b16.cont [5/8] 0, 128
          %1806 = vxpose.xlu0.c.b16.cont [6/8] 0, 128
          %1807 = vxpose.xlu0.c.b16.cont [7/8] 0, 128
          %1808 = vxpose.xlu0.c.b16.end [8/8] 0, 128
          %v1809 = vpop.trf.xlu0
          %v1810 = vpop.trf.xlu0
          %v1811 = vpop.trf.xlu0
          %v1812 = vpop.trf.xlu0
          %v1813 = vpop.trf.xlu0
          %v1814 = vpop.trf.xlu0
          %v1815 = vpop.trf.xlu0
          %v1816 = vpop.trf.xlu0
          %1817 = vxpose.xlu0.c.b16.start [1/8] %v1775, 128
          %1818 = vxpose.xlu0.c.b16.cont [2/8] 0, 128
          %1819 = vxpose.xlu0.c.b16.cont [3/8] 0, 128
          %1820 = vxpose.xlu0.c.b16.cont [4/8] 0, 128
          %1821 = vxpose.xlu0.c.b16.cont [5/8] 0, 128
          %1822 = vxpose.xlu0.c.b16.cont [6/8] 0, 128
          %1823 = vxpose.xlu0.c.b16.cont [7/8] 0, 128
          %1824 = vxpose.xlu0.c.b16.end [8/8] 0, 128
          %v1825 = vpop.trf.xlu0
          %v1826 = vpop.trf.xlu0
          %v1827 = vpop.trf.xlu0
          %v1828 = vpop.trf.xlu0
          %v1829 = vpop.trf.xlu0
          %v1830 = vpop.trf.xlu0
          %v1831 = vpop.trf.xlu0
          %v1832 = vpop.trf.xlu0
          %1833 = vxpose.xlu0.c.b16.start [1/8] %v1779, 128
          %1834 = vxpose.xlu0.c.b16.cont [2/8] 0, 128
          %1835 = vxpose.xlu0.c.b16.cont [3/8] 0, 128
          %1836 = vxpose.xlu0.c.b16.cont [4/8] 0, 128
          %1837 = vxpose.xlu0.c.b16.cont [5/8] 0, 128
          %1838 = vxpose.xlu0.c.b16.cont [6/8] 0, 128
          %1839 = vxpose.xlu0.c.b16.cont [7/8] 0, 128
          %1840 = vxpose.xlu0.c.b16.end [8/8] 0, 128
          %v1841 = vpop.trf.xlu0
          %v1842 = vpop.trf.xlu0
          %v1843 = vpop.trf.xlu0
          %v1844 = vpop.trf.xlu0
          %v1845 = vpop.trf.xlu0
          %v1846 = vpop.trf.xlu0
          %v1847 = vpop.trf.xlu0
          %v1848 = vpop.trf.xlu0
          %1849 = vxpose.xlu0.c.b16.start [1/8] %v1783, 128
          %1850 = vxpose.xlu0.c.b16.cont [2/8] 0, 128
          %1851 = vxpose.xlu0.c.b16.cont [3/8] 0, 128
          %1852 = vxpose.xlu0.c.b16.cont [4/8] 0, 128
          %1853 = vxpose.xlu0.c.b16.cont [5/8] 0, 128
          %1854 = vxpose.xlu0.c.b16.cont [6/8] 0, 128
          %1855 = vxpose.xlu0.c.b16.cont [7/8] 0, 128
          %1856 = vxpose.xlu0.c.b16.end [8/8] 0, 128
          %v1857 = vpop.trf.xlu0
          %v1858 = vpop.trf.xlu0
          %v1859 = vpop.trf.xlu0
          %v1860 = vpop.trf.xlu0
          %v1861 = vpop.trf.xlu0
          %v1862 = vpop.trf.xlu0
          %v1863 = vpop.trf.xlu0
          %v1864 = vpop.trf.xlu0
          %1865 = vxpose.xlu0.c.b16.start [1/8] %v1787, 128
          %1866 = vxpose.xlu0.c.b16.cont [2/8] 0, 128
          %1867 = vxpose.xlu0.c.b16.cont [3/8] 0, 128
          %1868 = vxpose.xlu0.c.b16.cont [4/8] 0, 128
          %1869 = vxpose.xlu0.c.b16.cont [5/8] 0, 128
          %1870 = vxpose.xlu0.c.b16.cont [6/8] 0, 128
          %1871 = vxpose.xlu0.c.b16.cont [7/8] 0, 128
          %1872 = vxpose.xlu0.c.b16.end [8/8] 0, 128
          %v1873 = vpop.trf.xlu0
          %v1874 = vpop.trf.xlu0
          %v1875 = vpop.trf.xlu0
          %v1876 = vpop.trf.xlu0
          %v1877 = vpop.trf.xlu0
          %v1878 = vpop.trf.xlu0
          %v1879 = vpop.trf.xlu0
          %v1880 = vpop.trf.xlu0
          %1881 = vxpose.xlu0.c.b16.start [1/8] %v1791, 128
          %1882 = vxpose.xlu0.c.b16.cont [2/8] 0, 128
          %1883 = vxpose.xlu0.c.b16.cont [3/8] 0, 128
          %1884 = vxpose.xlu0.c.b16.cont [4/8] 0, 128
          %1885 = vxpose.xlu0.c.b16.cont [5/8] 0, 128
          %1886 = vxpose.xlu0.c.b16.cont [6/8] 0, 128
          %1887 = vxpose.xlu0.c.b16.cont [7/8] 0, 128
          %1888 = vxpose.xlu0.c.b16.end [8/8] 0, 128
          %v1889 = vpop.trf.xlu0
          %v1890 = vpop.trf.xlu0
          %v1891 = vpop.trf.xlu0
          %v1892 = vpop.trf.xlu0
          %v1893 = vpop.trf.xlu0
          %v1894 = vpop.trf.xlu0
          %v1895 = vpop.trf.xlu0
          %v1896 = vpop.trf.xlu0
          %1897 = vxpose.xlu0.c.b16.start [1/8] %v1795, 128
          %1898 = vxpose.xlu0.c.b16.cont [2/8] 0, 128
          %1899 = vxpose.xlu0.c.b16.cont [3/8] 0, 128
          %1900 = vxpose.xlu0.c.b16.cont [4/8] 0, 128
          %1901 = vxpose.xlu0.c.b16.cont [5/8] 0, 128
          %1902 = vxpose.xlu0.c.b16.cont [6/8] 0, 128
          %1903 = vxpose.xlu0.c.b16.cont [7/8] 0, 128
          %1904 = vxpose.xlu0.c.b16.end [8/8] 0, 128
          %v1905 = vpop.trf.xlu0
          %v1906 = vpop.trf.xlu0
          %v1907 = vpop.trf.xlu0
          %v1908 = vpop.trf.xlu0
          %v1909 = vpop.trf.xlu0
          %v1910 = vpop.trf.xlu0
          %v1911 = vpop.trf.xlu0
          %v1912 = vpop.trf.xlu0
          %1913 = vxpose.xlu0.c.b16.start [1/8] %v1799, 128
          %1914 = vxpose.xlu0.c.b16.cont [2/8] 0, 128
          %1915 = vxpose.xlu0.c.b16.cont [3/8] 0, 128
          %1916 = vxpose.xlu0.c.b16.cont [4/8] 0, 128
          %1917 = vxpose.xlu0.c.b16.cont [5/8] 0, 128
          %1918 = vxpose.xlu0.c.b16.cont [6/8] 0, 128
          %1919 = vxpose.xlu0.c.b16.cont [7/8] 0, 128
          %1920 = vxpose.xlu0.c.b16.end [8/8] 0, 128
          %v1921 = vpop.trf.xlu0
          %v1922 = vpop.trf.xlu0
          %v1923 = vpop.trf.xlu0
          %v1924 = vpop.trf.xlu0
          %v1925 = vpop.trf.xlu0
          %v1926 = vpop.trf.xlu0
          %v1927 = vpop.trf.xlu0
          %v1928 = vpop.trf.xlu0
          %v1929 = vcombine.low %v1809, %v1873
          %v1931 = vunpack.c.l.s4 1983009808
          %v1932 = vunpack.c.0.s8 %v1931
          %v1933 = vlaneseq
          %v1934 = vshrl.u32 %v1933, 7
          %v1935 = vsub.s32 %v1932, %v1934
          %v1936 = vrot.slane %v1929, %v1935
          %v1937 = vcombine.low %v1841, %v1905
          %v1939 = vunpack.c.l.s4 1983009808
          %v1940 = vunpack.c.0.s8 %v1939
          %v1941 = vlaneseq
          %v1942 = vshrl.u32 %v1941, 7
          %v1943 = vsub.s32 %v1940, %v1942
          %v1944 = vrot.slane %v1937, %v1943
          %v1945 = vcombine.low %v1936, %v1944
          %v1947 = vunpack.c.l.s4 1934713408
          %v1948 = vunpack.c.0.s8 %v1947
          %v1949 = vlaneseq
          %v1950 = vshrl.u32 %v1949, 7
          %v1951 = vsub.s32 %v1948, %v1950
          %v1952 = vrot.slane %v1945, %v1951
          %v1953 = vcombine.high %v1952, 0
          %v1954 = vcombine.low %v1825, %v1889
          %v1956 = vunpack.c.l.s4 1983009808
          %v1957 = vunpack.c.0.s8 %v1956
          %v1958 = vlaneseq
          %v1959 = vshrl.u32 %v1958, 7
          %v1960 = vsub.s32 %v1957, %v1959
          %v1961 = vrot.slane %v1954, %v1960
          %v1962 = vcombine.low %v1857, %v1921
          %v1964 = vunpack.c.l.s4 1983009808
          %v1965 = vunpack.c.0.s8 %v1964
          %v1966 = vlaneseq
          %v1967 = vshrl.u32 %v1966, 7
          %v1968 = vsub.s32 %v1965, %v1967
          %v1969 = vrot.slane %v1962, %v1968
          %v1970 = vcombine.low %v1961, %v1969
          %v1972 = vunpack.c.l.s4 1934713408
          %v1973 = vunpack.c.0.s8 %v1972
          %v1974 = vlaneseq
          %v1975 = vshrl.u32 %v1974, 7
          %v1976 = vsub.s32 %v1973, %v1975
          %v1977 = vrot.slane %v1970, %v1976
          %v1978 = vcombine.high %v1977, 0
          %v1981 = vpack.i.b16 %v1977, %v1952
          %v1982 = vshrl.u32 %v1952, 16
          %v1983 = vshrl.u32 %v1977, 16
          %v1984 = vpack.i.b16 %v1983, %v1982
          %v1987 = vpack.i.b16 %v1978, %v1953
          %v1988 = vshrl.u32 %v1953, 16
          %v1989 = vshrl.u32 %v1978, 16
          %v1990 = vpack.i.b16 %v1989, %v1988
          %vm1991 = vcmask 64512
          %v1993 = vsel %vm1991, %v1367, 0
          %vm1995 = vcmask 1043456
          %v1997 = vsel %vm1995, %v1981, 0
          %1999 = vmatprep.subr.bf16.mxu0 0
          %2000 = vmatpush1.bf16.msra.mxu0 %v1997
          %2001 = vmatprep.subr.bf16.mxu0 0
          %2002 = vmatpush1.bf16.msra.mxu0 0
          %2003 = vmatprep.subr.bf16.mxu0 0
          %2004 = vmatpush1.bf16.msra.mxu0 0
          %2005 = vmatprep.subr.bf16.mxu0 0
          %2006 = vmatpush1.bf16.msra.mxu0 0
          %2007 = vmatprep.subr.bf16.mxu0 0
          %2008 = vmatpush1.bf16.msra.mxu0 0
          %2009 = vmatprep.subr.bf16.mxu0 0
          %2010 = vmatpush1.bf16.msra.mxu0 0
          %2011 = vmatprep.subr.bf16.mxu0 0
          %2012 = vmatpush1.bf16.msra.mxu0 0
          %2013 = vmatprep.subr.bf16.mxu0 0
          %2014 = vmatpush1.bf16.msra.mxu0 0
          %2015 = vmatprep.subr.bf16.mxu0 0
          %2016 = vmatpush1.bf16.msra.mxu0 0
          %2017 = vmatprep.subr.bf16.mxu0 0
          %2018 = vmatpush1.bf16.msra.mxu0 0
          %2019 = vmatprep.subr.bf16.mxu0 0
          %2020 = vmatpush1.bf16.msra.mxu0 0
          %2021 = vmatprep.subr.bf16.mxu0 0
          %2022 = vmatpush1.bf16.msra.mxu0 0
          %2023 = vmatprep.subr.bf16.mxu0 0
          %2024 = vmatpush1.bf16.msra.mxu0 0
          %2025 = vmatprep.subr.bf16.mxu0 0
          %2026 = vmatpush1.bf16.msra.mxu0 0
          %2027 = vmatprep.subr.bf16.mxu0 0
          %2028 = vmatpush1.bf16.msra.mxu0 0
          %2029 = vmatprep.subr.bf16.mxu0 0
          %2030 = vmatpush1.bf16.msra.mxu0 0
          %2031 = vmatprep.mubr.bf16.mxu0 0
          %2032 = vmatmul.mubr.bf16.gmra.mrb[0].mxu0 %v1993
          %v2033 = vpop.f32.mrb[0].mxu0
          %v2034 = vadd.f32 0.0, %v2033
          %v2035 = vpop.f32.mrb[0].mxu0
          %v2036 = vpop.f32.mrb[0].mxu0
          %v2037 = vadd.f32 0.0, %v2036
          %v2038 = vpop.f32.mrb[0].mxu0
          %2039 = vdwg.mxu0
          %v2041 = vsel %vm1991, %v1370, 0
          %v2044 = vsel %vm1995, %v1984, 0
          %2046 = vmatprep.subr.bf16.mxu0 0
          %2047 = vmatpush1.bf16.msra.mxu0 %v2044
          %2048 = vmatprep.subr.bf16.mxu0 0
          %2049 = vmatpush1.bf16.msra.mxu0 0
          %2050 = vmatprep.subr.bf16.mxu0 0
          %2051 = vmatpush1.bf16.msra.mxu0 0
          %2052 = vmatprep.subr.bf16.mxu0 0
          %2053 = vmatpush1.bf16.msra.mxu0 0
          %2054 = vmatprep.subr.bf16.mxu0 0
          %2055 = vmatpush1.bf16.msra.mxu0 0
          %2056 = vmatprep.subr.bf16.mxu0 0
          %2057 = vmatpush1.bf16.msra.mxu0 0
          %2058 = vmatprep.subr.bf16.mxu0 0
          %2059 = vmatpush1.bf16.msra.mxu0 0
          %2060 = vmatprep.subr.bf16.mxu0 0
          %2061 = vmatpush1.bf16.msra.mxu0 0
          %2062 = vmatprep.subr.bf16.mxu0 0
          %2063 = vmatpush1.bf16.msra.mxu0 0
          %2064 = vmatprep.subr.bf16.mxu0 0
          %2065 = vmatpush1.bf16.msra.mxu0 0
          %2066 = vmatprep.subr.bf16.mxu0 0
          %2067 = vmatpush1.bf16.msra.mxu0 0
          %2068 = vmatprep.subr.bf16.mxu0 0
          %2069 = vmatpush1.bf16.msra.mxu0 0
          %2070 = vmatprep.subr.bf16.mxu0 0
          %2071 = vmatpush1.bf16.msra.mxu0 0
          %2072 = vmatprep.subr.bf16.mxu0 0
          %2073 = vmatpush1.bf16.msra.mxu0 0
          %2074 = vmatprep.subr.bf16.mxu0 0
          %2075 = vmatpush1.bf16.msra.mxu0 0
          %2076 = vmatprep.subr.bf16.mxu0 0
          %2077 = vmatpush1.bf16.msra.mxu0 0
          %2078 = vmatprep.mubr.bf16.mxu0 0
          %2079 = vmatmul.mubr.bf16.gmra.mrb[0].mxu0 %v2041
          %v2080 = vpop.f32.mrb[0].mxu0
          %v2081 = vadd.f32 0.0, %v2080
          %v2082 = vpop.f32.mrb[0].mxu0
          %v2083 = vpop.f32.mrb[0].mxu0
          %v2084 = vadd.f32 0.0, %v2083
          %v2085 = vpop.f32.mrb[0].mxu0
          %2086 = vdwg.mxu0
          %v2088 = vsel %vm1991, %v1373, 0
          %v2091 = vsel %vm1995, %v1987, 0
          %2093 = vmatprep.subr.bf16.mxu0 0
          %2094 = vmatpush1.bf16.msra.mxu0 %v2091
          %2095 = vmatprep.subr.bf16.mxu0 0
          %2096 = vmatpush1.bf16.msra.mxu0 0
          %2097 = vmatprep.subr.bf16.mxu0 0
          %2098 = vmatpush1.bf16.msra.mxu0 0
          %2099 = vmatprep.subr.bf16.mxu0 0
          %2100 = vmatpush1.bf16.msra.mxu0 0
          %2101 = vmatprep.subr.bf16.mxu0 0
          %2102 = vmatpush1.bf16.msra.mxu0 0
          %2103 = vmatprep.subr.bf16.mxu0 0
          %2104 = vmatpush1.bf16.msra.mxu0 0
          %2105 = vmatprep.subr.bf16.mxu0 0
          %2106 = vmatpush1.bf16.msra.mxu0 0
          %2107 = vmatprep.subr.bf16.mxu0 0
          %2108 = vmatpush1.bf16.msra.mxu0 0
          %2109 = vmatprep.subr.bf16.mxu0 0
          %2110 = vmatpush1.bf16.msra.mxu0 0
          %2111 = vmatprep.subr.bf16.mxu0 0
          %2112 = vmatpush1.bf16.msra.mxu0 0
          %2113 = vmatprep.subr.bf16.mxu0 0
          %2114 = vmatpush1.bf16.msra.mxu0 0
          %2115 = vmatprep.subr.bf16.mxu0 0
          %2116 = vmatpush1.bf16.msra.mxu0 0
          %2117 = vmatprep.subr.bf16.mxu0 0
          %2118 = vmatpush1.bf16.msra.mxu0 0
          %2119 = vmatprep.subr.bf16.mxu0 0
          %2120 = vmatpush1.bf16.msra.mxu0 0
          %2121 = vmatprep.subr.bf16.mxu0 0
          %2122 = vmatpush1.bf16.msra.mxu0 0
          %2123 = vmatprep.subr.bf16.mxu0 0
          %2124 = vmatpush1.bf16.msra.mxu0 0
          %2125 = vmatprep.mubr.bf16.mxu0 0
          %2126 = vmatmul.mubr.bf16.gmra.mrb[0].mxu0 %v2088
          %v2127 = vpop.f32.mrb[0].mxu0
          %v2128 = vadd.f32 0.0, %v2127
          %v2129 = vpop.f32.mrb[0].mxu0
          %v2130 = vpop.f32.mrb[0].mxu0
          %v2131 = vadd.f32 0.0, %v2130
          %v2132 = vpop.f32.mrb[0].mxu0
          %2133 = vdwg.mxu0
          %v2135 = vsel %vm1991, %v1376, 0
          %v2138 = vsel %vm1995, %v1990, 0
          %2140 = vmatprep.subr.bf16.mxu0 0
          %2141 = vmatpush1.bf16.msra.mxu0 %v2138
          %2142 = vmatprep.subr.bf16.mxu0 0
          %2143 = vmatpush1.bf16.msra.mxu0 0
          %2144 = vmatprep.subr.bf16.mxu0 0
          %2145 = vmatpush1.bf16.msra.mxu0 0
          %2146 = vmatprep.subr.bf16.mxu0 0
          %2147 = vmatpush1.bf16.msra.mxu0 0
          %2148 = vmatprep.subr.bf16.mxu0 0
          %2149 = vmatpush1.bf16.msra.mxu0 0
          %2150 = vmatprep.subr.bf16.mxu0 0
          %2151 = vmatpush1.bf16.msra.mxu0 0
          %2152 = vmatprep.subr.bf16.mxu0 0
          %2153 = vmatpush1.bf16.msra.mxu0 0
          %2154 = vmatprep.subr.bf16.mxu0 0
          %2155 = vmatpush1.bf16.msra.mxu0 0
          %2156 = vmatprep.subr.bf16.mxu0 0
          %2157 = vmatpush1.bf16.msra.mxu0 0
          %2158 = vmatprep.subr.bf16.mxu0 0
          %2159 = vmatpush1.bf16.msra.mxu0 0
          %2160 = vmatprep.subr.bf16.mxu0 0
          %2161 = vmatpush1.bf16.msra.mxu0 0
          %2162 = vmatprep.subr.bf16.mxu0 0
          %2163 = vmatpush1.bf16.msra.mxu0 0
          %2164 = vmatprep.subr.bf16.mxu0 0
          %2165 = vmatpush1.bf16.msra.mxu0 0
          %2166 = vmatprep.subr.bf16.mxu0 0
          %2167 = vmatpush1.bf16.msra.mxu0 0
          %2168 = vmatprep.subr.bf16.mxu0 0
          %2169 = vmatpush1.bf16.msra.mxu0 0
          %2170 = vmatprep.subr.bf16.mxu0 0
          %2171 = vmatpush1.bf16.msra.mxu0 0
          %2172 = vmatprep.mubr.bf16.mxu0 0
          %2173 = vmatmul.mubr.bf16.gmra.mrb[0].mxu0 %v2135
          %v2174 = vpop.f32.mrb[0].mxu0
          %v2175 = vadd.f32 0.0, %v2174
          %v2176 = vpop.f32.mrb[0].mxu0
          %v2177 = vpop.f32.mrb[0].mxu0
          %v2178 = vadd.f32 0.0, %v2177
          %v2179 = vpop.f32.mrb[0].mxu0
          %2180 = vdwg.mxu0
          %vm2181 = vcmask 130048
          %v2182 = vsel %vm2181, %v2034, -inf
          %2183 = vmax.xlane.f32.xlu0 %v2182
          %v2184 = vpop.xlane.xlu0 %2183
          %v2185 = vsel %vm2181, %v2037, -inf
          %2186 = vmax.xlane.f32.xlu0 %v2185
          %v2187 = vpop.xlane.xlu0 %2186
          %v2188 = vsel %vm2181, %v2081, -inf
          %2189 = vmax.xlane.f32.xlu0 %v2188
          %v2190 = vpop.xlane.xlu0 %2189
          %v2191 = vsel %vm2181, %v2084, -inf
          %2192 = vmax.xlane.f32.xlu0 %v2191
          %v2193 = vpop.xlane.xlu0 %2192
          %v2194 = vsel %vm2181, %v2128, -inf
          %2195 = vmax.xlane.f32.xlu0 %v2194
          %v2196 = vpop.xlane.xlu0 %2195
          %v2197 = vsel %vm2181, %v2131, -inf
          %2198 = vmax.xlane.f32.xlu0 %v2197
          %v2199 = vpop.xlane.xlu0 %2198
          %v2200 = vsel %vm2181, %v2175, -inf
          %2201 = vmax.xlane.f32.xlu0 %v2200
          %v2202 = vpop.xlane.xlu0 %2201
          %v2203 = vsel %vm2181, %v2178, -inf
          %2204 = vmax.xlane.f32.xlu0 %v2203
          %v2205 = vpop.xlane.xlu0 %2204
          %v2206 = vmax.f32 %v882, %v2184
          %v2207 = vmax.f32 %v883, %v2187
          %v2208 = vmax.f32 %v884, %v2190
          %v2209 = vmax.f32 %v885, %v2193
          %v2210 = vmax.f32 %v886, %v2196
          %v2211 = vmax.f32 %v887, %v2199
          %v2212 = vmax.f32 %v888, %v2202
          %v2213 = vmax.f32 %v889, %v2205
          %v2214 = vsub.f32 %v882, %v2206
          %v2215 = vsub.f32 %v883, %v2207
          %v2216 = vsub.f32 %v884, %v2208
          %v2217 = vsub.f32 %v885, %v2209
          %v2218 = vsub.f32 %v886, %v2210
          %v2219 = vsub.f32 %v887, %v2211
          %v2220 = vsub.f32 %v888, %v2212
          %v2221 = vsub.f32 %v889, %v2213
          %v2222 = vmul.f32 %v2214, 1.442695
          %v2223 = vpow.pop %v2222
          %v2224 = vmul.f32 %v2215, 1.442695
          %v2225 = vpow.pop %v2224
          %v2226 = vmul.f32 %v2216, 1.442695
          %v2227 = vpow.pop %v2226
          %v2228 = vmul.f32 %v2217, 1.442695
          %v2229 = vpow.pop %v2228
          %v2230 = vmul.f32 %v2218, 1.442695
          %v2231 = vpow.pop %v2230
          %v2232 = vmul.f32 %v2219, 1.442695
          %v2233 = vpow.pop %v2232
          %v2234 = vmul.f32 %v2220, 1.442695
          %v2235 = vpow.pop %v2234
          %v2236 = vmul.f32 %v2221, 1.442695
          %v2237 = vpow.pop %v2236
          %v2238 = vsub.f32 %v2034, %v2206
          %v2239 = vsub.f32 %v2037, %v2207
          %v2240 = vsub.f32 %v2081, %v2208
          %v2241 = vsub.f32 %v2084, %v2209
          %v2242 = vsub.f32 %v2128, %v2210
          %v2243 = vsub.f32 %v2131, %v2211
          %v2244 = vsub.f32 %v2175, %v2212
          %v2245 = vsub.f32 %v2178, %v2213
          %v2246 = vmul.f32 %v2238, 1.442695
          %v2247 = vpow.pop %v2246
          %v2248 = vmul.f32 %v2239, 1.442695
          %v2249 = vpow.pop %v2248
          %v2250 = vmul.f32 %v2240, 1.442695
          %v2251 = vpow.pop %v2250
          %v2252 = vmul.f32 %v2241, 1.442695
          %v2253 = vpow.pop %v2252
          %v2254 = vmul.f32 %v2242, 1.442695
          %v2255 = vpow.pop %v2254
          %v2256 = vmul.f32 %v2243, 1.442695
          %v2257 = vpow.pop %v2256
          %v2258 = vmul.f32 %v2244, 1.442695
          %v2259 = vpow.pop %v2258
          %v2260 = vmul.f32 %v2245, 1.442695
          %v2261 = vpow.pop %v2260
          %v2262 = vmul.f32 %v2223, %v890
          %v2263 = vmul.f32 %v2225, %v891
          %v2264 = vmul.f32 %v2227, %v892
          %v2265 = vmul.f32 %v2229, %v893
          %v2266 = vmul.f32 %v2231, %v894
          %v2267 = vmul.f32 %v2233, %v895
          %v2268 = vmul.f32 %v2235, %v896
          %v2269 = vmul.f32 %v2237, %v897
          %v2270 = vsel %vm2181, %v2247, 0.0
          %2271 = vadd.xlane.f32.xlu0 %v2270
          %v2272 = vpop.xlane.xlu0 %2271
          %v2273 = vsel %vm2181, %v2249, 0.0
          %2274 = vadd.xlane.f32.xlu0 %v2273
          %v2275 = vpop.xlane.xlu0 %2274
          %v2276 = vsel %vm2181, %v2251, 0.0
          %2277 = vadd.xlane.f32.xlu0 %v2276
          %v2278 = vpop.xlane.xlu0 %2277
          %v2279 = vsel %vm2181, %v2253, 0.0
          %2280 = vadd.xlane.f32.xlu0 %v2279
          %v2281 = vpop.xlane.xlu0 %2280
          %v2282 = vsel %vm2181, %v2255, 0.0
          %2283 = vadd.xlane.f32.xlu0 %v2282
          %v2284 = vpop.xlane.xlu0 %2283
          %v2285 = vsel %vm2181, %v2257, 0.0
          %2286 = vadd.xlane.f32.xlu0 %v2285
          %v2287 = vpop.xlane.xlu0 %2286
          %v2288 = vsel %vm2181, %v2259, 0.0
          %2289 = vadd.xlane.f32.xlu0 %v2288
          %v2290 = vpop.xlane.xlu0 %2289
          %v2291 = vsel %vm2181, %v2261, 0.0
          %2292 = vadd.xlane.f32.xlu0 %v2291
          %v2293 = vpop.xlane.xlu0 %2292
          %v2294 = vadd.f32 %v2262, %v2272
          %v2295 = vadd.f32 %v2263, %v2275
          %v2296 = vadd.f32 %v2264, %v2278
          %v2297 = vadd.f32 %v2265, %v2281
          %v2298 = vadd.f32 %v2266, %v2284
          %v2299 = vadd.f32 %v2267, %v2287
          %v2300 = vadd.f32 %v2268, %v2290
          %v2301 = vadd.f32 %v2269, %v2293
          %v2302 = vpack.c.bf16 %v2249, %v2247
          %v2303 = vpack.c.bf16 %v2253, %v2251
          %v2304 = vpack.c.bf16 %v2257, %v2255
          %v2305 = vpack.c.bf16 %v2261, %v2259
          %v2306 = vcombine.low %v1153, %v1160
          %v2308 = vunpack.c.l.s4 1983009808
          %v2309 = vunpack.c.0.s8 %v2308
          %v2310 = vlaneseq
          %v2311 = vshrl.u32 %v2310, 7
          %v2312 = vsub.s32 %v2309, %v2311
          %v2313 = vrot.slane %v2306, %v2312
          %v2314 = vcombine.low %v1161, %v1162
          %v2316 = vunpack.c.l.s4 1983009808
          %v2317 = vunpack.c.0.s8 %v2316
          %v2318 = vlaneseq
          %v2319 = vshrl.u32 %v2318, 7
          %v2320 = vsub.s32 %v2317, %v2319
          %v2321 = vrot.slane %v2314, %v2320
          %v2322 = vcombine.low %v2313, %v2321
          %v2324 = vunpack.c.l.s4 1934713408
          %v2325 = vunpack.c.0.s8 %v2324
          %v2326 = vlaneseq
          %v2327 = vshrl.u32 %v2326, 7
          %v2328 = vsub.s32 %v2325, %v2327
          %v2329 = vrot.slane %v2322, %v2328
          %v2330 = vcombine.high %v2329, 0
          %v2331 = vcombine.low %v1187, %v1194
          %v2333 = vunpack.c.l.s4 1983009808
          %v2334 = vunpack.c.0.s8 %v2333
          %v2335 = vlaneseq
          %v2336 = vshrl.u32 %v2335, 7
          %v2337 = vsub.s32 %v2334, %v2336
          %v2338 = vrot.slane %v2331, %v2337
          %v2339 = vcombine.low %v1195, %v1196
          %v2341 = vunpack.c.l.s4 1983009808
          %v2342 = vunpack.c.0.s8 %v2341
          %v2343 = vlaneseq
          %v2344 = vshrl.u32 %v2343, 7
          %v2345 = vsub.s32 %v2342, %v2344
          %v2346 = vrot.slane %v2339, %v2345
          %v2347 = vcombine.low %v2338, %v2346
          %v2349 = vunpack.c.l.s4 1934713408
          %v2350 = vunpack.c.0.s8 %v2349
          %v2351 = vlaneseq
          %v2352 = vshrl.u32 %v2351, 7
          %v2353 = vsub.s32 %v2350, %v2352
          %v2354 = vrot.slane %v2347, %v2353
          %v2355 = vcombine.high %v2354, 0
          %v2356 = vcombine.low %v1221, %v1228
          %v2358 = vunpack.c.l.s4 1983009808
          %v2359 = vunpack.c.0.s8 %v2358
          %v2360 = vlaneseq
          %v2361 = vshrl.u32 %v2360, 7
          %v2362 = vsub.s32 %v2359, %v2361
          %v2363 = vrot.slane %v2356, %v2362
          %v2364 = vcombine.low %v1229, %v1230
          %v2366 = vunpack.c.l.s4 1983009808
          %v2367 = vunpack.c.0.s8 %v2366
          %v2368 = vlaneseq
          %v2369 = vshrl.u32 %v2368, 7
          %v2370 = vsub.s32 %v2367, %v2369
          %v2371 = vrot.slane %v2364, %v2370
          %v2372 = vcombine.low %v2363, %v2371
          %v2374 = vunpack.c.l.s4 1934713408
          %v2375 = vunpack.c.0.s8 %v2374
          %v2376 = vlaneseq
          %v2377 = vshrl.u32 %v2376, 7
          %v2378 = vsub.s32 %v2375, %v2377
          %v2379 = vrot.slane %v2372, %v2378
          %v2380 = vcombine.high %v2379, 0
          %v2381 = vcombine.low %v1255, %v1262
          %v2383 = vunpack.c.l.s4 1983009808
          %v2384 = vunpack.c.0.s8 %v2383
          %v2385 = vlaneseq
          %v2386 = vshrl.u32 %v2385, 7
          %v2387 = vsub.s32 %v2384, %v2386
          %v2388 = vrot.slane %v2381, %v2387
          %v2389 = vcombine.low %v1263, %v1264
          %v2391 = vunpack.c.l.s4 1983009808
          %v2392 = vunpack.c.0.s8 %v2391
          %v2393 = vlaneseq
          %v2394 = vshrl.u32 %v2393, 7
          %v2395 = vsub.s32 %v2392, %v2394
          %v2396 = vrot.slane %v2389, %v2395
          %v2397 = vcombine.low %v2388, %v2396
          %v2399 = vunpack.c.l.s4 1934713408
          %v2400 = vunpack.c.0.s8 %v2399
          %v2401 = vlaneseq
          %v2402 = vshrl.u32 %v2401, 7
          %v2403 = vsub.s32 %v2400, %v2402
          %v2404 = vrot.slane %v2397, %v2403
          %v2405 = vcombine.high %v2404, 0
          %v2408 = vpack.i.b16 %v2354, %v2329
          %v2409 = vshrl.u32 %v2329, 16
          %v2410 = vshrl.u32 %v2354, 16
          %v2411 = vpack.i.b16 %v2410, %v2409
          %v2414 = vpack.i.b16 %v2355, %v2330
          %v2415 = vshrl.u32 %v2330, 16
          %v2416 = vshrl.u32 %v2355, 16
          %v2417 = vpack.i.b16 %v2416, %v2415
          %v2420 = vpack.i.b16 %v2404, %v2379
          %v2421 = vshrl.u32 %v2379, 16
          %v2422 = vshrl.u32 %v2404, 16
          %v2423 = vpack.i.b16 %v2422, %v2421
          %v2426 = vpack.i.b16 %v2405, %v2380
          %v2427 = vshrl.u32 %v2380, 16
          %v2428 = vshrl.u32 %v2405, 16
          %v2429 = vpack.i.b16 %v2428, %v2427
          %v2430 = vunpack.c.l.b16 %v2408
          %v2431 = vunpack.c.l.b16 %v2420
          %v2432 = vpack.c.b16 %v2431, %v2430
          %v2435 = vsel %vm2181, %v2302, 0
          %2437 = vmatprep.subr.bf16.mxu0 0
          %2438 = vmatpush1.bf16.msra.mxu0 %v2432
          %2439 = vmatprep.subr.bf16.mxu0 0
          %2440 = vmatpush1.bf16.msra.mxu0 0
          %2441 = vmatprep.subr.bf16.mxu0 0
          %2442 = vmatpush1.bf16.msra.mxu0 0
          %2443 = vmatprep.subr.bf16.mxu0 0
          %2444 = vmatpush1.bf16.msra.mxu0 0
          %2445 = vmatprep.subr.bf16.mxu0 0
          %2446 = vmatpush1.bf16.msra.mxu0 0
          %2447 = vmatprep.subr.bf16.mxu0 0
          %2448 = vmatpush1.bf16.msra.mxu0 0
          %2449 = vmatprep.subr.bf16.mxu0 0
          %2450 = vmatpush1.bf16.msra.mxu0 0
          %2451 = vmatprep.subr.bf16.mxu0 0
          %2452 = vmatpush1.bf16.msra.mxu0 0
          %2453 = vmatprep.subr.bf16.mxu0 0
          %2454 = vmatpush1.bf16.msra.mxu0 0
          %2455 = vmatprep.subr.bf16.mxu0 0
          %2456 = vmatpush1.bf16.msra.mxu0 0
          %2457 = vmatprep.subr.bf16.mxu0 0
          %2458 = vmatpush1.bf16.msra.mxu0 0
          %2459 = vmatprep.subr.bf16.mxu0 0
          %2460 = vmatpush1.bf16.msra.mxu0 0
          %2461 = vmatprep.subr.bf16.mxu0 0
          %2462 = vmatpush1.bf16.msra.mxu0 0
          %2463 = vmatprep.subr.bf16.mxu0 0
          %2464 = vmatpush1.bf16.msra.mxu0 0
          %2465 = vmatprep.subr.bf16.mxu0 0
          %2466 = vmatpush1.bf16.msra.mxu0 0
          %2467 = vmatprep.subr.bf16.mxu0 0
          %2468 = vmatpush1.bf16.msra.mxu0 0
          %2469 = vmatprep.mubr.bf16.mxu0 0
          %2470 = vmatmul.mubr.bf16.gmra.mrb[0].mxu0 %v2435
          %v2471 = vpop.f32.mrb[0].mxu0
          %v2472 = vadd.f32 0.0, %v2471
          %v2473 = vpop.f32.mrb[0].mxu0
          %v2474 = vpop.f32.mrb[0].mxu0
          %v2475 = vadd.f32 0.0, %v2474
          %v2476 = vpop.f32.mrb[0].mxu0
          %2477 = vdwg.mxu0
          %v2478 = vunpack.c.l.b16 %v2411
          %v2479 = vunpack.c.l.b16 %v2423
          %v2480 = vpack.c.b16 %v2479, %v2478
          %v2483 = vsel %vm2181, %v2303, 0
          %2485 = vmatprep.subr.bf16.mxu0 0
          %2486 = vmatpush1.bf16.msra.mxu0 %v2480
          %2487 = vmatprep.subr.bf16.mxu0 0
          %2488 = vmatpush1.bf16.msra.mxu0 0
          %2489 = vmatprep.subr.bf16.mxu0 0
          %2490 = vmatpush1.bf16.msra.mxu0 0
          %2491 = vmatprep.subr.bf16.mxu0 0
          %2492 = vmatpush1.bf16.msra.mxu0 0
          %2493 = vmatprep.subr.bf16.mxu0 0
          %2494 = vmatpush1.bf16.msra.mxu0 0
          %2495 = vmatprep.subr.bf16.mxu0 0
          %2496 = vmatpush1.bf16.msra.mxu0 0
          %2497 = vmatprep.subr.bf16.mxu0 0
          %2498 = vmatpush1.bf16.msra.mxu0 0
          %2499 = vmatprep.subr.bf16.mxu0 0
          %2500 = vmatpush1.bf16.msra.mxu0 0
          %2501 = vmatprep.subr.bf16.mxu0 0
          %2502 = vmatpush1.bf16.msra.mxu0 0
          %2503 = vmatprep.subr.bf16.mxu0 0
          %2504 = vmatpush1.bf16.msra.mxu0 0
          %2505 = vmatprep.subr.bf16.mxu0 0
          %2506 = vmatpush1.bf16.msra.mxu0 0
          %2507 = vmatprep.subr.bf16.mxu0 0
          %2508 = vmatpush1.bf16.msra.mxu0 0
          %2509 = vmatprep.subr.bf16.mxu0 0
          %2510 = vmatpush1.bf16.msra.mxu0 0
          %2511 = vmatprep.subr.bf16.mxu0 0
          %2512 = vmatpush1.bf16.msra.mxu0 0
          %2513 = vmatprep.subr.bf16.mxu0 0
          %2514 = vmatpush1.bf16.msra.mxu0 0
          %2515 = vmatprep.subr.bf16.mxu0 0
          %2516 = vmatpush1.bf16.msra.mxu0 0
          %2517 = vmatprep.mubr.bf16.mxu0 0
          %2518 = vmatmul.mubr.bf16.gmra.mrb[0].mxu0 %v2483
          %v2519 = vpop.f32.mrb[0].mxu0
          %v2520 = vadd.f32 0.0, %v2519
          %v2521 = vpop.f32.mrb[0].mxu0
          %v2522 = vpop.f32.mrb[0].mxu0
          %v2523 = vadd.f32 0.0, %v2522
          %v2524 = vpop.f32.mrb[0].mxu0
          %2525 = vdwg.mxu0
          %v2526 = vunpack.c.l.b16 %v2414
          %v2527 = vunpack.c.l.b16 %v2426
          %v2528 = vpack.c.b16 %v2527, %v2526
          %v2531 = vsel %vm2181, %v2304, 0
          %2533 = vmatprep.subr.bf16.mxu0 0
          %2534 = vmatpush1.bf16.msra.mxu0 %v2528
          %2535 = vmatprep.subr.bf16.mxu0 0
          %2536 = vmatpush1.bf16.msra.mxu0 0
          %2537 = vmatprep.subr.bf16.mxu0 0
          %2538 = vmatpush1.bf16.msra.mxu0 0
          %2539 = vmatprep.subr.bf16.mxu0 0
          %2540 = vmatpush1.bf16.msra.mxu0 0
          %2541 = vmatprep.subr.bf16.mxu0 0
          %2542 = vmatpush1.bf16.msra.mxu0 0
          %2543 = vmatprep.subr.bf16.mxu0 0
          %2544 = vmatpush1.bf16.msra.mxu0 0
          %2545 = vmatprep.subr.bf16.mxu0 0
          %2546 = vmatpush1.bf16.msra.mxu0 0
          %2547 = vmatprep.subr.bf16.mxu0 0
          %2548 = vmatpush1.bf16.msra.mxu0 0
          %2549 = vmatprep.subr.bf16.mxu0 0
          %2550 = vmatpush1.bf16.msra.mxu0 0
          %2551 = vmatprep.subr.bf16.mxu0 0
          %2552 = vmatpush1.bf16.msra.mxu0 0
          %2553 = vmatprep.subr.bf16.mxu0 0
          %2554 = vmatpush1.bf16.msra.mxu0 0
          %2555 = vmatprep.subr.bf16.mxu0 0
          %2556 = vmatpush1.bf16.msra.mxu0 0
          %2557 = vmatprep.subr.bf16.mxu0 0
          %2558 = vmatpush1.bf16.msra.mxu0 0
          %2559 = vmatprep.subr.bf16.mxu0 0
          %2560 = vmatpush1.bf16.msra.mxu0 0
          %2561 = vmatprep.subr.bf16.mxu0 0
          %2562 = vmatpush1.bf16.msra.mxu0 0
          %2563 = vmatprep.subr.bf16.mxu0 0
          %2564 = vmatpush1.bf16.msra.mxu0 0
          %2565 = vmatprep.mubr.bf16.mxu0 0
          %2566 = vmatmul.mubr.bf16.gmra.mrb[0].mxu0 %v2531
          %v2567 = vpop.f32.mrb[0].mxu0
          %v2568 = vadd.f32 0.0, %v2567
          %v2569 = vpop.f32.mrb[0].mxu0
          %v2570 = vpop.f32.mrb[0].mxu0
          %v2571 = vadd.f32 0.0, %v2570
          %v2572 = vpop.f32.mrb[0].mxu0
          %2573 = vdwg.mxu0
          %v2574 = vunpack.c.l.b16 %v2417
          %v2575 = vunpack.c.l.b16 %v2429
          %v2576 = vpack.c.b16 %v2575, %v2574
          %v2579 = vsel %vm2181, %v2305, 0
          %2581 = vmatprep.subr.bf16.mxu0 0
          %2582 = vmatpush1.bf16.msra.mxu0 %v2576
          %2583 = vmatprep.subr.bf16.mxu0 0
          %2584 = vmatpush1.bf16.msra.mxu0 0
          %2585 = vmatprep.subr.bf16.mxu0 0
          %2586 = vmatpush1.bf16.msra.mxu0 0
          %2587 = vmatprep.subr.bf16.mxu0 0
          %2588 = vmatpush1.bf16.msra.mxu0 0
          %2589 = vmatprep.subr.bf16.mxu0 0
          %2590 = vmatpush1.bf16.msra.mxu0 0
          %2591 = vmatprep.subr.bf16.mxu0 0
          %2592 = vmatpush1.bf16.msra.mxu0 0
          %2593 = vmatprep.subr.bf16.mxu0 0
          %2594 = vmatpush1.bf16.msra.mxu0 0
          %2595 = vmatprep.subr.bf16.mxu0 0
          %2596 = vmatpush1.bf16.msra.mxu0 0
          %2597 = vmatprep.subr.bf16.mxu0 0
          %2598 = vmatpush1.bf16.msra.mxu0 0
          %2599 = vmatprep.subr.bf16.mxu0 0
          %2600 = vmatpush1.bf16.msra.mxu0 0
          %2601 = vmatprep.subr.bf16.mxu0 0
          %2602 = vmatpush1.bf16.msra.mxu0 0
          %2603 = vmatprep.subr.bf16.mxu0 0
          %2604 = vmatpush1.bf16.msra.mxu0 0
          %2605 = vmatprep.subr.bf16.mxu0 0
          %2606 = vmatpush1.bf16.msra.mxu0 0
          %2607 = vmatprep.subr.bf16.mxu0 0
          %2608 = vmatpush1.bf16.msra.mxu0 0
          %2609 = vmatprep.subr.bf16.mxu0 0
          %2610 = vmatpush1.bf16.msra.mxu0 0
          %2611 = vmatprep.subr.bf16.mxu0 0
          %2612 = vmatpush1.bf16.msra.mxu0 0
          %2613 = vmatprep.mubr.bf16.mxu0 0
          %2614 = vmatmul.mubr.bf16.gmra.mrb[0].mxu0 %v2579
          %v2615 = vpop.f32.mrb[0].mxu0
          %v2616 = vadd.f32 0.0, %v2615
          %v2617 = vpop.f32.mrb[0].mxu0
          %v2618 = vpop.f32.mrb[0].mxu0
          %v2619 = vadd.f32 0.0, %v2618
          %v2620 = vpop.f32.mrb[0].mxu0
          %2621 = vdwg.mxu0
          %v2622 = vmul.f32 %v2223, %v898
          %v2623 = vmul.f32 %v2225, %v899
          %v2624 = vmul.f32 %v2227, %v900
          %v2625 = vmul.f32 %v2229, %v901
          %v2626 = vmul.f32 %v2231, %v902
          %v2627 = vmul.f32 %v2233, %v903
          %v2628 = vmul.f32 %v2235, %v904
          %v2629 = vmul.f32 %v2237, %v905
          %v2630 = vadd.f32 %v2622, %v2472
          %v2631 = vadd.f32 %v2623, %v2475
          %v2632 = vadd.f32 %v2624, %v2520
          %v2633 = vadd.f32 %v2625, %v2523
          %v2634 = vadd.f32 %v2626, %v2568
          %v2635 = vadd.f32 %v2627, %v2571
          %v2636 = vadd.f32 %v2628, %v2616
          %v2637 = vadd.f32 %v2629, %v2619
        $region105: #{tpu_custom_call.1} parent=79 // loop_footer
          %s881 = sadd.s32 1, %s877
        $region106: #{tpu_custom_call.1} parent=79 // loop_footer_branch
          %876 = sbr.rel target = $region102
        $region107: #{tpu_custom_call.1} parent=79 // loop_exit
          _
        %v2638 = vrcp.pop %v890
        %v2639 = vrcp.pop %v891
        %v2640 = vrcp.pop %v892
        %v2641 = vrcp.pop %v893
        %v2642 = vrcp.pop %v894
        %v2643 = vrcp.pop %v895
        %v2644 = vrcp.pop %v896
        %v2645 = vrcp.pop %v897
        %v2646 = vmul.f32 %v898, %v2638
        %v2647 = vmul.f32 %v899, %v2639
        %v2648 = vmul.f32 %v900, %v2640
        %v2649 = vmul.f32 %v901, %v2641
        %v2650 = vmul.f32 %v902, %v2642
        %v2651 = vmul.f32 %v903, %v2643
        %v2652 = vmul.f32 %v904, %v2644
        %v2653 = vmul.f32 %v905, %v2645
        %v2654 = vcombine.low %v2646, %v2650
        %v2655 = vcombine.high %v2646, %v2650
        %v2657 = vunpack.c.l.s4 1983009808
        %v2658 = vunpack.c.0.s8 %v2657
        %v2659 = vlaneseq
        %v2660 = vshrl.u32 %v2659, 7
        %v2661 = vsub.s32 %v2658, %v2660
        %v2662 = vrot.slane %v2654, %v2661
        %v2664 = vunpack.c.l.s4 1983009808
        %v2665 = vunpack.c.0.s8 %v2664
        %v2666 = vlaneseq
        %v2667 = vshrl.u32 %v2666, 7
        %v2668 = vsub.s32 %v2665, %v2667
        %v2669 = vrot.slane %v2655, %v2668
        %v2670 = vcombine.low %v2648, %v2652
        %v2671 = vcombine.high %v2648, %v2652
        %v2673 = vunpack.c.l.s4 1983009808
        %v2674 = vunpack.c.0.s8 %v2673
        %v2675 = vlaneseq
        %v2676 = vshrl.u32 %v2675, 7
        %v2677 = vsub.s32 %v2674, %v2676
        %v2678 = vrot.slane %v2670, %v2677
        %v2680 = vunpack.c.l.s4 1983009808
        %v2681 = vunpack.c.0.s8 %v2680
        %v2682 = vlaneseq
        %v2683 = vshrl.u32 %v2682, 7
        %v2684 = vsub.s32 %v2681, %v2683
        %v2685 = vrot.slane %v2671, %v2684
        %v2686 = vcombine.low %v2662, %v2678
        %v2687 = vcombine.high %v2662, %v2678
        %v2689 = vunpack.c.l.s4 1934713408
        %v2690 = vunpack.c.0.s8 %v2689
        %v2691 = vlaneseq
        %v2692 = vshrl.u32 %v2691, 7
        %v2693 = vsub.s32 %v2690, %v2692
        %v2694 = vrot.slane %v2686, %v2693
        %v2696 = vunpack.c.l.s4 1934713408
        %v2697 = vunpack.c.0.s8 %v2696
        %v2698 = vlaneseq
        %v2699 = vshrl.u32 %v2698, 7
        %v2700 = vsub.s32 %v2697, %v2699
        %v2701 = vrot.slane %v2687, %v2700
        %v2702 = vcombine.low %v2669, %v2685
        %v2703 = vcombine.high %v2669, %v2685
        %v2705 = vunpack.c.l.s4 1934713408
        %v2706 = vunpack.c.0.s8 %v2705
        %v2707 = vlaneseq
        %v2708 = vshrl.u32 %v2707, 7
        %v2709 = vsub.s32 %v2706, %v2708
        %v2710 = vrot.slane %v2702, %v2709
        %v2712 = vunpack.c.l.s4 1934713408
        %v2713 = vunpack.c.0.s8 %v2712
        %v2714 = vlaneseq
        %v2715 = vshrl.u32 %v2714, 7
        %v2716 = vsub.s32 %v2713, %v2715
        %v2717 = vrot.slane %v2703, %v2716
        %v2718 = vcombine.high %v2694, 0.0
        %v2719 = vcombine.high %v2701, 0.0
        %v2720 = vcombine.high %v2710, 0.0
        %v2721 = vcombine.high %v2717, 0.0
        %v2722 = vcombine.low %v2647, %v2651
        %v2723 = vcombine.high %v2647, %v2651
        %v2725 = vunpack.c.l.s4 1983009808
        %v2726 = vunpack.c.0.s8 %v2725
        %v2727 = vlaneseq
        %v2728 = vshrl.u32 %v2727, 7
        %v2729 = vsub.s32 %v2726, %v2728
        %v2730 = vrot.slane %v2722, %v2729
        %v2732 = vunpack.c.l.s4 1983009808
        %v2733 = vunpack.c.0.s8 %v2732
        %v2734 = vlaneseq
        %v2735 = vshrl.u32 %v2734, 7
        %v2736 = vsub.s32 %v2733, %v2735
        %v2737 = vrot.slane %v2723, %v2736
        %v2738 = vcombine.low %v2649, %v2653
        %v2739 = vcombine.high %v2649, %v2653
        %v2741 = vunpack.c.l.s4 1983009808
        %v2742 = vunpack.c.0.s8 %v2741
        %v2743 = vlaneseq
        %v2744 = vshrl.u32 %v2743, 7
        %v2745 = vsub.s32 %v2742, %v2744
        %v2746 = vrot.slane %v2738, %v2745
        %v2748 = vunpack.c.l.s4 1983009808
        %v2749 = vunpack.c.0.s8 %v2748
        %v2750 = vlaneseq
        %v2751 = vshrl.u32 %v2750, 7
        %v2752 = vsub.s32 %v2749, %v2751
        %v2753 = vrot.slane %v2739, %v2752
        %v2754 = vcombine.low %v2730, %v2746
        %v2755 = vcombine.high %v2730, %v2746
        %v2757 = vunpack.c.l.s4 1934713408
        %v2758 = vunpack.c.0.s8 %v2757
        %v2759 = vlaneseq
        %v2760 = vshrl.u32 %v2759, 7
        %v2761 = vsub.s32 %v2758, %v2760
        %v2762 = vrot.slane %v2754, %v2761
        %v2764 = vunpack.c.l.s4 1934713408
        %v2765 = vunpack.c.0.s8 %v2764
        %v2766 = vlaneseq
        %v2767 = vshrl.u32 %v2766, 7
        %v2768 = vsub.s32 %v2765, %v2767
        %v2769 = vrot.slane %v2755, %v2768
        %v2770 = vcombine.low %v2737, %v2753
        %v2771 = vcombine.high %v2737, %v2753
        %v2773 = vunpack.c.l.s4 1934713408
        %v2774 = vunpack.c.0.s8 %v2773
        %v2775 = vlaneseq
        %v2776 = vshrl.u32 %v2775, 7
        %v2777 = vsub.s32 %v2774, %v2776
        %v2778 = vrot.slane %v2770, %v2777
        %v2780 = vunpack.c.l.s4 1934713408
        %v2781 = vunpack.c.0.s8 %v2780
        %v2782 = vlaneseq
        %v2783 = vshrl.u32 %v2782, 7
        %v2784 = vsub.s32 %v2781, %v2783
        %v2785 = vrot.slane %v2771, %v2784
        %v2786 = vcombine.high %v2762, 0.0
        %v2787 = vcombine.high %v2769, 0.0
        %v2788 = vcombine.high %v2778, 0.0
        %v2789 = vcombine.high %v2785, 0.0
        %v2790 = vcombine.low %v2694, %v2701
        %v2792 = vunpack.c.l.s4 1983009808
        %v2793 = vunpack.c.0.s8 %v2792
        %v2794 = vlaneseq
        %v2795 = vshrl.u32 %v2794, 7
        %v2796 = vsub.s32 %v2793, %v2795
        %v2797 = vrot.slane %v2790, %v2796
        %v2798 = vcombine.low %v2718, %v2719
        %v2800 = vunpack.c.l.s4 1983009808
        %v2801 = vunpack.c.0.s8 %v2800
        %v2802 = vlaneseq
        %v2803 = vshrl.u32 %v2802, 7
        %v2804 = vsub.s32 %v2801, %v2803
        %v2805 = vrot.slane %v2798, %v2804
        %v2806 = vcombine.low %v2710, %v2717
        %v2808 = vunpack.c.l.s4 1983009808
        %v2809 = vunpack.c.0.s8 %v2808
        %v2810 = vlaneseq
        %v2811 = vshrl.u32 %v2810, 7
        %v2812 = vsub.s32 %v2809, %v2811
        %v2813 = vrot.slane %v2806, %v2812
        %v2814 = vcombine.low %v2720, %v2721
        %v2816 = vunpack.c.l.s4 1983009808
        %v2817 = vunpack.c.0.s8 %v2816
        %v2818 = vlaneseq
        %v2819 = vshrl.u32 %v2818, 7
        %v2820 = vsub.s32 %v2817, %v2819
        %v2821 = vrot.slane %v2814, %v2820
        %v2822 = vcombine.low %v2797, %v2805
        %v2823 = vcombine.high %v2797, %v2805
        %v2825 = vunpack.c.l.s4 1934713408
        %v2826 = vunpack.c.0.s8 %v2825
        %v2827 = vlaneseq
        %v2828 = vshrl.u32 %v2827, 7
        %v2829 = vsub.s32 %v2826, %v2828
        %v2830 = vrot.slane %v2822, %v2829
        %v2832 = vunpack.c.l.s4 1934713408
        %v2833 = vunpack.c.0.s8 %v2832
        %v2834 = vlaneseq
        %v2835 = vshrl.u32 %v2834, 7
        %v2836 = vsub.s32 %v2833, %v2835
        %v2837 = vrot.slane %v2823, %v2836
        %v2838 = vcombine.low %v2813, %v2821
        %v2839 = vcombine.high %v2813, %v2821
        %v2841 = vunpack.c.l.s4 1934713408
        %v2842 = vunpack.c.0.s8 %v2841
        %v2843 = vlaneseq
        %v2844 = vshrl.u32 %v2843, 7
        %v2845 = vsub.s32 %v2842, %v2844
        %v2846 = vrot.slane %v2838, %v2845
        %v2848 = vunpack.c.l.s4 1934713408
        %v2849 = vunpack.c.0.s8 %v2848
        %v2850 = vlaneseq
        %v2851 = vshrl.u32 %v2850, 7
        %v2852 = vsub.s32 %v2849, %v2851
        %v2853 = vrot.slane %v2839, %v2852
        %v2854 = vcombine.low %v2830, %v2846
        %v2855 = vcombine.high %v2830, %v2846
        %v2856 = vcombine.low %v2837, %v2853
        %v2857 = vcombine.high %v2837, %v2853
        %v2858 = vcombine.low %v2762, %v2769
        %v2860 = vunpack.c.l.s4 1983009808
        %v2861 = vunpack.c.0.s8 %v2860
        %v2862 = vlaneseq
        %v2863 = vshrl.u32 %v2862, 7
        %v2864 = vsub.s32 %v2861, %v2863
        %v2865 = vrot.slane %v2858, %v2864
        %v2866 = vcombine.low %v2786, %v2787
        %v2868 = vunpack.c.l.s4 1983009808
        %v2869 = vunpack.c.0.s8 %v2868
        %v2870 = vlaneseq
        %v2871 = vshrl.u32 %v2870, 7
        %v2872 = vsub.s32 %v2869, %v2871
        %v2873 = vrot.slane %v2866, %v2872
        %v2874 = vcombine.low %v2778, %v2785
        %v2876 = vunpack.c.l.s4 1983009808
        %v2877 = vunpack.c.0.s8 %v2876
        %v2878 = vlaneseq
        %v2879 = vshrl.u32 %v2878, 7
        %v2880 = vsub.s32 %v2877, %v2879
        %v2881 = vrot.slane %v2874, %v2880
        %v2882 = vcombine.low %v2788, %v2789
        %v2884 = vunpack.c.l.s4 1983009808
        %v2885 = vunpack.c.0.s8 %v2884
        %v2886 = vlaneseq
        %v2887 = vshrl.u32 %v2886, 7
        %v2888 = vsub.s32 %v2885, %v2887
        %v2889 = vrot.slane %v2882, %v2888
        %v2890 = vcombine.low %v2865, %v2873
        %v2891 = vcombine.high %v2865, %v2873
        %v2893 = vunpack.c.l.s4 1934713408
        %v2894 = vunpack.c.0.s8 %v2893
        %v2895 = vlaneseq
        %v2896 = vshrl.u32 %v2895, 7
        %v2897 = vsub.s32 %v2894, %v2896
        %v2898 = vrot.slane %v2890, %v2897
        %v2900 = vunpack.c.l.s4 1934713408
        %v2901 = vunpack.c.0.s8 %v2900
        %v2902 = vlaneseq
        %v2903 = vshrl.u32 %v2902, 7
        %v2904 = vsub.s32 %v2901, %v2903
        %v2905 = vrot.slane %v2891, %v2904
        %v2906 = vcombine.low %v2881, %v2889
        %v2907 = vcombine.high %v2881, %v2889
        %v2909 = vunpack.c.l.s4 1934713408
        %v2910 = vunpack.c.0.s8 %v2909
        %v2911 = vlaneseq
        %v2912 = vshrl.u32 %v2911, 7
        %v2913 = vsub.s32 %v2910, %v2912
        %v2914 = vrot.slane %v2906, %v2913
        %v2916 = vunpack.c.l.s4 1934713408
        %v2917 = vunpack.c.0.s8 %v2916
        %v2918 = vlaneseq
        %v2919 = vshrl.u32 %v2918, 7
        %v2920 = vsub.s32 %v2917, %v2919
        %v2921 = vrot.slane %v2907, %v2920
        %v2922 = vcombine.low %v2898, %v2914
        %v2923 = vcombine.high %v2898, %v2914
        %v2924 = vcombine.low %v2905, %v2921
        %v2925 = vcombine.high %v2905, %v2921
        %2928 = vrot.lane.b32.xlu0 %v2855, 8
        %v2929 = vpop.permute.xlu0 %2928
        %2930 = vrot.lane.b32.xlu0 %v2923, 8
        %v2931 = vpop.permute.xlu0 %2930
        %2936 = vrot.lane.b32.xlu0 %v2856, 16
        %v2937 = vpop.permute.xlu0 %2936
        %2938 = vrot.lane.b32.xlu0 %v2924, 16
        %v2939 = vpop.permute.xlu0 %2938
        %2944 = vrot.lane.b32.xlu0 %v2857, 24
        %v2945 = vpop.permute.xlu0 %2944
        %2946 = vrot.lane.b32.xlu0 %v2925, 24
        %v2947 = vpop.permute.xlu0 %2946
        %vm2950 = vcmask 64512
        %v2951 = vsel %vm2950, %v2854, %v2929
        %v2952 = vsel %vm2950, %v2922, %v2931
        %vm2953 = vcmask 130048
        %v2954 = vsel %vm2953, %v2951, %v2937
        %v2955 = vsel %vm2953, %v2952, %v2939
        %vm2956 = vcmask 195584
        %v2957 = vsel %vm2956, %v2954, %v2945
        %v2958 = vsel %vm2956, %v2955, %v2947
        %v2959 = vpack.c.bf16 %v2958, %v2957
        %v2960 = vld [vmem:[#allocation7] sm:$0xf]
        %v2961 = vld [vmem:[#allocation7 + $0x4] sm:$0xf]
        %v2962 = vld [vmem:[#allocation7 + $0x8] sm:$0xf]
        %v2963 = vld [vmem:[#allocation7 + $0xc] sm:$0xf]
        %v2964 = vld [vmem:[%s6] sm:$0x1]
        %v2966 = vlaneseq
        %v2967 = vshrl.u32 %v2966, 7
        %v2968 = vsub.s32 0, %v2967
        %v2969 = vrot.slane %v2964, %v2968
        %v2975 = vunpack.c.l.b16 %v2960
        %v2976 = vunpack.c.l.b16 %v2961
        %v2977 = vunpack.c.l.b16 %v2962
        %v2978 = vunpack.c.l.b16 %v2963
        %v2979 = vpack.c.b16 %v2976, %v2975
        %v2980 = vpack.c.b16 %v2978, %v2977
        %v2984 = vsel %vm659, %v2959, 0
        %2986 = vmatprep.subr.bf16.mxu0 0
        %2987 = vmatpush1.bf16.msra.mxu0 %v2979
        %2988 = vmatprep.subr.bf16.mxu0 0
        %2989 = vmatpush1.bf16.msra.mxu0 %v2980
        %2990 = vmatprep.subr.bf16.mxu0 0
        %2991 = vmatpush1.bf16.msra.mxu0 0
        %2992 = vmatprep.subr.bf16.mxu0 0
        %2993 = vmatpush1.bf16.msra.mxu0 0
        %2994 = vmatprep.subr.bf16.mxu0 0
        %2995 = vmatpush1.bf16.msra.mxu0 0
        %2996 = vmatprep.subr.bf16.mxu0 0
        %2997 = vmatpush1.bf16.msra.mxu0 0
        %2998 = vmatprep.subr.bf16.mxu0 0
        %2999 = vmatpush1.bf16.msra.mxu0 0
        %3000 = vmatprep.subr.bf16.mxu0 0
        %3001 = vmatpush1.bf16.msra.mxu0 0
        %3002 = vmatprep.subr.bf16.mxu0 0
        %3003 = vmatpush1.bf16.msra.mxu0 0
        %3004 = vmatprep.subr.bf16.mxu0 0
        %3005 = vmatpush1.bf16.msra.mxu0 0
        %3006 = vmatprep.subr.bf16.mxu0 0
        %3007 = vmatpush1.bf16.msra.mxu0 0
        %3008 = vmatprep.subr.bf16.mxu0 0
        %3009 = vmatpush1.bf16.msra.mxu0 0
        %3010 = vmatprep.subr.bf16.mxu0 0
        %3011 = vmatpush1.bf16.msra.mxu0 0
        %3012 = vmatprep.subr.bf16.mxu0 0
        %3013 = vmatpush1.bf16.msra.mxu0 0
        %3014 = vmatprep.subr.bf16.mxu0 0
        %3015 = vmatpush1.bf16.msra.mxu0 0
        %3016 = vmatprep.subr.bf16.mxu0 0
        %3017 = vmatpush1.bf16.msra.mxu0 0
        %3018 = vmatprep.mubr.bf16.mxu0 0
        %3019 = vmatmul.mubr.bf16.gmra.mrb[0].mxu0 %v2984
        %v3020 = vpop.f32.mrb[0].mxu0
        %v3021 = vadd.f32 %v2969, %v3020
        %v3022 = vpop.f32.mrb[0].mxu0
        %v3023 = vpop.f32.mrb[0].mxu0
        %v3024 = vadd.f32 %v2969, %v3023
        %v3025 = vpop.f32.mrb[0].mxu0
        %3026 = vdwg.mxu0
        %v3027 = vadd.f32 %v633, %v3021
        %v3028 = vadd.f32 %v634, %v3024
        %v3029 = vld [vmem:[#allocation8] sm:$0x1]
        %v3030 = vld [vmem:[#allocation10] sm:$0x1]
        %v3031 = vsel %vm659, %v3027, 0.0
        %3032 = vadd.xlane.f32.xlu0 %v3031
        %v3033 = vpop.xlane.xlu0 %3032
        %v3034 = vsel %vm659, %v3028, 0.0
        %3035 = vadd.xlane.f32.xlu0 %v3034
        %v3036 = vpop.xlane.xlu0 %3035
        %v3037 = vrcp.pop 32.0
        %v3038 = vmul.f32 %v3033, %v3037
        %v3039 = vmul.f32 %v3036, %v3037
        %v3040 = vsub.f32 %v3027, %v3038
        %v3041 = vsub.f32 %v3028, %v3039
        %v3042 = vmul.f32 %v3040, %v3040
        %v3043 = vmul.f32 %v3041, %v3041
        %v3044 = vsel %vm659, %v3042, 0.0
        %3045 = vadd.xlane.f32.xlu0 %v3044
        %v3046 = vpop.xlane.xlu0 %3045
        %v3047 = vsel %vm659, %v3043, 0.0
        %3048 = vadd.xlane.f32.xlu0 %v3047
        %v3049 = vpop.xlane.xlu0 %3048
        %v3050 = vmul.f32 %v3046, %v3037
        %v3051 = vmul.f32 %v3049, %v3037
        %v3052 = vadd.f32 %v3050, 1e-05
        %v3053 = vadd.f32 %v3051, 1e-05
        %v3054 = vrsqrt.pop %v3052
        %v3055 = vrsqrt.pop %v3053
        %v3056 = vmul.f32 %v3040, %v3054
        %v3057 = vmul.f32 %v3041, %v3055
        %v3059 = vlaneseq
        %v3060 = vshrl.u32 %v3059, 7
        %v3061 = vsub.s32 0, %v3060
        %v3062 = vrot.slane %v3029, %v3061
        %v3064 = vmul.f32 %v3056, %v3062
        %v3065 = vmul.f32 %v3057, %v3062
        %v3067 = vlaneseq
        %v3068 = vshrl.u32 %v3067, 7
        %v3069 = vsub.s32 0, %v3068
        %v3070 = vrot.slane %v3030, %v3069
        %v3072 = vadd.f32 %v3064, %v3070
        %v3073 = vadd.f32 %v3065, %v3070
        %v3074 = vpack.c.bf16 %v3073, %v3072
        %v3075 = vld [vmem:[%s9] sm:$0xf]
        %v3076 = vld [vmem:[%s9 + $0x4] sm:$0xf]
        %v3077 = vld [vmem:[%s9 + $0x8] sm:$0xf]
        %v3078 = vld [vmem:[%s9 + $0xc] sm:$0xf]
        %v3079 = vld [vmem:[%s10] sm:$0x1]
        %v3081 = vlaneseq
        %v3082 = vshrl.u32 %v3081, 7
        %v3083 = vsub.s32 0, %v3082
        %v3084 = vrot.slane %v3079, %v3083
        %v3090 = vunpack.c.l.b16 %v3075
        %v3091 = vunpack.c.l.b16 %v3076
        %v3092 = vunpack.c.l.b16 %v3077
        %v3093 = vunpack.c.l.b16 %v3078
        %v3094 = vpack.c.b16 %v3091, %v3090
        %v3095 = vpack.c.b16 %v3093, %v3092
        %v3099 = vsel %vm659, %v3074, 0
        %3101 = vmatprep.subr.bf16.mxu0 0
        %3102 = vmatpush1.bf16.msra.mxu0 %v3094
        %3103 = vmatprep.subr.bf16.mxu0 0
        %3104 = vmatpush1.bf16.msra.mxu0 %v3095
        %3105 = vmatprep.subr.bf16.mxu0 0
        %3106 = vmatpush1.bf16.msra.mxu0 0
        %3107 = vmatprep.subr.bf16.mxu0 0
        %3108 = vmatpush1.bf16.msra.mxu0 0
        %3109 = vmatprep.subr.bf16.mxu0 0
        %3110 = vmatpush1.bf16.msra.mxu0 0
        %3111 = vmatprep.subr.bf16.mxu0 0
        %3112 = vmatpush1.bf16.msra.mxu0 0
        %3113 = vmatprep.subr.bf16.mxu0 0
        %3114 = vmatpush1.bf16.msra.mxu0 0
        %3115 = vmatprep.subr.bf16.mxu0 0
        %3116 = vmatpush1.bf16.msra.mxu0 0
        %3117 = vmatprep.subr.bf16.mxu0 0
        %3118 = vmatpush1.bf16.msra.mxu0 0
        %3119 = vmatprep.subr.bf16.mxu0 0
        %3120 = vmatpush1.bf16.msra.mxu0 0
        %3121 = vmatprep.subr.bf16.mxu0 0
        %3122 = vmatpush1.bf16.msra.mxu0 0
        %3123 = vmatprep.subr.bf16.mxu0 0
        %3124 = vmatpush1.bf16.msra.mxu0 0
        %3125 = vmatprep.subr.bf16.mxu0 0
        %3126 = vmatpush1.bf16.msra.mxu0 0
        %3127 = vmatprep.subr.bf16.mxu0 0
        %3128 = vmatpush1.bf16.msra.mxu0 0
        %3129 = vmatprep.subr.bf16.mxu0 0
        %3130 = vmatpush1.bf16.msra.mxu0 0
        %3131 = vmatprep.subr.bf16.mxu0 0
        %3132 = vmatpush1.bf16.msra.mxu0 0
        %3133 = vmatprep.mubr.bf16.mxu0 0
        %3134 = vmatmul.mubr.bf16.gmra.mrb[0].mxu0 %v3099
        %v3135 = vpop.f32.mrb[0].mxu0
        %v3136 = vadd.f32 %v3084, %v3135
        %v3137 = vpop.f32.mrb[0].mxu0
        %v3138 = vpop.f32.mrb[0].mxu0
        %v3139 = vadd.f32 %v3084, %v3138
        %v3140 = vpop.f32.mrb[0].mxu0
        %3141 = vdwg.mxu0
        %v3142 = vmax.f32 %v3136, 0.0
        %v3143 = vmax.f32 %v3139, 0.0
        %v3144 = vpack.c.bf16 %v3143, %v3142
        %v3145 = vld [vmem:[%s11] sm:$0xf]
        %v3146 = vld [vmem:[%s11 + $0x4] sm:$0xf]
        %v3147 = vld [vmem:[%s11 + $0x8] sm:$0xf]
        %v3148 = vld [vmem:[%s11 + $0xc] sm:$0xf]
        %v3149 = vld [vmem:[%s11 + $0x10] sm:$0xf]
        %v3150 = vld [vmem:[%s11 + $0x14] sm:$0xf]
        %v3151 = vld [vmem:[%s11 + $0x18] sm:$0xf]
        %v3152 = vld [vmem:[%s11 + $0x1c] sm:$0xf]
        %v3153 = vld [vmem:[%s12] sm:$0x1]
        %v3155 = vlaneseq
        %v3156 = vshrl.u32 %v3155, 7
        %v3157 = vsub.s32 0, %v3156
        %v3158 = vrot.slane %v3153, %v3157
        %v3168 = vunpack.c.l.b16 %v3145
        %v3169 = vunpack.c.l.b16 %v3146
        %v3170 = vunpack.c.l.b16 %v3147
        %v3171 = vunpack.c.l.b16 %v3148
        %v3172 = vunpack.c.l.b16 %v3149
        %v3173 = vunpack.c.l.b16 %v3150
        %v3174 = vunpack.c.l.b16 %v3151
        %v3175 = vunpack.c.l.b16 %v3152
        %v3176 = vpack.c.b16 %v3169, %v3168
        %v3177 = vpack.c.b16 %v3171, %v3170
        %v3178 = vpack.c.b16 %v3173, %v3172
        %v3179 = vpack.c.b16 %v3175, %v3174
        %vm3184 = vcmask 523264
        %v3186 = vsel %vm3184, %v3144, 0
        %3188 = vmatprep.subr.bf16.mxu0 0
        %3189 = vmatpush1.bf16.msra.mxu0 %v3176
        %3190 = vmatprep.subr.bf16.mxu0 0
        %3191 = vmatpush1.bf16.msra.mxu0 %v3177
        %3192 = vmatprep.subr.bf16.mxu0 0
        %3193 = vmatpush1.bf16.msra.mxu0 %v3178
        %3194 = vmatprep.subr.bf16.mxu0 0
        %3195 = vmatpush1.bf16.msra.mxu0 %v3179
        %3196 = vmatprep.subr.bf16.mxu0 0
        %3197 = vmatpush1.bf16.msra.mxu0 0
        %3198 = vmatprep.subr.bf16.mxu0 0
        %3199 = vmatpush1.bf16.msra.mxu0 0
        %3200 = vmatprep.subr.bf16.mxu0 0
        %3201 = vmatpush1.bf16.msra.mxu0 0
        %3202 = vmatprep.subr.bf16.mxu0 0
        %3203 = vmatpush1.bf16.msra.mxu0 0
        %3204 = vmatprep.subr.bf16.mxu0 0
        %3205 = vmatpush1.bf16.msra.mxu0 0
        %3206 = vmatprep.subr.bf16.mxu0 0
        %3207 = vmatpush1.bf16.msra.mxu0 0
        %3208 = vmatprep.subr.bf16.mxu0 0
        %3209 = vmatpush1.bf16.msra.mxu0 0
        %3210 = vmatprep.subr.bf16.mxu0 0
        %3211 = vmatpush1.bf16.msra.mxu0 0
        %3212 = vmatprep.subr.bf16.mxu0 0
        %3213 = vmatpush1.bf16.msra.mxu0 0
        %3214 = vmatprep.subr.bf16.mxu0 0
        %3215 = vmatpush1.bf16.msra.mxu0 0
        %3216 = vmatprep.subr.bf16.mxu0 0
        %3217 = vmatpush1.bf16.msra.mxu0 0
        %3218 = vmatprep.subr.bf16.mxu0 0
        %3219 = vmatpush1.bf16.msra.mxu0 0
        %3220 = vmatprep.mubr.bf16.mxu0 0
        %3221 = vmatmul.mubr.bf16.gmra.mrb[0].mxu0 %v3186
        %v3222 = vpop.f32.mrb[0].mxu0
        %v3223 = vadd.f32 %v3158, %v3222
        %v3224 = vpop.f32.mrb[0].mxu0
        %v3225 = vpop.f32.mrb[0].mxu0
        %v3226 = vadd.f32 %v3158, %v3225
        %v3227 = vpop.f32.mrb[0].mxu0
        %3228 = vdwg.mxu0
        %v3229 = vadd.f32 %v3072, %v3223
        %v3230 = vadd.f32 %v3073, %v3226
        %v3231 = vld [vmem:[%s13] sm:$0x1]
        %v3232 = vld [vmem:[%s14] sm:$0x1]
        %v3233 = vsel %vm659, %v3229, 0.0
        %3234 = vadd.xlane.f32.xlu0 %v3233
        %v3235 = vpop.xlane.xlu0 %3234
        %v3236 = vsel %vm659, %v3230, 0.0
        %3237 = vadd.xlane.f32.xlu0 %v3236
        %v3238 = vpop.xlane.xlu0 %3237
        %v3239 = vmul.f32 %v3235, %v3037
        %v3240 = vmul.f32 %v3238, %v3037
        %v3241 = vsub.f32 %v3229, %v3239
        %v3242 = vsub.f32 %v3230, %v3240
        %v3243 = vmul.f32 %v3241, %v3241
        %v3244 = vmul.f32 %v3242, %v3242
        %v3245 = vsel %vm659, %v3243, 0.0
        %3246 = vadd.xlane.f32.xlu0 %v3245
        %v3247 = vpop.xlane.xlu0 %3246
        %v3248 = vsel %vm659, %v3244, 0.0
        %3249 = vadd.xlane.f32.xlu0 %v3248
        %v3250 = vpop.xlane.xlu0 %3249
        %v3251 = vmul.f32 %v3247, %v3037
        %v3252 = vmul.f32 %v3250, %v3037
        %v3253 = vadd.f32 %v3251, 1e-05
        %v3254 = vadd.f32 %v3252, 1e-05
        %v3255 = vrsqrt.pop %v3253
        %v3256 = vrsqrt.pop %v3254
        %v3257 = vmul.f32 %v3241, %v3255
        %v3258 = vmul.f32 %v3242, %v3256
        %v3260 = vlaneseq
        %v3261 = vshrl.u32 %v3260, 7
        %v3262 = vsub.s32 0, %v3261
        %v3263 = vrot.slane %v3231, %v3262
        %v3265 = vmul.f32 %v3257, %v3263
        %v3266 = vmul.f32 %v3258, %v3263
        %v3268 = vlaneseq
        %v3269 = vshrl.u32 %v3268, 7
        %v3270 = vsub.s32 0, %v3269
        %v3271 = vrot.slane %v3232, %v3270
        %v3273 = vadd.f32 %v3265, %v3271
        %v3274 = vadd.f32 %v3266, %v3271
        %3275 = vst.msk [vmem:[%s624] sm:$0xff] %vm659, %v3273
        %3276 = vst.msk [vmem:[%s624 + $0x8] sm:$0xff] %vm659, %v3274
        %s3277 = sand.u32 %s390, 1
        %s3278 = scalar_lea.sflag [#allocation4], %s3277
        %s3279 = sand.u32 %s390, 1
        %s3280 = smul.addr %s3279, 16
        %s3281 = scalar_lea.vmem [#allocation11], %s3280
        // Predicated region
        $region108: #{tpu_custom_call.1} parent=79 // pred_check
          %p3282 = pneg %p400
        $region109: #{tpu_custom_call.1} parent=79 // pred_check_branch
          %3284 = sbr.rel (%p3282) target = $region111
        $region110: #{tpu_custom_call.1} parent=79 // pred_region
          %s3285 = smul.u32 2, %s41
          %s3287 = ssub.s32 256, 256
          %3288 = vsyncadd %s3278, %s3287
          %s3289 = smul.addr %s40, 4
          %s3290 = sadd.s32 %s3285, %s3289
          %s3291 = smul.addr %s3290, 128
          %s3292 = scalar_lea.hbm %s15, %s3291
          %s3293 = sshll.u32 %s3281, 4
          %s3294 = int_to_ptr.vmem [resolvable:$true] %s3293
          %3299 = dma.vmem_to_hbm [thread:$0]  %s3294, 256, %s3292, %s3278, 128, 128, 8
        $region111: #{tpu_custom_call.1} parent=79 // pred_fallthru
          _
      $region80: #{tpu_custom_call.1} parent=5 // pred_fallthru
        _
      %p3300 = scmp.le.s32.totalorder 2, %s31
      // Predicated region
      $region112: #{tpu_custom_call.1} parent=5 // pred_check
        %p3301 = pneg %p3300
      $region113: #{tpu_custom_call.1} parent=5 // pred_check_branch
        %3303 = sbr.rel (%p3301) target = $region115
      $region114: #{tpu_custom_call.1} parent=5 // pred_region
        %s3304 = ssub.s32 %s31, 2
        // Predicated region
        $region116: #{tpu_custom_call.1} parent=114 // pred_check
          %p3305 = pneg %p406
        $region117: #{tpu_custom_call.1} parent=114 // pred_check_branch
          %3307 = sbr.rel (%p3305) target = $region119
        $region118: #{tpu_custom_call.1} parent=114 // pred_region
          %s3308 = sand.u32 %s391, 1
          %s3309 = scalar_lea.sflag [#allocation4], %s3308
          %s3310 = sand.u32 %s391, 1
          %s3311 = smul.addr %s3310, 16
          %s3312 = scalar_lea.vmem [#allocation11], %s3311
          %3313 = dma.done %s3309, 256
        $region119: #{tpu_custom_call.1} parent=114 // pred_fallthru
          _
      $region115: #{tpu_custom_call.1} parent=5 // pred_fallthru
        _
    $region6: #{tpu_custom_call.1} parent=1 // loop_footer
      %s35 = sadd.s32 1, %s31
    $region7: #{tpu_custom_call.1} parent=1 // loop_footer_branch
      %30 = sbr.rel target = $region3
    $region8: #{tpu_custom_call.1} parent=1 // loop_exit
      _
    %3314 = vsyncpa [#allocation3], 1
    %s3315 = scalar_lea.sflag [#allocation3], 1
    %3316 = vsyncpa %s3315, 1
    %3317 = vsyncpa [#allocation6], 1
    %s3318 = scalar_lea.sflag [#allocation6], 1
    %3319 = vsyncpa %s3318, 1
    %3320 = vsyncpa [#allocation9], 1
    %3321 = vsyncpa [#allocation4], 1
    %s3322 = scalar_lea.sflag [#allocation4], 1
    %3323 = vsyncpa %s3322, 1

// kernel: tpu_custom_call.1
$region0: #{tpu_custom_call.1}
  #allocation0 [shape = 'u32[]', space=smem, size = 0x4, offset = 0x4, fixed_abs, tag = 'smem constant byte address 0x4 - core index']
  #allocation1 [shape = 'u32[144,128]{1,0:T(1,128)}', space=vmem, size = 0x12000, scoped, tag = 'internal scratch']
  %s0 = inlined_call_operand.hbm [shape: f32[2,32,32], index: 0, kind: input, shape index: {}]
  %s1 = inlined_call_operand.vmem [shape: bf16[2,32,32], index: 1, kind: input, shape index: {}]
  %s2 = inlined_call_operand.hbm [shape: bf16[2,32,32], index: 2, kind: input, shape index: {}]
  %s3 = inlined_call_operand.vmem [shape: bf16[32,32], index: 3, kind: input, shape index: {}]
  %s4 = inlined_call_operand.vmem [shape: f32[1,32], index: 4, kind: input, shape index: {}]
  %s5 = inlined_call_operand.hbm [shape: bf16[32,32], index: 5, kind: input, shape index: {}]
  %s6 = inlined_call_operand.vmem [shape: f32[1,32], index: 6, kind: input, shape index: {}]
  %s7 = inlined_call_operand.hbm [shape: f32[1,32], index: 7, kind: input, shape index: {}]
  %s8 = inlined_call_operand.hbm [shape: f32[1,32], index: 8, kind: input, shape index: {}]
  %s9 = inlined_call_operand.vmem [shape: bf16[32,64], index: 9, kind: input, shape index: {}]
  %s10 = inlined_call_operand.vmem [shape: f32[1,64], index: 10, kind: input, shape index: {}]
  %s11 = inlined_call_operand.vmem [shape: bf16[64,32], index: 11, kind: input, shape index: {}]
  %s12 = inlined_call_operand.vmem [shape: f32[1,32], index: 12, kind: input, shape index: {}]
  %s13 = inlined_call_operand.vmem [shape: f32[1,32], index: 13, kind: input, shape index: {}]
  %s14 = inlined_call_operand.vmem [shape: f32[1,32], index: 14, kind: input, shape index: {}]
  %s15 = inlined_call_operand.hbm [shape: f32[2,32,32], index: 15, kind: output, shape index: {}]
  %s16 = sld [smem:[#allocation0]]
  $region120: #{tpu_custom_call.1} parent=0
    _
  %s18 = ssub.s32 1, %s16
  %s19 = scalar_select 0, %s18, %s16
  $region1: #{tpu_custom_call.1} parent=0
    #allocation2 [shape = 'u8[16384]{0}', space=vmem, size = 0x4000, scoped, tag = 'input window, operand 0']
    #allocation3 [shape = 's32[2]{0}', space=sflag, size = 0x8, scoped, tag = 'scoped memory for tpu_custom_call.1']
    #allocation4 [shape = 's32[2]{0}', space=sflag, size = 0x8, scoped, tag = 'scoped memory for tpu_custom_call.1']
    #allocation5 [shape = 'u8[16384]{0}', space=vmem, size = 0x4000, scoped, tag = 'input window, operand 2']
    #allocation6 [shape = 's32[2]{0}', space=sflag, size = 0x8, scoped, tag = 'scoped memory for tpu_custom_call.1']
    #allocation7 [shape = 'u8[8192]{0}', space=vmem, size = 0x2000, scoped, tag = 'input window, operand 5, single buffered']
    #allocation8 [shape = 'u8[512]{0}', space=vmem, size = 0x400, scoped, tag = 'input window, operand 7, single buffered']
    #allocation9 [shape = 's32[1]{0}', space=sflag, size = 0x4, scoped, tag = 'scoped memory for tpu_custom_call.1']
    #allocation10 [shape = 'u8[512]{0}', space=vmem, size = 0x400, scoped, tag = 'input window, operand 8, single buffered']
    #allocation11 [shape = 'u8[16384]{0}', space=vmem, size = 0x4000, scoped, tag = 'output window, operand 0']
    %20 = vsyncpa [#allocation3], 0
    %s21 = scalar_lea.sflag [#allocation3], 1
    %22 = vsyncpa %s21, 0
    %23 = vsyncpa [#allocation6], 0
    %s24 = scalar_lea.sflag [#allocation6], 1
    %25 = vsyncpa %s24, 0
    %26 = vsyncpa [#allocation9], 0
    %27 = vsyncpa [#allocation4], 0
    %s28 = scalar_lea.sflag [#allocation4], 1
    %29 = vsyncpa %s28, 0
    loop: start=0, step=1, limit=6
    $region2: #{tpu_custom_call.1} parent=1 // loop_pre_header
      _
    $region3: #{tpu_custom_call.1} parent=1 // loop_header
      %s31 = sphi 0, %s35
      %p32 = scmp.ge.s32.totalorder %s31, 6
      %s38 = sphi 0, %s50
      %s39 = sphi 0, %s46
      %s40 = sphi 0, %s38
      %s41 = sphi 0, %s39
      %s42 = sphi 0, %s40
      %s43 = sphi 0, %s41
      %s55 = sphi 0, %s57
      %s58 = sphi 0, %s55
      %s59 = sphi 0, %s58
      %s75 = sphi 0, %s59
      %s81 = sphi 0, %s83
      %s84 = sphi 0, %s81
      %s85 = sphi 0, %s84
      %s101 = sphi 0, %s85
      %s107 = sphi 0, %s109
      %s110 = sphi 0, %s107
      %s111 = sphi 0, %s110
      %s127 = sphi 0, %s111
      %s131 = sphi 0, %s131
      %s133 = sphi 0, %s131
      %s134 = sphi 0, %s133
      %s148 = sphi 0, %s134
      %s152 = sphi 0, %s152
      %s154 = sphi 0, %s152
      %s155 = sphi 0, %s154
      %s169 = sphi 0, %s155
      %s173 = sphi 0, %s173
      %s175 = sphi 0, %s173
      %s176 = sphi 0, %s175
      %s190 = sphi 0, %s176
      %s194 = sphi 0, %s194
      %s196 = sphi 0, %s194
      %s197 = sphi 0, %s196
      %s211 = sphi 0, %s197
      %s215 = sphi 0, %s215
      %s217 = sphi 0, %s215
      %s218 = sphi 0, %s217
      %s232 = sphi 0, %s218
      %s236 = sphi 0, %s236
      %s238 = sphi 0, %s236
      %s239 = sphi 0, %s238
      %s253 = sphi 0, %s239
      %s257 = sphi 0, %s257
      %s259 = sphi 0, %s257
      %s260 = sphi 0, %s259
      %s274 = sphi 0, %s260
      %s278 = sphi 0, %s278
      %s280 = sphi 0, %s278
      %s281 = sphi 0, %s280
      %s295 = sphi 0, %s281
      %s299 = sphi 0, %s299
      %s301 = sphi 0, %s299
      %s302 = sphi 0, %s301
      %s316 = sphi 0, %s302
      %s320 = sphi 0, %s320
      %s322 = sphi 0, %s320
      %s323 = sphi 0, %s322
      %s337 = sphi 0, %s323
      %s341 = sphi 0, %s341
      %s343 = sphi 0, %s341
      %s344 = sphi 0, %s343
      %s358 = sphi 0, %s344
      %s362 = sphi 0, %s362
      %s364 = sphi 0, %s362
      %s365 = sphi 0, %s364
      %s379 = sphi 0, %s365
      %s387 = sphi 0, %s389
      %s390 = sphi 0, %s387
      %s391 = sphi 0, %s390
      %s407 = sphi 0, %s391
    $region4: #{tpu_custom_call.1} parent=1 // loop_header_branch
      %34 = sbr.rel (%p32) target = $region8
    $region5: #{tpu_custom_call.1} parent=1 // loop_body
      %s36 = ssub.s32 %s31, 1
      %s37 = ssub.s32 %s31, 2
      %s44 = sadd.s32 1, %s39
      %p45 = scmp.ge.s32.totalorder %s44, 2
      %s46 = scalar_select %p45, 0, %s44
      %s47 = sadd.s32 1, %s38
      %s48 = scalar_select %p45, %s47, %s38
      %p49 = scmp.ge.s32.totalorder %s48, 2
      %s50 = scalar_select %p49, 0, %s48
      %s51 = ssub.s32 %s38, %s50
      %s52 = ssub.s32 %s39, %s46
      %s53 = sor.u32 %s51, %s52
      %p54 = scmp.eq.s32.totalorder %s53, 0
      %s56 = sadd.s32 %s55, 1
      %s57 = scalar_select %p54, %s55, %s56
      %p60 = pneg %p54
      %p61 = scmp.eq.s32.totalorder %s31, 3
      %p62 = por %p60, %p61
      %p63 = scmp.ne.s32.totalorder %s55, %s58
      %p64 = scmp.eq.s32.totalorder %s31, 0
      %p65 = por %p63, %p64
      %p66 = scmp.ne.s32.totalorder %s55, %s58
      %p67 = scmp.eq.s32.totalorder %s36, 3
      %p68 = por %p66, %p67
      %p69 = scmp.ne.s32.totalorder %s58, %s59
      %p70 = scmp.eq.s32.totalorder %s36, 0
      %p71 = por %p69, %p70
      %p72 = scmp.ne.s32.totalorder %s58, %s59
      %p73 = scmp.eq.s32.totalorder %s37, 3
      %p74 = por %p72, %p73
      %p76 = scmp.ne.s32.totalorder %s59, %s75
      %p77 = scmp.eq.s32.totalorder %s37, 0
      %p78 = por %p76, %p77
      %s79 = ssub.s32 %s38, %s50
      %p80 = scmp.eq.s32.totalorder %s79, 0
      %s82 = sadd.s32 %s81, 1
      %s83 = scalar_select %p80, %s81, %s82
      %p86 = pneg %p80
      %p87 = scmp.eq.s32.totalorder %s31, 3
      %p88 = por %p86, %p87
      %p89 = scmp.ne.s32.totalorder %s81, %s84
      %p90 = scmp.eq.s32.totalorder %s31, 0
      %p91 = por %p89, %p90
      %p92 = scmp.ne.s32.totalorder %s81, %s84
      %p93 = scmp.eq.s32.totalorder %s36, 3
      %p94 = por %p92, %p93
      %p95 = scmp.ne.s32.totalorder %s84, %s85
      %p96 = scmp.eq.s32.totalorder %s36, 0
      %p97 = por %p95, %p96
      %p98 = scmp.ne.s32.totalorder %s84, %s85
      %p99 = scmp.eq.s32.totalorder %s37, 3
      %p100 = por %p98, %p99
      %p102 = scmp.ne.s32.totalorder %s85, %s101
      %p103 = scmp.eq.s32.totalorder %s37, 0
      %p104 = por %p102, %p103
      %s105 = ssub.s32 %s38, %s50
      %p106 = scmp.eq.s32.totalorder %s105, 0
      %s108 = sadd.s32 %s107, 1
      %s109 = scalar_select %p106, %s107, %s108
      %p112 = pneg %p106
      %p113 = scmp.eq.s32.totalorder %s31, 3
      %p114 = por %p112, %p113
      %p115 = scmp.ne.s32.totalorder %s107, %s110
      %p116 = scmp.eq.s32.totalorder %s31, 0
      %p117 = por %p115, %p116
      %p118 = scmp.ne.s32.totalorder %s107, %s110
      %p119 = scmp.eq.s32.totalorder %s36, 3
      %p120 = por %p118, %p119
      %p121 = scmp.ne.s32.totalorder %s110, %s111
      %p122 = scmp.eq.s32.totalorder %s36, 0
      %p123 = por %p121, %p122
      %p124 = scmp.ne.s32.totalorder %s110, %s111
      %p125 = scmp.eq.s32.totalorder %s37, 3
      %p126 = por %p124, %p125
      %p128 = scmp.ne.s32.totalorder %s111, %s127
      %p129 = scmp.eq.s32.totalorder %s37, 0
      %p130 = por %p128, %p129
      %s132 = sadd.s32 %s131, 1
      %p135 = scmp.eq.s32.totalorder %s31, 3
      %p136 = scmp.ne.s32.totalorder %s131, %s133
      %p137 = scmp.eq.s32.totalorder %s31, 0
      %p138 = por %p136, %p137
      %p139 = scmp.ne.s32.totalorder %s131, %s133
      %p140 = scmp.eq.s32.totalorder %s36, 3
      %p141 = por %p139, %p140
      %p142 = scmp.ne.s32.totalorder %s133, %s134
      %p143 = scmp.eq.s32.totalorder %s36, 0
      %p144 = por %p142, %p143
      %p145 = scmp.ne.s32.totalorder %s133, %s134
      %p146 = scmp.eq.s32.totalorder %s37, 3
      %p147 = por %p145, %p146
      %p149 = scmp.ne.s32.totalorder %s134, %s148
      %p150 = scmp.eq.s32.totalorder %s37, 0
      %p151 = por %p149, %p150
      %s153 = sadd.s32 %s152, 1
      %p156 = scmp.eq.s32.totalorder %s31, 3
      %p157 = scmp.ne.s32.totalorder %s152, %s154
      %p158 = scmp.eq.s32.totalorder %s31, 0
      %p159 = por %p157, %p158
      %p160 = scmp.ne.s32.totalorder %s152, %s154
      %p161 = scmp.eq.s32.totalorder %s36, 3
      %p162 = por %p160, %p161
      %p163 = scmp.ne.s32.totalorder %s154, %s155
      %p164 = scmp.eq.s32.totalorder %s36, 0
      %p165 = por %p163, %p164
      %p166 = scmp.ne.s32.totalorder %s154, %s155
      %p167 = scmp.eq.s32.totalorder %s37, 3
      %p168 = por %p166, %p167
      %p170 = scmp.ne.s32.totalorder %s155, %s169
      %p171 = scmp.eq.s32.totalorder %s37, 0
      %p172 = por %p170, %p171
      %s174 = sadd.s32 %s173, 1
      %p177 = scmp.eq.s32.totalorder %s31, 3
      %p178 = scmp.ne.s32.totalorder %s173, %s175
      %p179 = scmp.eq.s32.totalorder %s31, 0
      %p180 = por %p178, %p179
      %p181 = scmp.ne.s32.totalorder %s173, %s175
      %p182 = scmp.eq.s32.totalorder %s36, 3
      %p183 = por %p181, %p182
      %p184 = scmp.ne.s32.totalorder %s175, %s176
      %p185 = scmp.eq.s32.totalorder %s36, 0
      %p186 = por %p184, %p185
      %p187 = scmp.ne.s32.totalorder %s175, %s176
      %p188 = scmp.eq.s32.totalorder %s37, 3
      %p189 = por %p187, %p188
      %p191 = scmp.ne.s32.totalorder %s176, %s190
      %p192 = scmp.eq.s32.totalorder %s37, 0
      %p193 = por %p191, %p192
      %s195 = sadd.s32 %s194, 1
      %p198 = scmp.eq.s32.totalorder %s31, 3
      %p199 = scmp.ne.s32.totalorder %s194, %s196
      %p200 = scmp.eq.s32.totalorder %s31, 0
      %p201 = por %p199, %p200
      %p202 = scmp.ne.s32.totalorder %s194, %s196
      %p203 = scmp.eq.s32.totalorder %s36, 3
      %p204 = por %p202, %p203
      %p205 = scmp.ne.s32.totalorder %s196, %s197
      %p206 = scmp.eq.s32.totalorder %s36, 0
      %p207 = por %p205, %p206
      %p208 = scmp.ne.s32.totalorder %s196, %s197
      %p209 = scmp.eq.s32.totalorder %s37, 3
      %p210 = por %p208, %p209
      %p212 = scmp.ne.s32.totalorder %s197, %s211
      %p213 = scmp.eq.s32.totalorder %s37, 0
      %p214 = por %p212, %p213
      %s216 = sadd.s32 %s215, 1
      %p219 = scmp.eq.s32.totalorder %s31, 3
      %p220 = scmp.ne.s32.totalorder %s215, %s217
      %p221 = scmp.eq.s32.totalorder %s31, 0
      %p222 = por %p220, %p221
      %p223 = scmp.ne.s32.totalorder %s215, %s217
      %p224 = scmp.eq.s32.totalorder %s36, 3
      %p225 = por %p223, %p224
      %p226 = scmp.ne.s32.totalorder %s217, %s218
      %p227 = scmp.eq.s32.totalorder %s36, 0
      %p228 = por %p226, %p227
      %p229 = scmp.ne.s32.totalorder %s217, %s218
      %p230 = scmp.eq.s32.totalorder %s37, 3
      %p231 = por %p229, %p230
      %p233 = scmp.ne.s32.totalorder %s218, %s232
      %p234 = scmp.eq.s32.totalorder %s37, 0
      %p235 = por %p233, %p234
      %s237 = sadd.s32 %s236, 1
      %p240 = scmp.eq.s32.totalorder %s31, 3
      %p241 = scmp.ne.s32.totalorder %s236, %s238
      %p242 = scmp.eq.s32.totalorder %s31, 0
      %p243 = por %p241, %p242
      %p244 = scmp.ne.s32.totalorder %s236, %s238
      %p245 = scmp.eq.s32.totalorder %s36, 3
      %p246 = por %p244, %p245
      %p247 = scmp.ne.s32.totalorder %s238, %s239
      %p248 = scmp.eq.s32.totalorder %s36, 0
      %p249 = por %p247, %p248
      %p250 = scmp.ne.s32.totalorder %s238, %s239
      %p251 = scmp.eq.s32.totalorder %s37, 3
      %p252 = por %p250, %p251
      %p254 = scmp.ne.s32.totalorder %s239, %s253
      %p255 = scmp.eq.s32.totalorder %s37, 0
      %p256 = por %p254, %p255
      %s258 = sadd.s32 %s257, 1
      %p261 = scmp.eq.s32.totalorder %s31, 3
      %p262 = scmp.ne.s32.totalorder %s257, %s259
      %p263 = scmp.eq.s32.totalorder %s31, 0
      %p264 = por %p262, %p263
      %p265 = scmp.ne.s32.totalorder %s257, %s259
      %p266 = scmp.eq.s32.totalorder %s36, 3
      %p267 = por %p265, %p266
      %p268 = scmp.ne.s32.totalorder %s259, %s260
      %p269 = scmp.eq.s32.totalorder %s36, 0
      %p270 = por %p268, %p269
      %p271 = scmp.ne.s32.totalorder %s259, %s260
      %p272 = scmp.eq.s32.totalorder %s37, 3
      %p273 = por %p271, %p272
      %p275 = scmp.ne.s32.totalorder %s260, %s274
      %p276 = scmp.eq.s32.totalorder %s37, 0
      %p277 = por %p275, %p276
      %s279 = sadd.s32 %s278, 1
      %p282 = scmp.eq.s32.totalorder %s31, 3
      %p283 = scmp.ne.s32.totalorder %s278, %s280
      %p284 = scmp.eq.s32.totalorder %s31, 0
      %p285 = por %p283, %p284
      %p286 = scmp.ne.s32.totalorder %s278, %s280
      %p287 = scmp.eq.s32.totalorder %s36, 3
      %p288 = por %p286, %p287
      %p289 = scmp.ne.s32.totalorder %s280, %s281
      %p290 = scmp.eq.s32.totalorder %s36, 0
      %p291 = por %p289, %p290
      %p292 = scmp.ne.s32.totalorder %s280, %s281
      %p293 = scmp.eq.s32.totalorder %s37, 3
      %p294 = por %p292, %p293
      %p296 = scmp.ne.s32.totalorder %s281, %s295
      %p297 = scmp.eq.s32.totalorder %s37, 0
      %p298 = por %p296, %p297
      %s300 = sadd.s32 %s299, 1
      %p303 = scmp.eq.s32.totalorder %s31, 3
      %p304 = scmp.ne.s32.totalorder %s299, %s301
      %p305 = scmp.eq.s32.totalorder %s31, 0
      %p306 = por %p304, %p305
      %p307 = scmp.ne.s32.totalorder %s299, %s301
      %p308 = scmp.eq.s32.totalorder %s36, 3
      %p309 = por %p307, %p308
      %p310 = scmp.ne.s32.totalorder %s301, %s302
      %p311 = scmp.eq.s32.totalorder %s36, 0
      %p312 = por %p310, %p311
      %p313 = scmp.ne.s32.totalorder %s301, %s302
      %p314 = scmp.eq.s32.totalorder %s37, 3
      %p315 = por %p313, %p314
      %p317 = scmp.ne.s32.totalorder %s302, %s316
      %p318 = scmp.eq.s32.totalorder %s37, 0
      %p319 = por %p317, %p318
      %s321 = sadd.s32 %s320, 1
      %p324 = scmp.eq.s32.totalorder %s31, 3
      %p325 = scmp.ne.s32.totalorder %s320, %s322
      %p326 = scmp.eq.s32.totalorder %s31, 0
      %p327 = por %p325, %p326
      %p328 = scmp.ne.s32.totalorder %s320, %s322
      %p329 = scmp.eq.s32.totalorder %s36, 3
      %p330 = por %p328, %p329
      %p331 = scmp.ne.s32.totalorder %s322, %s323
      %p332 = scmp.eq.s32.totalorder %s36, 0
      %p333 = por %p331, %p332
      %p334 = scmp.ne.s32.totalorder %s322, %s323
      %p335 = scmp.eq.s32.totalorder %s37, 3
      %p336 = por %p334, %p335
      %p338 = scmp.ne.s32.totalorder %s323, %s337
      %p339 = scmp.eq.s32.totalorder %s37, 0
      %p340 = por %p338, %p339
      %s342 = sadd.s32 %s341, 1
      %p345 = scmp.eq.s32.totalorder %s31, 3
      %p346 = scmp.ne.s32.totalorder %s341, %s343
      %p347 = scmp.eq.s32.totalorder %s31, 0
      %p348 = por %p346, %p347
      %p349 = scmp.ne.s32.totalorder %s341, %s343
      %p350 = scmp.eq.s32.totalorder %s36, 3
      %p351 = por %p349, %p350
      %p352 = scmp.ne.s32.totalorder %s343, %s344
      %p353 = scmp.eq.s32.totalorder %s36, 0
      %p354 = por %p352, %p353
      %p355 = scmp.ne.s32.totalorder %s343, %s344
      %p356 = scmp.eq.s32.totalorder %s37, 3
      %p357 = por %p355, %p356
      %p359 = scmp.ne.s32.totalorder %s344, %s358
      %p360 = scmp.eq.s32.totalorder %s37, 0
      %p361 = por %p359, %p360
      %s363 = sadd.s32 %s362, 1
      %p366 = scmp.eq.s32.totalorder %s31, 3
      %p367 = scmp.ne.s32.totalorder %s362, %s364
      %p368 = scmp.eq.s32.totalorder %s31, 0
      %p369 = por %p367, %p368
      %p370 = scmp.ne.s32.totalorder %s362, %s364
      %p371 = scmp.eq.s32.totalorder %s36, 3
      %p372 = por %p370, %p371
      %p373 = scmp.ne.s32.totalorder %s364, %s365
      %p374 = scmp.eq.s32.totalorder %s36, 0
      %p375 = por %p373, %p374
      %p376 = scmp.ne.s32.totalorder %s364, %s365
      %p377 = scmp.eq.s32.totalorder %s37, 3
      %p378 = por %p376, %p377
      %p380 = scmp.ne.s32.totalorder %s365, %s379
      %p381 = scmp.eq.s32.totalorder %s37, 0
      %p382 = por %p380, %p381
      %s383 = ssub.s32 %s38, %s50
      %s384 = ssub.s32 %s39, %s46
      %s385 = sor.u32 %s383, %s384
      %p386 = scmp.eq.s32.totalorder %s385, 0
      %s388 = sadd.s32 %s387, 1
      %s389 = scalar_select %p386, %s387, %s388
      %p392 = pneg %p386
      %p393 = scmp.eq.s32.totalorder %s31, 3
      %p394 = por %p392, %p393
      %p395 = scmp.ne.s32.totalorder %s387, %s390
      %p396 = scmp.eq.s32.totalorder %s31, 0
      %p397 = por %p395, %p396
      %p398 = scmp.ne.s32.totalorder %s387, %s390
      %p399 = scmp.eq.s32.totalorder %s36, 3
      %p400 = por %p398, %p399
      %p401 = scmp.ne.s32.totalorder %s390, %s391
      %p402 = scmp.eq.s32.totalorder %s36, 0
      %p403 = por %p401, %p402
      %p404 = scmp.ne.s32.totalorder %s390, %s391
      %p405 = scmp.eq.s32.totalorder %s37, 3
      %p406 = por %p404, %p405
      %p408 = scmp.ne.s32.totalorder %s391, %s407
      %p409 = scmp.eq.s32.totalorder %s37, 0
      %p410 = por %p408, %p409
      %p411 = scmp.le.s32.totalorder 1, %s31
      %p412 = scmp.lt.s32.totalorder %s31, 5
      %p413 = pnand %p411, %p412
      %p414 = pneg %p413
      // Predicated region
      $region9: #{tpu_custom_call.1} parent=5 // pred_check
        _
      $region10: #{tpu_custom_call.1} parent=5 // pred_check_branch
        %416 = sbr.rel (%p413) target = $region12
      $region11: #{tpu_custom_call.1} parent=5 // pred_region
        %s417 = ssub.s32 %s31, 1
        // Predicated region
        $region13: #{tpu_custom_call.1} parent=11 // pred_check
          %p418 = pneg %p144
        $region14: #{tpu_custom_call.1} parent=11 // pred_check_branch
          %420 = sbr.rel (%p418) target = $region16
        $region15: #{tpu_custom_call.1} parent=11 // pred_region
          _
        $region16: #{tpu_custom_call.1} parent=11 // pred_fallthru
          _
        // Predicated region
        $region17: #{tpu_custom_call.1} parent=11 // pred_check
          %p421 = pneg %p165
        $region18: #{tpu_custom_call.1} parent=11 // pred_check_branch
          %423 = sbr.rel (%p421) target = $region20
        $region19: #{tpu_custom_call.1} parent=11 // pred_region
          _
        $region20: #{tpu_custom_call.1} parent=11 // pred_fallthru
          _
        // Predicated region
        $region21: #{tpu_custom_call.1} parent=11 // pred_check
          %p424 = pneg %p186
        $region22: #{tpu_custom_call.1} parent=11 // pred_check_branch
          %426 = sbr.rel (%p424) target = $region24
        $region23: #{tpu_custom_call.1} parent=11 // pred_region
          %s428 = ssub.s32 256, 256
          %429 = vsyncadd [#allocation6], %s428
          %s430 = sshll.u32 [#allocation7], 4
          %s431 = int_to_ptr.vmem [resolvable:$true] %s430
          %436 = dma.hbm_to_vmem [thread:$0]  %s5, 256, %s431, [#allocation6], 64, 64, 4
        $region24: #{tpu_custom_call.1} parent=11 // pred_fallthru
          _
        // Predicated region
        $region25: #{tpu_custom_call.1} parent=11 // pred_check
          %p437 = pneg %p207
        $region26: #{tpu_custom_call.1} parent=11 // pred_check_branch
          %439 = sbr.rel (%p437) target = $region28
        $region27: #{tpu_custom_call.1} parent=11 // pred_region
          _
        $region28: #{tpu_custom_call.1} parent=11 // pred_fallthru
          _
        // Predicated region
        $region29: #{tpu_custom_call.1} parent=11 // pred_check
          %p440 = pneg %p228
        $region30: #{tpu_custom_call.1} parent=11 // pred_check_branch
          %442 = sbr.rel (%p440) target = $region32
        $region31: #{tpu_custom_call.1} parent=11 // pred_region
          %s444 = ssub.s32 16, 16
          %445 = vsyncadd [#allocation9], %s444
          %s447 = sshll.u32 [#allocation8], 4
          %s448 = int_to_ptr.vmem [resolvable:$true] %s447
          %450 = dma.hbm_to_vmem [thread:$0]  %s7, 16, %s448, [#allocation9]
        $region32: #{tpu_custom_call.1} parent=11 // pred_fallthru
          _
        // Predicated region
        $region33: #{tpu_custom_call.1} parent=11 // pred_check
          %p451 = pneg %p249
        $region34: #{tpu_custom_call.1} parent=11 // pred_check_branch
          %453 = sbr.rel (%p451) target = $region36
        $region35: #{tpu_custom_call.1} parent=11 // pred_region
          %s455 = ssub.s32 16, 16
          %456 = vsyncadd [#allocation9], %s455
          %s458 = sshll.u32 [#allocation10], 4
          %s459 = int_to_ptr.vmem [resolvable:$true] %s458
          %461 = dma.hbm_to_vmem [thread:$0]  %s8, 16, %s459, [#allocation9]
        $region36: #{tpu_custom_call.1} parent=11 // pred_fallthru
          _
        // Predicated region
        $region37: #{tpu_custom_call.1} parent=11 // pred_check
          %p462 = pneg %p270
        $region38: #{tpu_custom_call.1} parent=11 // pred_check_branch
          %464 = sbr.rel (%p462) target = $region40
        $region39: #{tpu_custom_call.1} parent=11 // pred_region
          _
        $region40: #{tpu_custom_call.1} parent=11 // pred_fallthru
          _
        // Predicated region
        $region41: #{tpu_custom_call.1} parent=11 // pred_check
          %p465 = pneg %p291
        $region42: #{tpu_custom_call.1} parent=11 // pred_check_branch
          %467 = sbr.rel (%p465) target = $region44
        $region43: #{tpu_custom_call.1} parent=11 // pred_region
          _
        $region44: #{tpu_custom_call.1} parent=11 // pred_fallthru
          _
        // Predicated region
        $region45: #{tpu_custom_call.1} parent=11 // pred_check
          %p468 = pneg %p312
        $region46: #{tpu_custom_call.1} parent=11 // pred_check_branch
          %470 = sbr.rel (%p468) target = $region48
        $region47: #{tpu_custom_call.1} parent=11 // pred_region
          _
        $region48: #{tpu_custom_call.1} parent=11 // pred_fallthru
          _
        // Predicated region
        $region49: #{tpu_custom_call.1} parent=11 // pred_check
          %p471 = pneg %p333
        $region50: #{tpu_custom_call.1} parent=11 // pred_check_branch
          %473 = sbr.rel (%p471) target = $region52
        $region51: #{tpu_custom_call.1} parent=11 // pred_region
          _
        $region52: #{tpu_custom_call.1} parent=11 // pred_fallthru
          _
        // Predicated region
        $region53: #{tpu_custom_call.1} parent=11 // pred_check
          %p474 = pneg %p354
        $region54: #{tpu_custom_call.1} parent=11 // pred_check_branch
          %476 = sbr.rel (%p474) target = $region56
        $region55: #{tpu_custom_call.1} parent=11 // pred_region
          _
        $region56: #{tpu_custom_call.1} parent=11 // pred_fallthru
          _
        // Predicated region
        $region57: #{tpu_custom_call.1} parent=11 // pred_check
          %p477 = pneg %p375
        $region58: #{tpu_custom_call.1} parent=11 // pred_check_branch
          %479 = sbr.rel (%p477) target = $region60
        $region59: #{tpu_custom_call.1} parent=11 // pred_region
          _
        $region60: #{tpu_custom_call.1} parent=11 // pred_fallthru
          _
      $region12: #{tpu_custom_call.1} parent=5 // pred_fallthru
        _
      %p480 = scmp.lt.s32.totalorder %s31, 4
      // Predicated region
      $region61: #{tpu_custom_call.1} parent=5 // pred_check
        %p481 = pneg %p480
      $region62: #{tpu_custom_call.1} parent=5 // pred_check_branch
        %483 = sbr.rel (%p481) target = $region64
      $region63: #{tpu_custom_call.1} parent=5 // pred_region
        // Predicated region
        $region65: #{tpu_custom_call.1} parent=63 // pred_check
          %p484 = pneg %p65
        $region66: #{tpu_custom_call.1} parent=63 // pred_check_branch
          %486 = sbr.rel (%p484) target = $region68
        $region67: #{tpu_custom_call.1} parent=63 // pred_region
          %s487 = sand.u32 %s55, 1
          %s488 = scalar_lea.sflag [#allocation3], %s487
          %s489 = sand.u32 %s55, 1
          %s490 = smul.addr %s489, 16
          %s491 = scalar_lea.vmem [#allocation2], %s490
          %s492 = smul.u32 2, %s39
          %s494 = ssub.s32 256, 256
          %495 = vsyncadd %s488, %s494
          %s496 = smul.addr %s38, 4
          %s497 = sadd.s32 %s492, %s496
          %s498 = smul.addr %s497, 128
          %s499 = scalar_lea.hbm %s0, %s498
          %s500 = sshll.u32 %s491, 4
          %s501 = int_to_ptr.vmem [resolvable:$true] %s500
          %506 = dma.hbm_to_vmem [thread:$0]  %s499, 256, %s501, %s488, 128, 128, 8
        $region68: #{tpu_custom_call.1} parent=63 // pred_fallthru
          _
        // Predicated region
        $region69: #{tpu_custom_call.1} parent=63 // pred_check
          %p507 = pneg %p91
        $region70: #{tpu_custom_call.1} parent=63 // pred_check_branch
          %509 = sbr.rel (%p507) target = $region72
        $region71: #{tpu_custom_call.1} parent=63 // pred_region
          %p510 = scmp.lt.s32.totalorder %s38, 1
          %s511 = scalar_select %p510, %s38, 1
          %s512 = smul.addr %s511, 4
          %s513 = smul.addr %s512, 4
          %s514 = scalar_lea.vmem %s1, %s513
        $region72: #{tpu_custom_call.1} parent=63 // pred_fallthru
          _
        // Predicated region
        $region73: #{tpu_custom_call.1} parent=63 // pred_check
          %p515 = pneg %p117
        $region74: #{tpu_custom_call.1} parent=63 // pred_check_branch
          %517 = sbr.rel (%p515) target = $region76
        $region75: #{tpu_custom_call.1} parent=63 // pred_region
          %s518 = sand.u32 %s31, 1
          %s519 = scalar_lea.sflag [#allocation6], %s518
          %s520 = sand.u32 %s107, 1
          %s521 = smul.addr %s520, 16
          %s522 = scalar_lea.vmem [#allocation5], %s521
          %s524 = ssub.s32 256, 256
          %525 = vsyncadd %s519, %s524
          %s526 = smul.addr %s38, 4
          %s527 = smul.addr %s526, 64
          %s528 = scalar_lea.hbm %s2, %s527
          %s529 = sshll.u32 %s522, 4
          %s530 = int_to_ptr.vmem [resolvable:$true] %s529
          %535 = dma.hbm_to_vmem [thread:$0]  %s528, 256, %s530, %s519, 64, 64, 4
        $region76: #{tpu_custom_call.1} parent=63 // pred_fallthru
          _
      $region64: #{tpu_custom_call.1} parent=5 // pred_fallthru
        _
      %p536 = scmp.le.s32.totalorder 1, %s31
      %p537 = scmp.lt.s32.totalorder %s31, 5
      %p538 = pnand %p536, %p537
      %p539 = pneg %p538
      // Predicated region
      $region77: #{tpu_custom_call.1} parent=5 // pred_check
        _
      $region78: #{tpu_custom_call.1} parent=5 // pred_check_branch
        %541 = sbr.rel (%p538) target = $region80
      $region79: #{tpu_custom_call.1} parent=5 // pred_region
        %s542 = ssub.s32 %s31, 1
        %s543 = sand.u32 %s58, 1
        %s544 = scalar_lea.sflag [#allocation3], %s543
        %s545 = sand.u32 %s58, 1
        %s546 = smul.addr %s545, 16
        %s547 = scalar_lea.vmem [#allocation2], %s546
        // Predicated region
        $region81: #{tpu_custom_call.1} parent=79 // pred_check
          %p548 = pneg %p71
        $region82: #{tpu_custom_call.1} parent=79 // pred_check_branch
          %550 = sbr.rel (%p548) target = $region84
        $region83: #{tpu_custom_call.1} parent=79 // pred_region
          %551 = dma.done %s544, 256
        $region84: #{tpu_custom_call.1} parent=79 // pred_fallthru
          _
        %s552 = sand.u32 %s36, 1
        %s553 = scalar_lea.sflag [#allocation6], %s552
        %s554 = sand.u32 %s110, 1
        %s555 = smul.addr %s554, 16
        %s556 = scalar_lea.vmem [#allocation5], %s555
        // Predicated region
        $region85: #{tpu_custom_call.1} parent=79 // pred_check
          %p557 = pneg %p123
        $region86: #{tpu_custom_call.1} parent=79 // pred_check_branch
          %559 = sbr.rel (%p557) target = $region88
        $region87: #{tpu_custom_call.1} parent=79 // pred_region
          %560 = dma.done %s553, 256
        $region88: #{tpu_custom_call.1} parent=79 // pred_fallthru
          _
        // Predicated region
        $region89: #{tpu_custom_call.1} parent=79 // pred_check
          %p561 = pneg %p186
        $region90: #{tpu_custom_call.1} parent=79 // pred_check_branch
          %563 = sbr.rel (%p561) target = $region92
        $region91: #{tpu_custom_call.1} parent=79 // pred_region
          %564 = dma.done [#allocation6], 256
        $region92: #{tpu_custom_call.1} parent=79 // pred_fallthru
          _
        // Predicated region
        $region93: #{tpu_custom_call.1} parent=79 // pred_check
          %p565 = pneg %p228
        $region94: #{tpu_custom_call.1} parent=79 // pred_check_branch
          %567 = sbr.rel (%p565) target = $region96
        $region95: #{tpu_custom_call.1} parent=79 // pred_region
          %568 = dma.done [#allocation9], 16
        $region96: #{tpu_custom_call.1} parent=79 // pred_fallthru
          _
        // Predicated region
        $region97: #{tpu_custom_call.1} parent=79 // pred_check
          %p569 = pneg %p249
        $region98: #{tpu_custom_call.1} parent=79 // pred_check_branch
          %571 = sbr.rel (%p569) target = $region100
        $region99: #{tpu_custom_call.1} parent=79 // pred_region
          %572 = dma.done [#allocation9], 16
        $region100: #{tpu_custom_call.1} parent=79 // pred_fallthru
          _
        %s573 = sand.u32 %s58, 1
        %s574 = scalar_lea.sflag [#allocation3], %s573
        %s575 = sand.u32 %s58, 1
        %s576 = smul.addr %s575, 16
        %s577 = scalar_lea.vmem [#allocation2], %s576
        %p578 = pneg %p71
        %p579 = pneg %p68
        %p580 = scmp.lt.s32.totalorder %s40, 1
        %s581 = scalar_select %p580, %s40, 1
        %s582 = smul.addr %s581, 4
        %s583 = smul.addr %s582, 4
        %s584 = scalar_lea.vmem %s1, %s583
        %p585 = pneg %p97
        %p586 = pneg %p94
        %s587 = sand.u32 %s36, 1
        %s588 = scalar_lea.sflag [#allocation6], %s587
        %s589 = sand.u32 %s110, 1
        %s590 = smul.addr %s589, 16
        %s591 = scalar_lea.vmem [#allocation5], %s590
        %p592 = pneg %p123
        %p593 = pneg %p120
        %p594 = pneg %p144
        %p595 = pneg %p141
        %p596 = pneg %p165
        %p597 = pneg %p162
        %p598 = pneg %p186
        %p599 = pneg %p183
        %p600 = pneg %p207
        %p601 = pneg %p204
        %p602 = pneg %p228
        %p603 = pneg %p225
        %p604 = pneg %p249
        %p605 = pneg %p246
        %p606 = pneg %p270
        %p607 = pneg %p267
        %p608 = pneg %p291
        %p609 = pneg %p288
        %p610 = pneg %p312
        %p611 = pneg %p309
        %p612 = pneg %p333
        %p613 = pneg %p330
        %p614 = pneg %p354
        %p615 = pneg %p351
        %p616 = pneg %p375
        %p617 = pneg %p372
        %p618 = pneg %p403
        %p619 = pneg %p400
        %s620 = sand.u32 %s390, 1
        %s621 = scalar_lea.sflag [#allocation4], %s620
        %s622 = sand.u32 %s390, 1
        %s623 = smul.addr %s622, 16
        %s624 = scalar_lea.vmem [#allocation11], %s623
        %s625 = smul.u32 2, %s41
        %p626 = scmp.lt.s32.totalorder %s40, 1
        %s627 = scalar_select %p626, %s40, 1
        %s628 = smul.addr %s627, 4
        %s629 = smul.addr %s628, 4
        %s630 = scalar_lea.vmem %s1, %s629
        %s631 = smul.u32 2, %s41
        %v633 = vld [vmem:[%s547] sm:$0xff]
        %v634 = vld [vmem:[%s547 + $0x8] sm:$0xff]
        %v635 = vpack.c.bf16 %v634, %v633
        %v636 = vld [vmem:[%s3] sm:$0xf]
        %v637 = vld [vmem:[%s3 + $0x4] sm:$0xf]
        %v638 = vld [vmem:[%s3 + $0x8] sm:$0xf]
        %v639 = vld [vmem:[%s3 + $0xc] sm:$0xf]
        %v640 = vld [vmem:[%s4] sm:$0x1]
        %v642 = vlaneseq
        %v643 = vshrl.u32 %v642, 7
        %v644 = vsub.s32 0, %v643
        %v645 = vrot.slane %v640, %v644
        %v651 = vunpack.c.l.b16 %v636
        %v652 = vunpack.c.l.b16 %v637
        %v653 = vunpack.c.l.b16 %v638
        %v654 = vunpack.c.l.b16 %v639
        %v655 = vpack.c.b16 %v652, %v651
        %v656 = vpack.c.b16 %v654, %v653
        %vm659 = vcmask 261120
        %v661 = vsel %vm659, %v635, 0
        %663 = vmatprep.subr.bf16.mxu0 0
        %664 = vmatpush1.bf16.msra.mxu0 %v655
        %665 = vmatprep.subr.bf16.mxu0 0
        %666 = vmatpush1.bf16.msra.mxu0 %v656
        %667 = vmatprep.subr.bf16.mxu0 0
        %668 = vmatpush1.bf16.msra.mxu0 0
        %669 = vmatprep.subr.bf16.mxu0 0
        %670 = vmatpush1.bf16.msra.mxu0 0
        %671 = vmatprep.subr.bf16.mxu0 0
        %672 = vmatpush1.bf16.msra.mxu0 0
        %673 = vmatprep.subr.bf16.mxu0 0
        %674 = vmatpush1.bf16.msra.mxu0 0
        %675 = vmatprep.subr.bf16.mxu0 0
        %676 = vmatpush1.bf16.msra.mxu0 0
        %677 = vmatprep.subr.bf16.mxu0 0
        %678 = vmatpush1.bf16.msra.mxu0 0
        %679 = vmatprep.subr.bf16.mxu0 0
        %680 = vmatpush1.bf16.msra.mxu0 0
        %681 = vmatprep.subr.bf16.mxu0 0
        %682 = vmatpush1.bf16.msra.mxu0 0
        %683 = vmatprep.subr.bf16.mxu0 0
        %684 = vmatpush1.bf16.msra.mxu0 0
        %685 = vmatprep.subr.bf16.mxu0 0
        %686 = vmatpush1.bf16.msra.mxu0 0
        %687 = vmatprep.subr.bf16.mxu0 0
        %688 = vmatpush1.bf16.msra.mxu0 0
        %689 = vmatprep.subr.bf16.mxu0 0
        %690 = vmatpush1.bf16.msra.mxu0 0
        %691 = vmatprep.subr.bf16.mxu0 0
        %692 = vmatpush1.bf16.msra.mxu0 0
        %693 = vmatprep.subr.bf16.mxu0 0
        %694 = vmatpush1.bf16.msra.mxu0 0
        %695 = vmatprep.mubr.bf16.mxu0 0
        %696 = vmatmul.mubr.bf16.gmra.mrb[0].mxu0 %v661
        %v697 = vpop.f32.mrb[0].mxu0
        %v698 = vadd.f32 %v645, %v697
        %v699 = vpop.f32.mrb[0].mxu0
        %v700 = vpop.f32.mrb[0].mxu0
        %v701 = vadd.f32 %v645, %v700
        %v702 = vpop.f32.mrb[0].mxu0
        %703 = vdwg.mxu0
        %706 = vrot.lane.b32.xlu0 %v698, 120
        %v707 = vpop.permute.xlu0 %706
        %708 = vrot.lane.b32.xlu0 %v701, 120
        %v709 = vpop.permute.xlu0 %708
        %712 = vrot.lane.b32.xlu0 %v698, 112
        %v713 = vpop.permute.xlu0 %712
        %714 = vrot.lane.b32.xlu0 %v701, 112
        %v715 = vpop.permute.xlu0 %714
        %718 = vrot.lane.b32.xlu0 %v698, 104
        %v719 = vpop.permute.xlu0 %718
        %720 = vrot.lane.b32.xlu0 %v701, 104
        %v721 = vpop.permute.xlu0 %720
        %v724 = vcombine.low %v698, %v713
        %v725 = vcombine.high %v698, %v713
        %v727 = vunpack.c.l.s4 1983009808
        %v728 = vunpack.c.0.s8 %v727
        %v729 = vlaneseq
        %v730 = vshrl.u32 %v729, 7
        %v731 = vsub.s32 %v728, %v730
        %v732 = vrot.slane %v724, %v731
        %v734 = vunpack.c.l.s4 1983009808
        %v735 = vunpack.c.0.s8 %v734
        %v736 = vlaneseq
        %v737 = vshrl.u32 %v736, 7
        %v738 = vsub.s32 %v735, %v737
        %v739 = vrot.slane %v725, %v738
        %v740 = vcombine.low %v707, %v719
        %v741 = vcombine.high %v707, %v719
        %v743 = vunpack.c.l.s4 1983009808
        %v744 = vunpack.c.0.s8 %v743
        %v745 = vlaneseq
        %v746 = vshrl.u32 %v745, 7
        %v747 = vsub.s32 %v744, %v746
        %v748 = vrot.slane %v740, %v747
        %v750 = vunpack.c.l.s4 1983009808
        %v751 = vunpack.c.0.s8 %v750
        %v752 = vlaneseq
        %v753 = vshrl.u32 %v752, 7
        %v754 = vsub.s32 %v751, %v753
        %v755 = vrot.slane %v741, %v754
        %v756 = vcombine.low %v732, %v748
        %v757 = vcombine.high %v732, %v748
        %v759 = vunpack.c.l.s4 1934713408
        %v760 = vunpack.c.0.s8 %v759
        %v761 = vlaneseq
        %v762 = vshrl.u32 %v761, 7
        %v763 = vsub.s32 %v760, %v762
        %v764 = vrot.slane %v756, %v763
        %v766 = vunpack.c.l.s4 1934713408
        %v767 = vunpack.c.0.s8 %v766
        %v768 = vlaneseq
        %v769 = vshrl.u32 %v768, 7
        %v770 = vsub.s32 %v767, %v769
        %v771 = vrot.slane %v757, %v770
        %v772 = vcombine.low %v739, %v755
        %v773 = vcombine.high %v739, %v755
        %v775 = vunpack.c.l.s4 1934713408
        %v776 = vunpack.c.0.s8 %v775
        %v777 = vlaneseq
        %v778 = vshrl.u32 %v777, 7
        %v779 = vsub.s32 %v776, %v778
        %v780 = vrot.slane %v772, %v779
        %v782 = vunpack.c.l.s4 1934713408
        %v783 = vunpack.c.0.s8 %v782
        %v784 = vlaneseq
        %v785 = vshrl.u32 %v784, 7
        %v786 = vsub.s32 %v783, %v785
        %v787 = vrot.slane %v773, %v786
        %v788 = vcombine.high %v764, 0.0
        %v789 = vcombine.high %v771, 0.0
        %v790 = vcombine.high %v780, 0.0
        %v791 = vcombine.high %v787, 0.0
        %v792 = vcombine.low %v701, %v715
        %v793 = vcombine.high %v701, %v715
        %v795 = vunpack.c.l.s4 1983009808
        %v796 = vunpack.c.0.s8 %v795
        %v797 = vlaneseq
        %v798 = vshrl.u32 %v797, 7
        %v799 = vsub.s32 %v796, %v798
        %v800 = vrot.slane %v792, %v799
        %v802 = vunpack.c.l.s4 1983009808
        %v803 = vunpack.c.0.s8 %v802
        %v804 = vlaneseq
        %v805 = vshrl.u32 %v804, 7
        %v806 = vsub.s32 %v803, %v805
        %v807 = vrot.slane %v793, %v806
        %v808 = vcombine.low %v709, %v721
        %v809 = vcombine.high %v709, %v721
        %v811 = vunpack.c.l.s4 1983009808
        %v812 = vunpack.c.0.s8 %v811
        %v813 = vlaneseq
        %v814 = vshrl.u32 %v813, 7
        %v815 = vsub.s32 %v812, %v814
        %v816 = vrot.slane %v808, %v815
        %v818 = vunpack.c.l.s4 1983009808
        %v819 = vunpack.c.0.s8 %v818
        %v820 = vlaneseq
        %v821 = vshrl.u32 %v820, 7
        %v822 = vsub.s32 %v819, %v821
        %v823 = vrot.slane %v809, %v822
        %v824 = vcombine.low %v800, %v816
        %v825 = vcombine.high %v800, %v816
        %v827 = vunpack.c.l.s4 1934713408
        %v828 = vunpack.c.0.s8 %v827
        %v829 = vlaneseq
        %v830 = vshrl.u32 %v829, 7
        %v831 = vsub.s32 %v828, %v830
        %v832 = vrot.slane %v824, %v831
        %v834 = vunpack.c.l.s4 1934713408
        %v835 = vunpack.c.0.s8 %v834
        %v836 = vlaneseq
        %v837 = vshrl.u32 %v836, 7
        %v838 = vsub.s32 %v835, %v837
        %v839 = vrot.slane %v825, %v838
        %v840 = vcombine.low %v807, %v823
        %v841 = vcombine.high %v807, %v823
        %v843 = vunpack.c.l.s4 1934713408
        %v844 = vunpack.c.0.s8 %v843
        %v845 = vlaneseq
        %v846 = vshrl.u32 %v845, 7
        %v847 = vsub.s32 %v844, %v846
        %v848 = vrot.slane %v840, %v847
        %v850 = vunpack.c.l.s4 1934713408
        %v851 = vunpack.c.0.s8 %v850
        %v852 = vlaneseq
        %v853 = vshrl.u32 %v852, 7
        %v854 = vsub.s32 %v851, %v853
        %v855 = vrot.slane %v841, %v854
        %v856 = vcombine.high %v832, 0.0
        %v857 = vcombine.high %v839, 0.0
        %v858 = vcombine.high %v848, 0.0
        %v859 = vcombine.high %v855, 0.0
        %v860 = vpack.c.bf16 %v764, %v764
        %v861 = vpack.c.bf16 %v788, %v788
        %v862 = vpack.c.bf16 %v771, %v771
        %v863 = vpack.c.bf16 %v789, %v789
        %v864 = vpack.c.bf16 %v780, %v780
        %v865 = vpack.c.bf16 %v790, %v790
        %v866 = vpack.c.bf16 %v787, %v787
        %v867 = vpack.c.bf16 %v791, %v791
        %v868 = vpack.c.bf16 %v832, %v832
        %v869 = vpack.c.bf16 %v856, %v856
        %v870 = vpack.c.bf16 %v839, %v839
        %v871 = vpack.c.bf16 %v857, %v857
        %v872 = vpack.c.bf16 %v848, %v848
        %v873 = vpack.c.bf16 %v858, %v858
        %v874 = vpack.c.bf16 %v855, %v855
        %v875 = vpack.c.bf16 %v859, %v859
        loop: start=0, step=1, limit=2
        $region101: #{tpu_custom_call.1} parent=79 // loop_pre_header
          _
        $region102: #{tpu_custom_call.1} parent=79 // loop_header
          %s877 = sphi 0, %s881
          %p878 = scmp.ge.s32.totalorder %s877, 2
          %v882 = vphi -inf, %v2206
          %v883 = vphi -inf, %v2207
          %v884 = vphi -inf, %v2208
          %v885 = vphi -inf, %v2209
          %v886 = vphi -inf, %v2210
          %v887 = vphi -inf, %v2211
          %v888 = vphi -inf, %v2212
          %v889 = vphi -inf, %v2213
          %v890 = vphi 0.0, %v2294
          %v891 = vphi 0.0, %v2295
          %v892 = vphi 0.0, %v2296
          %v893 = vphi 0.0, %v2297
          %v894 = vphi 0.0, %v2298
          %v895 = vphi 0.0, %v2299
          %v896 = vphi 0.0, %v2300
          %v897 = vphi 0.0, %v2301
          %v898 = vphi 0.0, %v2630
          %v899 = vphi 0.0, %v2631
          %v900 = vphi 0.0, %v2632
          %v901 = vphi 0.0, %v2633
          %v902 = vphi 0.0, %v2634
          %v903 = vphi 0.0, %v2635
          %v904 = vphi 0.0, %v2636
          %v905 = vphi 0.0, %v2637
        $region103: #{tpu_custom_call.1} parent=79 // loop_header_branch
          %880 = sbr.rel (%p878) target = $region107
        $region104: #{tpu_custom_call.1} parent=79 // loop_body
          %s906 = smul.u32 %s877, 16
          %s907 = sshra.s32 %s906, 3
          %s908 = sand.u32 %s906, 7
          %s909 = smul.addr %s907, 4
          %s910 = scalar_lea.vmem %s630, %s909
          %v911 = vld [vmem:[%s910] sm:$0xf]
          %v912 = vld [vmem:[%s910 + $0x4] sm:$0xf]
          %915 = vrot.lane.b32.xlu0 %v911, 120
          %v916 = vpop.permute.xlu0 %915
          %917 = vrot.lane.b32.xlu0 %v912, 120
          %v918 = vpop.permute.xlu0 %917
          %919 = vrot.lane.b32.xlu0 %v911, 112
          %v920 = vpop.permute.xlu0 %919
          %921 = vrot.lane.b32.xlu0 %v912, 112
          %v922 = vpop.permute.xlu0 %921
          %923 = vrot.lane.b32.xlu0 %v911, 104
          %v924 = vpop.permute.xlu0 %923
          %925 = vrot.lane.b32.xlu0 %v912, 104
          %v926 = vpop.permute.xlu0 %925
          %v929 = vpack.i.b16 %v916, %v911
          %v930 = vshrl.u32 %v911, 16
          %v931 = vshrl.u32 %v916, 16
          %v932 = vpack.i.b16 %v931, %v930
          %v935 = vpack.i.b16 %v924, %v920
          %v936 = vshrl.u32 %v920, 16
          %v937 = vshrl.u32 %v924, 16
          %v938 = vpack.i.b16 %v937, %v936
          %v941 = vpack.i.b16 %v918, %v912
          %v942 = vshrl.u32 %v912, 16
          %v943 = vshrl.u32 %v918, 16
          %v944 = vpack.i.b16 %v943, %v942
          %v947 = vpack.i.b16 %v926, %v922
          %v948 = vshrl.u32 %v922, 16
          %v949 = vshrl.u32 %v926, 16
          %v950 = vpack.i.b16 %v949, %v948
          %v953 = vunpack.c.l.s4 1983009808
          %v954 = vunpack.c.0.s8 %v953
          %v955 = vlaneseq
          %v956 = vshrl.u32 %v955, 7
          %v957 = vsub.s32 %v954, %v956
          %v958 = vrot.slane %v929, %v957
          %v961 = vunpack.c.l.s4 1983009808
          %v962 = vunpack.c.0.s8 %v961
          %v963 = vlaneseq
          %v964 = vshrl.u32 %v963, 7
          %v965 = vsub.s32 %v962, %v964
          %v966 = vrot.slane %v935, %v965
          %v967 = vcombine.low %v958, %v966
          %v968 = vcombine.high %v958, %v966
          %v970 = vunpack.c.l.s4 1934713408
          %v971 = vunpack.c.0.s8 %v970
          %v972 = vlaneseq
          %v973 = vshrl.u32 %v972, 7
          %v974 = vsub.s32 %v971, %v973
          %v975 = vrot.slane %v967, %v974
          %v977 = vunpack.c.l.s4 1934713408
          %v978 = vunpack.c.0.s8 %v977
          %v979 = vlaneseq
          %v980 = vshrl.u32 %v979, 7
          %v981 = vsub.s32 %v978, %v980
          %v982 = vrot.slane %v968, %v981
          %v983 = vcombine.high %v975, 0
          %v984 = vcombine.high %v982, 0
          %v987 = vunpack.c.l.s4 1983009808
          %v988 = vunpack.c.0.s8 %v987
          %v989 = vlaneseq
          %v990 = vshrl.u32 %v989, 7
          %v991 = vsub.s32 %v988, %v990
          %v992 = vrot.slane %v932, %v991
          %v995 = vunpack.c.l.s4 1983009808
          %v996 = vunpack.c.0.s8 %v995
          %v997 = vlaneseq
          %v998 = vshrl.u32 %v997, 7
          %v999 = vsub.s32 %v996, %v998
          %v1000 = vrot.slane %v938, %v999
          %v1001 = vcombine.low %v992, %v1000
          %v1002 = vcombine.high %v992, %v1000
          %v1004 = vunpack.c.l.s4 1934713408
          %v1005 = vunpack.c.0.s8 %v1004
          %v1006 = vlaneseq
          %v1007 = vshrl.u32 %v1006, 7
          %v1008 = vsub.s32 %v1005, %v1007
          %v1009 = vrot.slane %v1001, %v1008
          %v1011 = vunpack.c.l.s4 1934713408
          %v1012 = vunpack.c.0.s8 %v1011
          %v1013 = vlaneseq
          %v1014 = vshrl.u32 %v1013, 7
          %v1015 = vsub.s32 %v1012, %v1014
          %v1016 = vrot.slane %v1002, %v1015
          %v1017 = vcombine.high %v1009, 0
          %v1018 = vcombine.high %v1016, 0
          %v1021 = vunpack.c.l.s4 1983009808
          %v1022 = vunpack.c.0.s8 %v1021
          %v1023 = vlaneseq
          %v1024 = vshrl.u32 %v1023, 7
          %v1025 = vsub.s32 %v1022, %v1024
          %v1026 = vrot.slane %v941, %v1025
          %v1029 = vunpack.c.l.s4 1983009808
          %v1030 = vunpack.c.0.s8 %v1029
          %v1031 = vlaneseq
          %v1032 = vshrl.u32 %v1031, 7
          %v1033 = vsub.s32 %v1030, %v1032
          %v1034 = vrot.slane %v947, %v1033
          %v1035 = vcombine.low %v1026, %v1034
          %v1036 = vcombine.high %v1026, %v1034
          %v1038 = vunpack.c.l.s4 1934713408
          %v1039 = vunpack.c.0.s8 %v1038
          %v1040 = vlaneseq
          %v1041 = vshrl.u32 %v1040, 7
          %v1042 = vsub.s32 %v1039, %v1041
          %v1043 = vrot.slane %v1035, %v1042
          %v1045 = vunpack.c.l.s4 1934713408
          %v1046 = vunpack.c.0.s8 %v1045
          %v1047 = vlaneseq
          %v1048 = vshrl.u32 %v1047, 7
          %v1049 = vsub.s32 %v1046, %v1048
          %v1050 = vrot.slane %v1036, %v1049
          %v1051 = vcombine.high %v1043, 0
          %v1052 = vcombine.high %v1050, 0
          %v1055 = vunpack.c.l.s4 1983009808
          %v1056 = vunpack.c.0.s8 %v1055
          %v1057 = vlaneseq
          %v1058 = vshrl.u32 %v1057, 7
          %v1059 = vsub.s32 %v1056, %v1058
          %v1060 = vrot.slane %v944, %v1059
          %v1063 = vunpack.c.l.s4 1983009808
          %v1064 = vunpack.c.0.s8 %v1063
          %v1065 = vlaneseq
          %v1066 = vshrl.u32 %v1065, 7
          %v1067 = vsub.s32 %v1064, %v1066
          %v1068 = vrot.slane %v950, %v1067
          %v1069 = vcombine.low %v1060, %v1068
          %v1070 = vcombine.high %v1060, %v1068
          %v1072 = vunpack.c.l.s4 1934713408
          %v1073 = vunpack.c.0.s8 %v1072
          %v1074 = vlaneseq
          %v1075 = vshrl.u32 %v1074, 7
          %v1076 = vsub.s32 %v1073, %v1075
          %v1077 = vrot.slane %v1069, %v1076
          %v1079 = vunpack.c.l.s4 1934713408
          %v1080 = vunpack.c.0.s8 %v1079
          %v1081 = vlaneseq
          %v1082 = vshrl.u32 %v1081, 7
          %v1083 = vsub.s32 %v1080, %v1082
          %v1084 = vrot.slane %v1070, %v1083
          %v1085 = vcombine.high %v1077, 0
          %v1086 = vcombine.high %v1084, 0
          %s1087 = smul.addr %s907, 4
          %s1088 = scalar_lea.vmem %s556, %s1087 [#allocation5]
          %v1089 = vld [vmem:[%s1088] sm:$0xf]
          %v1090 = vld [vmem:[%s1088 + $0x4] sm:$0xf]
          %1093 = vrot.lane.b32.xlu0 %v1089, 120
          %v1094 = vpop.permute.xlu0 %1093
          %1095 = vrot.lane.b32.xlu0 %v1090, 120
          %v1096 = vpop.permute.xlu0 %1095
          %1097 = vrot.lane.b32.xlu0 %v1089, 112
          %v1098 = vpop.permute.xlu0 %1097
          %1099 = vrot.lane.b32.xlu0 %v1090, 112
          %v1100 = vpop.permute.xlu0 %1099
          %1101 = vrot.lane.b32.xlu0 %v1089, 104
          %v1102 = vpop.permute.xlu0 %1101
          %1103 = vrot.lane.b32.xlu0 %v1090, 104
          %v1104 = vpop.permute.xlu0 %1103
          %v1107 = vpack.i.b16 %v1094, %v1089
          %v1108 = vshrl.u32 %v1089, 16
          %v1109 = vshrl.u32 %v1094, 16
          %v1110 = vpack.i.b16 %v1109, %v1108
          %v1113 = vpack.i.b16 %v1102, %v1098
          %v1114 = vshrl.u32 %v1098, 16
          %v1115 = vshrl.u32 %v1102, 16
          %v1116 = vpack.i.b16 %v1115, %v1114
          %v1119 = vpack.i.b16 %v1096, %v1090
          %v1120 = vshrl.u32 %v1090, 16
          %v1121 = vshrl.u32 %v1096, 16
          %v1122 = vpack.i.b16 %v1121, %v1120
          %v1125 = vpack.i.b16 %v1104, %v1100
          %v1126 = vshrl.u32 %v1100, 16
          %v1127 = vshrl.u32 %v1104, 16
          %v1128 = vpack.i.b16 %v1127, %v1126
          %v1131 = vunpack.c.l.s4 1983009808
          %v1132 = vunpack.c.0.s8 %v1131
          %v1133 = vlaneseq
          %v1134 = vshrl.u32 %v1133, 7
          %v1135 = vsub.s32 %v1132, %v1134
          %v1136 = vrot.slane %v1107, %v1135
          %v1139 = vunpack.c.l.s4 1983009808
          %v1140 = vunpack.c.0.s8 %v1139
          %v1141 = vlaneseq
          %v1142 = vshrl.u32 %v1141, 7
          %v1143 = vsub.s32 %v1140, %v1142
          %v1144 = vrot.slane %v1113, %v1143
          %v1145 = vcombine.low %v1136, %v1144
          %v1146 = vcombine.high %v1136, %v1144
          %v1148 = vunpack.c.l.s4 1934713408
          %v1149 = vunpack.c.0.s8 %v1148
          %v1150 = vlaneseq
          %v1151 = vshrl.u32 %v1150, 7
          %v1152 = vsub.s32 %v1149, %v1151
          %v1153 = vrot.slane %v1145, %v1152
          %v1155 = vunpack.c.l.s4 1934713408
          %v1156 = vunpack.c.0.s8 %v1155
          %v1157 = vlaneseq
          %v1158 = vshrl.u32 %v1157, 7
          %v1159 = vsub.s32 %v1156, %v1158
          %v1160 = vrot.slane %v1146, %v1159
          %v1161 = vcombine.high %v1153, 0
          %v1162 = vcombine.high %v1160, 0
          %v1165 = vunpack.c.l.s4 1983009808
          %v1166 = vunpack.c.0.s8 %v1165
          %v1167 = vlaneseq
          %v1168 = vshrl.u32 %v1167, 7
          %v1169 = vsub.s32 %v1166, %v1168
          %v1170 = vrot.slane %v1110, %v1169
          %v1173 = vunpack.c.l.s4 1983009808
          %v1174 = vunpack.c.0.s8 %v1173
          %v1175 = vlaneseq
          %v1176 = vshrl.u32 %v1175, 7
          %v1177 = vsub.s32 %v1174, %v1176
          %v1178 = vrot.slane %v1116, %v1177
          %v1179 = vcombine.low %v1170, %v1178
          %v1180 = vcombine.high %v1170, %v1178
          %v1182 = vunpack.c.l.s4 1934713408
          %v1183 = vunpack.c.0.s8 %v1182
          %v1184 = vlaneseq
          %v1185 = vshrl.u32 %v1184, 7
          %v1186 = vsub.s32 %v1183, %v1185
          %v1187 = vrot.slane %v1179, %v1186
          %v1189 = vunpack.c.l.s4 1934713408
          %v1190 = vunpack.c.0.s8 %v1189
          %v1191 = vlaneseq
          %v1192 = vshrl.u32 %v1191, 7
          %v1193 = vsub.s32 %v1190, %v1192
          %v1194 = vrot.slane %v1180, %v1193
          %v1195 = vcombine.high %v1187, 0
          %v1196 = vcombine.high %v1194, 0
          %v1199 = vunpack.c.l.s4 1983009808
          %v1200 = vunpack.c.0.s8 %v1199
          %v1201 = vlaneseq
          %v1202 = vshrl.u32 %v1201, 7
          %v1203 = vsub.s32 %v1200, %v1202
          %v1204 = vrot.slane %v1119, %v1203
          %v1207 = vunpack.c.l.s4 1983009808
          %v1208 = vunpack.c.0.s8 %v1207
          %v1209 = vlaneseq
          %v1210 = vshrl.u32 %v1209, 7
          %v1211 = vsub.s32 %v1208, %v1210
          %v1212 = vrot.slane %v1125, %v1211
          %v1213 = vcombine.low %v1204, %v1212
          %v1214 = vcombine.high %v1204, %v1212
          %v1216 = vunpack.c.l.s4 1934713408
          %v1217 = vunpack.c.0.s8 %v1216
          %v1218 = vlaneseq
          %v1219 = vshrl.u32 %v1218, 7
          %v1220 = vsub.s32 %v1217, %v1219
          %v1221 = vrot.slane %v1213, %v1220
          %v1223 = vunpack.c.l.s4 1934713408
          %v1224 = vunpack.c.0.s8 %v1223
          %v1225 = vlaneseq
          %v1226 = vshrl.u32 %v1225, 7
          %v1227 = vsub.s32 %v1224, %v1226
          %v1228 = vrot.slane %v1214, %v1227
          %v1229 = vcombine.high %v1221, 0
          %v1230 = vcombine.high %v1228, 0
          %v1233 = vunpack.c.l.s4 1983009808
          %v1234 = vunpack.c.0.s8 %v1233
          %v1235 = vlaneseq
          %v1236 = vshrl.u32 %v1235, 7
          %v1237 = vsub.s32 %v1234, %v1236
          %v1238 = vrot.slane %v1122, %v1237
          %v1241 = vunpack.c.l.s4 1983009808
          %v1242 = vunpack.c.0.s8 %v1241
          %v1243 = vlaneseq
          %v1244 = vshrl.u32 %v1243, 7
          %v1245 = vsub.s32 %v1242, %v1244
          %v1246 = vrot.slane %v1128, %v1245
          %v1247 = vcombine.low %v1238, %v1246
          %v1248 = vcombine.high %v1238, %v1246
          %v1250 = vunpack.c.l.s4 1934713408
          %v1251 = vunpack.c.0.s8 %v1250
          %v1252 = vlaneseq
          %v1253 = vshrl.u32 %v1252, 7
          %v1254 = vsub.s32 %v1251, %v1253
          %v1255 = vrot.slane %v1247, %v1254
          %v1257 = vunpack.c.l.s4 1934713408
          %v1258 = vunpack.c.0.s8 %v1257
          %v1259 = vlaneseq
          %v1260 = vshrl.u32 %v1259, 7
          %v1261 = vsub.s32 %v1258, %v1260
          %v1262 = vrot.slane %v1248, %v1261
          %v1263 = vcombine.high %v1255, 0
          %v1264 = vcombine.high %v1262, 0
          %v1265 = vcombine.low %v860, %v864
          %v1267 = vunpack.c.l.s4 1983009808
          %v1268 = vunpack.c.0.s8 %v1267
          %v1269 = vlaneseq
          %v1270 = vshrl.u32 %v1269, 7
          %v1271 = vsub.s32 %v1268, %v1270
          %v1272 = vrot.slane %v1265, %v1271
          %v1273 = vcombine.low %v862, %v866
          %v1275 = vunpack.c.l.s4 1983009808
          %v1276 = vunpack.c.0.s8 %v1275
          %v1277 = vlaneseq
          %v1278 = vshrl.u32 %v1277, 7
          %v1279 = vsub.s32 %v1276, %v1278
          %v1280 = vrot.slane %v1273, %v1279
          %v1281 = vcombine.low %v868, %v872
          %v1283 = vunpack.c.l.s4 1983009808
          %v1284 = vunpack.c.0.s8 %v1283
          %v1285 = vlaneseq
          %v1286 = vshrl.u32 %v1285, 7
          %v1287 = vsub.s32 %v1284, %v1286
          %v1288 = vrot.slane %v1281, %v1287
          %v1289 = vcombine.low %v870, %v874
          %v1291 = vunpack.c.l.s4 1983009808
          %v1292 = vunpack.c.0.s8 %v1291
          %v1293 = vlaneseq
          %v1294 = vshrl.u32 %v1293, 7
          %v1295 = vsub.s32 %v1292, %v1294
          %v1296 = vrot.slane %v1289, %v1295
          %v1297 = vcombine.low %v1272, %v1280
          %v1299 = vunpack.c.l.s4 1934713408
          %v1300 = vunpack.c.0.s8 %v1299
          %v1301 = vlaneseq
          %v1302 = vshrl.u32 %v1301, 7
          %v1303 = vsub.s32 %v1300, %v1302
          %v1304 = vrot.slane %v1297, %v1303
          %v1305 = vcombine.low %v1288, %v1296
          %v1307 = vunpack.c.l.s4 1934713408
          %v1308 = vunpack.c.0.s8 %v1307
          %v1309 = vlaneseq
          %v1310 = vshrl.u32 %v1309, 7
          %v1311 = vsub.s32 %v1308, %v1310
          %v1312 = vrot.slane %v1305, %v1311
          %v1313 = vcombine.low %v1304, %v1312
          %v1314 = vcombine.high %v1304, %v1312
          %v1315 = vcombine.low %v861, %v865
          %v1317 = vunpack.c.l.s4 1983009808
          %v1318 = vunpack.c.0.s8 %v1317
          %v1319 = vlaneseq
          %v1320 = vshrl.u32 %v1319, 7
          %v1321 = vsub.s32 %v1318, %v1320
          %v1322 = vrot.slane %v1315, %v1321
          %v1323 = vcombine.low %v863, %v867
          %v1325 = vunpack.c.l.s4 1983009808
          %v1326 = vunpack.c.0.s8 %v1325
          %v1327 = vlaneseq
          %v1328 = vshrl.u32 %v1327, 7
          %v1329 = vsub.s32 %v1326, %v1328
          %v1330 = vrot.slane %v1323, %v1329
          %v1331 = vcombine.low %v869, %v873
          %v1333 = vunpack.c.l.s4 1983009808
          %v1334 = vunpack.c.0.s8 %v1333
          %v1335 = vlaneseq
          %v1336 = vshrl.u32 %v1335, 7
          %v1337 = vsub.s32 %v1334, %v1336
          %v1338 = vrot.slane %v1331, %v1337
          %v1339 = vcombine.low %v871, %v875
          %v1341 = vunpack.c.l.s4 1983009808
          %v1342 = vunpack.c.0.s8 %v1341
          %v1343 = vlaneseq
          %v1344 = vshrl.u32 %v1343, 7
          %v1345 = vsub.s32 %v1342, %v1344
          %v1346 = vrot.slane %v1339, %v1345
          %v1347 = vcombine.low %v1322, %v1330
          %v1349 = vunpack.c.l.s4 1934713408
          %v1350 = vunpack.c.0.s8 %v1349
          %v1351 = vlaneseq
          %v1352 = vshrl.u32 %v1351, 7
          %v1353 = vsub.s32 %v1350, %v1352
          %v1354 = vrot.slane %v1347, %v1353
          %v1355 = vcombine.low %v1338, %v1346
          %v1357 = vunpack.c.l.s4 1934713408
          %v1358 = vunpack.c.0.s8 %v1357
          %v1359 = vlaneseq
          %v1360 = vshrl.u32 %v1359, 7
          %v1361 = vsub.s32 %v1358, %v1360
          %v1362 = vrot.slane %v1355, %v1361
          %v1363 = vcombine.low %v1354, %v1362
          %v1364 = vcombine.high %v1354, %v1362
          %v1367 = vpack.i.b16 %v1363, %v1313
          %v1368 = vshrl.u32 %v1313, 16
          %v1369 = vshrl.u32 %v1363, 16
          %v1370 = vpack.i.b16 %v1369, %v1368
          %v1373 = vpack.i.b16 %v1364, %v1314
          %v1374 = vshrl.u32 %v1314, 16
          %v1375 = vshrl.u32 %v1364, 16
          %v1376 = vpack.i.b16 %v1375, %v1374
          %1377 = vxpose.xlu0.c.b16.start [1/8] %v975, 128
          %1378 = vxpose.xlu0.c.b16.cont [2/8] 0, 128
          %1379 = vxpose.xlu0.c.b16.cont [3/8] 0, 128
          %1380 = vxpose.xlu0.c.b16.cont [4/8] 0, 128
          %1381 = vxpose.xlu0.c.b16.cont [5/8] 0, 128
          %1382 = vxpose.xlu0.c.b16.cont [6/8] 0, 128
          %1383 = vxpose.xlu0.c.b16.cont [7/8] 0, 128
          %1384 = vxpose.xlu0.c.b16.end [8/8] 0, 128
          %v1385 = vpop.trf.xlu0
          %v1386 = vpop.trf.xlu0
          %v1387 = vpop.trf.xlu0
          %v1388 = vpop.trf.xlu0
          %v1389 = vpop.trf.xlu0
          %v1390 = vpop.trf.xlu0
          %v1391 = vpop.trf.xlu0
          %v1392 = vpop.trf.xlu0
          %1393 = vxpose.xlu0.c.b16.start [1/8] %v1009, 128
          %1394 = vxpose.xlu0.c.b16.cont [2/8] 0, 128
          %1395 = vxpose.xlu0.c.b16.cont [3/8] 0, 128
          %1396 = vxpose.xlu0.c.b16.cont [4/8] 0, 128
          %1397 = vxpose.xlu0.c.b16.cont [5/8] 0, 128
          %1398 = vxpose.xlu0.c.b16.cont [6/8] 0, 128
          %1399 = vxpose.xlu0.c.b16.cont [7/8] 0, 128
          %1400 = vxpose.xlu0.c.b16.end [8/8] 0, 128
          %v1401 = vpop.trf.xlu0
          %v1402 = vpop.trf.xlu0
          %v1403 = vpop.trf.xlu0
          %v1404 = vpop.trf.xlu0
          %v1405 = vpop.trf.xlu0
          %v1406 = vpop.trf.xlu0
          %v1407 = vpop.trf.xlu0
          %v1408 = vpop.trf.xlu0
          %1409 = vxpose.xlu0.c.b16.start [1/8] %v983, 128
          %1410 = vxpose.xlu0.c.b16.cont [2/8] 0, 128
          %1411 = vxpose.xlu0.c.b16.cont [3/8] 0, 128
          %1412 = vxpose.xlu0.c.b16.cont [4/8] 0, 128
          %1413 = vxpose.xlu0.c.b16.cont [5/8] 0, 128
          %1414 = vxpose.xlu0.c.b16.cont [6/8] 0, 128
          %1415 = vxpose.xlu0.c.b16.cont [7/8] 0, 128
          %1416 = vxpose.xlu0.c.b16.end [8/8] 0, 128
          %v1417 = vpop.trf.xlu0
          %v1418 = vpop.trf.xlu0
          %v1419 = vpop.trf.xlu0
          %v1420 = vpop.trf.xlu0
          %v1421 = vpop.trf.xlu0
          %v1422 = vpop.trf.xlu0
          %v1423 = vpop.trf.xlu0
          %v1424 = vpop.trf.xlu0
          %1425 = vxpose.xlu0.c.b16.start [1/8] %v1017, 128
          %1426 = vxpose.xlu0.c.b16.cont [2/8] 0, 128
          %1427 = vxpose.xlu0.c.b16.cont [3/8] 0, 128
          %1428 = vxpose.xlu0.c.b16.cont [4/8] 0, 128
          %1429 = vxpose.xlu0.c.b16.cont [5/8] 0, 128
          %1430 = vxpose.xlu0.c.b16.cont [6/8] 0, 128
          %1431 = vxpose.xlu0.c.b16.cont [7/8] 0, 128
          %1432 = vxpose.xlu0.c.b16.end [8/8] 0, 128
          %v1433 = vpop.trf.xlu0
          %v1434 = vpop.trf.xlu0
          %v1435 = vpop.trf.xlu0
          %v1436 = vpop.trf.xlu0
          %v1437 = vpop.trf.xlu0
          %v1438 = vpop.trf.xlu0
          %v1439 = vpop.trf.xlu0
          %v1440 = vpop.trf.xlu0
          %1441 = vxpose.xlu0.c.b16.start [1/8] %v982, 128
          %1442 = vxpose.xlu0.c.b16.cont [2/8] 0, 128
          %1443 = vxpose.xlu0.c.b16.cont [3/8] 0, 128
          %1444 = vxpose.xlu0.c.b16.cont [4/8] 0, 128
          %1445 = vxpose.xlu0.c.b16.cont [5/8] 0, 128
          %1446 = vxpose.xlu0.c.b16.cont [6/8] 0, 128
          %1447 = vxpose.xlu0.c.b16.cont [7/8] 0, 128
          %1448 = vxpose.xlu0.c.b16.end [8/8] 0, 128
          %v1449 = vpop.trf.xlu0
          %v1450 = vpop.trf.xlu0
          %v1451 = vpop.trf.xlu0
          %v1452 = vpop.trf.xlu0
          %v1453 = vpop.trf.xlu0
          %v1454 = vpop.trf.xlu0
          %v1455 = vpop.trf.xlu0
          %v1456 = vpop.trf.xlu0
          %1457 = vxpose.xlu0.c.b16.start [1/8] %v1016, 128
          %1458 = vxpose.xlu0.c.b16.cont [2/8] 0, 128
          %1459 = vxpose.xlu0.c.b16.cont [3/8] 0, 128
          %1460 = vxpose.xlu0.c.b16.cont [4/8] 0, 128
          %1461 = vxpose.xlu0.c.b16.cont [5/8] 0, 128
          %1462 = vxpose.xlu0.c.b16.cont [6/8] 0, 128
          %1463 = vxpose.xlu0.c.b16.cont [7/8] 0, 128
          %1464 = vxpose.xlu0.c.b16.end [8/8] 0, 128
          %v1465 = vpop.trf.xlu0
          %v1466 = vpop.trf.xlu0
          %v1467 = vpop.trf.xlu0
          %v1468 = vpop.trf.xlu0
          %v1469 = vpop.trf.xlu0
          %v1470 = vpop.trf.xlu0
          %v1471 = vpop.trf.xlu0
          %v1472 = vpop.trf.xlu0
          %1473 = vxpose.xlu0.c.b16.start [1/8] %v984, 128
          %1474 = vxpose.xlu0.c.b16.cont [2/8] 0, 128
          %1475 = vxpose.xlu0.c.b16.cont [3/8] 0, 128
          %1476 = vxpose.xlu0.c.b16.cont [4/8] 0, 128
          %1477 = vxpose.xlu0.c.b16.cont [5/8] 0, 128
          %1478 = vxpose.xlu0.c.b16.cont [6/8] 0, 128
          %1479 = vxpose.xlu0.c.b16.cont [7/8] 0, 128
          %1480 = vxpose.xlu0.c.b16.end [8/8] 0, 128
          %v1481 = vpop.trf.xlu0
          %v1482 = vpop.trf.xlu0
          %v1483 = vpop.trf.xlu0
          %v1484 = vpop.trf.xlu0
          %v1485 = vpop.trf.xlu0
          %v1486 = vpop.trf.xlu0
          %v1487 = vpop.trf.xlu0
          %v1488 = vpop.trf.xlu0
          %1489 = vxpose.xlu0.c.b16.start [1/8] %v1018, 128
          %1490 = vxpose.xlu0.c.b16.cont [2/8] 0, 128
          %1491 = vxpose.xlu0.c.b16.cont [3/8] 0, 128
          %1492 = vxpose.xlu0.c.b16.cont [4/8] 0, 128
          %1493 = vxpose.xlu0.c.b16.cont [5/8] 0, 128
          %1494 = vxpose.xlu0.c.b16.cont [6/8] 0, 128
          %1495 = vxpose.xlu0.c.b16.cont [7/8] 0, 128
          %1496 = vxpose.xlu0.c.b16.end [8/8] 0, 128
          %v1497 = vpop.trf.xlu0
          %v1498 = vpop.trf.xlu0
          %v1499 = vpop.trf.xlu0
          %v1500 = vpop.trf.xlu0
          %v1501 = vpop.trf.xlu0
          %v1502 = vpop.trf.xlu0
          %v1503 = vpop.trf.xlu0
          %v1504 = vpop.trf.xlu0
          %1505 = vxpose.xlu0.c.b16.start [1/8] %v1043, 128
          %1506 = vxpose.xlu0.c.b16.cont [2/8] 0, 128
          %1507 = vxpose.xlu0.c.b16.cont [3/8] 0, 128
          %1508 = vxpose.xlu0.c.b16.cont [4/8] 0, 128
          %1509 = vxpose.xlu0.c.b16.cont [5/8] 0, 128
          %1510 = vxpose.xlu0.c.b16.cont [6/8] 0, 128
          %1511 = vxpose.xlu0.c.b16.cont [7/8] 0, 128
          %1512 = vxpose.xlu0.c.b16.end [8/8] 0, 128
          %v1513 = vpop.trf.xlu0
          %v1514 = vpop.trf.xlu0
          %v1515 = vpop.trf.xlu0
          %v1516 = vpop.trf.xlu0
          %v1517 = vpop.trf.xlu0
          %v1518 = vpop.trf.xlu0
          %v1519 = vpop.trf.xlu0
          %v1520 = vpop.trf.xlu0
          %1521 = vxpose.xlu0.c.b16.start [1/8] %v1077, 128
          %1522 = vxpose.xlu0.c.b16.cont [2/8] 0, 128
          %1523 = vxpose.xlu0.c.b16.cont [3/8] 0, 128
          %1524 = vxpose.xlu0.c.b16.cont [4/8] 0, 128
          %1525 = vxpose.xlu0.c.b16.cont [5/8] 0, 128
          %1526 = vxpose.xlu0.c.b16.cont [6/8] 0, 128
          %1527 = vxpose.xlu0.c.b16.cont [7/8] 0, 128
          %1528 = vxpose.xlu0.c.b16.end [8/8] 0, 128
          %v1529 = vpop.trf.xlu0
          %v1530 = vpop.trf.xlu0
          %v1531 = vpop.trf.xlu0
          %v1532 = vpop.trf.xlu0
          %v1533 = vpop.trf.xlu0
          %v1534 = vpop.trf.xlu0
          %v1535 = vpop.trf.xlu0
          %v1536 = vpop.trf.xlu0
          %1537 = vxpose.xlu0.c.b16.start [1/8] %v1051, 128
          %1538 = vxpose.xlu0.c.b16.cont [2/8] 0, 128
          %1539 = vxpose.xlu0.c.b16.cont [3/8] 0, 128
          %1540 = vxpose.xlu0.c.b16.cont [4/8] 0, 128
          %1541 = vxpose.xlu0.c.b16.cont [5/8] 0, 128
          %1542 = vxpose.xlu0.c.b16.cont [6/8] 0, 128
          %1543 = vxpose.xlu0.c.b16.cont [7/8] 0, 128
          %1544 = vxpose.xlu0.c.b16.end [8/8] 0, 128
          %v1545 = vpop.trf.xlu0
          %v1546 = vpop.trf.xlu0
          %v1547 = vpop.trf.xlu0
          %v1548 = vpop.trf.xlu0
          %v1549 = vpop.trf.xlu0
          %v1550 = vpop.trf.xlu0
          %v1551 = vpop.trf.xlu0
          %v1552 = vpop.trf.xlu0
          %1553 = vxpose.xlu0.c.b16.start [1/8] %v1085, 128
          %1554 = vxpose.xlu0.c.b16.cont [2/8] 0, 128
          %1555 = vxpose.xlu0.c.b16.cont [3/8] 0, 128
          %1556 = vxpose.xlu0.c.b16.cont [4/8] 0, 128
          %1557 = vxpose.xlu0.c.b16.cont [5/8] 0, 128
          %1558 = vxpose.xlu0.c.b16.cont [6/8] 0, 128
          %1559 = vxpose.xlu0.c.b16.cont [7/8] 0, 128
          %1560 = vxpose.xlu0.c.b16.end [8/8] 0, 128
          %v1561 = vpop.trf.xlu0
          %v1562 = vpop.trf.xlu0
          %v1563 = vpop.trf.xlu0
          %v1564 = vpop.trf.xlu0
          %v1565 = vpop.trf.xlu0
          %v1566 = vpop.trf.xlu0
          %v1567 = vpop.trf.xlu0
          %v1568 = vpop.trf.xlu0
          %1569 = vxpose.xlu0.c.b16.start [1/8] %v1050, 128
          %1570 = vxpose.xlu0.c.b16.cont [2/8] 0, 128
          %1571 = vxpose.xlu0.c.b16.cont [3/8] 0, 128
          %1572 = vxpose.xlu0.c.b16.cont [4/8] 0, 128
          %1573 = vxpose.xlu0.c.b16.cont [5/8] 0, 128
          %1574 = vxpose.xlu0.c.b16.cont [6/8] 0, 128
          %1575 = vxpose.xlu0.c.b16.cont [7/8] 0, 128
          %1576 = vxpose.xlu0.c.b16.end [8/8] 0, 128
          %v1577 = vpop.trf.xlu0
          %v1578 = vpop.trf.xlu0
          %v1579 = vpop.trf.xlu0
          %v1580 = vpop.trf.xlu0
          %v1581 = vpop.trf.xlu0
          %v1582 = vpop.trf.xlu0
          %v1583 = vpop.trf.xlu0
          %v1584 = vpop.trf.xlu0
          %1585 = vxpose.xlu0.c.b16.start [1/8] %v1084, 128
          %1586 = vxpose.xlu0.c.b16.cont [2/8] 0, 128
          %1587 = vxpose.xlu0.c.b16.cont [3/8] 0, 128
          %1588 = vxpose.xlu0.c.b16.cont [4/8] 0, 128
          %1589 = vxpose.xlu0.c.b16.cont [5/8] 0, 128
          %1590 = vxpose.xlu0.c.b16.cont [6/8] 0, 128
          %1591 = vxpose.xlu0.c.b16.cont [7/8] 0, 128
          %1592 = vxpose.xlu0.c.b16.end [8/8] 0, 128
          %v1593 = vpop.trf.xlu0
          %v1594 = vpop.trf.xlu0
          %v1595 = vpop.trf.xlu0
          %v1596 = vpop.trf.xlu0
          %v1597 = vpop.trf.xlu0
          %v1598 = vpop.trf.xlu0
          %v1599 = vpop.trf.xlu0
          %v1600 = vpop.trf.xlu0
          %1601 = vxpose.xlu0.c.b16.start [1/8] %v1052, 128
          %1602 = vxpose.xlu0.c.b16.cont [2/8] 0, 128
          %1603 = vxpose.xlu0.c.b16.cont [3/8] 0, 128
          %1604 = vxpose.xlu0.c.b16.cont [4/8] 0, 128
          %1605 = vxpose.xlu0.c.b16.cont [5/8] 0, 128
          %1606 = vxpose.xlu0.c.b16.cont [6/8] 0, 128
          %1607 = vxpose.xlu0.c.b16.cont [7/8] 0, 128
          %1608 = vxpose.xlu0.c.b16.end [8/8] 0, 128
          %v1609 = vpop.trf.xlu0
          %v1610 = vpop.trf.xlu0
          %v1611 = vpop.trf.xlu0
          %v1612 = vpop.trf.xlu0
          %v1613 = vpop.trf.xlu0
          %v1614 = vpop.trf.xlu0
          %v1615 = vpop.trf.xlu0
          %v1616 = vpop.trf.xlu0
          %1617 = vxpose.xlu0.c.b16.start [1/8] %v1086, 128
          %1618 = vxpose.xlu0.c.b16.cont [2/8] 0, 128
          %1619 = vxpose.xlu0.c.b16.cont [3/8] 0, 128
          %1620 = vxpose.xlu0.c.b16.cont [4/8] 0, 128
          %1621 = vxpose.xlu0.c.b16.cont [5/8] 0, 128
          %1622 = vxpose.xlu0.c.b16.cont [6/8] 0, 128
          %1623 = vxpose.xlu0.c.b16.cont [7/8] 0, 128
          %1624 = vxpose.xlu0.c.b16.end [8/8] 0, 128
          %v1625 = vpop.trf.xlu0
          %v1626 = vpop.trf.xlu0
          %v1627 = vpop.trf.xlu0
          %v1628 = vpop.trf.xlu0
          %v1629 = vpop.trf.xlu0
          %v1630 = vpop.trf.xlu0
          %v1631 = vpop.trf.xlu0
          %v1632 = vpop.trf.xlu0
          %v1633 = vcombine.low %v1385, %v1449
          %v1635 = vunpack.c.l.s4 1983009808
          %v1636 = vunpack.c.0.s8 %v1635
          %v1637 = vlaneseq
          %v1638 = vshrl.u32 %v1637, 7
          %v1639 = vsub.s32 %v1636, %v1638
          %v1640 = vrot.slane %v1633, %v1639
          %v1641 = vcombine.low %v1417, %v1481
          %v1643 = vunpack.c.l.s4 1983009808
          %v1644 = vunpack.c.0.s8 %v1643
          %v1645 = vlaneseq
          %v1646 = vshrl.u32 %v1645, 7
          %v1647 = vsub.s32 %v1644, %v1646
          %v1648 = vrot.slane %v1641, %v1647
          %v1649 = vcombine.low %v1513, %v1577
          %v1651 = vunpack.c.l.s4 1983009808
          %v1652 = vunpack.c.0.s8 %v1651
          %v1653 = vlaneseq
          %v1654 = vshrl.u32 %v1653, 7
          %v1655 = vsub.s32 %v1652, %v1654
          %v1656 = vrot.slane %v1649, %v1655
          %v1657 = vcombine.low %v1545, %v1609
          %v1659 = vunpack.c.l.s4 1983009808
          %v1660 = vunpack.c.0.s8 %v1659
          %v1661 = vlaneseq
          %v1662 = vshrl.u32 %v1661, 7
          %v1663 = vsub.s32 %v1660, %v1662
          %v1664 = vrot.slane %v1657, %v1663
          %v1665 = vcombine.low %v1640, %v1648
          %v1666 = vcombine.high %v1640, %v1648
          %v1668 = vunpack.c.l.s4 1934713408
          %v1669 = vunpack.c.0.s8 %v1668
          %v1670 = vlaneseq
          %v1671 = vshrl.u32 %v1670, 7
          %v1672 = vsub.s32 %v1669, %v1671
          %v1673 = vrot.slane %v1665, %v1672
          %v1675 = vunpack.c.l.s4 1934713408
          %v1676 = vunpack.c.0.s8 %v1675
          %v1677 = vlaneseq
          %v1678 = vshrl.u32 %v1677, 7
          %v1679 = vsub.s32 %v1676, %v1678
          %v1680 = vrot.slane %v1666, %v1679
          %v1681 = vcombine.low %v1656, %v1664
          %v1682 = vcombine.high %v1656, %v1664
          %v1684 = vunpack.c.l.s4 1934713408
          %v1685 = vunpack.c.0.s8 %v1684
          %v1686 = vlaneseq
          %v1687 = vshrl.u32 %v1686, 7
          %v1688 = vsub.s32 %v1685, %v1687
          %v1689 = vrot.slane %v1681, %v1688
          %v1691 = vunpack.c.l.s4 1934713408
          %v1692 = vunpack.c.0.s8 %v1691
          %v1693 = vlaneseq
          %v1694 = vshrl.u32 %v1693, 7
          %v1695 = vsub.s32 %v1692, %v1694
          %v1696 = vrot.slane %v1682, %v1695
          %v1697 = vcombine.low %v1673, %v1689
          %v1698 = vcombine.high %v1673, %v1689
          %v1699 = vcombine.low %v1680, %v1696
          %v1700 = vcombine.high %v1680, %v1696
          %v1701 = vcombine.low %v1401, %v1465
          %v1703 = vunpack.c.l.s4 1983009808
          %v1704 = vunpack.c.0.s8 %v1703
          %v1705 = vlaneseq
          %v1706 = vshrl.u32 %v1705, 7
          %v1707 = vsub.s32 %v1704, %v1706
          %v1708 = vrot.slane %v1701, %v1707
          %v1709 = vcombine.low %v1433, %v1497
          %v1711 = vunpack.c.l.s4 1983009808
          %v1712 = vunpack.c.0.s8 %v1711
          %v1713 = vlaneseq
          %v1714 = vshrl.u32 %v1713, 7
          %v1715 = vsub.s32 %v1712, %v1714
          %v1716 = vrot.slane %v1709, %v1715
          %v1717 = vcombine.low %v1529, %v1593
          %v1719 = vunpack.c.l.s4 1983009808
          %v1720 = vunpack.c.0.s8 %v1719
          %v1721 = vlaneseq
          %v1722 = vshrl.u32 %v1721, 7
          %v1723 = vsub.s32 %v1720, %v1722
          %v1724 = vrot.slane %v1717, %v1723
          %v1725 = vcombine.low %v1561, %v1625
          %v1727 = vunpack.c.l.s4 1983009808
          %v1728 = vunpack.c.0.s8 %v1727
          %v1729 = vlaneseq
          %v1730 = vshrl.u32 %v1729, 7
          %v1731 = vsub.s32 %v1728, %v1730
          %v1732 = vrot.slane %v1725, %v1731
          %v1733 = vcombine.low %v1708, %v1716
          %v1734 = vcombine.high %v1708, %v1716
          %v1736 = vunpack.c.l.s4 1934713408
          %v1737 = vunpack.c.0.s8 %v1736
          %v1738 = vlaneseq
          %v1739 = vshrl.u32 %v1738, 7
          %v1740 = vsub.s32 %v1737, %v1739
          %v1741 = vrot.slane %v1733, %v1740
          %v1743 = vunpack.c.l.s4 1934713408
          %v1744 = vunpack.c.0.s8 %v1743
          %v1745 = vlaneseq
          %v1746 = vshrl.u32 %v1745, 7
          %v1747 = vsub.s32 %v1744, %v1746
          %v1748 = vrot.slane %v1734, %v1747
          %v1749 = vcombine.low %v1724, %v1732
          %v1750 = vcombine.high %v1724, %v1732
          %v1752 = vunpack.c.l.s4 1934713408
          %v1753 = vunpack.c.0.s8 %v1752
          %v1754 = vlaneseq
          %v1755 = vshrl.u32 %v1754, 7
          %v1756 = vsub.s32 %v1753, %v1755
          %v1757 = vrot.slane %v1749, %v1756
          %v1759 = vunpack.c.l.s4 1934713408
          %v1760 = vunpack.c.0.s8 %v1759
          %v1761 = vlaneseq
          %v1762 = vshrl.u32 %v1761, 7
          %v1763 = vsub.s32 %v1760, %v1762
          %v1764 = vrot.slane %v1750, %v1763
          %v1765 = vcombine.low %v1741, %v1757
          %v1766 = vcombine.high %v1741, %v1757
          %v1767 = vcombine.low %v1748, %v1764
          %v1768 = vcombine.high %v1748, %v1764
          %v1771 = vpack.i.b16 %v1765, %v1697
          %v1773 = vshrl.u32 %v1697, 16
          %v1774 = vshrl.u32 %v1765, 16
          %v1775 = vpack.i.b16 %v1774, %v1773
          %v1779 = vpack.i.b16 %v1766, %v1698
          %v1781 = vshrl.u32 %v1698, 16
          %v1782 = vshrl.u32 %v1766, 16
          %v1783 = vpack.i.b16 %v1782, %v1781
          %v1787 = vpack.i.b16 %v1767, %v1699
          %v1789 = vshrl.u32 %v1699, 16
          %v1790 = vshrl.u32 %v1767, 16
          %v1791 = vpack.i.b16 %v1790, %v1789
          %v1795 = vpack.i.b16 %v1768, %v1700
          %v1797 = vshrl.u32 %v1700, 16
          %v1798 = vshrl.u32 %v1768, 16
          %v1799 = vpack.i.b16 %v1798, %v1797
          %1801 = vxpose.xlu0.c.b16.start [1/8] %v1771, 128
          %1802 = vxpose.xlu0.c.b16.cont [2/8] 0, 128
          %1803 = vxpose.xlu0.c.b16.cont [3/8] 0, 128
          %1804 = vxpose.xlu0.c.b16.cont [4/8] 0, 128
          %1805 = vxpose.xlu0.c.b16.cont [5/8] 0, 128
          %1806 = vxpose.xlu0.c.b16.cont [6/8] 0, 128
          %1807 = vxpose.xlu0.c.b16.cont [7/8] 0, 128
          %1808 = vxpose.xlu0.c.b16.end [8/8] 0, 128
          %v1809 = vpop.trf.xlu0
          %v1810 = vpop.trf.xlu0
          %v1811 = vpop.trf.xlu0
          %v1812 = vpop.trf.xlu0
          %v1813 = vpop.trf.xlu0
          %v1814 = vpop.trf.xlu0
          %v1815 = vpop.trf.xlu0
          %v1816 = vpop.trf.xlu0
          %1817 = vxpose.xlu0.c.b16.start [1/8] %v1775, 128
          %1818 = vxpose.xlu0.c.b16.cont [2/8] 0, 128
          %1819 = vxpose.xlu0.c.b16.cont [3/8] 0, 128
          %1820 = vxpose.xlu0.c.b16.cont [4/8] 0, 128
          %1821 = vxpose.xlu0.c.b16.cont [5/8] 0, 128
          %1822 = vxpose.xlu0.c.b16.cont [6/8] 0, 128
          %1823 = vxpose.xlu0.c.b16.cont [7/8] 0, 128
          %1824 = vxpose.xlu0.c.b16.end [8/8] 0, 128
          %v1825 = vpop.trf.xlu0
          %v1826 = vpop.trf.xlu0
          %v1827 = vpop.trf.xlu0
          %v1828 = vpop.trf.xlu0
          %v1829 = vpop.trf.xlu0
          %v1830 = vpop.trf.xlu0
          %v1831 = vpop.trf.xlu0
          %v1832 = vpop.trf.xlu0
          %1833 = vxpose.xlu0.c.b16.start [1/8] %v1779, 128
          %1834 = vxpose.xlu0.c.b16.cont [2/8] 0, 128
          %1835 = vxpose.xlu0.c.b16.cont [3/8] 0, 128
          %1836 = vxpose.xlu0.c.b16.cont [4/8] 0, 128
          %1837 = vxpose.xlu0.c.b16.cont [5/8] 0, 128
          %1838 = vxpose.xlu0.c.b16.cont [6/8] 0, 128
          %1839 = vxpose.xlu0.c.b16.cont [7/8] 0, 128
          %1840 = vxpose.xlu0.c.b16.end [8/8] 0, 128
          %v1841 = vpop.trf.xlu0
          %v1842 = vpop.trf.xlu0
          %v1843 = vpop.trf.xlu0
          %v1844 = vpop.trf.xlu0
          %v1845 = vpop.trf.xlu0
          %v1846 = vpop.trf.xlu0
          %v1847 = vpop.trf.xlu0
          %v1848 = vpop.trf.xlu0
          %1849 = vxpose.xlu0.c.b16.start [1/8] %v1783, 128
          %1850 = vxpose.xlu0.c.b16.cont [2/8] 0, 128
          %1851 = vxpose.xlu0.c.b16.cont [3/8] 0, 128
          %1852 = vxpose.xlu0.c.b16.cont [4/8] 0, 128
          %1853 = vxpose.xlu0.c.b16.cont [5/8] 0, 128
          %1854 = vxpose.xlu0.c.b16.cont [6/8] 0, 128
          %1855 = vxpose.xlu0.c.b16.cont [7/8] 0, 128
          %1856 = vxpose.xlu0.c.b16.end [8/8] 0, 128
          %v1857 = vpop.trf.xlu0
          %v1858 = vpop.trf.xlu0
          %v1859 = vpop.trf.xlu0
          %v1860 = vpop.trf.xlu0
          %v1861 = vpop.trf.xlu0
          %v1862 = vpop.trf.xlu0
          %v1863 = vpop.trf.xlu0
          %v1864 = vpop.trf.xlu0
          %1865 = vxpose.xlu0.c.b16.start [1/8] %v1787, 128
          %1866 = vxpose.xlu0.c.b16.cont [2/8] 0, 128
          %1867 = vxpose.xlu0.c.b16.cont [3/8] 0, 128
          %1868 = vxpose.xlu0.c.b16.cont [4/8] 0, 128
          %1869 = vxpose.xlu0.c.b16.cont [5/8] 0, 128
          %1870 = vxpose.xlu0.c.b16.cont [6/8] 0, 128
          %1871 = vxpose.xlu0.c.b16.cont [7/8] 0, 128
          %1872 = vxpose.xlu0.c.b16.end [8/8] 0, 128
          %v1873 = vpop.trf.xlu0
          %v1874 = vpop.trf.xlu0
          %v1875 = vpop.trf.xlu0
          %v1876 = vpop.trf.xlu0
          %v1877 = vpop.trf.xlu0
          %v1878 = vpop.trf.xlu0
          %v1879 = vpop.trf.xlu0
          %v1880 = vpop.trf.xlu0
          %1881 = vxpose.xlu0.c.b16.start [1/8] %v1791, 128
          %1882 = vxpose.xlu0.c.b16.cont [2/8] 0, 128
          %1883 = vxpose.xlu0.c.b16.cont [3/8] 0, 128
          %1884 = vxpose.xlu0.c.b16.cont [4/8] 0, 128
          %1885 = vxpose.xlu0.c.b16.cont [5/8] 0, 128
          %1886 = vxpose.xlu0.c.b16.cont [6/8] 0, 128
          %1887 = vxpose.xlu0.c.b16.cont [7/8] 0, 128
          %1888 = vxpose.xlu0.c.b16.end [8/8] 0, 128
          %v1889 = vpop.trf.xlu0
          %v1890 = vpop.trf.xlu0
          %v1891 = vpop.trf.xlu0
          %v1892 = vpop.trf.xlu0
          %v1893 = vpop.trf.xlu0
          %v1894 = vpop.trf.xlu0
          %v1895 = vpop.trf.xlu0
          %v1896 = vpop.trf.xlu0
          %1897 = vxpose.xlu0.c.b16.start [1/8] %v1795, 128
          %1898 = vxpose.xlu0.c.b16.cont [2/8] 0, 128
          %1899 = vxpose.xlu0.c.b16.cont [3/8] 0, 128
          %1900 = vxpose.xlu0.c.b16.cont [4/8] 0, 128
          %1901 = vxpose.xlu0.c.b16.cont [5/8] 0, 128
          %1902 = vxpose.xlu0.c.b16.cont [6/8] 0, 128
          %1903 = vxpose.xlu0.c.b16.cont [7/8] 0, 128
          %1904 = vxpose.xlu0.c.b16.end [8/8] 0, 128
          %v1905 = vpop.trf.xlu0
          %v1906 = vpop.trf.xlu0
          %v1907 = vpop.trf.xlu0
          %v1908 = vpop.trf.xlu0
          %v1909 = vpop.trf.xlu0
          %v1910 = vpop.trf.xlu0
          %v1911 = vpop.trf.xlu0
          %v1912 = vpop.trf.xlu0
          %1913 = vxpose.xlu0.c.b16.start [1/8] %v1799, 128
          %1914 = vxpose.xlu0.c.b16.cont [2/8] 0, 128
          %1915 = vxpose.xlu0.c.b16.cont [3/8] 0, 128
          %1916 = vxpose.xlu0.c.b16.cont [4/8] 0, 128
          %1917 = vxpose.xlu0.c.b16.cont [5/8] 0, 128
          %1918 = vxpose.xlu0.c.b16.cont [6/8] 0, 128
          %1919 = vxpose.xlu0.c.b16.cont [7/8] 0, 128
          %1920 = vxpose.xlu0.c.b16.end [8/8] 0, 128
          %v1921 = vpop.trf.xlu0
          %v1922 = vpop.trf.xlu0
          %v1923 = vpop.trf.xlu0
          %v1924 = vpop.trf.xlu0
          %v1925 = vpop.trf.xlu0
          %v1926 = vpop.trf.xlu0
          %v1927 = vpop.trf.xlu0
          %v1928 = vpop.trf.xlu0
          %v1929 = vcombine.low %v1809, %v1873
          %v1931 = vunpack.c.l.s4 1983009808
          %v1932 = vunpack.c.0.s8 %v1931
          %v1933 = vlaneseq
          %v1934 = vshrl.u32 %v1933, 7
          %v1935 = vsub.s32 %v1932, %v1934
          %v1936 = vrot.slane %v1929, %v1935
          %v1937 = vcombine.low %v1841, %v1905
          %v1939 = vunpack.c.l.s4 1983009808
          %v1940 = vunpack.c.0.s8 %v1939
          %v1941 = vlaneseq
          %v1942 = vshrl.u32 %v1941, 7
          %v1943 = vsub.s32 %v1940, %v1942
          %v1944 = vrot.slane %v1937, %v1943
          %v1945 = vcombine.low %v1936, %v1944
          %v1947 = vunpack.c.l.s4 1934713408
          %v1948 = vunpack.c.0.s8 %v1947
          %v1949 = vlaneseq
          %v1950 = vshrl.u32 %v1949, 7
          %v1951 = vsub.s32 %v1948, %v1950
          %v1952 = vrot.slane %v1945, %v1951
          %v1953 = vcombine.high %v1952, 0
          %v1954 = vcombine.low %v1825, %v1889
          %v1956 = vunpack.c.l.s4 1983009808
          %v1957 = vunpack.c.0.s8 %v1956
          %v1958 = vlaneseq
          %v1959 = vshrl.u32 %v1958, 7
          %v1960 = vsub.s32 %v1957, %v1959
          %v1961 = vrot.slane %v1954, %v1960
          %v1962 = vcombine.low %v1857, %v1921
          %v1964 = vunpack.c.l.s4 1983009808
          %v1965 = vunpack.c.0.s8 %v1964
          %v1966 = vlaneseq
          %v1967 = vshrl.u32 %v1966, 7
          %v1968 = vsub.s32 %v1965, %v1967
          %v1969 = vrot.slane %v1962, %v1968
          %v1970 = vcombine.low %v1961, %v1969
          %v1972 = vunpack.c.l.s4 1934713408
          %v1973 = vunpack.c.0.s8 %v1972
          %v1974 = vlaneseq
          %v1975 = vshrl.u32 %v1974, 7
          %v1976 = vsub.s32 %v1973, %v1975
          %v1977 = vrot.slane %v1970, %v1976
          %v1978 = vcombine.high %v1977, 0
          %v1981 = vpack.i.b16 %v1977, %v1952
          %v1982 = vshrl.u32 %v1952, 16
          %v1983 = vshrl.u32 %v1977, 16
          %v1984 = vpack.i.b16 %v1983, %v1982
          %v1987 = vpack.i.b16 %v1978, %v1953
          %v1988 = vshrl.u32 %v1953, 16
          %v1989 = vshrl.u32 %v1978, 16
          %v1990 = vpack.i.b16 %v1989, %v1988
          %vm1991 = vcmask 64512
          %v1993 = vsel %vm1991, %v1367, 0
          %vm1995 = vcmask 1043456
          %v1997 = vsel %vm1995, %v1981, 0
          %1999 = vmatprep.subr.bf16.mxu0 0
          %2000 = vmatpush1.bf16.msra.mxu0 %v1997
          %2001 = vmatprep.subr.bf16.mxu0 0
          %2002 = vmatpush1.bf16.msra.mxu0 0
          %2003 = vmatprep.subr.bf16.mxu0 0
          %2004 = vmatpush1.bf16.msra.mxu0 0
          %2005 = vmatprep.subr.bf16.mxu0 0
          %2006 = vmatpush1.bf16.msra.mxu0 0
          %2007 = vmatprep.subr.bf16.mxu0 0
          %2008 = vmatpush1.bf16.msra.mxu0 0
          %2009 = vmatprep.subr.bf16.mxu0 0
          %2010 = vmatpush1.bf16.msra.mxu0 0
          %2011 = vmatprep.subr.bf16.mxu0 0
          %2012 = vmatpush1.bf16.msra.mxu0 0
          %2013 = vmatprep.subr.bf16.mxu0 0
          %2014 = vmatpush1.bf16.msra.mxu0 0
          %2015 = vmatprep.subr.bf16.mxu0 0
          %2016 = vmatpush1.bf16.msra.mxu0 0
          %2017 = vmatprep.subr.bf16.mxu0 0
          %2018 = vmatpush1.bf16.msra.mxu0 0
          %2019 = vmatprep.subr.bf16.mxu0 0
          %2020 = vmatpush1.bf16.msra.mxu0 0
          %2021 = vmatprep.subr.bf16.mxu0 0
          %2022 = vmatpush1.bf16.msra.mxu0 0
          %2023 = vmatprep.subr.bf16.mxu0 0
          %2024 = vmatpush1.bf16.msra.mxu0 0
          %2025 = vmatprep.subr.bf16.mxu0 0
          %2026 = vmatpush1.bf16.msra.mxu0 0
          %2027 = vmatprep.subr.bf16.mxu0 0
          %2028 = vmatpush1.bf16.msra.mxu0 0
          %2029 = vmatprep.subr.bf16.mxu0 0
          %2030 = vmatpush1.bf16.msra.mxu0 0
          %2031 = vmatprep.mubr.bf16.mxu0 0
          %2032 = vmatmul.mubr.bf16.gmra.mrb[0].mxu0 %v1993
          %v2033 = vpop.f32.mrb[0].mxu0
          %v2034 = vadd.f32 0.0, %v2033
          %v2035 = vpop.f32.mrb[0].mxu0
          %v2036 = vpop.f32.mrb[0].mxu0
          %v2037 = vadd.f32 0.0, %v2036
          %v2038 = vpop.f32.mrb[0].mxu0
          %2039 = vdwg.mxu0
          %v2041 = vsel %vm1991, %v1370, 0
          %v2044 = vsel %vm1995, %v1984, 0
          %2046 = vmatprep.subr.bf16.mxu0 0
          %2047 = vmatpush1.bf16.msra.mxu0 %v2044
          %2048 = vmatprep.subr.bf16.mxu0 0
          %2049 = vmatpush1.bf16.msra.mxu0 0
          %2050 = vmatprep.subr.bf16.mxu0 0
          %2051 = vmatpush1.bf16.msra.mxu0 0
          %2052 = vmatprep.subr.bf16.mxu0 0
          %2053 = vmatpush1.bf16.msra.mxu0 0
          %2054 = vmatprep.subr.bf16.mxu0 0
          %2055 = vmatpush1.bf16.msra.mxu0 0
          %2056 = vmatprep.subr.bf16.mxu0 0
          %2057 = vmatpush1.bf16.msra.mxu0 0
          %2058 = vmatprep.subr.bf16.mxu0 0
          %2059 = vmatpush1.bf16.msra.mxu0 0
          %2060 = vmatprep.subr.bf16.mxu0 0
          %2061 = vmatpush1.bf16.msra.mxu0 0
          %2062 = vmatprep.subr.bf16.mxu0 0
          %2063 = vmatpush1.bf16.msra.mxu0 0
          %2064 = vmatprep.subr.bf16.mxu0 0
          %2065 = vmatpush1.bf16.msra.mxu0 0
          %2066 = vmatprep.subr.bf16.mxu0 0
          %2067 = vmatpush1.bf16.msra.mxu0 0
          %2068 = vmatprep.subr.bf16.mxu0 0
          %2069 = vmatpush1.bf16.msra.mxu0 0
          %2070 = vmatprep.subr.bf16.mxu0 0
          %2071 = vmatpush1.bf16.msra.mxu0 0
          %2072 = vmatprep.subr.bf16.mxu0 0
          %2073 = vmatpush1.bf16.msra.mxu0 0
          %2074 = vmatprep.subr.bf16.mxu0 0
          %2075 = vmatpush1.bf16.msra.mxu0 0
          %2076 = vmatprep.subr.bf16.mxu0 0
          %2077 = vmatpush1.bf16.msra.mxu0 0
          %2078 = vmatprep.mubr.bf16.mxu0 0
          %2079 = vmatmul.mubr.bf16.gmra.mrb[0].mxu0 %v2041
          %v2080 = vpop.f32.mrb[0].mxu0
          %v2081 = vadd.f32 0.0, %v2080
          %v2082 = vpop.f32.mrb[0].mxu0
          %v2083 = vpop.f32.mrb[0].mxu0
          %v2084 = vadd.f32 0.0, %v2083
          %v2085 = vpop.f32.mrb[0].mxu0
          %2086 = vdwg.mxu0
          %v2088 = vsel %vm1991, %v1373, 0
          %v2091 = vsel %vm1995, %v1987, 0
          %2093 = vmatprep.subr.bf16.mxu0 0
          %2094 = vmatpush1.bf16.msra.mxu0 %v2091
          %2095 = vmatprep.subr.bf16.mxu0 0
          %2096 = vmatpush1.bf16.msra.mxu0 0
          %2097 = vmatprep.subr.bf16.mxu0 0
          %2098 = vmatpush1.bf16.msra.mxu0 0
          %2099 = vmatprep.subr.bf16.mxu0 0
          %2100 = vmatpush1.bf16.msra.mxu0 0
          %2101 = vmatprep.subr.bf16.mxu0 0
          %2102 = vmatpush1.bf16.msra.mxu0 0
          %2103 = vmatprep.subr.bf16.mxu0 0
          %2104 = vmatpush1.bf16.msra.mxu0 0
          %2105 = vmatprep.subr.bf16.mxu0 0
          %2106 = vmatpush1.bf16.msra.mxu0 0
          %2107 = vmatprep.subr.bf16.mxu0 0
          %2108 = vmatpush1.bf16.msra.mxu0 0
          %2109 = vmatprep.subr.bf16.mxu0 0
          %2110 = vmatpush1.bf16.msra.mxu0 0
          %2111 = vmatprep.subr.bf16.mxu0 0
          %2112 = vmatpush1.bf16.msra.mxu0 0
          %2113 = vmatprep.subr.bf16.mxu0 0
          %2114 = vmatpush1.bf16.msra.mxu0 0
          %2115 = vmatprep.subr.bf16.mxu0 0
          %2116 = vmatpush1.bf16.msra.mxu0 0
          %2117 = vmatprep.subr.bf16.mxu0 0
          %2118 = vmatpush1.bf16.msra.mxu0 0
          %2119 = vmatprep.subr.bf16.mxu0 0
          %2120 = vmatpush1.bf16.msra.mxu0 0
          %2121 = vmatprep.subr.bf16.mxu0 0
          %2122 = vmatpush1.bf16.msra.mxu0 0
          %2123 = vmatprep.subr.bf16.mxu0 0
          %2124 = vmatpush1.bf16.msra.mxu0 0
          %2125 = vmatprep.mubr.bf16.mxu0 0
          %2126 = vmatmul.mubr.bf16.gmra.mrb[0].mxu0 %v2088
          %v2127 = vpop.f32.mrb[0].mxu0
          %v2128 = vadd.f32 0.0, %v2127
          %v2129 = vpop.f32.mrb[0].mxu0
          %v2130 = vpop.f32.mrb[0].mxu0
          %v2131 = vadd.f32 0.0, %v2130
          %v2132 = vpop.f32.mrb[0].mxu0
          %2133 = vdwg.mxu0
          %v2135 = vsel %vm1991, %v1376, 0
          %v2138 = vsel %vm1995, %v1990, 0
          %2140 = vmatprep.subr.bf16.mxu0 0
          %2141 = vmatpush1.bf16.msra.mxu0 %v2138
          %2142 = vmatprep.subr.bf16.mxu0 0
          %2143 = vmatpush1.bf16.msra.mxu0 0
          %2144 = vmatprep.subr.bf16.mxu0 0
          %2145 = vmatpush1.bf16.msra.mxu0 0
          %2146 = vmatprep.subr.bf16.mxu0 0
          %2147 = vmatpush1.bf16.msra.mxu0 0
          %2148 = vmatprep.subr.bf16.mxu0 0
          %2149 = vmatpush1.bf16.msra.mxu0 0
          %2150 = vmatprep.subr.bf16.mxu0 0
          %2151 = vmatpush1.bf16.msra.mxu0 0
          %2152 = vmatprep.subr.bf16.mxu0 0
          %2153 = vmatpush1.bf16.msra.mxu0 0
          %2154 = vmatprep.subr.bf16.mxu0 0
          %2155 = vmatpush1.bf16.msra.mxu0 0
          %2156 = vmatprep.subr.bf16.mxu0 0
          %2157 = vmatpush1.bf16.msra.mxu0 0
          %2158 = vmatprep.subr.bf16.mxu0 0
          %2159 = vmatpush1.bf16.msra.mxu0 0
          %2160 = vmatprep.subr.bf16.mxu0 0
          %2161 = vmatpush1.bf16.msra.mxu0 0
          %2162 = vmatprep.subr.bf16.mxu0 0
          %2163 = vmatpush1.bf16.msra.mxu0 0
          %2164 = vmatprep.subr.bf16.mxu0 0
          %2165 = vmatpush1.bf16.msra.mxu0 0
          %2166 = vmatprep.subr.bf16.mxu0 0
          %2167 = vmatpush1.bf16.msra.mxu0 0
          %2168 = vmatprep.subr.bf16.mxu0 0
          %2169 = vmatpush1.bf16.msra.mxu0 0
          %2170 = vmatprep.subr.bf16.mxu0 0
          %2171 = vmatpush1.bf16.msra.mxu0 0
          %2172 = vmatprep.mubr.bf16.mxu0 0
          %2173 = vmatmul.mubr.bf16.gmra.mrb[0].mxu0 %v2135
          %v2174 = vpop.f32.mrb[0].mxu0
          %v2175 = vadd.f32 0.0, %v2174
          %v2176 = vpop.f32.mrb[0].mxu0
          %v2177 = vpop.f32.mrb[0].mxu0
          %v2178 = vadd.f32 0.0, %v2177
          %v2179 = vpop.f32.mrb[0].mxu0
          %2180 = vdwg.mxu0
          %vm2181 = vcmask 130048
          %v2182 = vsel %vm2181, %v2034, -inf
          %2183 = vmax.xlane.f32.xlu0 %v2182
          %v2184 = vpop.xlane.xlu0 %2183
          %v2185 = vsel %vm2181, %v2037, -inf
          %2186 = vmax.xlane.f32.xlu0 %v2185
          %v2187 = vpop.xlane.xlu0 %2186
          %v2188 = vsel %vm2181, %v2081, -inf
          %2189 = vmax.xlane.f32.xlu0 %v2188
          %v2190 = vpop.xlane.xlu0 %2189
          %v2191 = vsel %vm2181, %v2084, -inf
          %2192 = vmax.xlane.f32.xlu0 %v2191
          %v2193 = vpop.xlane.xlu0 %2192
          %v2194 = vsel %vm2181, %v2128, -inf
          %2195 = vmax.xlane.f32.xlu0 %v2194
          %v2196 = vpop.xlane.xlu0 %2195
          %v2197 = vsel %vm2181, %v2131, -inf
          %2198 = vmax.xlane.f32.xlu0 %v2197
          %v2199 = vpop.xlane.xlu0 %2198
          %v2200 = vsel %vm2181, %v2175, -inf
          %2201 = vmax.xlane.f32.xlu0 %v2200
          %v2202 = vpop.xlane.xlu0 %2201
          %v2203 = vsel %vm2181, %v2178, -inf
          %2204 = vmax.xlane.f32.xlu0 %v2203
          %v2205 = vpop.xlane.xlu0 %2204
          %v2206 = vmax.f32 %v882, %v2184
          %v2207 = vmax.f32 %v883, %v2187
          %v2208 = vmax.f32 %v884, %v2190
          %v2209 = vmax.f32 %v885, %v2193
          %v2210 = vmax.f32 %v886, %v2196
          %v2211 = vmax.f32 %v887, %v2199
          %v2212 = vmax.f32 %v888, %v2202
          %v2213 = vmax.f32 %v889, %v2205
          %v2214 = vsub.f32 %v882, %v2206
          %v2215 = vsub.f32 %v883, %v2207
          %v2216 = vsub.f32 %v884, %v2208
          %v2217 = vsub.f32 %v885, %v2209
          %v2218 = vsub.f32 %v886, %v2210
          %v2219 = vsub.f32 %v887, %v2211
          %v2220 = vsub.f32 %v888, %v2212
          %v2221 = vsub.f32 %v889, %v2213
          %v2222 = vmul.f32 %v2214, 1.442695
          %v2223 = vpow.pop %v2222
          %v2224 = vmul.f32 %v2215, 1.442695
          %v2225 = vpow.pop %v2224
          %v2226 = vmul.f32 %v2216, 1.442695
          %v2227 = vpow.pop %v2226
          %v2228 = vmul.f32 %v2217, 1.442695
          %v2229 = vpow.pop %v2228
          %v2230 = vmul.f32 %v2218, 1.442695
          %v2231 = vpow.pop %v2230
          %v2232 = vmul.f32 %v2219, 1.442695
          %v2233 = vpow.pop %v2232
          %v2234 = vmul.f32 %v2220, 1.442695
          %v2235 = vpow.pop %v2234
          %v2236 = vmul.f32 %v2221, 1.442695
          %v2237 = vpow.pop %v2236
          %v2238 = vsub.f32 %v2034, %v2206
          %v2239 = vsub.f32 %v2037, %v2207
          %v2240 = vsub.f32 %v2081, %v2208
          %v2241 = vsub.f32 %v2084, %v2209
          %v2242 = vsub.f32 %v2128, %v2210
          %v2243 = vsub.f32 %v2131, %v2211
          %v2244 = vsub.f32 %v2175, %v2212
          %v2245 = vsub.f32 %v2178, %v2213
          %v2246 = vmul.f32 %v2238, 1.442695
          %v2247 = vpow.pop %v2246
          %v2248 = vmul.f32 %v2239, 1.442695
          %v2249 = vpow.pop %v2248
          %v2250 = vmul.f32 %v2240, 1.442695
          %v2251 = vpow.pop %v2250
          %v2252 = vmul.f32 %v2241, 1.442695
          %v2253 = vpow.pop %v2252
          %v2254 = vmul.f32 %v2242, 1.442695
          %v2255 = vpow.pop %v2254
          %v2256 = vmul.f32 %v2243, 1.442695
          %v2257 = vpow.pop %v2256
          %v2258 = vmul.f32 %v2244, 1.442695
          %v2259 = vpow.pop %v2258
          %v2260 = vmul.f32 %v2245, 1.442695
          %v2261 = vpow.pop %v2260
          %v2262 = vmul.f32 %v2223, %v890
          %v2263 = vmul.f32 %v2225, %v891
          %v2264 = vmul.f32 %v2227, %v892
          %v2265 = vmul.f32 %v2229, %v893
          %v2266 = vmul.f32 %v2231, %v894
          %v2267 = vmul.f32 %v2233, %v895
          %v2268 = vmul.f32 %v2235, %v896
          %v2269 = vmul.f32 %v2237, %v897
          %v2270 = vsel %vm2181, %v2247, 0.0
          %2271 = vadd.xlane.f32.xlu0 %v2270
          %v2272 = vpop.xlane.xlu0 %2271
          %v2273 = vsel %vm2181, %v2249, 0.0
          %2274 = vadd.xlane.f32.xlu0 %v2273
          %v2275 = vpop.xlane.xlu0 %2274
          %v2276 = vsel %vm2181, %v2251, 0.0
          %2277 = vadd.xlane.f32.xlu0 %v2276
          %v2278 = vpop.xlane.xlu0 %2277
          %v2279 = vsel %vm2181, %v2253, 0.0
          %2280 = vadd.xlane.f32.xlu0 %v2279
          %v2281 = vpop.xlane.xlu0 %2280
          %v2282 = vsel %vm2181, %v2255, 0.0
          %2283 = vadd.xlane.f32.xlu0 %v2282
          %v2284 = vpop.xlane.xlu0 %2283
          %v2285 = vsel %vm2181, %v2257, 0.0
          %2286 = vadd.xlane.f32.xlu0 %v2285
          %v2287 = vpop.xlane.xlu0 %2286
          %v2288 = vsel %vm2181, %v2259, 0.0
          %2289 = vadd.xlane.f32.xlu0 %v2288
          %v2290 = vpop.xlane.xlu0 %2289
          %v2291 = vsel %vm2181, %v2261, 0.0
          %2292 = vadd.xlane.f32.xlu0 %v2291
          %v2293 = vpop.xlane.xlu0 %2292
          %v2294 = vadd.f32 %v2262, %v2272
          %v2295 = vadd.f32 %v2263, %v2275
          %v2296 = vadd.f32 %v2264, %v2278
          %v2297 = vadd.f32 %v2265, %v2281
          %v2298 = vadd.f32 %v2266, %v2284
          %v2299 = vadd.f32 %v2267, %v2287
          %v2300 = vadd.f32 %v2268, %v2290
          %v2301 = vadd.f32 %v2269, %v2293
          %v2302 = vpack.c.bf16 %v2249, %v2247
          %v2303 = vpack.c.bf16 %v2253, %v2251
          %v2304 = vpack.c.bf16 %v2257, %v2255
          %v2305 = vpack.c.bf16 %v2261, %v2259
          %v2306 = vcombine.low %v1153, %v1160
          %v2308 = vunpack.c.l.s4 1983009808
          %v2309 = vunpack.c.0.s8 %v2308
          %v2310 = vlaneseq
          %v2311 = vshrl.u32 %v2310, 7
          %v2312 = vsub.s32 %v2309, %v2311
          %v2313 = vrot.slane %v2306, %v2312
          %v2314 = vcombine.low %v1161, %v1162
          %v2316 = vunpack.c.l.s4 1983009808
          %v2317 = vunpack.c.0.s8 %v2316
          %v2318 = vlaneseq
          %v2319 = vshrl.u32 %v2318, 7
          %v2320 = vsub.s32 %v2317, %v2319
          %v2321 = vrot.slane %v2314, %v2320
          %v2322 = vcombine.low %v2313, %v2321
          %v2324 = vunpack.c.l.s4 1934713408
          %v2325 = vunpack.c.0.s8 %v2324
          %v2326 = vlaneseq
          %v2327 = vshrl.u32 %v2326, 7
          %v2328 = vsub.s32 %v2325, %v2327
          %v2329 = vrot.slane %v2322, %v2328
          %v2330 = vcombine.high %v2329, 0
          %v2331 = vcombine.low %v1187, %v1194
          %v2333 = vunpack.c.l.s4 1983009808
          %v2334 = vunpack.c.0.s8 %v2333
          %v2335 = vlaneseq
          %v2336 = vshrl.u32 %v2335, 7
          %v2337 = vsub.s32 %v2334, %v2336
          %v2338 = vrot.slane %v2331, %v2337
          %v2339 = vcombine.low %v1195, %v1196
          %v2341 = vunpack.c.l.s4 1983009808
          %v2342 = vunpack.c.0.s8 %v2341
          %v2343 = vlaneseq
          %v2344 = vshrl.u32 %v2343, 7
          %v2345 = vsub.s32 %v2342, %v2344
          %v2346 = vrot.slane %v2339, %v2345
          %v2347 = vcombine.low %v2338, %v2346
          %v2349 = vunpack.c.l.s4 1934713408
          %v2350 = vunpack.c.0.s8 %v2349
          %v2351 = vlaneseq
          %v2352 = vshrl.u32 %v2351, 7
          %v2353 = vsub.s32 %v2350, %v2352
          %v2354 = vrot.slane %v2347, %v2353
          %v2355 = vcombine.high %v2354, 0
          %v2356 = vcombine.low %v1221, %v1228
          %v2358 = vunpack.c.l.s4 1983009808
          %v2359 = vunpack.c.0.s8 %v2358
          %v2360 = vlaneseq
          %v2361 = vshrl.u32 %v2360, 7
          %v2362 = vsub.s32 %v2359, %v2361
          %v2363 = vrot.slane %v2356, %v2362
          %v2364 = vcombine.low %v1229, %v1230
          %v2366 = vunpack.c.l.s4 1983009808
          %v2367 = vunpack.c.0.s8 %v2366
          %v2368 = vlaneseq
          %v2369 = vshrl.u32 %v2368, 7
          %v2370 = vsub.s32 %v2367, %v2369
          %v2371 = vrot.slane %v2364, %v2370
          %v2372 = vcombine.low %v2363, %v2371
          %v2374 = vunpack.c.l.s4 1934713408
          %v2375 = vunpack.c.0.s8 %v2374
          %v2376 = vlaneseq
          %v2377 = vshrl.u32 %v2376, 7
          %v2378 = vsub.s32 %v2375, %v2377
          %v2379 = vrot.slane %v2372, %v2378
          %v2380 = vcombine.high %v2379, 0
          %v2381 = vcombine.low %v1255, %v1262
          %v2383 = vunpack.c.l.s4 1983009808
          %v2384 = vunpack.c.0.s8 %v2383
          %v2385 = vlaneseq
          %v2386 = vshrl.u32 %v2385, 7
          %v2387 = vsub.s32 %v2384, %v2386
          %v2388 = vrot.slane %v2381, %v2387
          %v2389 = vcombine.low %v1263, %v1264
          %v2391 = vunpack.c.l.s4 1983009808
          %v2392 = vunpack.c.0.s8 %v2391
          %v2393 = vlaneseq
          %v2394 = vshrl.u32 %v2393, 7
          %v2395 = vsub.s32 %v2392, %v2394
          %v2396 = vrot.slane %v2389, %v2395
          %v2397 = vcombine.low %v2388, %v2396
          %v2399 = vunpack.c.l.s4 1934713408
          %v2400 = vunpack.c.0.s8 %v2399
          %v2401 = vlaneseq
          %v2402 = vshrl.u32 %v2401, 7
          %v2403 = vsub.s32 %v2400, %v2402
          %v2404 = vrot.slane %v2397, %v2403
          %v2405 = vcombine.high %v2404, 0
          %v2408 = vpack.i.b16 %v2354, %v2329
          %v2409 = vshrl.u32 %v2329, 16
          %v2410 = vshrl.u32 %v2354, 16
          %v2411 = vpack.i.b16 %v2410, %v2409
          %v2414 = vpack.i.b16 %v2355, %v2330
          %v2415 = vshrl.u32 %v2330, 16
          %v2416 = vshrl.u32 %v2355, 16
          %v2417 = vpack.i.b16 %v2416, %v2415
          %v2420 = vpack.i.b16 %v2404, %v2379
          %v2421 = vshrl.u32 %v2379, 16
          %v2422 = vshrl.u32 %v2404, 16
          %v2423 = vpack.i.b16 %v2422, %v2421
          %v2426 = vpack.i.b16 %v2405, %v2380
          %v2427 = vshrl.u32 %v2380, 16
          %v2428 = vshrl.u32 %v2405, 16
          %v2429 = vpack.i.b16 %v2428, %v2427
          %v2430 = vunpack.c.l.b16 %v2408
          %v2431 = vunpack.c.l.b16 %v2420
          %v2432 = vpack.c.b16 %v2431, %v2430
          %v2435 = vsel %vm2181, %v2302, 0
          %2437 = vmatprep.subr.bf16.mxu0 0
          %2438 = vmatpush1.bf16.msra.mxu0 %v2432
          %2439 = vmatprep.subr.bf16.mxu0 0
          %2440 = vmatpush1.bf16.msra.mxu0 0
          %2441 = vmatprep.subr.bf16.mxu0 0
          %2442 = vmatpush1.bf16.msra.mxu0 0
          %2443 = vmatprep.subr.bf16.mxu0 0
          %2444 = vmatpush1.bf16.msra.mxu0 0
          %2445 = vmatprep.subr.bf16.mxu0 0
          %2446 = vmatpush1.bf16.msra.mxu0 0
          %2447 = vmatprep.subr.bf16.mxu0 0
          %2448 = vmatpush1.bf16.msra.mxu0 0
          %2449 = vmatprep.subr.bf16.mxu0 0
          %2450 = vmatpush1.bf16.msra.mxu0 0
          %2451 = vmatprep.subr.bf16.mxu0 0
          %2452 = vmatpush1.bf16.msra.mxu0 0
          %2453 = vmatprep.subr.bf16.mxu0 0
          %2454 = vmatpush1.bf16.msra.mxu0 0
          %2455 = vmatprep.subr.bf16.mxu0 0
          %2456 = vmatpush1.bf16.msra.mxu0 0
          %2457 = vmatprep.subr.bf16.mxu0 0
          %2458 = vmatpush1.bf16.msra.mxu0 0
          %2459 = vmatprep.subr.bf16.mxu0 0
          %2460 = vmatpush1.bf16.msra.mxu0 0
          %2461 = vmatprep.subr.bf16.mxu0 0
          %2462 = vmatpush1.bf16.msra.mxu0 0
          %2463 = vmatprep.subr.bf16.mxu0 0
          %2464 = vmatpush1.bf16.msra.mxu0 0
          %2465 = vmatprep.subr.bf16.mxu0 0
          %2466 = vmatpush1.bf16.msra.mxu0 0
          %2467 = vmatprep.subr.bf16.mxu0 0
          %2468 = vmatpush1.bf16.msra.mxu0 0
          %2469 = vmatprep.mubr.bf16.mxu0 0
          %2470 = vmatmul.mubr.bf16.gmra.mrb[0].mxu0 %v2435
          %v2471 = vpop.f32.mrb[0].mxu0
          %v2472 = vadd.f32 0.0, %v2471
          %v2473 = vpop.f32.mrb[0].mxu0
          %v2474 = vpop.f32.mrb[0].mxu0
          %v2475 = vadd.f32 0.0, %v2474
          %v2476 = vpop.f32.mrb[0].mxu0
          %2477 = vdwg.mxu0
          %v2478 = vunpack.c.l.b16 %v2411
          %v2479 = vunpack.c.l.b16 %v2423
          %v2480 = vpack.c.b16 %v2479, %v2478
          %v2483 = vsel %vm2181, %v2303, 0
          %2485 = vmatprep.subr.bf16.mxu0 0
          %2486 = vmatpush1.bf16.msra.mxu0 %v2480
          %2487 = vmatprep.subr.bf16.mxu0 0
          %2488 = vmatpush1.bf16.msra.mxu0 0
          %2489 = vmatprep.subr.bf16.mxu0 0
          %2490 = vmatpush1.bf16.msra.mxu0 0
          %2491 = vmatprep.subr.bf16.mxu0 0
          %2492 = vmatpush1.bf16.msra.mxu0 0
          %2493 = vmatprep.subr.bf16.mxu0 0
          %2494 = vmatpush1.bf16.msra.mxu0 0
          %2495 = vmatprep.subr.bf16.mxu0 0
          %2496 = vmatpush1.bf16.msra.mxu0 0
          %2497 = vmatprep.subr.bf16.mxu0 0
          %2498 = vmatpush1.bf16.msra.mxu0 0
          %2499 = vmatprep.subr.bf16.mxu0 0
          %2500 = vmatpush1.bf16.msra.mxu0 0
          %2501 = vmatprep.subr.bf16.mxu0 0
          %2502 = vmatpush1.bf16.msra.mxu0 0
          %2503 = vmatprep.subr.bf16.mxu0 0
          %2504 = vmatpush1.bf16.msra.mxu0 0
          %2505 = vmatprep.subr.bf16.mxu0 0
          %2506 = vmatpush1.bf16.msra.mxu0 0
          %2507 = vmatprep.subr.bf16.mxu0 0
          %2508 = vmatpush1.bf16.msra.mxu0 0
          %2509 = vmatprep.subr.bf16.mxu0 0
          %2510 = vmatpush1.bf16.msra.mxu0 0
          %2511 = vmatprep.subr.bf16.mxu0 0
          %2512 = vmatpush1.bf16.msra.mxu0 0
          %2513 = vmatprep.subr.bf16.mxu0 0
          %2514 = vmatpush1.bf16.msra.mxu0 0
          %2515 = vmatprep.subr.bf16.mxu0 0
          %2516 = vmatpush1.bf16.msra.mxu0 0
          %2517 = vmatprep.mubr.bf16.mxu0 0
          %2518 = vmatmul.mubr.bf16.gmra.mrb[0].mxu0 %v2483
          %v2519 = vpop.f32.mrb[0].mxu0
          %v2520 = vadd.f32 0.0, %v2519
          %v2521 = vpop.f32.mrb[0].mxu0
          %v2522 = vpop.f32.mrb[0].mxu0
          %v2523 = vadd.f32 0.0, %v2522
          %v2524 = vpop.f32.mrb[0].mxu0
          %2525 = vdwg.mxu0
          %v2526 = vunpack.c.l.b16 %v2414
          %v2527 = vunpack.c.l.b16 %v2426
          %v2528 = vpack.c.b16 %v2527, %v2526
          %v2531 = vsel %vm2181, %v2304, 0
          %2533 = vmatprep.subr.bf16.mxu0 0
          %2534 = vmatpush1.bf16.msra.mxu0 %v2528
          %2535 = vmatprep.subr.bf16.mxu0 0
          %2536 = vmatpush1.bf16.msra.mxu0 0
          %2537 = vmatprep.subr.bf16.mxu0 0
          %2538 = vmatpush1.bf16.msra.mxu0 0
          %2539 = vmatprep.subr.bf16.mxu0 0
          %2540 = vmatpush1.bf16.msra.mxu0 0
          %2541 = vmatprep.subr.bf16.mxu0 0
          %2542 = vmatpush1.bf16.msra.mxu0 0
          %2543 = vmatprep.subr.bf16.mxu0 0
          %2544 = vmatpush1.bf16.msra.mxu0 0
          %2545 = vmatprep.subr.bf16.mxu0 0
          %2546 = vmatpush1.bf16.msra.mxu0 0
          %2547 = vmatprep.subr.bf16.mxu0 0
          %2548 = vmatpush1.bf16.msra.mxu0 0
          %2549 = vmatprep.subr.bf16.mxu0 0
          %2550 = vmatpush1.bf16.msra.mxu0 0
          %2551 = vmatprep.subr.bf16.mxu0 0
          %2552 = vmatpush1.bf16.msra.mxu0 0
          %2553 = vmatprep.subr.bf16.mxu0 0
          %2554 = vmatpush1.bf16.msra.mxu0 0
          %2555 = vmatprep.subr.bf16.mxu0 0
          %2556 = vmatpush1.bf16.msra.mxu0 0
          %2557 = vmatprep.subr.bf16.mxu0 0
          %2558 = vmatpush1.bf16.msra.mxu0 0
          %2559 = vmatprep.subr.bf16.mxu0 0
          %2560 = vmatpush1.bf16.msra.mxu0 0
          %2561 = vmatprep.subr.bf16.mxu0 0
          %2562 = vmatpush1.bf16.msra.mxu0 0
          %2563 = vmatprep.subr.bf16.mxu0 0
          %2564 = vmatpush1.bf16.msra.mxu0 0
          %2565 = vmatprep.mubr.bf16.mxu0 0
          %2566 = vmatmul.mubr.bf16.gmra.mrb[0].mxu0 %v2531
          %v2567 = vpop.f32.mrb[0].mxu0
          %v2568 = vadd.f32 0.0, %v2567
          %v2569 = vpop.f32.mrb[0].mxu0
          %v2570 = vpop.f32.mrb[0].mxu0
          %v2571 = vadd.f32 0.0, %v2570
          %v2572 = vpop.f32.mrb[0].mxu0
          %2573 = vdwg.mxu0
          %v2574 = vunpack.c.l.b16 %v2417
          %v2575 = vunpack.c.l.b16 %v2429
          %v2576 = vpack.c.b16 %v2575, %v2574
          %v2579 = vsel %vm2181, %v2305, 0
          %2581 = vmatprep.subr.bf16.mxu0 0
          %2582 = vmatpush1.bf16.msra.mxu0 %v2576
          %2583 = vmatprep.subr.bf16.mxu0 0
          %2584 = vmatpush1.bf16.msra.mxu0 0
          %2585 = vmatprep.subr.bf16.mxu0 0
          %2586 = vmatpush1.bf16.msra.mxu0 0
          %2587 = vmatprep.subr.bf16.mxu0 0
          %2588 = vmatpush1.bf16.msra.mxu0 0
          %2589 = vmatprep.subr.bf16.mxu0 0
          %2590 = vmatpush1.bf16.msra.mxu0 0
          %2591 = vmatprep.subr.bf16.mxu0 0
          %2592 = vmatpush1.bf16.msra.mxu0 0
          %2593 = vmatprep.subr.bf16.mxu0 0
          %2594 = vmatpush1.bf16.msra.mxu0 0
          %2595 = vmatprep.subr.bf16.mxu0 0
          %2596 = vmatpush1.bf16.msra.mxu0 0
          %2597 = vmatprep.subr.bf16.mxu0 0
          %2598 = vmatpush1.bf16.msra.mxu0 0
          %2599 = vmatprep.subr.bf16.mxu0 0
          %2600 = vmatpush1.bf16.msra.mxu0 0
          %2601 = vmatprep.subr.bf16.mxu0 0
          %2602 = vmatpush1.bf16.msra.mxu0 0
          %2603 = vmatprep.subr.bf16.mxu0 0
          %2604 = vmatpush1.bf16.msra.mxu0 0
          %2605 = vmatprep.subr.bf16.mxu0 0
          %2606 = vmatpush1.bf16.msra.mxu0 0
          %2607 = vmatprep.subr.bf16.mxu0 0
          %2608 = vmatpush1.bf16.msra.mxu0 0
          %2609 = vmatprep.subr.bf16.mxu0 0
          %2610 = vmatpush1.bf16.msra.mxu0 0
          %2611 = vmatprep.subr.bf16.mxu0 0
          %2612 = vmatpush1.bf16.msra.mxu0 0
          %2613 = vmatprep.mubr.bf16.mxu0 0
          %2614 = vmatmul.mubr.bf16.gmra.mrb[0].mxu0 %v2579
          %v2615 = vpop.f32.mrb[0].mxu0
          %v2616 = vadd.f32 0.0, %v2615
          %v2617 = vpop.f32.mrb[0].mxu0
          %v2618 = vpop.f32.mrb[0].mxu0
          %v2619 = vadd.f32 0.0, %v2618
          %v2620 = vpop.f32.mrb[0].mxu0
          %2621 = vdwg.mxu0
          %v2622 = vmul.f32 %v2223, %v898
          %v2623 = vmul.f32 %v2225, %v899
          %v2624 = vmul.f32 %v2227, %v900
          %v2625 = vmul.f32 %v2229, %v901
          %v2626 = vmul.f32 %v2231, %v902
          %v2627 = vmul.f32 %v2233, %v903
          %v2628 = vmul.f32 %v2235, %v904
          %v2629 = vmul.f32 %v2237, %v905
          %v2630 = vadd.f32 %v2622, %v2472
          %v2631 = vadd.f32 %v2623, %v2475
          %v2632 = vadd.f32 %v2624, %v2520
          %v2633 = vadd.f32 %v2625, %v2523
          %v2634 = vadd.f32 %v2626, %v2568
          %v2635 = vadd.f32 %v2627, %v2571
          %v2636 = vadd.f32 %v2628, %v2616
          %v2637 = vadd.f32 %v2629, %v2619
        $region105: #{tpu_custom_call.1} parent=79 // loop_footer
          %s881 = sadd.s32 1, %s877
        $region106: #{tpu_custom_call.1} parent=79 // loop_footer_branch
          %876 = sbr.rel target = $region102
        $region107: #{tpu_custom_call.1} parent=79 // loop_exit
          _
        %v2638 = vrcp.pop %v890
        %v2639 = vrcp.pop %v891
        %v2640 = vrcp.pop %v892
        %v2641 = vrcp.pop %v893
        %v2642 = vrcp.pop %v894
        %v2643 = vrcp.pop %v895
        %v2644 = vrcp.pop %v896
        %v2645 = vrcp.pop %v897
        %v2646 = vmul.f32 %v898, %v2638
        %v2647 = vmul.f32 %v899, %v2639
        %v2648 = vmul.f32 %v900, %v2640
        %v2649 = vmul.f32 %v901, %v2641
        %v2650 = vmul.f32 %v902, %v2642
        %v2651 = vmul.f32 %v903, %v2643
        %v2652 = vmul.f32 %v904, %v2644
        %v2653 = vmul.f32 %v905, %v2645
        %v2654 = vcombine.low %v2646, %v2650
        %v2655 = vcombine.high %v2646, %v2650
        %v2657 = vunpack.c.l.s4 1983009808
        %v2658 = vunpack.c.0.s8 %v2657
        %v2659 = vlaneseq
        %v2660 = vshrl.u32 %v2659, 7
        %v2661 = vsub.s32 %v2658, %v2660
        %v2662 = vrot.slane %v2654, %v2661
        %v2664 = vunpack.c.l.s4 1983009808
        %v2665 = vunpack.c.0.s8 %v2664
        %v2666 = vlaneseq
        %v2667 = vshrl.u32 %v2666, 7
        %v2668 = vsub.s32 %v2665, %v2667
        %v2669 = vrot.slane %v2655, %v2668
        %v2670 = vcombine.low %v2648, %v2652
        %v2671 = vcombine.high %v2648, %v2652
        %v2673 = vunpack.c.l.s4 1983009808
        %v2674 = vunpack.c.0.s8 %v2673
        %v2675 = vlaneseq
        %v2676 = vshrl.u32 %v2675, 7
        %v2677 = vsub.s32 %v2674, %v2676
        %v2678 = vrot.slane %v2670, %v2677
        %v2680 = vunpack.c.l.s4 1983009808
        %v2681 = vunpack.c.0.s8 %v2680
        %v2682 = vlaneseq
        %v2683 = vshrl.u32 %v2682, 7
        %v2684 = vsub.s32 %v2681, %v2683
        %v2685 = vrot.slane %v2671, %v2684
        %v2686 = vcombine.low %v2662, %v2678
        %v2687 = vcombine.high %v2662, %v2678
        %v2689 = vunpack.c.l.s4 1934713408
        %v2690 = vunpack.c.0.s8 %v2689
        %v2691 = vlaneseq
        %v2692 = vshrl.u32 %v2691, 7
        %v2693 = vsub.s32 %v2690, %v2692
        %v2694 = vrot.slane %v2686, %v2693
        %v2696 = vunpack.c.l.s4 1934713408
        %v2697 = vunpack.c.0.s8 %v2696
        %v2698 = vlaneseq
        %v2699 = vshrl.u32 %v2698, 7
        %v2700 = vsub.s32 %v2697, %v2699
        %v2701 = vrot.slane %v2687, %v2700
        %v2702 = vcombine.low %v2669, %v2685
        %v2703 = vcombine.high %v2669, %v2685
        %v2705 = vunpack.c.l.s4 1934713408
        %v2706 = vunpack.c.0.s8 %v2705
        %v2707 = vlaneseq
        %v2708 = vshrl.u32 %v2707, 7
        %v2709 = vsub.s32 %v2706, %v2708
        %v2710 = vrot.slane %v2702, %v2709
        %v2712 = vunpack.c.l.s4 1934713408
        %v2713 = vunpack.c.0.s8 %v2712
        %v2714 = vlaneseq
        %v2715 = vshrl.u32 %v2714, 7
        %v2716 = vsub.s32 %v2713, %v2715
        %v2717 = vrot.slane %v2703, %v2716
        %v2718 = vcombine.high %v2694, 0.0
        %v2719 = vcombine.high %v2701, 0.0
        %v2720 = vcombine.high %v2710, 0.0
        %v2721 = vcombine.high %v2717, 0.0
        %v2722 = vcombine.low %v2647, %v2651
        %v2723 = vcombine.high %v2647, %v2651
        %v2725 = vunpack.c.l.s4 1983009808
        %v2726 = vunpack.c.0.s8 %v2725
        %v2727 = vlaneseq
        %v2728 = vshrl.u32 %v2727, 7
        %v2729 = vsub.s32 %v2726, %v2728
        %v2730 = vrot.slane %v2722, %v2729
        %v2732 = vunpack.c.l.s4 1983009808
        %v2733 = vunpack.c.0.s8 %v2732
        %v2734 = vlaneseq
        %v2735 = vshrl.u32 %v2734, 7
        %v2736 = vsub.s32 %v2733, %v2735
        %v2737 = vrot.slane %v2723, %v2736
        %v2738 = vcombine.low %v2649, %v2653
        %v2739 = vcombine.high %v2649, %v2653
        %v2741 = vunpack.c.l.s4 1983009808
        %v2742 = vunpack.c.0.s8 %v2741
        %v2743 = vlaneseq
        %v2744 = vshrl.u32 %v2743, 7
        %v2745 = vsub.s32 %v2742, %v2744
        %v2746 = vrot.slane %v2738, %v2745
        %v2748 = vunpack.c.l.s4 1983009808
        %v2749 = vunpack.c.0.s8 %v2748
        %v2750 = vlaneseq
        %v2751 = vshrl.u32 %v2750, 7
        %v2752 = vsub.s32 %v2749, %v2751
        %v2753 = vrot.slane %v2739, %v2752
        %v2754 = vcombine.low %v2730, %v2746
        %v2755 = vcombine.high %v2730, %v2746
        %v2757 = vunpack.c.l.s4 1934713408
        %v2758 = vunpack.c.0.s8 %v2757
        %v2759 = vlaneseq
        %v2760 = vshrl.u32 %v2759, 7
        %v2761 = vsub.s32 %v2758, %v2760
        %v2762 = vrot.slane %v2754, %v2761
        %v2764 = vunpack.c.l.s4 1934713408
        %v2765 = vunpack.c.0.s8 %v2764
        %v2766 = vlaneseq
        %v2767 = vshrl.u32 %v2766, 7
        %v2768 = vsub.s32 %v2765, %v2767
        %v2769 = vrot.slane %v2755, %v2768
        %v2770 = vcombine.low %v2737, %v2753
        %v2771 = vcombine.high %v2737, %v2753
        %v2773 = vunpack.c.l.s4 1934713408
        %v2774 = vunpack.c.0.s8 %v2773
        %v2775 = vlaneseq
        %v2776 = vshrl.u32 %v2775, 7
        %v2777 = vsub.s32 %v2774, %v2776
        %v2778 = vrot.slane %v2770, %v2777
        %v2780 = vunpack.c.l.s4 1934713408
        %v2781 = vunpack.c.0.s8 %v2780
        %v2782 = vlaneseq
        %v2783 = vshrl.u32 %v2782, 7
        %v2784 = vsub.s32 %v2781, %v2783
        %v2785 = vrot.slane %v2771, %v2784
        %v2786 = vcombine.high %v2762, 0.0
        %v2787 = vcombine.high %v2769, 0.0
        %v2788 = vcombine.high %v2778, 0.0
        %v2789 = vcombine.high %v2785, 0.0
        %v2790 = vcombine.low %v2694, %v2701
        %v2792 = vunpack.c.l.s4 1983009808
        %v2793 = vunpack.c.0.s8 %v2792
        %v2794 = vlaneseq
        %v2795 = vshrl.u32 %v2794, 7
        %v2796 = vsub.s32 %v2793, %v2795
        %v2797 = vrot.slane %v2790, %v2796
        %v2798 = vcombine.low %v2718, %v2719
        %v2800 = vunpack.c.l.s4 1983009808
        %v2801 = vunpack.c.0.s8 %v2800
        %v2802 = vlaneseq
        %v2803 = vshrl.u32 %v2802, 7
        %v2804 = vsub.s32 %v2801, %v2803
        %v2805 = vrot.slane %v2798, %v2804
        %v2806 = vcombine.low %v2710, %v2717
        %v2808 = vunpack.c.l.s4 1983009808
        %v2809 = vunpack.c.0.s8 %v2808
        %v2810 = vlaneseq
        %v2811 = vshrl.u32 %v2810, 7
        %v2812 = vsub.s32 %v2809, %v2811
        %v2813 = vrot.slane %v2806, %v2812
        %v2814 = vcombine.low %v2720, %v2721
        %v2816 = vunpack.c.l.s4 1983009808
        %v2817 = vunpack.c.0.s8 %v2816
        %v2818 = vlaneseq
        %v2819 = vshrl.u32 %v2818, 7
        %v2820 = vsub.s32 %v2817, %v2819
        %v2821 = vrot.slane %v2814, %v2820
        %v2822 = vcombine.low %v2797, %v2805
        %v2823 = vcombine.high %v2797, %v2805
        %v2825 = vunpack.c.l.s4 1934713408
        %v2826 = vunpack.c.0.s8 %v2825
        %v2827 = vlaneseq
        %v2828 = vshrl.u32 %v2827, 7
        %v2829 = vsub.s32 %v2826, %v2828
        %v2830 = vrot.slane %v2822, %v2829
        %v2832 = vunpack.c.l.s4 1934713408
        %v2833 = vunpack.c.0.s8 %v2832
        %v2834 = vlaneseq
        %v2835 = vshrl.u32 %v2834, 7
        %v2836 = vsub.s32 %v2833, %v2835
        %v2837 = vrot.slane %v2823, %v2836
        %v2838 = vcombine.low %v2813, %v2821
        %v2839 = vcombine.high %v2813, %v2821
        %v2841 = vunpack.c.l.s4 1934713408
        %v2842 = vunpack.c.0.s8 %v2841
        %v2843 = vlaneseq
        %v2844 = vshrl.u32 %v2843, 7
        %v2845 = vsub.s32 %v2842, %v2844
        %v2846 = vrot.slane %v2838, %v2845
        %v2848 = vunpack.c.l.s4 1934713408
        %v2849 = vunpack.c.0.s8 %v2848
        %v2850 = vlaneseq
        %v2851 = vshrl.u32 %v2850, 7
        %v2852 = vsub.s32 %v2849, %v2851
        %v2853 = vrot.slane %v2839, %v2852
        %v2854 = vcombine.low %v2830, %v2846
        %v2855 = vcombine.high %v2830, %v2846
        %v2856 = vcombine.low %v2837, %v2853
        %v2857 = vcombine.high %v2837, %v2853
        %v2858 = vcombine.low %v2762, %v2769
        %v2860 = vunpack.c.l.s4 1983009808
        %v2861 = vunpack.c.0.s8 %v2860
        %v2862 = vlaneseq
        %v2863 = vshrl.u32 %v2862, 7
        %v2864 = vsub.s32 %v2861, %v2863
        %v2865 = vrot.slane %v2858, %v2864
        %v2866 = vcombine.low %v2786, %v2787
        %v2868 = vunpack.c.l.s4 1983009808
        %v2869 = vunpack.c.0.s8 %v2868
        %v2870 = vlaneseq
        %v2871 = vshrl.u32 %v2870, 7
        %v2872 = vsub.s32 %v2869, %v2871
        %v2873 = vrot.slane %v2866, %v2872
        %v2874 = vcombine.low %v2778, %v2785
        %v2876 = vunpack.c.l.s4 1983009808
        %v2877 = vunpack.c.0.s8 %v2876
        %v2878 = vlaneseq
        %v2879 = vshrl.u32 %v2878, 7
        %v2880 = vsub.s32 %v2877, %v2879
        %v2881 = vrot.slane %v2874, %v2880
        %v2882 = vcombine.low %v2788, %v2789
        %v2884 = vunpack.c.l.s4 1983009808
        %v2885 = vunpack.c.0.s8 %v2884
        %v2886 = vlaneseq
        %v2887 = vshrl.u32 %v2886, 7
        %v2888 = vsub.s32 %v2885, %v2887
        %v2889 = vrot.slane %v2882, %v2888
        %v2890 = vcombine.low %v2865, %v2873
        %v2891 = vcombine.high %v2865, %v2873
        %v2893 = vunpack.c.l.s4 1934713408
        %v2894 = vunpack.c.0.s8 %v2893
        %v2895 = vlaneseq
        %v2896 = vshrl.u32 %v2895, 7
        %v2897 = vsub.s32 %v2894, %v2896
        %v2898 = vrot.slane %v2890, %v2897
        %v2900 = vunpack.c.l.s4 1934713408
        %v2901 = vunpack.c.0.s8 %v2900
        %v2902 = vlaneseq
        %v2903 = vshrl.u32 %v2902, 7
        %v2904 = vsub.s32 %v2901, %v2903
        %v2905 = vrot.slane %v2891, %v2904
        %v2906 = vcombine.low %v2881, %v2889
        %v2907 = vcombine.high %v2881, %v2889
        %v2909 = vunpack.c.l.s4 1934713408
        %v2910 = vunpack.c.0.s8 %v2909
        %v2911 = vlaneseq
        %v2912 = vshrl.u32 %v2911, 7
        %v2913 = vsub.s32 %v2910, %v2912
        %v2914 = vrot.slane %v2906, %v2913
        %v2916 = vunpack.c.l.s4 1934713408
        %v2917 = vunpack.c.0.s8 %v2916
        %v2918 = vlaneseq
        %v2919 = vshrl.u32 %v2918, 7
        %v2920 = vsub.s32 %v2917, %v2919
        %v2921 = vrot.slane %v2907, %v2920
        %v2922 = vcombine.low %v2898, %v2914
        %v2923 = vcombine.high %v2898, %v2914
        %v2924 = vcombine.low %v2905, %v2921
        %v2925 = vcombine.high %v2905, %v2921
        %2928 = vrot.lane.b32.xlu0 %v2855, 8
        %v2929 = vpop.permute.xlu0 %2928
        %2930 = vrot.lane.b32.xlu0 %v2923, 8
        %v2931 = vpop.permute.xlu0 %2930
        %2936 = vrot.lane.b32.xlu0 %v2856, 16
        %v2937 = vpop.permute.xlu0 %2936
        %2938 = vrot.lane.b32.xlu0 %v2924, 16
        %v2939 = vpop.permute.xlu0 %2938
        %2944 = vrot.lane.b32.xlu0 %v2857, 24
        %v2945 = vpop.permute.xlu0 %2944
        %2946 = vrot.lane.b32.xlu0 %v2925, 24
        %v2947 = vpop.permute.xlu0 %2946
        %vm2950 = vcmask 64512
        %v2951 = vsel %vm2950, %v2854, %v2929
        %v2952 = vsel %vm2950, %v2922, %v2931
        %vm2953 = vcmask 130048
        %v2954 = vsel %vm2953, %v2951, %v2937
        %v2955 = vsel %vm2953, %v2952, %v2939
        %vm2956 = vcmask 195584
        %v2957 = vsel %vm2956, %v2954, %v2945
        %v2958 = vsel %vm2956, %v2955, %v2947
        %v2959 = vpack.c.bf16 %v2958, %v2957
        %v2960 = vld [vmem:[#allocation7] sm:$0xf]
        %v2961 = vld [vmem:[#allocation7 + $0x4] sm:$0xf]
        %v2962 = vld [vmem:[#allocation7 + $0x8] sm:$0xf]
        %v2963 = vld [vmem:[#allocation7 + $0xc] sm:$0xf]
        %v2964 = vld [vmem:[%s6] sm:$0x1]
        %v2966 = vlaneseq
        %v2967 = vshrl.u32 %v2966, 7
        %v2968 = vsub.s32 0, %v2967
        %v2969 = vrot.slane %v2964, %v2968
        %v2975 = vunpack.c.l.b16 %v2960
        %v2976 = vunpack.c.l.b16 %v2961
        %v2977 = vunpack.c.l.b16 %v2962
        %v2978 = vunpack.c.l.b16 %v2963
        %v2979 = vpack.c.b16 %v2976, %v2975
        %v2980 = vpack.c.b16 %v2978, %v2977
        %v2984 = vsel %vm659, %v2959, 0
        %2986 = vmatprep.subr.bf16.mxu0 0
        %2987 = vmatpush1.bf16.msra.mxu0 %v2979
        %2988 = vmatprep.subr.bf16.mxu0 0
        %2989 = vmatpush1.bf16.msra.mxu0 %v2980
        %2990 = vmatprep.subr.bf16.mxu0 0
        %2991 = vmatpush1.bf16.msra.mxu0 0
        %2992 = vmatprep.subr.bf16.mxu0 0
        %2993 = vmatpush1.bf16.msra.mxu0 0
        %2994 = vmatprep.subr.bf16.mxu0 0
        %2995 = vmatpush1.bf16.msra.mxu0 0
        %2996 = vmatprep.subr.bf16.mxu0 0
        %2997 = vmatpush1.bf16.msra.mxu0 0
        %2998 = vmatprep.subr.bf16.mxu0 0
        %2999 = vmatpush1.bf16.msra.mxu0 0
        %3000 = vmatprep.subr.bf16.mxu0 0
        %3001 = vmatpush1.bf16.msra.mxu0 0
        %3002 = vmatprep.subr.bf16.mxu0 0
        %3003 = vmatpush1.bf16.msra.mxu0 0
        %3004 = vmatprep.subr.bf16.mxu0 0
        %3005 = vmatpush1.bf16.msra.mxu0 0
        %3006 = vmatprep.subr.bf16.mxu0 0
        %3007 = vmatpush1.bf16.msra.mxu0 0
        %3008 = vmatprep.subr.bf16.mxu0 0
        %3009 = vmatpush1.bf16.msra.mxu0 0
        %3010 = vmatprep.subr.bf16.mxu0 0
        %3011 = vmatpush1.bf16.msra.mxu0 0
        %3012 = vmatprep.subr.bf16.mxu0 0
        %3013 = vmatpush1.bf16.msra.mxu0 0
        %3014 = vmatprep.subr.bf16.mxu0 0
        %3015 = vmatpush1.bf16.msra.mxu0 0
        %3016 = vmatprep.subr.bf16.mxu0 0
        %3017 = vmatpush1.bf16.msra.mxu0 0
        %3018 = vmatprep.mubr.bf16.mxu0 0
        %3019 = vmatmul.mubr.bf16.gmra.mrb[0].mxu0 %v2984
        %v3020 = vpop.f32.mrb[0].mxu0
        %v3021 = vadd.f32 %v2969, %v3020
        %v3022 = vpop.f32.mrb[0].mxu0
        %v3023 = vpop.f32.mrb[0].mxu0
        %v3024 = vadd.f32 %v2969, %v3023
        %v3025 = vpop.f32.mrb[0].mxu0
        %3026 = vdwg.mxu0
        %v3027 = vadd.f32 %v633, %v3021
        %v3028 = vadd.f32 %v634, %v3024
        %v3029 = vld [vmem:[#allocation8] sm:$0x1]
        %v3030 = vld [vmem:[#allocation10] sm:$0x1]
        %v3031 = vsel %vm659, %v3027, 0.0
        %3032 = vadd.xlane.f32.xlu0 %v3031
        %v3033 = vpop.xlane.xlu0 %3032
        %v3034 = vsel %vm659, %v3028, 0.0
        %3035 = vadd.xlane.f32.xlu0 %v3034
        %v3036 = vpop.xlane.xlu0 %3035
        %v3037 = vrcp.pop 32.0
        %v3038 = vmul.f32 %v3033, %v3037
        %v3039 = vmul.f32 %v3036, %v3037
        %v3040 = vsub.f32 %v3027, %v3038
        %v3041 = vsub.f32 %v3028, %v3039
        %v3042 = vmul.f32 %v3040, %v3040
        %v3043 = vmul.f32 %v3041, %v3041
        %v3044 = vsel %vm659, %v3042, 0.0
        %3045 = vadd.xlane.f32.xlu0 %v3044
        %v3046 = vpop.xlane.xlu0 %3045
        %v3047 = vsel %vm659, %v3043, 0.0
        %3048 = vadd.xlane.f32.xlu0 %v3047
        %v3049 = vpop.xlane.xlu0 %3048
        %v3050 = vmul.f32 %v3046, %v3037
        %v3051 = vmul.f32 %v3049, %v3037
        %v3052 = vadd.f32 %v3050, 1e-05
        %v3053 = vadd.f32 %v3051, 1e-05
        %v3054 = vrsqrt.pop %v3052
        %v3055 = vrsqrt.pop %v3053
        %v3056 = vmul.f32 %v3040, %v3054
        %v3057 = vmul.f32 %v3041, %v3055
        %v3059 = vlaneseq
        %v3060 = vshrl.u32 %v3059, 7
        %v3061 = vsub.s32 0, %v3060
        %v3062 = vrot.slane %v3029, %v3061
        %v3064 = vmul.f32 %v3056, %v3062
        %v3065 = vmul.f32 %v3057, %v3062
        %v3067 = vlaneseq
        %v3068 = vshrl.u32 %v3067, 7
        %v3069 = vsub.s32 0, %v3068
        %v3070 = vrot.slane %v3030, %v3069
        %v3072 = vadd.f32 %v3064, %v3070
        %v3073 = vadd.f32 %v3065, %v3070
        %v3074 = vpack.c.bf16 %v3073, %v3072
        %v3075 = vld [vmem:[%s9] sm:$0xf]
        %v3076 = vld [vmem:[%s9 + $0x4] sm:$0xf]
        %v3077 = vld [vmem:[%s9 + $0x8] sm:$0xf]
        %v3078 = vld [vmem:[%s9 + $0xc] sm:$0xf]
        %v3079 = vld [vmem:[%s10] sm:$0x1]
        %v3081 = vlaneseq
        %v3082 = vshrl.u32 %v3081, 7
        %v3083 = vsub.s32 0, %v3082
        %v3084 = vrot.slane %v3079, %v3083
        %v3090 = vunpack.c.l.b16 %v3075
        %v3091 = vunpack.c.l.b16 %v3076
        %v3092 = vunpack.c.l.b16 %v3077
        %v3093 = vunpack.c.l.b16 %v3078
        %v3094 = vpack.c.b16 %v3091, %v3090
        %v3095 = vpack.c.b16 %v3093, %v3092
        %v3099 = vsel %vm659, %v3074, 0
        %3101 = vmatprep.subr.bf16.mxu0 0
        %3102 = vmatpush1.bf16.msra.mxu0 %v3094
        %3103 = vmatprep.subr.bf16.mxu0 0
        %3104 = vmatpush1.bf16.msra.mxu0 %v3095
        %3105 = vmatprep.subr.bf16.mxu0 0
        %3106 = vmatpush1.bf16.msra.mxu0 0
        %3107 = vmatprep.subr.bf16.mxu0 0
        %3108 = vmatpush1.bf16.msra.mxu0 0
        %3109 = vmatprep.subr.bf16.mxu0 0
        %3110 = vmatpush1.bf16.msra.mxu0 0
        %3111 = vmatprep.subr.bf16.mxu0 0
        %3112 = vmatpush1.bf16.msra.mxu0 0
        %3113 = vmatprep.subr.bf16.mxu0 0
        %3114 = vmatpush1.bf16.msra.mxu0 0
        %3115 = vmatprep.subr.bf16.mxu0 0
        %3116 = vmatpush1.bf16.msra.mxu0 0
        %3117 = vmatprep.subr.bf16.mxu0 0
        %3118 = vmatpush1.bf16.msra.mxu0 0
        %3119 = vmatprep.subr.bf16.mxu0 0
        %3120 = vmatpush1.bf16.msra.mxu0 0
        %3121 = vmatprep.subr.bf16.mxu0 0
        %3122 = vmatpush1.bf16.msra.mxu0 0
        %3123 = vmatprep.subr.bf16.mxu0 0
        %3124 = vmatpush1.bf16.msra.mxu0 0
        %3125 = vmatprep.subr.bf16.mxu0 0
        %3126 = vmatpush1.bf16.msra.mxu0 0
        %3127 = vmatprep.subr.bf16.mxu0 0
        %3128 = vmatpush1.bf16.msra.mxu0 0
        %3129 = vmatprep.subr.bf16.mxu0 0
        %3130 = vmatpush1.bf16.msra.mxu0 0
        %3131 = vmatprep.subr.bf16.mxu0 0
        %3132 = vmatpush1.bf16.msra.mxu0 0
        %3133 = vmatprep.mubr.bf16.mxu0 0
        %3134 = vmatmul.mubr.bf16.gmra.mrb[0].mxu0 %v3099
        %v3135 = vpop.f32.mrb[0].mxu0
        %v3136 = vadd.f32 %v3084, %v3135
        %v3137 = vpop.f32.mrb[0].mxu0
        %v3138 = vpop.f32.mrb[0].mxu0
        %v3139 = vadd.f32 %v3084, %v3138
        %v3140 = vpop.f32.mrb[0].mxu0
        %3141 = vdwg.mxu0
        %v3142 = vmax.f32 %v3136, 0.0
        %v3143 = vmax.f32 %v3139, 0.0
        %v3144 = vpack.c.bf16 %v3143, %v3142
        %v3145 = vld [vmem:[%s11] sm:$0xf]
        %v3146 = vld [vmem:[%s11 + $0x4] sm:$0xf]
        %v3147 = vld [vmem:[%s11 + $0x8] sm:$0xf]
        %v3148 = vld [vmem:[%s11 + $0xc] sm:$0xf]
        %v3149 = vld [vmem:[%s11 + $0x10] sm:$0xf]
        %v3150 = vld [vmem:[%s11 + $0x14] sm:$0xf]
        %v3151 = vld [vmem:[%s11 + $0x18] sm:$0xf]
        %v3152 = vld [vmem:[%s11 + $0x1c] sm:$0xf]
        %v3153 = vld [vmem:[%s12] sm:$0x1]
        %v3155 = vlaneseq
        %v3156 = vshrl.u32 %v3155, 7
        %v3157 = vsub.s32 0, %v3156
        %v3158 = vrot.slane %v3153, %v3157
        %v3168 = vunpack.c.l.b16 %v3145
        %v3169 = vunpack.c.l.b16 %v3146
        %v3170 = vunpack.c.l.b16 %v3147
        %v3171 = vunpack.c.l.b16 %v3148
        %v3172 = vunpack.c.l.b16 %v3149
        %v3173 = vunpack.c.l.b16 %v3150
        %v3174 = vunpack.c.l.b16 %v3151
        %v3175 = vunpack.c.l.b16 %v3152
        %v3176 = vpack.c.b16 %v3169, %v3168
        %v3177 = vpack.c.b16 %v3171, %v3170
        %v3178 = vpack.c.b16 %v3173, %v3172
        %v3179 = vpack.c.b16 %v3175, %v3174
        %vm3184 = vcmask 523264
        %v3186 = vsel %vm3184, %v3144, 0
        %3188 = vmatprep.subr.bf16.mxu0 0
        %3189 = vmatpush1.bf16.msra.mxu0 %v3176
        %3190 = vmatprep.subr.bf16.mxu0 0
        %3191 = vmatpush1.bf16.msra.mxu0 %v3177
        %3192 = vmatprep.subr.bf16.mxu0 0
        %3193 = vmatpush1.bf16.msra.mxu0 %v3178
        %3194 = vmatprep.subr.bf16.mxu0 0
        %3195 = vmatpush1.bf16.msra.mxu0 %v3179
        %3196 = vmatprep.subr.bf16.mxu0 0
        %3197 = vmatpush1.bf16.msra.mxu0 0
        %3198 = vmatprep.subr.bf16.mxu0 0
        %3199 = vmatpush1.bf16.msra.mxu0 0
        %3200 = vmatprep.subr.bf16.mxu0 0
        %3201 = vmatpush1.bf16.msra.mxu0 0
        %3202 = vmatprep.subr.bf16.mxu0 0
        %3203 = vmatpush1.bf16.msra.mxu0 0
        %3204 = vmatprep.subr.bf16.mxu0 0
        %3205 = vmatpush1.bf16.msra.mxu0 0
        %3206 = vmatprep.subr.bf16.mxu0 0
        %3207 = vmatpush1.bf16.msra.mxu0 0
        %3208 = vmatprep.subr.bf16.mxu0 0
        %3209 = vmatpush1.bf16.msra.mxu0 0
        %3210 = vmatprep.subr.bf16.mxu0 0
        %3211 = vmatpush1.bf16.msra.mxu0 0
        %3212 = vmatprep.subr.bf16.mxu0 0
        %3213 = vmatpush1.bf16.msra.mxu0 0
        %3214 = vmatprep.subr.bf16.mxu0 0
        %3215 = vmatpush1.bf16.msra.mxu0 0
        %3216 = vmatprep.subr.bf16.mxu0 0
        %3217 = vmatpush1.bf16.msra.mxu0 0
        %3218 = vmatprep.subr.bf16.mxu0 0
        %3219 = vmatpush1.bf16.msra.mxu0 0
        %3220 = vmatprep.mubr.bf16.mxu0 0
        %3221 = vmatmul.mubr.bf16.gmra.mrb[0].mxu0 %v3186
        %v3222 = vpop.f32.mrb[0].mxu0
        %v3223 = vadd.f32 %v3158, %v3222
        %v3224 = vpop.f32.mrb[0].mxu0
        %v3225 = vpop.f32.mrb[0].mxu0
        %v3226 = vadd.f32 %v3158, %v3225
        %v3227 = vpop.f32.mrb[0].mxu0
        %3228 = vdwg.mxu0
        %v3229 = vadd.f32 %v3072, %v3223
        %v3230 = vadd.f32 %v3073, %v3226
        %v3231 = vld [vmem:[%s13] sm:$0x1]
        %v3232 = vld [vmem:[%s14] sm:$0x1]
        %v3233 = vsel %vm659, %v3229, 0.0
        %3234 = vadd.xlane.f32.xlu0 %v3233
        %v3235 = vpop.xlane.xlu0 %3234
        %v3236 = vsel %vm659, %v3230, 0.0
        %3237 = vadd.xlane.f32.xlu0 %v3236
        %v3238 = vpop.xlane.xlu0 %3237
        %v3239 = vmul.f32 %v3235, %v3037
        %v3240 = vmul.f32 %v3238, %v3037
        %v3241 = vsub.f32 %v3229, %v3239
        %v3242 = vsub.f32 %v3230, %v3240
        %v3243 = vmul.f32 %v3241, %v3241
        %v3244 = vmul.f32 %v3242, %v3242
        %v3245 = vsel %vm659, %v3243, 0.0
        %3246 = vadd.xlane.f32.xlu0 %v3245
        %v3247 = vpop.xlane.xlu0 %3246
        %v3248 = vsel %vm659, %v3244, 0.0
        %3249 = vadd.xlane.f32.xlu0 %v3248
        %v3250 = vpop.xlane.xlu0 %3249
        %v3251 = vmul.f32 %v3247, %v3037
        %v3252 = vmul.f32 %v3250, %v3037
        %v3253 = vadd.f32 %v3251, 1e-05
        %v3254 = vadd.f32 %v3252, 1e-05
        %v3255 = vrsqrt.pop %v3253
        %v3256 = vrsqrt.pop %v3254
        %v3257 = vmul.f32 %v3241, %v3255
        %v3258 = vmul.f32 %v3242, %v3256
        %v3260 = vlaneseq
        %v3261 = vshrl.u32 %v3260, 7
        %v3262 = vsub.s32 0, %v3261
        %v3263 = vrot.slane %v3231, %v3262
        %v3265 = vmul.f32 %v3257, %v3263
        %v3266 = vmul.f32 %v3258, %v3263
        %v3268 = vlaneseq
        %v3269 = vshrl.u32 %v3268, 7
        %v3270 = vsub.s32 0, %v3269
        %v3271 = vrot.slane %v3232, %v3270
        %v3273 = vadd.f32 %v3265, %v3271
        %v3274 = vadd.f32 %v3266, %v3271
        %3275 = vst.msk [vmem:[%s624] sm:$0xff] %vm659, %v3273
        %3276 = vst.msk [vmem:[%s624 + $0x8] sm:$0xff] %vm659, %v3274
        %s3277 = sand.u32 %s390, 1
        %s3278 = scalar_lea.sflag [#allocation4], %s3277
        %s3279 = sand.u32 %s390, 1
        %s3280 = smul.addr %s3279, 16
        %s3281 = scalar_lea.vmem [#allocation11], %s3280
        // Predicated region
        $region108: #{tpu_custom_call.1} parent=79 // pred_check
          %p3282 = pneg %p400
        $region109: #{tpu_custom_call.1} parent=79 // pred_check_branch
          %3284 = sbr.rel (%p3282) target = $region111
        $region110: #{tpu_custom_call.1} parent=79 // pred_region
          %s3285 = smul.u32 2, %s41
          %s3287 = ssub.s32 256, 256
          %3288 = vsyncadd %s3278, %s3287
          %s3289 = smul.addr %s40, 4
          %s3290 = sadd.s32 %s3285, %s3289
          %s3291 = smul.addr %s3290, 128
          %s3292 = scalar_lea.hbm %s15, %s3291
          %s3293 = sshll.u32 %s3281, 4
          %s3294 = int_to_ptr.vmem [resolvable:$true] %s3293
          %3299 = dma.vmem_to_hbm [thread:$0]  %s3294, 256, %s3292, %s3278, 128, 128, 8
        $region111: #{tpu_custom_call.1} parent=79 // pred_fallthru
          _
      $region80: #{tpu_custom_call.1} parent=5 // pred_fallthru
        _
      %p3300 = scmp.le.s32.totalorder 2, %s31
      // Predicated region
      $region112: #{tpu_custom_call.1} parent=5 // pred_check
        %p3301 = pneg %p3300
      $region113: #{tpu_custom_call.1} parent=5 // pred_check_branch
        %3303 = sbr.rel (%p3301) target = $region115
      $region114: #{tpu_custom_call.1} parent=5 // pred_region
        %s3304 = ssub.s32 %s31, 2
        // Predicated region
        $region116: #{tpu_custom_call.1} parent=114 // pred_check
          %p3305 = pneg %p406
        $region117: #{tpu_custom_call.1} parent=114 // pred_check_branch
          %3307 = sbr.rel (%p3305) target = $region119
        $region118: #{tpu_custom_call.1} parent=114 // pred_region
          %s3308 = sand.u32 %s391, 1
          %s3309 = scalar_lea.sflag [#allocation4], %s3308
          %s3310 = sand.u32 %s391, 1
          %s3311 = smul.addr %s3310, 16
          %s3312 = scalar_lea.vmem [#allocation11], %s3311
          %3313 = dma.done %s3309, 256
        $region119: #{tpu_custom_call.1} parent=114 // pred_fallthru
          _
      $region115: #{tpu_custom_call.1} parent=5 // pred_fallthru
        _
    $region6: #{tpu_custom_call.1} parent=1 // loop_footer
      %s35 = sadd.s32 1, %s31
    $region7: #{tpu_custom_call.1} parent=1 // loop_footer_branch
      %30 = sbr.rel target = $region3
    $region8: #{tpu_custom_call.1} parent=1 // loop_exit
      _
    %3314 = vsyncpa [#allocation3], 1
    %s3315 = scalar_lea.sflag [#allocation3], 1
    %3316 = vsyncpa %s3315, 1
    %3317 = vsyncpa [#allocation6], 1
    %s3318 = scalar_lea.sflag [#allocation6], 1
    %3319 = vsyncpa %s3318, 1
    %3320 = vsyncpa [#allocation9], 1
    %3321 = vsyncpa [#allocation4], 1
    %s3322 = scalar_lea.sflag [#allocation4], 1
    %3323 = vsyncpa %s3322, 1

</llo_original>
